<compile_context>
chip_gen: v5e
topology: v5e:2x2
jax: 0.10.0
libtpu: 0.0.40
codegen_flags: <defaults>
</compile_context>

<pallas_src>
import functools

import jax
import jax.numpy as jnp
from jax import lax
from jax.experimental import pallas as pl
from jax.experimental.pallas import tpu as pltpu

_LANE = 128
_SQRT_HALF = 0.7071067811865476


def _round_up(x, m):
    return ((x + m - 1) // m) * m


def _conv_block_kernel(x_ref, w1_ref, b1_ref, g1_ref, t1_ref,
                       w2_ref, b2_ref, g2_ref, t2_ref, o_ref,
                       xpad_ref, hpad_ref,
                       *, H, W, Cin, Cout, Cpi, Cpo):
    """Fused: 2x (3x3 conv pad=1 zeros -> GroupNorm(groups=1) -> exact GELU).

    x_ref   : (1, H, W, Cin)   natural-channel input block (one sample)
    w1_ref  : (9*Cpi, Cpo)     im2col weights, row order (ky, kx, cin)
    w2_ref  : (9*Cpo, Cpo)
    b*_ref  : (1, Cpo)         conv bias   (zero in padded lanes)
    g*_ref  : (1, Cpo)         GN gamma    (zero in padded lanes)
    t*_ref  : (1, Cpo)         GN beta     (zero in padded lanes)
    o_ref   : (1, H, W, Cpo)   lane-dense output block
    xpad_ref: (H+2, W+2, Cpi)  VMEM scratch (zero-padded layer-1 input)
    hpad_ref: (H+2, W+2, Cpo)  VMEM scratch (zero-padded layer-2 input)
    """
    # GroupNorm stats are over the REAL channels only. Padded output lanes of
    # the conv are exactly zero (zero weight columns + zero bias), so whole
    # tile sums equal sums over the real channels; just divide by the real
    # element count.
    inv_count = jnp.float32(1.0 / float(H * W * Cout))

    def conv_gn_gelu(pad_ref, cp, w_ref, b_ref, g_ref, t_ref):
        # im2col: build the (H*W, 9*cp) patch matrix once -> one MXU matmul.
        cols = []
        for ky in range(3):
            for kx in range(3):
                cols.append(pad_ref[ky:ky + H, kx:kx + W, :].reshape(H * W, cp))
        patches = jnp.concatenate(cols, axis=-1)               # (H*W, 9*cp)
        acc = jnp.dot(patches, w_ref[...],
                      preferred_element_type=jnp.float32)      # (H*W, Cpo)
        acc = acc + b_ref[0].astype(jnp.float32)[None, :]

        # GroupNorm(num_groups=1): one-pass mean / variance, folded affine.
        mean = jnp.sum(acc) * inv_count
        var = jnp.sum(acc * acc) * inv_count - mean * mean
        inv = lax.rsqrt(var + 1e-5)
        scale = g_ref[0].astype(jnp.float32) * inv             # (Cpo,)
        shift = t_ref[0].astype(jnp.float32) - mean * scale    # (Cpo,)
        y = acc * scale[None, :] + shift[None, :]

        # Exact GELU: 0.5 * x * (1 + erf(x / sqrt(2))) (torch.nn.GELU default).
        return 0.5 * y * (1.0 + lax.erf(y * jnp.float32(_SQRT_HALF)))

    # ---- layer 1: spatial + channel zero-pad into VMEM (no HBM-side pad) ----
    xpad_ref[...] = jnp.zeros_like(xpad_ref)
    xpad_ref[1:H + 1, 1:W + 1, :Cin] = x_ref[0]
    h = conv_gn_gelu(xpad_ref, Cpi, w1_ref, b1_ref, g1_ref, t1_ref)

    # ---- layer 2: intermediate h never leaves VMEM ----
    hpad_ref[...] = jnp.zeros_like(hpad_ref)
    hpad_ref[1:H + 1, 1:W + 1, :] = h.reshape(H, W, Cpo).astype(hpad_ref.dtype)
    y = conv_gn_gelu(hpad_ref, Cpo, w2_ref, b2_ref, g2_ref, t2_ref)

    o_ref[...] = y.reshape(1, H, W, Cpo).astype(o_ref.dtype)


def conv_block_apply(x_nhwc, w1, b1, g1, bt1, w2, b2, g2, bt2):
    """x_nhwc: (N,H,W,Cin); w*: (3,3,Cin/out,Cout). Returns (N,H,W,Cout)."""
    N, H, W, Cin = x_nhwc.shape
    Cout = w1.shape[-1]
    Cpi = _round_up(Cin, _LANE)
    Cpo = _round_up(Cout, _LANE)

    def pad_w(w, cp_in, cp_out):
        ci, co = w.shape[2], w.shape[3]
        wp = jnp.pad(w, ((0, 0), (0, 0), (0, cp_in - ci), (0, cp_out - co)))
        return wp.reshape(9 * cp_in, cp_out)      # row order (ky, kx, cin)

    def pad_v(v):
        return jnp.pad(v, (0, Cpo - v.shape[0])).reshape(1, Cpo)

    w1p = pad_w(w1, Cpi, Cpo)
    w2p = pad_w(w2, Cpo, Cpo)
    b1p, g1p, t1p = pad_v(b1), pad_v(g1), pad_v(bt1)
    b2p, g2p, t2p = pad_v(b2), pad_v(g2), pad_v(bt2)

    kernel = functools.partial(_conv_block_kernel, H=H, W=W,
                               Cin=Cin, Cout=Cout, Cpi=Cpi, Cpo=Cpo)

    rep = lambda n: (0, 0)  # parameter blocks: whole array, reused every step

    out = pl.pallas_call(
        kernel,
        out_shape=jax.ShapeDtypeStruct((N, H, W, Cpo), x_nhwc.dtype),
        grid=(N,),
        in_specs=[
            pl.BlockSpec((1, H, W, Cin), lambda n: (n, 0, 0, 0)),
            pl.BlockSpec((9 * Cpi, Cpo), rep),
            pl.BlockSpec((1, Cpo), rep),
            pl.BlockSpec((1, Cpo), rep),
            pl.BlockSpec((1, Cpo), rep),
            pl.BlockSpec((9 * Cpo, Cpo), rep),
            pl.BlockSpec((1, Cpo), rep),
            pl.BlockSpec((1, Cpo), rep),
            pl.BlockSpec((1, Cpo), rep),
        ],
        out_specs=pl.BlockSpec((1, H, W, Cpo), lambda n: (n, 0, 0, 0)),
        scratch_shapes=[
            pltpu.VMEM((H + 2, W + 2, Cpi), x_nhwc.dtype),
            pltpu.VMEM((H + 2, W + 2, Cpo), x_nhwc.dtype),
        ],
        compiler_params=pltpu.CompilerParams(
            dimension_semantics=("parallel",),
            vmem_limit_bytes=32 * 1024 * 1024,
        ),
    )(x_nhwc, w1p, b1p, g1p, t1p, w2p, b2p, g2p, t2p)

    # drop the padded output lanes (exactly zero by construction)
    return out[..., :Cout]


class ConvBlockPallas:
    """JAX/Pallas equivalent of the PyTorch ConvBlock (norm=True, groups=1, gelu,
    padding_mode='zeros')."""
    # TODO(synk): padding_mode other than 'zeros' (circular/reflect) not implemented.

    def __init__(self, in_channels, out_channels, key):
        k1, k2, k3, k4 = jax.random.split(key, 4)
        # Conv weights stored as (3, 3, Cin, Cout).  NOTE: PyTorch checkpoints
        # store (Cout, Cin, kH, kW); porting real weights requires
        # w.permute(2, 3, 1, 0).
        self.w1 = 0.1 * jax.random.normal(k1, (3, 3, in_channels, out_channels), jnp.float32)
        self.b1 = 0.1 * jax.random.normal(k2, (out_channels,), jnp.float32)
        self.w2 = 0.1 * jax.random.normal(k3, (3, 3, out_channels, out_channels), jnp.float32)
        self.b2 = 0.1 * jax.random.normal(k4, (out_channels,), jnp.float32)
        # GroupNorm affine params: PyTorch default init (ones / zeros).
        self.g1 = jnp.ones((out_channels,), jnp.float32)
        self.beta1 = jnp.zeros((out_channels,), jnp.float32)
        self.g2 = jnp.ones((out_channels,), jnp.float32)
        self.beta2 = jnp.zeros((out_channels,), jnp.float32)

    def __call__(self, x_nchw):
        # NCHW (PyTorch) -> NHWC (kernel layout), once around the fused block.
        x = jnp.transpose(x_nchw, (0, 2, 3, 1))
        y = conv_block_apply(x, self.w1, self.b1, self.g1, self.beta1,
                             self.w2, self.b2, self.g2, self.beta2)
        return jnp.transpose(y, (0, 3, 1, 2))


if __name__ == "__main__":
    key = jax.random.PRNGKey(0)
    kx, kp = jax.random.split(key)

    N, Cin, Cout, H, W = 2, 4, 8, 16, 16
    x = jax.random.normal(kx, (N, Cin, H, W), jnp.float32)  # NCHW like PyTorch

    block = ConvBlockPallas(Cin, Cout, kp)
    out = block(x)
    out = jax.block_until_ready(out)

    assert out.shape == (N, Cout, H, W), out.shape
    assert jnp.all(jnp.isfinite(out))
    print("KERNEL_OK")
</pallas_src>

<mosaic_0001>
module attributes {stable_mosaic.version = 11 : i64} {
  func.func @_conv_block_kernel(%arg0: i32, %arg1: memref<1x16x16x4xf32, #tpu.memory_space<vmem>>, %arg2: memref<1152x128xf32, #tpu.memory_space<vmem>>, %arg3: memref<1x128xf32, #tpu.memory_space<vmem>>, %arg4: memref<1x128xf32, #tpu.memory_space<vmem>>, %arg5: memref<1x128xf32, #tpu.memory_space<vmem>>, %arg6: memref<1152x128xf32, #tpu.memory_space<vmem>>, %arg7: memref<1x128xf32, #tpu.memory_space<vmem>>, %arg8: memref<1x128xf32, #tpu.memory_space<vmem>>, %arg9: memref<1x128xf32, #tpu.memory_space<vmem>>, %arg10: memref<1x16x16x128xf32, #tpu.memory_space<vmem>>, %arg11: memref<18x18x128xf32, #tpu.memory_space<vmem>>, %arg12: memref<18x18x128xf32, #tpu.memory_space<vmem>>) attributes {dimension_semantics = [#tpu.dimension_semantics<parallel>], iteration_bounds = array<i64: 2>, scalar_prefetch = 0 : i64, scratch_operands = 2 : i64, tpu.core_type = #tpu.core_type<tc>, window_params = [{transform_indices = @transform_0, window_bounds = array<i64: 1, 16, 16, 4>}, {pipeline_mode = #tpu.pipeline_mode<synchronous>, transform_indices = @transform_1, window_bounds = array<i64: 1152, 128>}, {pipeline_mode = #tpu.pipeline_mode<synchronous>, transform_indices = @transform_2, window_bounds = array<i64: 1, 128>}, {pipeline_mode = #tpu.pipeline_mode<synchronous>, transform_indices = @transform_3, window_bounds = array<i64: 1, 128>}, {pipeline_mode = #tpu.pipeline_mode<synchronous>, transform_indices = @transform_4, window_bounds = array<i64: 1, 128>}, {pipeline_mode = #tpu.pipeline_mode<synchronous>, transform_indices = @transform_5, window_bounds = array<i64: 1152, 128>}, {pipeline_mode = #tpu.pipeline_mode<synchronous>, transform_indices = @transform_6, window_bounds = array<i64: 1, 128>}, {pipeline_mode = #tpu.pipeline_mode<synchronous>, transform_indices = @transform_7, window_bounds = array<i64: 1, 128>}, {pipeline_mode = #tpu.pipeline_mode<synchronous>, transform_indices = @transform_8, window_bounds = array<i64: 1, 128>}, {transform_indices = @transform_9, window_bounds = array<i64: 1, 16, 16, 128>}]} {
    %cst = arith.constant 0.000000e+00 : f32
    %0 = vector.broadcast %cst : f32 to vector<18x18x128xf32>
    %c0 = arith.constant 0 : index
    %c0_0 = arith.constant 0 : index
    %c0_1 = arith.constant 0 : index
    %1 = vector.load %arg11[%c0, %c0_0, %c0_1] : memref<18x18x128xf32, #tpu.memory_space<vmem>>, vector<18x18x128xf32>
    tpu.vector_store %arg11[%c0, %c0_0, %c0_1], %0 {strides = array<i32>} : memref<18x18x128xf32, #tpu.memory_space<vmem>>, vector<18x18x128xf32>,
    %c0_2 = arith.constant 0 : index
    %c0_3 = arith.constant 0 : index
    %c0_4 = arith.constant 0 : index
    %c0_5 = arith.constant 0 : index
    %2 = vector.load %arg1[%c0_2, %c0_3, %c0_4, %c0_5] : memref<1x16x16x4xf32, #tpu.memory_space<vmem>>, vector<1x16x16x4xf32>
    %3 = vector.shape_cast %2 : vector<1x16x16x4xf32> to vector<16x16x4xf32>
    %c1 = arith.constant 1 : index
    %c1_6 = arith.constant 1 : index
    %c0_7 = arith.constant 0 : index
    %4 = vector.load %arg11[%c1, %c1_6, %c0_7] : memref<18x18x128xf32, #tpu.memory_space<vmem>>, vector<16x16x4xf32>
    tpu.vector_store %arg11[%c1, %c1_6, %c0_7], %3 {strides = array<i32>} : memref<18x18x128xf32, #tpu.memory_space<vmem>>, vector<16x16x4xf32>,
    %c0_8 = arith.constant 0 : index
    %c0_9 = arith.constant 0 : index
    %c0_10 = arith.constant 0 : index
    %5 = vector.load %arg11[%c0_8, %c0_9, %c0_10] : memref<18x18x128xf32, #tpu.memory_space<vmem>>, vector<16x16x128xf32>
    %6 = vector.shape_cast %5 : vector<16x16x128xf32> to vector<256x128xf32>
    %c0_11 = arith.constant 0 : index
    %c1_12 = arith.constant 1 : index
    %c0_13 = arith.constant 0 : index
    %7 = vector.load %arg11[%c0_11, %c1_12, %c0_13] : memref<18x18x128xf32, #tpu.memory_space<vmem>>, vector<16x16x128xf32>
    %8 = vector.shape_cast %7 : vector<16x16x128xf32> to vector<256x128xf32>
    %c0_14 = arith.constant 0 : index
    %c2 = arith.constant 2 : index
    %c0_15 = arith.constant 0 : index
    %9 = vector.load %arg11[%c0_14, %c2, %c0_15] : memref<18x18x128xf32, #tpu.memory_space<vmem>>, vector<16x16x128xf32>
    %10 = vector.shape_cast %9 : vector<16x16x128xf32> to vector<256x128xf32>
    %c1_16 = arith.constant 1 : index
    %c0_17 = arith.constant 0 : index
    %c0_18 = arith.constant 0 : index
    %11 = vector.load %arg11[%c1_16, %c0_17, %c0_18] : memref<18x18x128xf32, #tpu.memory_space<vmem>>, vector<16x16x128xf32>
    %12 = vector.shape_cast %11 : vector<16x16x128xf32> to vector<256x128xf32>
    %c1_19 = arith.constant 1 : index
    %c1_20 = arith.constant 1 : index
    %c0_21 = arith.constant 0 : index
    %13 = vector.load %arg11[%c1_19, %c1_20, %c0_21] : memref<18x18x128xf32, #tpu.memory_space<vmem>>, vector<16x16x128xf32>
    %14 = vector.shape_cast %13 : vector<16x16x128xf32> to vector<256x128xf32>
    %c1_22 = arith.constant 1 : index
    %c2_23 = arith.constant 2 : index
    %c0_24 = arith.constant 0 : index
    %15 = vector.load %arg11[%c1_22, %c2_23, %c0_24] : memref<18x18x128xf32, #tpu.memory_space<vmem>>, vector<16x16x128xf32>
    %16 = vector.shape_cast %15 : vector<16x16x128xf32> to vector<256x128xf32>
    %c2_25 = arith.constant 2 : index
    %c0_26 = arith.constant 0 : index
    %c0_27 = arith.constant 0 : index
    %17 = vector.load %arg11[%c2_25, %c0_26, %c0_27] : memref<18x18x128xf32, #tpu.memory_space<vmem>>, vector<16x16x128xf32>
    %18 = vector.shape_cast %17 : vector<16x16x128xf32> to vector<256x128xf32>
    %c2_28 = arith.constant 2 : index
    %c1_29 = arith.constant 1 : index
    %c0_30 = arith.constant 0 : index
    %19 = vector.load %arg11[%c2_28, %c1_29, %c0_30] : memref<18x18x128xf32, #tpu.memory_space<vmem>>, vector<16x16x128xf32>
    %20 = vector.shape_cast %19 : vector<16x16x128xf32> to vector<256x128xf32>
    %c2_31 = arith.constant 2 : index
    %c2_32 = arith.constant 2 : index
    %c0_33 = arith.constant 0 : index
    %21 = vector.load %arg11[%c2_31, %c2_32, %c0_33] : memref<18x18x128xf32, #tpu.memory_space<vmem>>, vector<16x16x128xf32>
    %22 = vector.shape_cast %21 : vector<16x16x128xf32> to vector<256x128xf32>
    %23 = tpu.concatenate %6, %8, %10, %12, %14, %16, %18, %20, %22 in 1 : vector<256x128xf32>, vector<256x128xf32>, vector<256x128xf32>, vector<256x128xf32>, vector<256x128xf32>, vector<256x128xf32>, vector<256x128xf32>, vector<256x128xf32>, vector<256x128xf32> -> vector<256x1152xf32>
    %c0_34 = arith.constant 0 : index
    %c0_35 = arith.constant 0 : index
    %24 = vector.load %arg2[%c0_34, %c0_35] : memref<1152x128xf32, #tpu.memory_space<vmem>>, vector<1152x128xf32>
    %cst_36 = arith.constant dense<0.000000e+00> : vector<256x128xf32>
    %25 = tpu.matmul %23, %24, %cst_36 {dimension_numbers = #tpu.dot_dimension_numbers<[1], [0], [0], [1], [0, 0, 1, 1], [], []>} : vector<256x1152xf32>, vector<1152x128xf32>, vector<256x128xf32> -> vector<256x128xf32>
    %c0_37 = arith.constant 0 : index
    %c0_38 = arith.constant 0 : index
    %26 = vector.load %arg3[%c0_37, %c0_38] : memref<1x128xf32, #tpu.memory_space<vmem>>, vector<1x128xf32>
    %27 = vector.shape_cast %26 : vector<1x128xf32> to vector<128xf32>
    %28 = vector.shape_cast %27 : vector<128xf32> to vector<1x128xf32>
    %29 = vector.broadcast %28 : vector<1x128xf32> to vector<256x128xf32>
    %30 = arith.addf %25, %29 : vector<256x128xf32>
    %31 = vector.shape_cast %30 : vector<256x128xf32> to vector<1x256x128xf32>
    %cst_39 = arith.constant dense<0.000000e+00> : vector<1xf32>
    %32 = vector.multi_reduction <add>, %31, %cst_39 [1, 2] : vector<1x256x128xf32> to vector<1xf32>
    %33 = vector.shape_cast %32 : vector<1xf32> to vector<1x1x1xf32>
    %34 = vector.extract %33[0, 0, 0] : f32 from vector<1x1x1xf32>
    %cst_40 = arith.constant 4.8828125E-4 : f32
    %35 = arith.mulf %34, %cst_40 : f32
    %36 = arith.mulf %30, %30 : vector<256x128xf32>
    %37 = vector.shape_cast %36 : vector<256x128xf32> to vector<1x256x128xf32>
    %cst_41 = arith.constant dense<0.000000e+00> : vector<1xf32>
    %38 = vector.multi_reduction <add>, %37, %cst_41 [1, 2] : vector<1x256x128xf32> to vector<1xf32>
    %39 = vector.shape_cast %38 : vector<1xf32> to vector<1x1x1xf32>
    %40 = vector.extract %39[0, 0, 0] : f32 from vector<1x1x1xf32>
    %cst_42 = arith.constant 4.8828125E-4 : f32
    %41 = arith.mulf %40, %cst_42 : f32
    %42 = arith.mulf %35, %35 : f32
    %43 = arith.subf %41, %42 : f32
    %cst_43 = arith.constant 9.99999974E-6 : f32
    %44 = arith.addf %43, %cst_43 : f32
    %45 = math.rsqrt %44 : f32
    %c0_44 = arith.constant 0 : index
    %c0_45 = arith.constant 0 : index
    %46 = vector.load %arg4[%c0_44, %c0_45] : memref<1x128xf32, #tpu.memory_space<vmem>>, vector<1x128xf32>
    %47 = vector.shape_cast %46 : vector<1x128xf32> to vector<128xf32>
    %48 = vector.broadcast %45 : f32 to vector<128xf32>
    %49 = arith.mulf %47, %48 : vector<128xf32>
    %c0_46 = arith.constant 0 : index
    %c0_47 = arith.constant 0 : index
    %50 = vector.load %arg5[%c0_46, %c0_47] : memref<1x128xf32, #tpu.memory_space<vmem>>, vector<1x128xf32>
    %51 = vector.shape_cast %50 : vector<1x128xf32> to vector<128xf32>
    %52 = vector.broadcast %35 : f32 to vector<128xf32>
    %53 = arith.mulf %52, %49 : vector<128xf32>
    %54 = arith.subf %51, %53 : vector<128xf32>
    %55 = vector.shape_cast %49 : vector<128xf32> to vector<1x128xf32>
    %56 = vector.broadcast %55 : vector<1x128xf32> to vector<256x128xf32>
    %57 = arith.mulf %30, %56 : vector<256x128xf32>
    %58 = vector.shape_cast %54 : vector<128xf32> to vector<1x128xf32>
    %59 = vector.broadcast %58 : vector<1x128xf32> to vector<256x128xf32>
    %60 = arith.addf %57, %59 : vector<256x128xf32>
    %cst_48 = arith.constant 5.000000e-01 : f32
    %61 = vector.broadcast %cst_48 : f32 to vector<256x128xf32>
    %62 = arith.mulf %61, %60 : vector<256x128xf32>
    %cst_49 = arith.constant 0.707106769 : f32
    %63 = vector.broadcast %cst_49 : f32 to vector<256x128xf32>
    %64 = arith.mulf %60, %63 : vector<256x128xf32>
    %65 = math.erf %64 : vector<256x128xf32>
    %cst_50 = arith.constant 1.000000e+00 : f32
    %66 = vector.broadcast %cst_50 : f32 to vector<256x128xf32>
    %67 = arith.addf %66, %65 : vector<256x128xf32>
    %68 = arith.mulf %62, %67 : vector<256x128xf32>
    %cst_51 = arith.constant 0.000000e+00 : f32
    %69 = vector.broadcast %cst_51 : f32 to vector<18x18x128xf32>
    %c0_52 = arith.constant 0 : index
    %c0_53 = arith.constant 0 : index
    %c0_54 = arith.constant 0 : index
    %70 = vector.load %arg12[%c0_52, %c0_53, %c0_54] : memref<18x18x128xf32, #tpu.memory_space<vmem>>, vector<18x18x128xf32>
    tpu.vector_store %arg12[%c0_52, %c0_53, %c0_54], %69 {strides = array<i32>} : memref<18x18x128xf32, #tpu.memory_space<vmem>>, vector<18x18x128xf32>,
    %71 = vector.shape_cast %68 : vector<256x128xf32> to vector<16x16x128xf32>
    %c1_55 = arith.constant 1 : index
    %c1_56 = arith.constant 1 : index
    %c0_57 = arith.constant 0 : index
    %72 = vector.load %arg12[%c1_55, %c1_56, %c0_57] : memref<18x18x128xf32, #tpu.memory_space<vmem>>, vector<16x16x128xf32>
    tpu.vector_store %arg12[%c1_55, %c1_56, %c0_57], %71 {strides = array<i32>} : memref<18x18x128xf32, #tpu.memory_space<vmem>>, vector<16x16x128xf32>,
    %c0_58 = arith.constant 0 : index
    %c0_59 = arith.constant 0 : index
    %c0_60 = arith.constant 0 : index
    %73 = vector.load %arg12[%c0_58, %c0_59, %c0_60] : memref<18x18x128xf32, #tpu.memory_space<vmem>>, vector<16x16x128xf32>
    %74 = vector.shape_cast %73 : vector<16x16x128xf32> to vector<256x128xf32>
    %c0_61 = arith.constant 0 : index
    %c1_62 = arith.constant 1 : index
    %c0_63 = arith.constant 0 : index
    %75 = vector.load %arg12[%c0_61, %c1_62, %c0_63] : memref<18x18x128xf32, #tpu.memory_space<vmem>>, vector<16x16x128xf32>
    %76 = vector.shape_cast %75 : vector<16x16x128xf32> to vector<256x128xf32>
    %c0_64 = arith.constant 0 : index
    %c2_65 = arith.constant 2 : index
    %c0_66 = arith.constant 0 : index
    %77 = vector.load %arg12[%c0_64, %c2_65, %c0_66] : memref<18x18x128xf32, #tpu.memory_space<vmem>>, vector<16x16x128xf32>
    %78 = vector.shape_cast %77 : vector<16x16x128xf32> to vector<256x128xf32>
    %c1_67 = arith.constant 1 : index
    %c0_68 = arith.constant 0 : index
    %c0_69 = arith.constant 0 : index
    %79 = vector.load %arg12[%c1_67, %c0_68, %c0_69] : memref<18x18x128xf32, #tpu.memory_space<vmem>>, vector<16x16x128xf32>
    %80 = vector.shape_cast %79 : vector<16x16x128xf32> to vector<256x128xf32>
    %c1_70 = arith.constant 1 : index
    %c1_71 = arith.constant 1 : index
    %c0_72 = arith.constant 0 : index
    %81 = vector.load %arg12[%c1_70, %c1_71, %c0_72] : memref<18x18x128xf32, #tpu.memory_space<vmem>>, vector<16x16x128xf32>
    %82 = vector.shape_cast %81 : vector<16x16x128xf32> to vector<256x128xf32>
    %c1_73 = arith.constant 1 : index
    %c2_74 = arith.constant 2 : index
    %c0_75 = arith.constant 0 : index
    %83 = vector.load %arg12[%c1_73, %c2_74, %c0_75] : memref<18x18x128xf32, #tpu.memory_space<vmem>>, vector<16x16x128xf32>
    %84 = vector.shape_cast %83 : vector<16x16x128xf32> to vector<256x128xf32>
    %c2_76 = arith.constant 2 : index
    %c0_77 = arith.constant 0 : index
    %c0_78 = arith.constant 0 : index
    %85 = vector.load %arg12[%c2_76, %c0_77, %c0_78] : memref<18x18x128xf32, #tpu.memory_space<vmem>>, vector<16x16x128xf32>
    %86 = vector.shape_cast %85 : vector<16x16x128xf32> to vector<256x128xf32>
    %c2_79 = arith.constant 2 : index
    %c1_80 = arith.constant 1 : index
    %c0_81 = arith.constant 0 : index
    %87 = vector.load %arg12[%c2_79, %c1_80, %c0_81] : memref<18x18x128xf32, #tpu.memory_space<vmem>>, vector<16x16x128xf32>
    %88 = vector.shape_cast %87 : vector<16x16x128xf32> to vector<256x128xf32>
    %c2_82 = arith.constant 2 : index
    %c2_83 = arith.constant 2 : index
    %c0_84 = arith.constant 0 : index
    %89 = vector.load %arg12[%c2_82, %c2_83, %c0_84] : memref<18x18x128xf32, #tpu.memory_space<vmem>>, vector<16x16x128xf32>
    %90 = vector.shape_cast %89 : vector<16x16x128xf32> to vector<256x128xf32>
    %91 = tpu.concatenate %74, %76, %78, %80, %82, %84, %86, %88, %90 in 1 : vector<256x128xf32>, vector<256x128xf32>, vector<256x128xf32>, vector<256x128xf32>, vector<256x128xf32>, vector<256x128xf32>, vector<256x128xf32>, vector<256x128xf32>, vector<256x128xf32> -> vector<256x1152xf32>
    %c0_85 = arith.constant 0 : index
    %c0_86 = arith.constant 0 : index
    %92 = vector.load %arg6[%c0_85, %c0_86] : memref<1152x128xf32, #tpu.memory_space<vmem>>, vector<1152x128xf32>
    %cst_87 = arith.constant dense<0.000000e+00> : vector<256x128xf32>
    %93 = tpu.matmul %91, %92, %cst_87 {dimension_numbers = #tpu.dot_dimension_numbers<[1], [0], [0], [1], [0, 0, 1, 1], [], []>} : vector<256x1152xf32>, vector<1152x128xf32>, vector<256x128xf32> -> vector<256x128xf32>
    %c0_88 = arith.constant 0 : index
    %c0_89 = arith.constant 0 : index
    %94 = vector.load %arg7[%c0_88, %c0_89] : memref<1x128xf32, #tpu.memory_space<vmem>>, vector<1x128xf32>
    %95 = vector.shape_cast %94 : vector<1x128xf32> to vector<128xf32>
    %96 = vector.shape_cast %95 : vector<128xf32> to vector<1x128xf32>
    %97 = vector.broadcast %96 : vector<1x128xf32> to vector<256x128xf32>
    %98 = arith.addf %93, %97 : vector<256x128xf32>
    %99 = vector.shape_cast %98 : vector<256x128xf32> to vector<1x256x128xf32>
    %cst_90 = arith.constant dense<0.000000e+00> : vector<1xf32>
    %100 = vector.multi_reduction <add>, %99, %cst_90 [1, 2] : vector<1x256x128xf32> to vector<1xf32>
    %101 = vector.shape_cast %100 : vector<1xf32> to vector<1x1x1xf32>
    %102 = vector.extract %101[0, 0, 0] : f32 from vector<1x1x1xf32>
    %cst_91 = arith.constant 4.8828125E-4 : f32
    %103 = arith.mulf %102, %cst_91 : f32
    %104 = arith.mulf %98, %98 : vector<256x128xf32>
    %105 = vector.shape_cast %104 : vector<256x128xf32> to vector<1x256x128xf32>
    %cst_92 = arith.constant dense<0.000000e+00> : vector<1xf32>
    %106 = vector.multi_reduction <add>, %105, %cst_92 [1, 2] : vector<1x256x128xf32> to vector<1xf32>
    %107 = vector.shape_cast %106 : vector<1xf32> to vector<1x1x1xf32>
    %108 = vector.extract %107[0, 0, 0] : f32 from vector<1x1x1xf32>
    %cst_93 = arith.constant 4.8828125E-4 : f32
    %109 = arith.mulf %108, %cst_93 : f32
    %110 = arith.mulf %103, %103 : f32
    %111 = arith.subf %109, %110 : f32
    %cst_94 = arith.constant 9.99999974E-6 : f32
    %112 = arith.addf %111, %cst_94 : f32
    %113 = math.rsqrt %112 : f32
    %c0_95 = arith.constant 0 : index
    %c0_96 = arith.constant 0 : index
    %114 = vector.load %arg8[%c0_95, %c0_96] : memref<1x128xf32, #tpu.memory_space<vmem>>, vector<1x128xf32>
    %115 = vector.shape_cast %114 : vector<1x128xf32> to vector<128xf32>
    %116 = vector.broadcast %113 : f32 to vector<128xf32>
    %117 = arith.mulf %115, %116 : vector<128xf32>
    %c0_97 = arith.constant 0 : index
    %c0_98 = arith.constant 0 : index
    %118 = vector.load %arg9[%c0_97, %c0_98] : memref<1x128xf32, #tpu.memory_space<vmem>>, vector<1x128xf32>
    %119 = vector.shape_cast %118 : vector<1x128xf32> to vector<128xf32>
    %120 = vector.broadcast %103 : f32 to vector<128xf32>
    %121 = arith.mulf %120, %117 : vector<128xf32>
    %122 = arith.subf %119, %121 : vector<128xf32>
    %123 = vector.shape_cast %117 : vector<128xf32> to vector<1x128xf32>
    %124 = vector.broadcast %123 : vector<1x128xf32> to vector<256x128xf32>
    %125 = arith.mulf %98, %124 : vector<256x128xf32>
    %126 = vector.shape_cast %122 : vector<128xf32> to vector<1x128xf32>
    %127 = vector.broadcast %126 : vector<1x128xf32> to vector<256x128xf32>
    %128 = arith.addf %125, %127 : vector<256x128xf32>
    %cst_99 = arith.constant 5.000000e-01 : f32
    %129 = vector.broadcast %cst_99 : f32 to vector<256x128xf32>
    %130 = arith.mulf %129, %128 : vector<256x128xf32>
    %cst_100 = arith.constant 0.707106769 : f32
    %131 = vector.broadcast %cst_100 : f32 to vector<256x128xf32>
    %132 = arith.mulf %128, %131 : vector<256x128xf32>
    %133 = math.erf %132 : vector<256x128xf32>
    %cst_101 = arith.constant 1.000000e+00 : f32
    %134 = vector.broadcast %cst_101 : f32 to vector<256x128xf32>
    %135 = arith.addf %134, %133 : vector<256x128xf32>
    %136 = arith.mulf %130, %135 : vector<256x128xf32>
    %137 = vector.shape_cast %136 : vector<256x128xf32> to vector<1x16x16x128xf32>
    %c0_102 = arith.constant 0 : index
    %c0_103 = arith.constant 0 : index
    %c0_104 = arith.constant 0 : index
    %c0_105 = arith.constant 0 : index
    %138 = vector.load %arg10[%c0_102, %c0_103, %c0_104, %c0_105] : memref<1x16x16x128xf32, #tpu.memory_space<vmem>>, vector<1x16x16x128xf32>
    tpu.vector_store %arg10[%c0_102, %c0_103, %c0_104, %c0_105], %137 {strides = array<i32>} : memref<1x16x16x128xf32, #tpu.memory_space<vmem>>, vector<1x16x16x128xf32>,
    return
  }
  func.func @transform_0(%arg0: i32) -> (i32, i32, i32, i32) {
    %c0_i32 = arith.constant 0 : i32
    %c0_i32_0 = arith.constant 0 : i32
    %c0_i32_1 = arith.constant 0 : i32
    %c0_i32_2 = arith.constant 0 : i32
    return %arg0, %c0_i32, %c0_i32_0, %c0_i32_1 : i32, i32, i32, i32
  }
  func.func @transform_1(%arg0: i32) -> (i32, i32) {
    %c0_i32 = arith.constant 0 : i32
    %c0_i32_0 = arith.constant 0 : i32
    %c0_i32_1 = arith.constant 0 : i32
    return %c0_i32, %c0_i32_0 : i32, i32
  }
  func.func @transform_2(%arg0: i32) -> (i32, i32) {
    %c0_i32 = arith.constant 0 : i32
    %c0_i32_0 = arith.constant 0 : i32
    %c0_i32_1 = arith.constant 0 : i32
    return %c0_i32, %c0_i32_0 : i32, i32
  }
  func.func @transform_3(%arg0: i32) -> (i32, i32) {
    %c0_i32 = arith.constant 0 : i32
    %c0_i32_0 = arith.constant 0 : i32
    %c0_i32_1 = arith.constant 0 : i32
    return %c0_i32, %c0_i32_0 : i32, i32
  }
  func.func @transform_4(%arg0: i32) -> (i32, i32) {
    %c0_i32 = arith.constant 0 : i32
    %c0_i32_0 = arith.constant 0 : i32
    %c0_i32_1 = arith.constant 0 : i32
    return %c0_i32, %c0_i32_0 : i32, i32
  }
  func.func @transform_5(%arg0: i32) -> (i32, i32) {
    %c0_i32 = arith.constant 0 : i32
    %c0_i32_0 = arith.constant 0 : i32
    %c0_i32_1 = arith.constant 0 : i32
    return %c0_i32, %c0_i32_0 : i32, i32
  }
  func.func @transform_6(%arg0: i32) -> (i32, i32) {
    %c0_i32 = arith.constant 0 : i32
    %c0_i32_0 = arith.constant 0 : i32
    %c0_i32_1 = arith.constant 0 : i32
    return %c0_i32, %c0_i32_0 : i32, i32
  }
  func.func @transform_7(%arg0: i32) -> (i32, i32) {
    %c0_i32 = arith.constant 0 : i32
    %c0_i32_0 = arith.constant 0 : i32
    %c0_i32_1 = arith.constant 0 : i32
    return %c0_i32, %c0_i32_0 : i32, i32
  }
  func.func @transform_8(%arg0: i32) -> (i32, i32) {
    %c0_i32 = arith.constant 0 : i32
    %c0_i32_0 = arith.constant 0 : i32
    %c0_i32_1 = arith.constant 0 : i32
    return %c0_i32, %c0_i32_0 : i32, i32
  }
  func.func @transform_9(%arg0: i32) -> (i32, i32, i32, i32) {
    %c0_i32 = arith.constant 0 : i32
    %c0_i32_0 = arith.constant 0 : i32
    %c0_i32_1 = arith.constant 0 : i32
    %c0_i32_2 = arith.constant 0 : i32
    return %arg0, %c0_i32, %c0_i32_0, %c0_i32_1 : i32, i32, i32, i32
  }
}

</mosaic_0001>

<llo_original>
// kernel: tpu_custom_call.1
$region0: #{tpu_custom_call.1}
  #allocation0 [shape = 'u32[]', space=smem, size = 0x4, offset = 0x4, fixed_abs, tag = 'smem constant byte address 0x4 - core index']
  #allocation1 [shape = 'u32[72,128]{1,0:T(1,128)}', space=vmem, size = 0x9000, scoped, tag = 'internal scratch']
  #allocation2 [shape = 'f32[18,18,128]{2,1,0:T(8,128)}', space=vmem, size = 0x36000, scoped, tag = 'scratch operand']
  #allocation3 [shape = 'f32[18,18,128]{2,1,0:T(8,128)}', space=vmem, size = 0x36000, scoped, tag = 'scratch operand']
  %s0 = inlined_call_operand.vmem [shape: f32[2,16,16,4], index: 0, kind: input, shape index: {}]
  %s1 = inlined_call_operand.hbm [shape: f32[1152,128], index: 1, kind: input, shape index: {}]
  %s2 = inlined_call_operand.vmem [shape: f32[1,128], index: 2, kind: input, shape index: {}]
  %s3 = inlined_call_operand.vmem [shape: f32[1,128], index: 3, kind: input, shape index: {}]
  %s4 = inlined_call_operand.vmem [shape: f32[1,128], index: 4, kind: input, shape index: {}]
  %s5 = inlined_call_operand.hbm [shape: f32[1152,128], index: 5, kind: input, shape index: {}]
  %s6 = inlined_call_operand.vmem [shape: f32[1,128], index: 6, kind: input, shape index: {}]
  %s7 = inlined_call_operand.vmem [shape: f32[1,128], index: 7, kind: input, shape index: {}]
  %s8 = inlined_call_operand.vmem [shape: f32[1,128], index: 8, kind: input, shape index: {}]
  %s9 = inlined_call_operand.hbm [shape: f32[2,16,16,128], index: 9, kind: output, shape index: {}]
  %s10 = sld [smem:[#allocation0]]
  $region77: #{tpu_custom_call.1} parent=0
    _
  %s12 = ssub.s32 1, %s10
  %s13 = scalar_select 0, %s12, %s10
  $region1: #{tpu_custom_call.1} parent=0
    #allocation4 [shape = 'u8[589824]{0}', space=vmem, size = 0x90000, scoped, tag = 'input window, operand 1, single buffered']
    #allocation5 [shape = 's32[2]{0}', space=sflag, size = 0x8, scoped, tag = 'scoped memory for tpu_custom_call.1']
    #allocation6 [shape = 's32[2]{0}', space=sflag, size = 0x8, scoped, tag = 'scoped memory for tpu_custom_call.1']
    #allocation7 [shape = 'u8[589824]{0}', space=vmem, size = 0x90000, scoped, tag = 'input window, operand 5, single buffered']
    #allocation8 [shape = 's32[1]{0}', space=sflag, size = 0x4, scoped, tag = 'scoped memory for tpu_custom_call.1']
    #allocation9 [shape = 'u8[262144]{0}', space=vmem, size = 0x40000, scoped, tag = 'output window, operand 0']
    %14 = vsyncpa [#allocation5], 0
    %15 = vsyncpa [#allocation8], 0
    %16 = vsyncpa [#allocation6], 0
    %s17 = scalar_lea.sflag [#allocation6], 1
    %18 = vsyncpa %s17, 0
    loop: start=0, step=1, limit=4
    $region2: #{tpu_custom_call.1} parent=1 // loop_pre_header
      _
    $region3: #{tpu_custom_call.1} parent=1 // loop_header
      %s20 = sphi 0, %s24
      %p21 = scmp.ge.s32.totalorder %s20, 4
      %s30 = sphi 0, %s32
      %s33 = sphi 0, %s30
      %s34 = sphi 0, %s33
      %s50 = sphi 0, %s34
      %s54 = sphi 0, %s54
      %s56 = sphi 0, %s54
      %s57 = sphi 0, %s56
      %s71 = sphi 0, %s57
      %s75 = sphi 0, %s75
      %s77 = sphi 0, %s75
      %s78 = sphi 0, %s77
      %s92 = sphi 0, %s78
      %s96 = sphi 0, %s96
      %s98 = sphi 0, %s96
      %s99 = sphi 0, %s98
      %s113 = sphi 0, %s99
      %s117 = sphi 0, %s117
      %s119 = sphi 0, %s117
      %s120 = sphi 0, %s119
      %s134 = sphi 0, %s120
      %s138 = sphi 0, %s138
      %s140 = sphi 0, %s138
      %s141 = sphi 0, %s140
      %s155 = sphi 0, %s141
      %s159 = sphi 0, %s159
      %s161 = sphi 0, %s159
      %s162 = sphi 0, %s161
      %s176 = sphi 0, %s162
      %s180 = sphi 0, %s180
      %s182 = sphi 0, %s180
      %s183 = sphi 0, %s182
      %s197 = sphi 0, %s183
      %s201 = sphi 0, %s201
      %s203 = sphi 0, %s201
      %s204 = sphi 0, %s203
      %s218 = sphi 0, %s204
      %s224 = sphi 0, %s226
      %s227 = sphi 0, %s224
      %s228 = sphi 0, %s227
      %s244 = sphi 0, %s228
    $region4: #{tpu_custom_call.1} parent=1 // loop_header_branch
      %23 = sbr.rel (%p21) target = $region8
    $region5: #{tpu_custom_call.1} parent=1 // loop_body
      %s25 = ssub.s32 %s20, 1
      %s26 = ssub.s32 %s20, 2
      %s27 = sadd.s32 %s20, 1
      %s28 = ssub.s32 %s20, %s27
      %p29 = scmp.eq.s32.totalorder %s28, 0
      %s31 = sadd.s32 %s30, 1
      %s32 = scalar_select %p29, %s30, %s31
      %p35 = pneg %p29
      %p36 = scmp.eq.s32.totalorder %s20, 1
      %p37 = por %p35, %p36
      %p38 = scmp.ne.s32.totalorder %s30, %s33
      %p39 = scmp.eq.s32.totalorder %s20, 0
      %p40 = por %p38, %p39
      %p41 = scmp.ne.s32.totalorder %s30, %s33
      %p42 = scmp.eq.s32.totalorder %s25, 1
      %p43 = por %p41, %p42
      %p44 = scmp.ne.s32.totalorder %s33, %s34
      %p45 = scmp.eq.s32.totalorder %s25, 0
      %p46 = por %p44, %p45
      %p47 = scmp.ne.s32.totalorder %s33, %s34
      %p48 = scmp.eq.s32.totalorder %s26, 1
      %p49 = por %p47, %p48
      %p51 = scmp.ne.s32.totalorder %s34, %s50
      %p52 = scmp.eq.s32.totalorder %s26, 0
      %p53 = por %p51, %p52
      %s55 = sadd.s32 %s54, 1
      %p58 = scmp.eq.s32.totalorder %s20, 1
      %p59 = scmp.ne.s32.totalorder %s54, %s56
      %p60 = scmp.eq.s32.totalorder %s20, 0
      %p61 = por %p59, %p60
      %p62 = scmp.ne.s32.totalorder %s54, %s56
      %p63 = scmp.eq.s32.totalorder %s25, 1
      %p64 = por %p62, %p63
      %p65 = scmp.ne.s32.totalorder %s56, %s57
      %p66 = scmp.eq.s32.totalorder %s25, 0
      %p67 = por %p65, %p66
      %p68 = scmp.ne.s32.totalorder %s56, %s57
      %p69 = scmp.eq.s32.totalorder %s26, 1
      %p70 = por %p68, %p69
      %p72 = scmp.ne.s32.totalorder %s57, %s71
      %p73 = scmp.eq.s32.totalorder %s26, 0
      %p74 = por %p72, %p73
      %s76 = sadd.s32 %s75, 1
      %p79 = scmp.eq.s32.totalorder %s20, 1
      %p80 = scmp.ne.s32.totalorder %s75, %s77
      %p81 = scmp.eq.s32.totalorder %s20, 0
      %p82 = por %p80, %p81
      %p83 = scmp.ne.s32.totalorder %s75, %s77
      %p84 = scmp.eq.s32.totalorder %s25, 1
      %p85 = por %p83, %p84
      %p86 = scmp.ne.s32.totalorder %s77, %s78
      %p87 = scmp.eq.s32.totalorder %s25, 0
      %p88 = por %p86, %p87
      %p89 = scmp.ne.s32.totalorder %s77, %s78
      %p90 = scmp.eq.s32.totalorder %s26, 1
      %p91 = por %p89, %p90
      %p93 = scmp.ne.s32.totalorder %s78, %s92
      %p94 = scmp.eq.s32.totalorder %s26, 0
      %p95 = por %p93, %p94
      %s97 = sadd.s32 %s96, 1
      %p100 = scmp.eq.s32.totalorder %s20, 1
      %p101 = scmp.ne.s32.totalorder %s96, %s98
      %p102 = scmp.eq.s32.totalorder %s20, 0
      %p103 = por %p101, %p102
      %p104 = scmp.ne.s32.totalorder %s96, %s98
      %p105 = scmp.eq.s32.totalorder %s25, 1
      %p106 = por %p104, %p105
      %p107 = scmp.ne.s32.totalorder %s98, %s99
      %p108 = scmp.eq.s32.totalorder %s25, 0
      %p109 = por %p107, %p108
      %p110 = scmp.ne.s32.totalorder %s98, %s99
      %p111 = scmp.eq.s32.totalorder %s26, 1
      %p112 = por %p110, %p111
      %p114 = scmp.ne.s32.totalorder %s99, %s113
      %p115 = scmp.eq.s32.totalorder %s26, 0
      %p116 = por %p114, %p115
      %s118 = sadd.s32 %s117, 1
      %p121 = scmp.eq.s32.totalorder %s20, 1
      %p122 = scmp.ne.s32.totalorder %s117, %s119
      %p123 = scmp.eq.s32.totalorder %s20, 0
      %p124 = por %p122, %p123
      %p125 = scmp.ne.s32.totalorder %s117, %s119
      %p126 = scmp.eq.s32.totalorder %s25, 1
      %p127 = por %p125, %p126
      %p128 = scmp.ne.s32.totalorder %s119, %s120
      %p129 = scmp.eq.s32.totalorder %s25, 0
      %p130 = por %p128, %p129
      %p131 = scmp.ne.s32.totalorder %s119, %s120
      %p132 = scmp.eq.s32.totalorder %s26, 1
      %p133 = por %p131, %p132
      %p135 = scmp.ne.s32.totalorder %s120, %s134
      %p136 = scmp.eq.s32.totalorder %s26, 0
      %p137 = por %p135, %p136
      %s139 = sadd.s32 %s138, 1
      %p142 = scmp.eq.s32.totalorder %s20, 1
      %p143 = scmp.ne.s32.totalorder %s138, %s140
      %p144 = scmp.eq.s32.totalorder %s20, 0
      %p145 = por %p143, %p144
      %p146 = scmp.ne.s32.totalorder %s138, %s140
      %p147 = scmp.eq.s32.totalorder %s25, 1
      %p148 = por %p146, %p147
      %p149 = scmp.ne.s32.totalorder %s140, %s141
      %p150 = scmp.eq.s32.totalorder %s25, 0
      %p151 = por %p149, %p150
      %p152 = scmp.ne.s32.totalorder %s140, %s141
      %p153 = scmp.eq.s32.totalorder %s26, 1
      %p154 = por %p152, %p153
      %p156 = scmp.ne.s32.totalorder %s141, %s155
      %p157 = scmp.eq.s32.totalorder %s26, 0
      %p158 = por %p156, %p157
      %s160 = sadd.s32 %s159, 1
      %p163 = scmp.eq.s32.totalorder %s20, 1
      %p164 = scmp.ne.s32.totalorder %s159, %s161
      %p165 = scmp.eq.s32.totalorder %s20, 0
      %p166 = por %p164, %p165
      %p167 = scmp.ne.s32.totalorder %s159, %s161
      %p168 = scmp.eq.s32.totalorder %s25, 1
      %p169 = por %p167, %p168
      %p170 = scmp.ne.s32.totalorder %s161, %s162
      %p171 = scmp.eq.s32.totalorder %s25, 0
      %p172 = por %p170, %p171
      %p173 = scmp.ne.s32.totalorder %s161, %s162
      %p174 = scmp.eq.s32.totalorder %s26, 1
      %p175 = por %p173, %p174
      %p177 = scmp.ne.s32.totalorder %s162, %s176
      %p178 = scmp.eq.s32.totalorder %s26, 0
      %p179 = por %p177, %p178
      %s181 = sadd.s32 %s180, 1
      %p184 = scmp.eq.s32.totalorder %s20, 1
      %p185 = scmp.ne.s32.totalorder %s180, %s182
      %p186 = scmp.eq.s32.totalorder %s20, 0
      %p187 = por %p185, %p186
      %p188 = scmp.ne.s32.totalorder %s180, %s182
      %p189 = scmp.eq.s32.totalorder %s25, 1
      %p190 = por %p188, %p189
      %p191 = scmp.ne.s32.totalorder %s182, %s183
      %p192 = scmp.eq.s32.totalorder %s25, 0
      %p193 = por %p191, %p192
      %p194 = scmp.ne.s32.totalorder %s182, %s183
      %p195 = scmp.eq.s32.totalorder %s26, 1
      %p196 = por %p194, %p195
      %p198 = scmp.ne.s32.totalorder %s183, %s197
      %p199 = scmp.eq.s32.totalorder %s26, 0
      %p200 = por %p198, %p199
      %s202 = sadd.s32 %s201, 1
      %p205 = scmp.eq.s32.totalorder %s20, 1
      %p206 = scmp.ne.s32.totalorder %s201, %s203
      %p207 = scmp.eq.s32.totalorder %s20, 0
      %p208 = por %p206, %p207
      %p209 = scmp.ne.s32.totalorder %s201, %s203
      %p210 = scmp.eq.s32.totalorder %s25, 1
      %p211 = por %p209, %p210
      %p212 = scmp.ne.s32.totalorder %s203, %s204
      %p213 = scmp.eq.s32.totalorder %s25, 0
      %p214 = por %p212, %p213
      %p215 = scmp.ne.s32.totalorder %s203, %s204
      %p216 = scmp.eq.s32.totalorder %s26, 1
      %p217 = por %p215, %p216
      %p219 = scmp.ne.s32.totalorder %s204, %s218
      %p220 = scmp.eq.s32.totalorder %s26, 0
      %p221 = por %p219, %p220
      %s222 = ssub.s32 %s20, %s27
      %p223 = scmp.eq.s32.totalorder %s222, 0
      %s225 = sadd.s32 %s224, 1
      %s226 = scalar_select %p223, %s224, %s225
      %p229 = pneg %p223
      %p230 = scmp.eq.s32.totalorder %s20, 1
      %p231 = por %p229, %p230
      %p232 = scmp.ne.s32.totalorder %s224, %s227
      %p233 = scmp.eq.s32.totalorder %s20, 0
      %p234 = por %p232, %p233
      %p235 = scmp.ne.s32.totalorder %s224, %s227
      %p236 = scmp.eq.s32.totalorder %s25, 1
      %p237 = por %p235, %p236
      %p238 = scmp.ne.s32.totalorder %s227, %s228
      %p239 = scmp.eq.s32.totalorder %s25, 0
      %p240 = por %p238, %p239
      %p241 = scmp.ne.s32.totalorder %s227, %s228
      %p242 = scmp.eq.s32.totalorder %s26, 1
      %p243 = por %p241, %p242
      %p245 = scmp.ne.s32.totalorder %s228, %s244
      %p246 = scmp.eq.s32.totalorder %s26, 0
      %p247 = por %p245, %p246
      %p248 = scmp.le.s32.totalorder 1, %s20
      %p249 = scmp.lt.s32.totalorder %s20, 3
      %p250 = pnand %p248, %p249
      %p251 = pneg %p250
      // Predicated region
      $region9: #{tpu_custom_call.1} parent=5 // pred_check
        _
      $region10: #{tpu_custom_call.1} parent=5 // pred_check_branch
        %253 = sbr.rel (%p250) target = $region12
      $region11: #{tpu_custom_call.1} parent=5 // pred_region
        %s254 = ssub.s32 %s20, 1
        // Predicated region
        $region13: #{tpu_custom_call.1} parent=11 // pred_check
          %p255 = pneg %p67
        $region14: #{tpu_custom_call.1} parent=11 // pred_check_branch
          %257 = sbr.rel (%p255) target = $region16
        $region15: #{tpu_custom_call.1} parent=11 // pred_region
          %259 = vsyncadd [#allocation5], 0
          %s260 = sshll.u32 %s1, 4
          %s261 = int_to_ptr.hbm [resolvable:$true] %s260
          %s262 = sshll.u32 [#allocation4], 4
          %s263 = int_to_ptr.vmem [resolvable:$true] %s262
          %268 = dma.hbm_to_vmem [thread:$0]  %s261, 18432, %s263, [#allocation5], 128, 128, 8
        $region16: #{tpu_custom_call.1} parent=11 // pred_fallthru
          _
        // Predicated region
        $region17: #{tpu_custom_call.1} parent=11 // pred_check
          %p269 = pneg %p88
        $region18: #{tpu_custom_call.1} parent=11 // pred_check_branch
          %271 = sbr.rel (%p269) target = $region20
        $region19: #{tpu_custom_call.1} parent=11 // pred_region
          _
        $region20: #{tpu_custom_call.1} parent=11 // pred_fallthru
          _
        // Predicated region
        $region21: #{tpu_custom_call.1} parent=11 // pred_check
          %p272 = pneg %p109
        $region22: #{tpu_custom_call.1} parent=11 // pred_check_branch
          %274 = sbr.rel (%p272) target = $region24
        $region23: #{tpu_custom_call.1} parent=11 // pred_region
          _
        $region24: #{tpu_custom_call.1} parent=11 // pred_fallthru
          _
        // Predicated region
        $region25: #{tpu_custom_call.1} parent=11 // pred_check
          %p275 = pneg %p130
        $region26: #{tpu_custom_call.1} parent=11 // pred_check_branch
          %277 = sbr.rel (%p275) target = $region28
        $region27: #{tpu_custom_call.1} parent=11 // pred_region
          _
        $region28: #{tpu_custom_call.1} parent=11 // pred_fallthru
          _
        // Predicated region
        $region29: #{tpu_custom_call.1} parent=11 // pred_check
          %p278 = pneg %p151
        $region30: #{tpu_custom_call.1} parent=11 // pred_check_branch
          %280 = sbr.rel (%p278) target = $region32
        $region31: #{tpu_custom_call.1} parent=11 // pred_region
          %282 = vsyncadd [#allocation8], 0
          %s283 = sshll.u32 %s5, 4
          %s284 = int_to_ptr.hbm [resolvable:$true] %s283
          %s285 = sshll.u32 [#allocation7], 4
          %s286 = int_to_ptr.vmem [resolvable:$true] %s285
          %291 = dma.hbm_to_vmem [thread:$0]  %s284, 18432, %s286, [#allocation8], 128, 128, 8
        $region32: #{tpu_custom_call.1} parent=11 // pred_fallthru
          _
        // Predicated region
        $region33: #{tpu_custom_call.1} parent=11 // pred_check
          %p292 = pneg %p172
        $region34: #{tpu_custom_call.1} parent=11 // pred_check_branch
          %294 = sbr.rel (%p292) target = $region36
        $region35: #{tpu_custom_call.1} parent=11 // pred_region
          _
        $region36: #{tpu_custom_call.1} parent=11 // pred_fallthru
          _
        // Predicated region
        $region37: #{tpu_custom_call.1} parent=11 // pred_check
          %p295 = pneg %p193
        $region38: #{tpu_custom_call.1} parent=11 // pred_check_branch
          %297 = sbr.rel (%p295) target = $region40
        $region39: #{tpu_custom_call.1} parent=11 // pred_region
          _
        $region40: #{tpu_custom_call.1} parent=11 // pred_fallthru
          _
        // Predicated region
        $region41: #{tpu_custom_call.1} parent=11 // pred_check
          %p298 = pneg %p214
        $region42: #{tpu_custom_call.1} parent=11 // pred_check_branch
          %300 = sbr.rel (%p298) target = $region44
        $region43: #{tpu_custom_call.1} parent=11 // pred_region
          _
        $region44: #{tpu_custom_call.1} parent=11 // pred_fallthru
          _
      $region12: #{tpu_custom_call.1} parent=5 // pred_fallthru
        _
      %p301 = scmp.lt.s32.totalorder %s20, 2
      // Predicated region
      $region45: #{tpu_custom_call.1} parent=5 // pred_check
        %p302 = pneg %p301
      $region46: #{tpu_custom_call.1} parent=5 // pred_check_branch
        %304 = sbr.rel (%p302) target = $region48
      $region47: #{tpu_custom_call.1} parent=5 // pred_region
        // Predicated region
        $region49: #{tpu_custom_call.1} parent=47 // pred_check
          %p305 = pneg %p40
        $region50: #{tpu_custom_call.1} parent=47 // pred_check_branch
          %307 = sbr.rel (%p305) target = $region52
        $region51: #{tpu_custom_call.1} parent=47 // pred_region
          %p308 = scmp.lt.s32.totalorder %s20, 1
          %s309 = scalar_select %p308, %s20, 1
          %s310 = smul.addr %s309, 32
          %s311 = smul.addr %s310, 8
          %s312 = scalar_lea.vmem %s0, %s311
        $region52: #{tpu_custom_call.1} parent=47 // pred_fallthru
          _
      $region48: #{tpu_custom_call.1} parent=5 // pred_fallthru
        _
      %p313 = scmp.le.s32.totalorder 1, %s20
      %p314 = scmp.lt.s32.totalorder %s20, 3
      %p315 = pnand %p313, %p314
      %p316 = pneg %p315
      // Predicated region
      $region53: #{tpu_custom_call.1} parent=5 // pred_check
        _
      $region54: #{tpu_custom_call.1} parent=5 // pred_check_branch
        %318 = sbr.rel (%p315) target = $region56
      $region55: #{tpu_custom_call.1} parent=5 // pred_region
        %s319 = ssub.s32 %s20, 1
        // Predicated region
        $region57: #{tpu_custom_call.1} parent=55 // pred_check
          %p320 = pneg %p67
        $region58: #{tpu_custom_call.1} parent=55 // pred_check_branch
          %322 = sbr.rel (%p320) target = $region60
        $region59: #{tpu_custom_call.1} parent=55 // pred_region
          %324 = dma.done [#allocation5], 18432
        $region60: #{tpu_custom_call.1} parent=55 // pred_fallthru
          _
        // Predicated region
        $region61: #{tpu_custom_call.1} parent=55 // pred_check
          %p325 = pneg %p151
        $region62: #{tpu_custom_call.1} parent=55 // pred_check_branch
          %327 = sbr.rel (%p325) target = $region64
        $region63: #{tpu_custom_call.1} parent=55 // pred_region
          %329 = dma.done [#allocation8], 18432
        $region64: #{tpu_custom_call.1} parent=55 // pred_fallthru
          _
        %p330 = scmp.lt.s32.totalorder %s25, 1
        %s331 = scalar_select %p330, %s25, 1
        %s332 = smul.addr %s331, 32
        %s333 = smul.addr %s332, 8
        %s334 = scalar_lea.vmem %s0, %s333
        %p335 = pneg %p46
        %p336 = pneg %p43
        %p337 = pneg %p67
        %p338 = pneg %p64
        %p339 = pneg %p88
        %p340 = pneg %p85
        %p341 = pneg %p109
        %p342 = pneg %p106
        %p343 = pneg %p130
        %p344 = pneg %p127
        %p345 = pneg %p151
        %p346 = pneg %p148
        %p347 = pneg %p172
        %p348 = pneg %p169
        %p349 = pneg %p193
        %p350 = pneg %p190
        %p351 = pneg %p214
        %p352 = pneg %p211
        %p353 = pneg %p240
        %p354 = pneg %p237
        %s355 = sand.u32 %s227, 1
        %s356 = scalar_lea.sflag [#allocation6], %s355
        %s357 = sand.u32 %s227, 1
        %s358 = smul.addr %s357, 256
        %s359 = scalar_lea.vmem [#allocation9], %s358
        %p360 = scmp.lt.s32.totalorder %s25, 1
        %s361 = scalar_select %p360, %s25, 1
        %s362 = smul.addr %s361, 32
        %s363 = smul.addr %s362, 8
        %s364 = scalar_lea.vmem %s0, %s363
        %365 = vst [vmem:[#allocation2] sm:$0xff] 0.0
        %366 = vst [vmem:[#allocation2 + $0x8] sm:$0xff] 0.0
        %367 = vst [vmem:[#allocation2 + $0x10] sm:$0x3] 0.0
        %368 = vst [vmem:[#allocation2 + $0x18] sm:$0xff] 0.0
        %369 = vst [vmem:[#allocation2 + $0x20] sm:$0xff] 0.0
        %370 = vst [vmem:[#allocation2 + $0x28] sm:$0x3] 0.0
        %371 = vst [vmem:[#allocation2 + $0x30] sm:$0xff] 0.0
        %372 = vst [vmem:[#allocation2 + $0x38] sm:$0xff] 0.0
        %373 = vst [vmem:[#allocation2 + $0x40] sm:$0x3] 0.0
        %374 = vst [vmem:[#allocation2 + $0x48] sm:$0xff] 0.0
        %375 = vst [vmem:[#allocation2 + $0x50] sm:$0xff] 0.0
        %376 = vst [vmem:[#allocation2 + $0x58] sm:$0x3] 0.0
        %377 = vst [vmem:[#allocation2 + $0x60] sm:$0xff] 0.0
        %378 = vst [vmem:[#allocation2 + $0x68] sm:$0xff] 0.0
        %379 = vst [vmem:[#allocation2 + $0x70] sm:$0x3] 0.0
        %380 = vst [vmem:[#allocation2 + $0x78] sm:$0xff] 0.0
        %381 = vst [vmem:[#allocation2 + $0x80] sm:$0xff] 0.0
        %382 = vst [vmem:[#allocation2 + $0x88] sm:$0x3] 0.0
        %383 = vst [vmem:[#allocation2 + $0x90] sm:$0xff] 0.0
        %384 = vst [vmem:[#allocation2 + $0x98] sm:$0xff] 0.0
        %385 = vst [vmem:[#allocation2 + $0xa0] sm:$0x3] 0.0
        %386 = vst [vmem:[#allocation2 + $0xa8] sm:$0xff] 0.0
        %387 = vst [vmem:[#allocation2 + $0xb0] sm:$0xff] 0.0
        %388 = vst [vmem:[#allocation2 + $0xb8] sm:$0x3] 0.0
        %389 = vst [vmem:[#allocation2 + $0xc0] sm:$0xff] 0.0
        %390 = vst [vmem:[#allocation2 + $0xc8] sm:$0xff] 0.0
        %391 = vst [vmem:[#allocation2 + $0xd0] sm:$0x3] 0.0
        %392 = vst [vmem:[#allocation2 + $0xd8] sm:$0xff] 0.0
        %393 = vst [vmem:[#allocation2 + $0xe0] sm:$0xff] 0.0
        %394 = vst [vmem:[#allocation2 + $0xe8] sm:$0x3] 0.0
        %395 = vst [vmem:[#allocation2 + $0xf0] sm:$0xff] 0.0
        %396 = vst [vmem:[#allocation2 + $0xf8] sm:$0xff] 0.0
        %397 = vst [vmem:[#allocation2 + $0x100] sm:$0x3] 0.0
        %398 = vst [vmem:[#allocation2 + $0x108] sm:$0xff] 0.0
        %399 = vst [vmem:[#allocation2 + $0x110] sm:$0xff] 0.0
        %400 = vst [vmem:[#allocation2 + $0x118] sm:$0x3] 0.0
        %401 = vst [vmem:[#allocation2 + $0x120] sm:$0xff] 0.0
        %402 = vst [vmem:[#allocation2 + $0x128] sm:$0xff] 0.0
        %403 = vst [vmem:[#allocation2 + $0x130] sm:$0x3] 0.0
        %404 = vst [vmem:[#allocation2 + $0x138] sm:$0xff] 0.0
        %405 = vst [vmem:[#allocation2 + $0x140] sm:$0xff] 0.0
        %406 = vst [vmem:[#allocation2 + $0x148] sm:$0x3] 0.0
        %407 = vst [vmem:[#allocation2 + $0x150] sm:$0xff] 0.0
        %408 = vst [vmem:[#allocation2 + $0x158] sm:$0xff] 0.0
        %409 = vst [vmem:[#allocation2 + $0x160] sm:$0x3] 0.0
        %410 = vst [vmem:[#allocation2 + $0x168] sm:$0xff] 0.0
        %411 = vst [vmem:[#allocation2 + $0x170] sm:$0xff] 0.0
        %412 = vst [vmem:[#allocation2 + $0x178] sm:$0x3] 0.0
        %413 = vst [vmem:[#allocation2 + $0x180] sm:$0xff] 0.0
        %414 = vst [vmem:[#allocation2 + $0x188] sm:$0xff] 0.0
        %415 = vst [vmem:[#allocation2 + $0x190] sm:$0x3] 0.0
        %416 = vst [vmem:[#allocation2 + $0x198] sm:$0xff] 0.0
        %417 = vst [vmem:[#allocation2 + $0x1a0] sm:$0xff] 0.0
        %418 = vst [vmem:[#allocation2 + $0x1a8] sm:$0x3] 0.0
        %v419 = vld [vmem:[%s364] sm:$0xff]
        %v420 = vld [vmem:[%s364 + $0x8] sm:$0xff]
        %v421 = vld [vmem:[%s364 + $0x10] sm:$0xff]
        %v422 = vld [vmem:[%s364 + $0x18] sm:$0xff]
        %v423 = vld [vmem:[%s364 + $0x20] sm:$0xff]
        %v424 = vld [vmem:[%s364 + $0x28] sm:$0xff]
        %v425 = vld [vmem:[%s364 + $0x30] sm:$0xff]
        %v426 = vld [vmem:[%s364 + $0x38] sm:$0xff]
        %v427 = vld [vmem:[%s364 + $0x40] sm:$0xff]
        %v428 = vld [vmem:[%s364 + $0x48] sm:$0xff]
        %v429 = vld [vmem:[%s364 + $0x50] sm:$0xff]
        %v430 = vld [vmem:[%s364 + $0x58] sm:$0xff]
        %v431 = vld [vmem:[%s364 + $0x60] sm:$0xff]
        %v432 = vld [vmem:[%s364 + $0x68] sm:$0xff]
        %v433 = vld [vmem:[%s364 + $0x70] sm:$0xff]
        %v434 = vld [vmem:[%s364 + $0x78] sm:$0xff]
        %v435 = vld [vmem:[%s364 + $0x80] sm:$0xff]
        %v436 = vld [vmem:[%s364 + $0x88] sm:$0xff]
        %v437 = vld [vmem:[%s364 + $0x90] sm:$0xff]
        %v438 = vld [vmem:[%s364 + $0x98] sm:$0xff]
        %v439 = vld [vmem:[%s364 + $0xa0] sm:$0xff]
        %v440 = vld [vmem:[%s364 + $0xa8] sm:$0xff]
        %v441 = vld [vmem:[%s364 + $0xb0] sm:$0xff]
        %v442 = vld [vmem:[%s364 + $0xb8] sm:$0xff]
        %v443 = vld [vmem:[%s364 + $0xc0] sm:$0xff]
        %v444 = vld [vmem:[%s364 + $0xc8] sm:$0xff]
        %v445 = vld [vmem:[%s364 + $0xd0] sm:$0xff]
        %v446 = vld [vmem:[%s364 + $0xd8] sm:$0xff]
        %v447 = vld [vmem:[%s364 + $0xe0] sm:$0xff]
        %v448 = vld [vmem:[%s364 + $0xe8] sm:$0xff]
        %v449 = vld [vmem:[%s364 + $0xf0] sm:$0xff]
        %v450 = vld [vmem:[%s364 + $0xf8] sm:$0xff]
        %s451 = scalar_lea.vmem [#allocation2], 24
        %vm452 = vcmask 31744
        %453 = vst.msk [vmem:[%s451 + $0x1] sm:$0xff] %vm452, %v419
        %454 = vst.msk [vmem:[%s451 + $0x9] sm:$0xff] %vm452, %v420
        %455 = vst.msk [vmem:[%s451 + $0x19] sm:$0xff] %vm452, %v421
        %456 = vst.msk [vmem:[%s451 + $0x21] sm:$0xff] %vm452, %v422
        %457 = vst.msk [vmem:[%s451 + $0x31] sm:$0xff] %vm452, %v423
        %458 = vst.msk [vmem:[%s451 + $0x39] sm:$0xff] %vm452, %v424
        %459 = vst.msk [vmem:[%s451 + $0x49] sm:$0xff] %vm452, %v425
        %460 = vst.msk [vmem:[%s451 + $0x51] sm:$0xff] %vm452, %v426
        %461 = vst.msk [vmem:[%s451 + $0x61] sm:$0xff] %vm452, %v427
        %462 = vst.msk [vmem:[%s451 + $0x69] sm:$0xff] %vm452, %v428
        %463 = vst.msk [vmem:[%s451 + $0x79] sm:$0xff] %vm452, %v429
        %464 = vst.msk [vmem:[%s451 + $0x81] sm:$0xff] %vm452, %v430
        %465 = vst.msk [vmem:[%s451 + $0x91] sm:$0xff] %vm452, %v431
        %466 = vst.msk [vmem:[%s451 + $0x99] sm:$0xff] %vm452, %v432
        %467 = vst.msk [vmem:[%s451 + $0xa9] sm:$0xff] %vm452, %v433
        %468 = vst.msk [vmem:[%s451 + $0xb1] sm:$0xff] %vm452, %v434
        %469 = vst.msk [vmem:[%s451 + $0xc1] sm:$0xff] %vm452, %v435
        %470 = vst.msk [vmem:[%s451 + $0xc9] sm:$0xff] %vm452, %v436
        %471 = vst.msk [vmem:[%s451 + $0xd9] sm:$0xff] %vm452, %v437
        %472 = vst.msk [vmem:[%s451 + $0xe1] sm:$0xff] %vm452, %v438
        %473 = vst.msk [vmem:[%s451 + $0xf1] sm:$0xff] %vm452, %v439
        %474 = vst.msk [vmem:[%s451 + $0xf9] sm:$0xff] %vm452, %v440
        %475 = vst.msk [vmem:[%s451 + $0x109] sm:$0xff] %vm452, %v441
        %476 = vst.msk [vmem:[%s451 + $0x111] sm:$0xff] %vm452, %v442
        %477 = vst.msk [vmem:[%s451 + $0x121] sm:$0xff] %vm452, %v443
        %478 = vst.msk [vmem:[%s451 + $0x129] sm:$0xff] %vm452, %v444
        %479 = vst.msk [vmem:[%s451 + $0x139] sm:$0xff] %vm452, %v445
        %480 = vst.msk [vmem:[%s451 + $0x141] sm:$0xff] %vm452, %v446
        %481 = vst.msk [vmem:[%s451 + $0x151] sm:$0xff] %vm452, %v447
        %482 = vst.msk [vmem:[%s451 + $0x159] sm:$0xff] %vm452, %v448
        %483 = vst.msk [vmem:[%s451 + $0x169] sm:$0xff] %vm452, %v449
        %484 = vst.msk [vmem:[%s451 + $0x171] sm:$0xff] %vm452, %v450
        %v485 = vld [vmem:[#allocation2] sm:$0xff]
        %v486 = vld [vmem:[#allocation2 + $0x8] sm:$0xff]
        %v487 = vld [vmem:[#allocation2 + $0x18] sm:$0xff]
        %v488 = vld [vmem:[#allocation2 + $0x20] sm:$0xff]
        %v489 = vld [vmem:[#allocation2 + $0x30] sm:$0xff]
        %v490 = vld [vmem:[#allocation2 + $0x38] sm:$0xff]
        %v491 = vld [vmem:[#allocation2 + $0x48] sm:$0xff]
        %v492 = vld [vmem:[#allocation2 + $0x50] sm:$0xff]
        %v493 = vld [vmem:[#allocation2 + $0x60] sm:$0xff]
        %v494 = vld [vmem:[#allocation2 + $0x68] sm:$0xff]
        %v495 = vld [vmem:[#allocation2 + $0x78] sm:$0xff]
        %v496 = vld [vmem:[#allocation2 + $0x80] sm:$0xff]
        %v497 = vld [vmem:[#allocation2 + $0x90] sm:$0xff]
        %v498 = vld [vmem:[#allocation2 + $0x98] sm:$0xff]
        %v499 = vld [vmem:[#allocation2 + $0xa8] sm:$0xff]
        %v500 = vld [vmem:[#allocation2 + $0xb0] sm:$0xff]
        %v501 = vld [vmem:[#allocation2 + $0xc0] sm:$0xff]
        %v502 = vld [vmem:[#allocation2 + $0xc8] sm:$0xff]
        %v503 = vld [vmem:[#allocation2 + $0xd8] sm:$0xff]
        %v504 = vld [vmem:[#allocation2 + $0xe0] sm:$0xff]
        %v505 = vld [vmem:[#allocation2 + $0xf0] sm:$0xff]
        %v506 = vld [vmem:[#allocation2 + $0xf8] sm:$0xff]
        %v507 = vld [vmem:[#allocation2 + $0x108] sm:$0xff]
        %v508 = vld [vmem:[#allocation2 + $0x110] sm:$0xff]
        %v509 = vld [vmem:[#allocation2 + $0x120] sm:$0xff]
        %v510 = vld [vmem:[#allocation2 + $0x128] sm:$0xff]
        %v511 = vld [vmem:[#allocation2 + $0x138] sm:$0xff]
        %v512 = vld [vmem:[#allocation2 + $0x140] sm:$0xff]
        %v513 = vld [vmem:[#allocation2 + $0x150] sm:$0xff]
        %v514 = vld [vmem:[#allocation2 + $0x158] sm:$0xff]
        %v515 = vld [vmem:[#allocation2 + $0x168] sm:$0xff]
        %v516 = vld [vmem:[#allocation2 + $0x170] sm:$0xff]
        %v517 = vld [vmem:[#allocation2 + $0x1] sm:$0xff]
        %v518 = vld [vmem:[#allocation2 + $0x9] sm:$0xff]
        %v519 = vld [vmem:[#allocation2 + $0x19] sm:$0xff]
        %v520 = vld [vmem:[#allocation2 + $0x21] sm:$0xff]
        %v521 = vld [vmem:[#allocation2 + $0x31] sm:$0xff]
        %v522 = vld [vmem:[#allocation2 + $0x39] sm:$0xff]
        %v523 = vld [vmem:[#allocation2 + $0x49] sm:$0xff]
        %v524 = vld [vmem:[#allocation2 + $0x51] sm:$0xff]
        %v525 = vld [vmem:[#allocation2 + $0x61] sm:$0xff]
        %v526 = vld [vmem:[#allocation2 + $0x69] sm:$0xff]
        %v527 = vld [vmem:[#allocation2 + $0x79] sm:$0xff]
        %v528 = vld [vmem:[#allocation2 + $0x81] sm:$0xff]
        %v529 = vld [vmem:[#allocation2 + $0x91] sm:$0xff]
        %v530 = vld [vmem:[#allocation2 + $0x99] sm:$0xff]
        %v531 = vld [vmem:[#allocation2 + $0xa9] sm:$0xff]
        %v532 = vld [vmem:[#allocation2 + $0xb1] sm:$0xff]
        %v533 = vld [vmem:[#allocation2 + $0xc1] sm:$0xff]
        %v534 = vld [vmem:[#allocation2 + $0xc9] sm:$0xff]
        %v535 = vld [vmem:[#allocation2 + $0xd9] sm:$0xff]
        %v536 = vld [vmem:[#allocation2 + $0xe1] sm:$0xff]
        %v537 = vld [vmem:[#allocation2 + $0xf1] sm:$0xff]
        %v538 = vld [vmem:[#allocation2 + $0xf9] sm:$0xff]
        %v539 = vld [vmem:[#allocation2 + $0x109] sm:$0xff]
        %v540 = vld [vmem:[#allocation2 + $0x111] sm:$0xff]
        %v541 = vld [vmem:[#allocation2 + $0x121] sm:$0xff]
        %v542 = vld [vmem:[#allocation2 + $0x129] sm:$0xff]
        %v543 = vld [vmem:[#allocation2 + $0x139] sm:$0xff]
        %v544 = vld [vmem:[#allocation2 + $0x141] sm:$0xff]
        %v545 = vld [vmem:[#allocation2 + $0x151] sm:$0xff]
        %v546 = vld [vmem:[#allocation2 + $0x159] sm:$0xff]
        %v547 = vld [vmem:[#allocation2 + $0x169] sm:$0xff]
        %v548 = vld [vmem:[#allocation2 + $0x171] sm:$0xff]
        %v549 = vld [vmem:[#allocation2 + $0x2] sm:$0xff]
        %v550 = vld [vmem:[#allocation2 + $0xa] sm:$0xff]
        %v551 = vld [vmem:[#allocation2 + $0x1a] sm:$0xff]
        %v552 = vld [vmem:[#allocation2 + $0x22] sm:$0xff]
        %v553 = vld [vmem:[#allocation2 + $0x32] sm:$0xff]
        %v554 = vld [vmem:[#allocation2 + $0x3a] sm:$0xff]
        %v555 = vld [vmem:[#allocation2 + $0x4a] sm:$0xff]
        %v556 = vld [vmem:[#allocation2 + $0x52] sm:$0xff]
        %v557 = vld [vmem:[#allocation2 + $0x62] sm:$0xff]
        %v558 = vld [vmem:[#allocation2 + $0x6a] sm:$0xff]
        %v559 = vld [vmem:[#allocation2 + $0x7a] sm:$0xff]
        %v560 = vld [vmem:[#allocation2 + $0x82] sm:$0xff]
        %v561 = vld [vmem:[#allocation2 + $0x92] sm:$0xff]
        %v562 = vld [vmem:[#allocation2 + $0x9a] sm:$0xff]
        %v563 = vld [vmem:[#allocation2 + $0xaa] sm:$0xff]
        %v564 = vld [vmem:[#allocation2 + $0xb2] sm:$0xff]
        %v565 = vld [vmem:[#allocation2 + $0xc2] sm:$0xff]
        %v566 = vld [vmem:[#allocation2 + $0xca] sm:$0xff]
        %v567 = vld [vmem:[#allocation2 + $0xda] sm:$0xff]
        %v568 = vld [vmem:[#allocation2 + $0xe2] sm:$0xff]
        %v569 = vld [vmem:[#allocation2 + $0xf2] sm:$0xff]
        %v570 = vld [vmem:[#allocation2 + $0xfa] sm:$0xff]
        %v571 = vld [vmem:[#allocation2 + $0x10a] sm:$0xff]
        %v572 = vld [vmem:[#allocation2 + $0x112] sm:$0xff]
        %v573 = vld [vmem:[#allocation2 + $0x122] sm:$0xff]
        %v574 = vld [vmem:[#allocation2 + $0x12a] sm:$0xff]
        %v575 = vld [vmem:[#allocation2 + $0x13a] sm:$0xff]
        %v576 = vld [vmem:[#allocation2 + $0x142] sm:$0xff]
        %v577 = vld [vmem:[#allocation2 + $0x152] sm:$0xff]
        %v578 = vld [vmem:[#allocation2 + $0x15a] sm:$0xff]
        %v579 = vld [vmem:[#allocation2 + $0x16a] sm:$0xff]
        %v580 = vld [vmem:[#allocation2 + $0x172] sm:$0xff]
        %v581 = vld [vmem:[%s451] sm:$0xff]
        %v582 = vld [vmem:[%s451 + $0x8] sm:$0xff]
        %v583 = vld [vmem:[%s451 + $0x18] sm:$0xff]
        %v584 = vld [vmem:[%s451 + $0x20] sm:$0xff]
        %v585 = vld [vmem:[%s451 + $0x30] sm:$0xff]
        %v586 = vld [vmem:[%s451 + $0x38] sm:$0xff]
        %v587 = vld [vmem:[%s451 + $0x48] sm:$0xff]
        %v588 = vld [vmem:[%s451 + $0x50] sm:$0xff]
        %v589 = vld [vmem:[%s451 + $0x60] sm:$0xff]
        %v590 = vld [vmem:[%s451 + $0x68] sm:$0xff]
        %v591 = vld [vmem:[%s451 + $0x78] sm:$0xff]
        %v592 = vld [vmem:[%s451 + $0x80] sm:$0xff]
        %v593 = vld [vmem:[%s451 + $0x90] sm:$0xff]
        %v594 = vld [vmem:[%s451 + $0x98] sm:$0xff]
        %v595 = vld [vmem:[%s451 + $0xa8] sm:$0xff]
        %v596 = vld [vmem:[%s451 + $0xb0] sm:$0xff]
        %v597 = vld [vmem:[%s451 + $0xc0] sm:$0xff]
        %v598 = vld [vmem:[%s451 + $0xc8] sm:$0xff]
        %v599 = vld [vmem:[%s451 + $0xd8] sm:$0xff]
        %v600 = vld [vmem:[%s451 + $0xe0] sm:$0xff]
        %v601 = vld [vmem:[%s451 + $0xf0] sm:$0xff]
        %v602 = vld [vmem:[%s451 + $0xf8] sm:$0xff]
        %v603 = vld [vmem:[%s451 + $0x108] sm:$0xff]
        %v604 = vld [vmem:[%s451 + $0x110] sm:$0xff]
        %v605 = vld [vmem:[%s451 + $0x120] sm:$0xff]
        %v606 = vld [vmem:[%s451 + $0x128] sm:$0xff]
        %v607 = vld [vmem:[%s451 + $0x138] sm:$0xff]
        %v608 = vld [vmem:[%s451 + $0x140] sm:$0xff]
        %v609 = vld [vmem:[%s451 + $0x150] sm:$0xff]
        %v610 = vld [vmem:[%s451 + $0x158] sm:$0xff]
        %v611 = vld [vmem:[%s451 + $0x168] sm:$0xff]
        %v612 = vld [vmem:[%s451 + $0x170] sm:$0xff]
        %v613 = vld [vmem:[%s451 + $0x1] sm:$0xff]
        %v614 = vld [vmem:[%s451 + $0x9] sm:$0xff]
        %v615 = vld [vmem:[%s451 + $0x19] sm:$0xff]
        %v616 = vld [vmem:[%s451 + $0x21] sm:$0xff]
        %v617 = vld [vmem:[%s451 + $0x31] sm:$0xff]
        %v618 = vld [vmem:[%s451 + $0x39] sm:$0xff]
        %v619 = vld [vmem:[%s451 + $0x49] sm:$0xff]
        %v620 = vld [vmem:[%s451 + $0x51] sm:$0xff]
        %v621 = vld [vmem:[%s451 + $0x61] sm:$0xff]
        %v622 = vld [vmem:[%s451 + $0x69] sm:$0xff]
        %v623 = vld [vmem:[%s451 + $0x79] sm:$0xff]
        %v624 = vld [vmem:[%s451 + $0x81] sm:$0xff]
        %v625 = vld [vmem:[%s451 + $0x91] sm:$0xff]
        %v626 = vld [vmem:[%s451 + $0x99] sm:$0xff]
        %v627 = vld [vmem:[%s451 + $0xa9] sm:$0xff]
        %v628 = vld [vmem:[%s451 + $0xb1] sm:$0xff]
        %v629 = vld [vmem:[%s451 + $0xc1] sm:$0xff]
        %v630 = vld [vmem:[%s451 + $0xc9] sm:$0xff]
        %v631 = vld [vmem:[%s451 + $0xd9] sm:$0xff]
        %v632 = vld [vmem:[%s451 + $0xe1] sm:$0xff]
        %v633 = vld [vmem:[%s451 + $0xf1] sm:$0xff]
        %v634 = vld [vmem:[%s451 + $0xf9] sm:$0xff]
        %v635 = vld [vmem:[%s451 + $0x109] sm:$0xff]
        %v636 = vld [vmem:[%s451 + $0x111] sm:$0xff]
        %v637 = vld [vmem:[%s451 + $0x121] sm:$0xff]
        %v638 = vld [vmem:[%s451 + $0x129] sm:$0xff]
        %v639 = vld [vmem:[%s451 + $0x139] sm:$0xff]
        %v640 = vld [vmem:[%s451 + $0x141] sm:$0xff]
        %v641 = vld [vmem:[%s451 + $0x151] sm:$0xff]
        %v642 = vld [vmem:[%s451 + $0x159] sm:$0xff]
        %v643 = vld [vmem:[%s451 + $0x169] sm:$0xff]
        %v644 = vld [vmem:[%s451 + $0x171] sm:$0xff]
        %v645 = vld [vmem:[%s451 + $0x2] sm:$0xff]
        %v646 = vld [vmem:[%s451 + $0xa] sm:$0xff]
        %v647 = vld [vmem:[%s451 + $0x1a] sm:$0xff]
        %v648 = vld [vmem:[%s451 + $0x22] sm:$0xff]
        %v649 = vld [vmem:[%s451 + $0x32] sm:$0xff]
        %v650 = vld [vmem:[%s451 + $0x3a] sm:$0xff]
        %v651 = vld [vmem:[%s451 + $0x4a] sm:$0xff]
        %v652 = vld [vmem:[%s451 + $0x52] sm:$0xff]
        %v653 = vld [vmem:[%s451 + $0x62] sm:$0xff]
        %v654 = vld [vmem:[%s451 + $0x6a] sm:$0xff]
        %v655 = vld [vmem:[%s451 + $0x7a] sm:$0xff]
        %v656 = vld [vmem:[%s451 + $0x82] sm:$0xff]
        %v657 = vld [vmem:[%s451 + $0x92] sm:$0xff]
        %v658 = vld [vmem:[%s451 + $0x9a] sm:$0xff]
        %v659 = vld [vmem:[%s451 + $0xaa] sm:$0xff]
        %v660 = vld [vmem:[%s451 + $0xb2] sm:$0xff]
        %v661 = vld [vmem:[%s451 + $0xc2] sm:$0xff]
        %v662 = vld [vmem:[%s451 + $0xca] sm:$0xff]
        %v663 = vld [vmem:[%s451 + $0xda] sm:$0xff]
        %v664 = vld [vmem:[%s451 + $0xe2] sm:$0xff]
        %v665 = vld [vmem:[%s451 + $0xf2] sm:$0xff]
        %v666 = vld [vmem:[%s451 + $0xfa] sm:$0xff]
        %v667 = vld [vmem:[%s451 + $0x10a] sm:$0xff]
        %v668 = vld [vmem:[%s451 + $0x112] sm:$0xff]
        %v669 = vld [vmem:[%s451 + $0x122] sm:$0xff]
        %v670 = vld [vmem:[%s451 + $0x12a] sm:$0xff]
        %v671 = vld [vmem:[%s451 + $0x13a] sm:$0xff]
        %v672 = vld [vmem:[%s451 + $0x142] sm:$0xff]
        %v673 = vld [vmem:[%s451 + $0x152] sm:$0xff]
        %v674 = vld [vmem:[%s451 + $0x15a] sm:$0xff]
        %v675 = vld [vmem:[%s451 + $0x16a] sm:$0xff]
        %v676 = vld [vmem:[%s451 + $0x172] sm:$0xff]
        %s677 = scalar_lea.vmem [#allocation2], 48
        %v678 = vld [vmem:[%s677] sm:$0xff]
        %v679 = vld [vmem:[%s677 + $0x8] sm:$0xff]
        %v680 = vld [vmem:[%s677 + $0x18] sm:$0xff]
        %v681 = vld [vmem:[%s677 + $0x20] sm:$0xff]
        %v682 = vld [vmem:[%s677 + $0x30] sm:$0xff]
        %v683 = vld [vmem:[%s677 + $0x38] sm:$0xff]
        %v684 = vld [vmem:[%s677 + $0x48] sm:$0xff]
        %v685 = vld [vmem:[%s677 + $0x50] sm:$0xff]
        %v686 = vld [vmem:[%s677 + $0x60] sm:$0xff]
        %v687 = vld [vmem:[%s677 + $0x68] sm:$0xff]
        %v688 = vld [vmem:[%s677 + $0x78] sm:$0xff]
        %v689 = vld [vmem:[%s677 + $0x80] sm:$0xff]
        %v690 = vld [vmem:[%s677 + $0x90] sm:$0xff]
        %v691 = vld [vmem:[%s677 + $0x98] sm:$0xff]
        %v692 = vld [vmem:[%s677 + $0xa8] sm:$0xff]
        %v693 = vld [vmem:[%s677 + $0xb0] sm:$0xff]
        %v694 = vld [vmem:[%s677 + $0xc0] sm:$0xff]
        %v695 = vld [vmem:[%s677 + $0xc8] sm:$0xff]
        %v696 = vld [vmem:[%s677 + $0xd8] sm:$0xff]
        %v697 = vld [vmem:[%s677 + $0xe0] sm:$0xff]
        %v698 = vld [vmem:[%s677 + $0xf0] sm:$0xff]
        %v699 = vld [vmem:[%s677 + $0xf8] sm:$0xff]
        %v700 = vld [vmem:[%s677 + $0x108] sm:$0xff]
        %v701 = vld [vmem:[%s677 + $0x110] sm:$0xff]
        %v702 = vld [vmem:[%s677 + $0x120] sm:$0xff]
        %v703 = vld [vmem:[%s677 + $0x128] sm:$0xff]
        %v704 = vld [vmem:[%s677 + $0x138] sm:$0xff]
        %v705 = vld [vmem:[%s677 + $0x140] sm:$0xff]
        %v706 = vld [vmem:[%s677 + $0x150] sm:$0xff]
        %v707 = vld [vmem:[%s677 + $0x158] sm:$0xff]
        %v708 = vld [vmem:[%s677 + $0x168] sm:$0xff]
        %v709 = vld [vmem:[%s677 + $0x170] sm:$0xff]
        %v710 = vld [vmem:[%s677 + $0x1] sm:$0xff]
        %v711 = vld [vmem:[%s677 + $0x9] sm:$0xff]
        %v712 = vld [vmem:[%s677 + $0x19] sm:$0xff]
        %v713 = vld [vmem:[%s677 + $0x21] sm:$0xff]
        %v714 = vld [vmem:[%s677 + $0x31] sm:$0xff]
        %v715 = vld [vmem:[%s677 + $0x39] sm:$0xff]
        %v716 = vld [vmem:[%s677 + $0x49] sm:$0xff]
        %v717 = vld [vmem:[%s677 + $0x51] sm:$0xff]
        %v718 = vld [vmem:[%s677 + $0x61] sm:$0xff]
        %v719 = vld [vmem:[%s677 + $0x69] sm:$0xff]
        %v720 = vld [vmem:[%s677 + $0x79] sm:$0xff]
        %v721 = vld [vmem:[%s677 + $0x81] sm:$0xff]
        %v722 = vld [vmem:[%s677 + $0x91] sm:$0xff]
        %v723 = vld [vmem:[%s677 + $0x99] sm:$0xff]
        %v724 = vld [vmem:[%s677 + $0xa9] sm:$0xff]
        %v725 = vld [vmem:[%s677 + $0xb1] sm:$0xff]
        %v726 = vld [vmem:[%s677 + $0xc1] sm:$0xff]
        %v727 = vld [vmem:[%s677 + $0xc9] sm:$0xff]
        %v728 = vld [vmem:[%s677 + $0xd9] sm:$0xff]
        %v729 = vld [vmem:[%s677 + $0xe1] sm:$0xff]
        %v730 = vld [vmem:[%s677 + $0xf1] sm:$0xff]
        %v731 = vld [vmem:[%s677 + $0xf9] sm:$0xff]
        %v732 = vld [vmem:[%s677 + $0x109] sm:$0xff]
        %v733 = vld [vmem:[%s677 + $0x111] sm:$0xff]
        %v734 = vld [vmem:[%s677 + $0x121] sm:$0xff]
        %v735 = vld [vmem:[%s677 + $0x129] sm:$0xff]
        %v736 = vld [vmem:[%s677 + $0x139] sm:$0xff]
        %v737 = vld [vmem:[%s677 + $0x141] sm:$0xff]
        %v738 = vld [vmem:[%s677 + $0x151] sm:$0xff]
        %v739 = vld [vmem:[%s677 + $0x159] sm:$0xff]
        %v740 = vld [vmem:[%s677 + $0x169] sm:$0xff]
        %v741 = vld [vmem:[%s677 + $0x171] sm:$0xff]
        %v742 = vld [vmem:[%s677 + $0x2] sm:$0xff]
        %v743 = vld [vmem:[%s677 + $0xa] sm:$0xff]
        %v744 = vld [vmem:[%s677 + $0x1a] sm:$0xff]
        %v745 = vld [vmem:[%s677 + $0x22] sm:$0xff]
        %v746 = vld [vmem:[%s677 + $0x32] sm:$0xff]
        %v747 = vld [vmem:[%s677 + $0x3a] sm:$0xff]
        %v748 = vld [vmem:[%s677 + $0x4a] sm:$0xff]
        %v749 = vld [vmem:[%s677 + $0x52] sm:$0xff]
        %v750 = vld [vmem:[%s677 + $0x62] sm:$0xff]
        %v751 = vld [vmem:[%s677 + $0x6a] sm:$0xff]
        %v752 = vld [vmem:[%s677 + $0x7a] sm:$0xff]
        %v753 = vld [vmem:[%s677 + $0x82] sm:$0xff]
        %v754 = vld [vmem:[%s677 + $0x92] sm:$0xff]
        %v755 = vld [vmem:[%s677 + $0x9a] sm:$0xff]
        %v756 = vld [vmem:[%s677 + $0xaa] sm:$0xff]
        %v757 = vld [vmem:[%s677 + $0xb2] sm:$0xff]
        %v758 = vld [vmem:[%s677 + $0xc2] sm:$0xff]
        %v759 = vld [vmem:[%s677 + $0xca] sm:$0xff]
        %v760 = vld [vmem:[%s677 + $0xda] sm:$0xff]
        %v761 = vld [vmem:[%s677 + $0xe2] sm:$0xff]
        %v762 = vld [vmem:[%s677 + $0xf2] sm:$0xff]
        %v763 = vld [vmem:[%s677 + $0xfa] sm:$0xff]
        %v764 = vld [vmem:[%s677 + $0x10a] sm:$0xff]
        %v765 = vld [vmem:[%s677 + $0x112] sm:$0xff]
        %v766 = vld [vmem:[%s677 + $0x122] sm:$0xff]
        %v767 = vld [vmem:[%s677 + $0x12a] sm:$0xff]
        %v768 = vld [vmem:[%s677 + $0x13a] sm:$0xff]
        %v769 = vld [vmem:[%s677 + $0x142] sm:$0xff]
        %v770 = vld [vmem:[%s677 + $0x152] sm:$0xff]
        %v771 = vld [vmem:[%s677 + $0x15a] sm:$0xff]
        %v772 = vld [vmem:[%s677 + $0x16a] sm:$0xff]
        %v773 = vld [vmem:[%s677 + $0x172] sm:$0xff]
        %v774 = vld [vmem:[#allocation4] sm:$0xff]
        %v775 = vld [vmem:[#allocation4 + $0x8] sm:$0xff]
        %v776 = vld [vmem:[#allocation4 + $0x10] sm:$0xff]
        %v777 = vld [vmem:[#allocation4 + $0x18] sm:$0xff]
        %v778 = vld [vmem:[#allocation4 + $0x20] sm:$0xff]
        %v779 = vld [vmem:[#allocation4 + $0x28] sm:$0xff]
        %v780 = vld [vmem:[#allocation4 + $0x30] sm:$0xff]
        %v781 = vld [vmem:[#allocation4 + $0x38] sm:$0xff]
        %v782 = vld [vmem:[#allocation4 + $0x40] sm:$0xff]
        %v783 = vld [vmem:[#allocation4 + $0x48] sm:$0xff]
        %v784 = vld [vmem:[#allocation4 + $0x50] sm:$0xff]
        %v785 = vld [vmem:[#allocation4 + $0x58] sm:$0xff]
        %v786 = vld [vmem:[#allocation4 + $0x60] sm:$0xff]
        %v787 = vld [vmem:[#allocation4 + $0x68] sm:$0xff]
        %v788 = vld [vmem:[#allocation4 + $0x70] sm:$0xff]
        %v789 = vld [vmem:[#allocation4 + $0x78] sm:$0xff]
        %v790 = vld [vmem:[#allocation4 + $0x80] sm:$0xff]
        %v791 = vld [vmem:[#allocation4 + $0x88] sm:$0xff]
        %v792 = vld [vmem:[#allocation4 + $0x90] sm:$0xff]
        %v793 = vld [vmem:[#allocation4 + $0x98] sm:$0xff]
        %v794 = vld [vmem:[#allocation4 + $0xa0] sm:$0xff]
        %v795 = vld [vmem:[#allocation4 + $0xa8] sm:$0xff]
        %v796 = vld [vmem:[#allocation4 + $0xb0] sm:$0xff]
        %v797 = vld [vmem:[#allocation4 + $0xb8] sm:$0xff]
        %v798 = vld [vmem:[#allocation4 + $0xc0] sm:$0xff]
        %v799 = vld [vmem:[#allocation4 + $0xc8] sm:$0xff]
        %v800 = vld [vmem:[#allocation4 + $0xd0] sm:$0xff]
        %v801 = vld [vmem:[#allocation4 + $0xd8] sm:$0xff]
        %v802 = vld [vmem:[#allocation4 + $0xe0] sm:$0xff]
        %v803 = vld [vmem:[#allocation4 + $0xe8] sm:$0xff]
        %v804 = vld [vmem:[#allocation4 + $0xf0] sm:$0xff]
        %v805 = vld [vmem:[#allocation4 + $0xf8] sm:$0xff]
        %v806 = vld [vmem:[#allocation4 + $0x100] sm:$0xff]
        %v807 = vld [vmem:[#allocation4 + $0x108] sm:$0xff]
        %v808 = vld [vmem:[#allocation4 + $0x110] sm:$0xff]
        %v809 = vld [vmem:[#allocation4 + $0x118] sm:$0xff]
        %v810 = vld [vmem:[#allocation4 + $0x120] sm:$0xff]
        %v811 = vld [vmem:[#allocation4 + $0x128] sm:$0xff]
        %v812 = vld [vmem:[#allocation4 + $0x130] sm:$0xff]
        %v813 = vld [vmem:[#allocation4 + $0x138] sm:$0xff]
        %v814 = vld [vmem:[#allocation4 + $0x140] sm:$0xff]
        %v815 = vld [vmem:[#allocation4 + $0x148] sm:$0xff]
        %v816 = vld [vmem:[#allocation4 + $0x150] sm:$0xff]
        %v817 = vld [vmem:[#allocation4 + $0x158] sm:$0xff]
        %v818 = vld [vmem:[#allocation4 + $0x160] sm:$0xff]
        %v819 = vld [vmem:[#allocation4 + $0x168] sm:$0xff]
        %v820 = vld [vmem:[#allocation4 + $0x170] sm:$0xff]
        %v821 = vld [vmem:[#allocation4 + $0x178] sm:$0xff]
        %v822 = vld [vmem:[#allocation4 + $0x180] sm:$0xff]
        %v823 = vld [vmem:[#allocation4 + $0x188] sm:$0xff]
        %v824 = vld [vmem:[#allocation4 + $0x190] sm:$0xff]
        %v825 = vld [vmem:[#allocation4 + $0x198] sm:$0xff]
        %v826 = vld [vmem:[#allocation4 + $0x1a0] sm:$0xff]
        %v827 = vld [vmem:[#allocation4 + $0x1a8] sm:$0xff]
        %v828 = vld [vmem:[#allocation4 + $0x1b0] sm:$0xff]
        %v829 = vld [vmem:[#allocation4 + $0x1b8] sm:$0xff]
        %v830 = vld [vmem:[#allocation4 + $0x1c0] sm:$0xff]
        %v831 = vld [vmem:[#allocation4 + $0x1c8] sm:$0xff]
        %v832 = vld [vmem:[#allocation4 + $0x1d0] sm:$0xff]
        %v833 = vld [vmem:[#allocation4 + $0x1d8] sm:$0xff]
        %v834 = vld [vmem:[#allocation4 + $0x1e0] sm:$0xff]
        %v835 = vld [vmem:[#allocation4 + $0x1e8] sm:$0xff]
        %v836 = vld [vmem:[#allocation4 + $0x1f0] sm:$0xff]
        %v837 = vld [vmem:[#allocation4 + $0x1f8] sm:$0xff]
        %v838 = vld [vmem:[#allocation4 + $0x200] sm:$0xff]
        %v839 = vld [vmem:[#allocation4 + $0x208] sm:$0xff]
        %v840 = vld [vmem:[#allocation4 + $0x210] sm:$0xff]
        %v841 = vld [vmem:[#allocation4 + $0x218] sm:$0xff]
        %v842 = vld [vmem:[#allocation4 + $0x220] sm:$0xff]
        %v843 = vld [vmem:[#allocation4 + $0x228] sm:$0xff]
        %v844 = vld [vmem:[#allocation4 + $0x230] sm:$0xff]
        %v845 = vld [vmem:[#allocation4 + $0x238] sm:$0xff]
        %v846 = vld [vmem:[#allocation4 + $0x240] sm:$0xff]
        %v847 = vld [vmem:[#allocation4 + $0x248] sm:$0xff]
        %v848 = vld [vmem:[#allocation4 + $0x250] sm:$0xff]
        %v849 = vld [vmem:[#allocation4 + $0x258] sm:$0xff]
        %v850 = vld [vmem:[#allocation4 + $0x260] sm:$0xff]
        %v851 = vld [vmem:[#allocation4 + $0x268] sm:$0xff]
        %v852 = vld [vmem:[#allocation4 + $0x270] sm:$0xff]
        %v853 = vld [vmem:[#allocation4 + $0x278] sm:$0xff]
        %v854 = vld [vmem:[#allocation4 + $0x280] sm:$0xff]
        %v855 = vld [vmem:[#allocation4 + $0x288] sm:$0xff]
        %v856 = vld [vmem:[#allocation4 + $0x290] sm:$0xff]
        %v857 = vld [vmem:[#allocation4 + $0x298] sm:$0xff]
        %v858 = vld [vmem:[#allocation4 + $0x2a0] sm:$0xff]
        %v859 = vld [vmem:[#allocation4 + $0x2a8] sm:$0xff]
        %v860 = vld [vmem:[#allocation4 + $0x2b0] sm:$0xff]
        %v861 = vld [vmem:[#allocation4 + $0x2b8] sm:$0xff]
        %v862 = vld [vmem:[#allocation4 + $0x2c0] sm:$0xff]
        %v863 = vld [vmem:[#allocation4 + $0x2c8] sm:$0xff]
        %v864 = vld [vmem:[#allocation4 + $0x2d0] sm:$0xff]
        %v865 = vld [vmem:[#allocation4 + $0x2d8] sm:$0xff]
        %v866 = vld [vmem:[#allocation4 + $0x2e0] sm:$0xff]
        %v867 = vld [vmem:[#allocation4 + $0x2e8] sm:$0xff]
        %v868 = vld [vmem:[#allocation4 + $0x2f0] sm:$0xff]
        %v869 = vld [vmem:[#allocation4 + $0x2f8] sm:$0xff]
        %v870 = vld [vmem:[#allocation4 + $0x300] sm:$0xff]
        %v871 = vld [vmem:[#allocation4 + $0x308] sm:$0xff]
        %v872 = vld [vmem:[#allocation4 + $0x310] sm:$0xff]
        %v873 = vld [vmem:[#allocation4 + $0x318] sm:$0xff]
        %v874 = vld [vmem:[#allocation4 + $0x320] sm:$0xff]
        %v875 = vld [vmem:[#allocation4 + $0x328] sm:$0xff]
        %v876 = vld [vmem:[#allocation4 + $0x330] sm:$0xff]
        %v877 = vld [vmem:[#allocation4 + $0x338] sm:$0xff]
        %v878 = vld [vmem:[#allocation4 + $0x340] sm:$0xff]
        %v879 = vld [vmem:[#allocation4 + $0x348] sm:$0xff]
        %v880 = vld [vmem:[#allocation4 + $0x350] sm:$0xff]
        %v881 = vld [vmem:[#allocation4 + $0x358] sm:$0xff]
        %v882 = vld [vmem:[#allocation4 + $0x360] sm:$0xff]
        %v883 = vld [vmem:[#allocation4 + $0x368] sm:$0xff]
        %v884 = vld [vmem:[#allocation4 + $0x370] sm:$0xff]
        %v885 = vld [vmem:[#allocation4 + $0x378] sm:$0xff]
        %v886 = vld [vmem:[#allocation4 + $0x380] sm:$0xff]
        %v887 = vld [vmem:[#allocation4 + $0x388] sm:$0xff]
        %v888 = vld [vmem:[#allocation4 + $0x390] sm:$0xff]
        %v889 = vld [vmem:[#allocation4 + $0x398] sm:$0xff]
        %v890 = vld [vmem:[#allocation4 + $0x3a0] sm:$0xff]
        %v891 = vld [vmem:[#allocation4 + $0x3a8] sm:$0xff]
        %v892 = vld [vmem:[#allocation4 + $0x3b0] sm:$0xff]
        %v893 = vld [vmem:[#allocation4 + $0x3b8] sm:$0xff]
        %v894 = vld [vmem:[#allocation4 + $0x3c0] sm:$0xff]
        %v895 = vld [vmem:[#allocation4 + $0x3c8] sm:$0xff]
        %v896 = vld [vmem:[#allocation4 + $0x3d0] sm:$0xff]
        %v897 = vld [vmem:[#allocation4 + $0x3d8] sm:$0xff]
        %v898 = vld [vmem:[#allocation4 + $0x3e0] sm:$0xff]
        %v899 = vld [vmem:[#allocation4 + $0x3e8] sm:$0xff]
        %v900 = vld [vmem:[#allocation4 + $0x3f0] sm:$0xff]
        %v901 = vld [vmem:[#allocation4 + $0x3f8] sm:$0xff]
        %v902 = vld [vmem:[#allocation4 + $0x400] sm:$0xff]
        %v903 = vld [vmem:[#allocation4 + $0x408] sm:$0xff]
        %v904 = vld [vmem:[#allocation4 + $0x410] sm:$0xff]
        %v905 = vld [vmem:[#allocation4 + $0x418] sm:$0xff]
        %v906 = vld [vmem:[#allocation4 + $0x420] sm:$0xff]
        %v907 = vld [vmem:[#allocation4 + $0x428] sm:$0xff]
        %v908 = vld [vmem:[#allocation4 + $0x430] sm:$0xff]
        %v909 = vld [vmem:[#allocation4 + $0x438] sm:$0xff]
        %v910 = vld [vmem:[#allocation4 + $0x440] sm:$0xff]
        %v911 = vld [vmem:[#allocation4 + $0x448] sm:$0xff]
        %v912 = vld [vmem:[#allocation4 + $0x450] sm:$0xff]
        %v913 = vld [vmem:[#allocation4 + $0x458] sm:$0xff]
        %v914 = vld [vmem:[#allocation4 + $0x460] sm:$0xff]
        %v915 = vld [vmem:[#allocation4 + $0x468] sm:$0xff]
        %v916 = vld [vmem:[#allocation4 + $0x470] sm:$0xff]
        %v917 = vld [vmem:[#allocation4 + $0x478] sm:$0xff]
        %v918 = vld [vmem:[%s2] sm:$0x1]
        %v920 = vperm.slane %v918, 0
        %922 = vmatpush.msra.mxu0 %v789
        %923 = vmatpush.msra.mxu0 %v788
        %924 = vmatpush.msra.mxu0 %v787
        %925 = vmatpush.msra.mxu0 %v786
        %926 = vmatpush.msra.mxu0 %v785
        %927 = vmatpush.msra.mxu0 %v784
        %928 = vmatpush.msra.mxu0 %v783
        %929 = vmatpush.msra.mxu0 %v782
        %930 = vmatpush.msra.mxu0 %v781
        %931 = vmatpush.msra.mxu0 %v780
        %932 = vmatpush.msra.mxu0 %v779
        %933 = vmatpush.msra.mxu0 %v778
        %934 = vmatpush.msra.mxu0 %v777
        %935 = vmatpush.msra.mxu0 %v776
        %936 = vmatpush.msra.mxu0 %v775
        %937 = vmatpush.msra.mxu0 %v774
        %938 = vmatmul.f32.gmra.mxu0 %v485
        %v939 = vpop.f32.mrf.mxu0
        %v940 = vadd.f32 %v920, %v939
        %941 = vmatmul.f32.gmra.mxu0 %v486
        %v942 = vpop.f32.mrf.mxu0
        %v943 = vadd.f32 %v920, %v942
        %944 = vmatmul.f32.gmra.mxu0 %v487
        %v945 = vpop.f32.mrf.mxu0
        %v946 = vadd.f32 %v920, %v945
        %947 = vmatmul.f32.gmra.mxu0 %v488
        %v948 = vpop.f32.mrf.mxu0
        %v949 = vadd.f32 %v920, %v948
        %950 = vmatmul.f32.gmra.mxu0 %v489
        %v951 = vpop.f32.mrf.mxu0
        %v952 = vadd.f32 %v920, %v951
        %953 = vmatmul.f32.gmra.mxu0 %v490
        %v954 = vpop.f32.mrf.mxu0
        %v955 = vadd.f32 %v920, %v954
        %956 = vmatmul.f32.gmra.mxu0 %v491
        %v957 = vpop.f32.mrf.mxu0
        %v958 = vadd.f32 %v920, %v957
        %959 = vmatmul.f32.gmra.mxu0 %v492
        %v960 = vpop.f32.mrf.mxu0
        %v961 = vadd.f32 %v920, %v960
        %962 = vmatmul.f32.gmra.mxu0 %v493
        %v963 = vpop.f32.mrf.mxu0
        %v964 = vadd.f32 %v920, %v963
        %965 = vmatmul.f32.gmra.mxu0 %v494
        %v966 = vpop.f32.mrf.mxu0
        %v967 = vadd.f32 %v920, %v966
        %968 = vmatmul.f32.gmra.mxu0 %v495
        %v969 = vpop.f32.mrf.mxu0
        %v970 = vadd.f32 %v920, %v969
        %971 = vmatmul.f32.gmra.mxu0 %v496
        %v972 = vpop.f32.mrf.mxu0
        %v973 = vadd.f32 %v920, %v972
        %974 = vmatmul.f32.gmra.mxu0 %v497
        %v975 = vpop.f32.mrf.mxu0
        %v976 = vadd.f32 %v920, %v975
        %977 = vmatmul.f32.gmra.mxu0 %v498
        %v978 = vpop.f32.mrf.mxu0
        %v979 = vadd.f32 %v920, %v978
        %980 = vmatmul.f32.gmra.mxu0 %v499
        %v981 = vpop.f32.mrf.mxu0
        %v982 = vadd.f32 %v920, %v981
        %983 = vmatmul.f32.gmra.mxu0 %v500
        %v984 = vpop.f32.mrf.mxu0
        %v985 = vadd.f32 %v920, %v984
        %986 = vmatmul.f32.gmra.mxu0 %v501
        %v987 = vpop.f32.mrf.mxu0
        %v988 = vadd.f32 %v920, %v987
        %989 = vmatmul.f32.gmra.mxu0 %v502
        %v990 = vpop.f32.mrf.mxu0
        %v991 = vadd.f32 %v920, %v990
        %992 = vmatmul.f32.gmra.mxu0 %v503
        %v993 = vpop.f32.mrf.mxu0
        %v994 = vadd.f32 %v920, %v993
        %995 = vmatmul.f32.gmra.mxu0 %v504
        %v996 = vpop.f32.mrf.mxu0
        %v997 = vadd.f32 %v920, %v996
        %998 = vmatmul.f32.gmra.mxu0 %v505
        %v999 = vpop.f32.mrf.mxu0
        %v1000 = vadd.f32 %v920, %v999
        %1001 = vmatmul.f32.gmra.mxu0 %v506
        %v1002 = vpop.f32.mrf.mxu0
        %v1003 = vadd.f32 %v920, %v1002
        %1004 = vmatmul.f32.gmra.mxu0 %v507
        %v1005 = vpop.f32.mrf.mxu0
        %v1006 = vadd.f32 %v920, %v1005
        %1007 = vmatmul.f32.gmra.mxu0 %v508
        %v1008 = vpop.f32.mrf.mxu0
        %v1009 = vadd.f32 %v920, %v1008
        %1010 = vmatmul.f32.gmra.mxu0 %v509
        %v1011 = vpop.f32.mrf.mxu0
        %v1012 = vadd.f32 %v920, %v1011
        %1013 = vmatmul.f32.gmra.mxu0 %v510
        %v1014 = vpop.f32.mrf.mxu0
        %v1015 = vadd.f32 %v920, %v1014
        %1016 = vmatmul.f32.gmra.mxu0 %v511
        %v1017 = vpop.f32.mrf.mxu0
        %v1018 = vadd.f32 %v920, %v1017
        %1019 = vmatmul.f32.gmra.mxu0 %v512
        %v1020 = vpop.f32.mrf.mxu0
        %v1021 = vadd.f32 %v920, %v1020
        %1022 = vmatmul.f32.gmra.mxu0 %v513
        %v1023 = vpop.f32.mrf.mxu0
        %v1024 = vadd.f32 %v920, %v1023
        %1025 = vmatmul.f32.gmra.mxu0 %v514
        %v1026 = vpop.f32.mrf.mxu0
        %v1027 = vadd.f32 %v920, %v1026
        %1028 = vmatmul.f32.gmra.mxu0 %v515
        %v1029 = vpop.f32.mrf.mxu0
        %v1030 = vadd.f32 %v920, %v1029
        %1031 = vmatmul.f32.gmra.mxu0 %v516
        %v1032 = vpop.f32.mrf.mxu0
        %v1033 = vadd.f32 %v920, %v1032
        %1034 = vdwg.mxu0
        %1035 = vmatpush.msra.mxu0 %v805
        %1036 = vmatpush.msra.mxu0 %v804
        %1037 = vmatpush.msra.mxu0 %v803
        %1038 = vmatpush.msra.mxu0 %v802
        %1039 = vmatpush.msra.mxu0 %v801
        %1040 = vmatpush.msra.mxu0 %v800
        %1041 = vmatpush.msra.mxu0 %v799
        %1042 = vmatpush.msra.mxu0 %v798
        %1043 = vmatpush.msra.mxu0 %v797
        %1044 = vmatpush.msra.mxu0 %v796
        %1045 = vmatpush.msra.mxu0 %v795
        %1046 = vmatpush.msra.mxu0 %v794
        %1047 = vmatpush.msra.mxu0 %v793
        %1048 = vmatpush.msra.mxu0 %v792
        %1049 = vmatpush.msra.mxu0 %v791
        %1050 = vmatpush.msra.mxu0 %v790
        %1051 = vmatmul.f32.gmra.mxu0 %v517
        %v1052 = vpop.f32.mrf.mxu0
        %v1053 = vadd.f32 %v940, %v1052
        %1054 = vmatmul.f32.gmra.mxu0 %v518
        %v1055 = vpop.f32.mrf.mxu0
        %v1056 = vadd.f32 %v943, %v1055
        %1057 = vmatmul.f32.gmra.mxu0 %v519
        %v1058 = vpop.f32.mrf.mxu0
        %v1059 = vadd.f32 %v946, %v1058
        %1060 = vmatmul.f32.gmra.mxu0 %v520
        %v1061 = vpop.f32.mrf.mxu0
        %v1062 = vadd.f32 %v949, %v1061
        %1063 = vmatmul.f32.gmra.mxu0 %v521
        %v1064 = vpop.f32.mrf.mxu0
        %v1065 = vadd.f32 %v952, %v1064
        %1066 = vmatmul.f32.gmra.mxu0 %v522
        %v1067 = vpop.f32.mrf.mxu0
        %v1068 = vadd.f32 %v955, %v1067
        %1069 = vmatmul.f32.gmra.mxu0 %v523
        %v1070 = vpop.f32.mrf.mxu0
        %v1071 = vadd.f32 %v958, %v1070
        %1072 = vmatmul.f32.gmra.mxu0 %v524
        %v1073 = vpop.f32.mrf.mxu0
        %v1074 = vadd.f32 %v961, %v1073
        %1075 = vmatmul.f32.gmra.mxu0 %v525
        %v1076 = vpop.f32.mrf.mxu0
        %v1077 = vadd.f32 %v964, %v1076
        %1078 = vmatmul.f32.gmra.mxu0 %v526
        %v1079 = vpop.f32.mrf.mxu0
        %v1080 = vadd.f32 %v967, %v1079
        %1081 = vmatmul.f32.gmra.mxu0 %v527
        %v1082 = vpop.f32.mrf.mxu0
        %v1083 = vadd.f32 %v970, %v1082
        %1084 = vmatmul.f32.gmra.mxu0 %v528
        %v1085 = vpop.f32.mrf.mxu0
        %v1086 = vadd.f32 %v973, %v1085
        %1087 = vmatmul.f32.gmra.mxu0 %v529
        %v1088 = vpop.f32.mrf.mxu0
        %v1089 = vadd.f32 %v976, %v1088
        %1090 = vmatmul.f32.gmra.mxu0 %v530
        %v1091 = vpop.f32.mrf.mxu0
        %v1092 = vadd.f32 %v979, %v1091
        %1093 = vmatmul.f32.gmra.mxu0 %v531
        %v1094 = vpop.f32.mrf.mxu0
        %v1095 = vadd.f32 %v982, %v1094
        %1096 = vmatmul.f32.gmra.mxu0 %v532
        %v1097 = vpop.f32.mrf.mxu0
        %v1098 = vadd.f32 %v985, %v1097
        %1099 = vmatmul.f32.gmra.mxu0 %v533
        %v1100 = vpop.f32.mrf.mxu0
        %v1101 = vadd.f32 %v988, %v1100
        %1102 = vmatmul.f32.gmra.mxu0 %v534
        %v1103 = vpop.f32.mrf.mxu0
        %v1104 = vadd.f32 %v991, %v1103
        %1105 = vmatmul.f32.gmra.mxu0 %v535
        %v1106 = vpop.f32.mrf.mxu0
        %v1107 = vadd.f32 %v994, %v1106
        %1108 = vmatmul.f32.gmra.mxu0 %v536
        %v1109 = vpop.f32.mrf.mxu0
        %v1110 = vadd.f32 %v997, %v1109
        %1111 = vmatmul.f32.gmra.mxu0 %v537
        %v1112 = vpop.f32.mrf.mxu0
        %v1113 = vadd.f32 %v1000, %v1112
        %1114 = vmatmul.f32.gmra.mxu0 %v538
        %v1115 = vpop.f32.mrf.mxu0
        %v1116 = vadd.f32 %v1003, %v1115
        %1117 = vmatmul.f32.gmra.mxu0 %v539
        %v1118 = vpop.f32.mrf.mxu0
        %v1119 = vadd.f32 %v1006, %v1118
        %1120 = vmatmul.f32.gmra.mxu0 %v540
        %v1121 = vpop.f32.mrf.mxu0
        %v1122 = vadd.f32 %v1009, %v1121
        %1123 = vmatmul.f32.gmra.mxu0 %v541
        %v1124 = vpop.f32.mrf.mxu0
        %v1125 = vadd.f32 %v1012, %v1124
        %1126 = vmatmul.f32.gmra.mxu0 %v542
        %v1127 = vpop.f32.mrf.mxu0
        %v1128 = vadd.f32 %v1015, %v1127
        %1129 = vmatmul.f32.gmra.mxu0 %v543
        %v1130 = vpop.f32.mrf.mxu0
        %v1131 = vadd.f32 %v1018, %v1130
        %1132 = vmatmul.f32.gmra.mxu0 %v544
        %v1133 = vpop.f32.mrf.mxu0
        %v1134 = vadd.f32 %v1021, %v1133
        %1135 = vmatmul.f32.gmra.mxu0 %v545
        %v1136 = vpop.f32.mrf.mxu0
        %v1137 = vadd.f32 %v1024, %v1136
        %1138 = vmatmul.f32.gmra.mxu0 %v546
        %v1139 = vpop.f32.mrf.mxu0
        %v1140 = vadd.f32 %v1027, %v1139
        %1141 = vmatmul.f32.gmra.mxu0 %v547
        %v1142 = vpop.f32.mrf.mxu0
        %v1143 = vadd.f32 %v1030, %v1142
        %1144 = vmatmul.f32.gmra.mxu0 %v548
        %v1145 = vpop.f32.mrf.mxu0
        %v1146 = vadd.f32 %v1033, %v1145
        %1147 = vdwg.mxu0
        %1148 = vmatpush.msra.mxu0 %v821
        %1149 = vmatpush.msra.mxu0 %v820
        %1150 = vmatpush.msra.mxu0 %v819
        %1151 = vmatpush.msra.mxu0 %v818
        %1152 = vmatpush.msra.mxu0 %v817
        %1153 = vmatpush.msra.mxu0 %v816
        %1154 = vmatpush.msra.mxu0 %v815
        %1155 = vmatpush.msra.mxu0 %v814
        %1156 = vmatpush.msra.mxu0 %v813
        %1157 = vmatpush.msra.mxu0 %v812
        %1158 = vmatpush.msra.mxu0 %v811
        %1159 = vmatpush.msra.mxu0 %v810
        %1160 = vmatpush.msra.mxu0 %v809
        %1161 = vmatpush.msra.mxu0 %v808
        %1162 = vmatpush.msra.mxu0 %v807
        %1163 = vmatpush.msra.mxu0 %v806
        %1164 = vmatmul.f32.gmra.mxu0 %v549
        %v1165 = vpop.f32.mrf.mxu0
        %v1166 = vadd.f32 %v1053, %v1165
        %1167 = vmatmul.f32.gmra.mxu0 %v550
        %v1168 = vpop.f32.mrf.mxu0
        %v1169 = vadd.f32 %v1056, %v1168
        %1170 = vmatmul.f32.gmra.mxu0 %v551
        %v1171 = vpop.f32.mrf.mxu0
        %v1172 = vadd.f32 %v1059, %v1171
        %1173 = vmatmul.f32.gmra.mxu0 %v552
        %v1174 = vpop.f32.mrf.mxu0
        %v1175 = vadd.f32 %v1062, %v1174
        %1176 = vmatmul.f32.gmra.mxu0 %v553
        %v1177 = vpop.f32.mrf.mxu0
        %v1178 = vadd.f32 %v1065, %v1177
        %1179 = vmatmul.f32.gmra.mxu0 %v554
        %v1180 = vpop.f32.mrf.mxu0
        %v1181 = vadd.f32 %v1068, %v1180
        %1182 = vmatmul.f32.gmra.mxu0 %v555
        %v1183 = vpop.f32.mrf.mxu0
        %v1184 = vadd.f32 %v1071, %v1183
        %1185 = vmatmul.f32.gmra.mxu0 %v556
        %v1186 = vpop.f32.mrf.mxu0
        %v1187 = vadd.f32 %v1074, %v1186
        %1188 = vmatmul.f32.gmra.mxu0 %v557
        %v1189 = vpop.f32.mrf.mxu0
        %v1190 = vadd.f32 %v1077, %v1189
        %1191 = vmatmul.f32.gmra.mxu0 %v558
        %v1192 = vpop.f32.mrf.mxu0
        %v1193 = vadd.f32 %v1080, %v1192
        %1194 = vmatmul.f32.gmra.mxu0 %v559
        %v1195 = vpop.f32.mrf.mxu0
        %v1196 = vadd.f32 %v1083, %v1195
        %1197 = vmatmul.f32.gmra.mxu0 %v560
        %v1198 = vpop.f32.mrf.mxu0
        %v1199 = vadd.f32 %v1086, %v1198
        %1200 = vmatmul.f32.gmra.mxu0 %v561
        %v1201 = vpop.f32.mrf.mxu0
        %v1202 = vadd.f32 %v1089, %v1201
        %1203 = vmatmul.f32.gmra.mxu0 %v562
        %v1204 = vpop.f32.mrf.mxu0
        %v1205 = vadd.f32 %v1092, %v1204
        %1206 = vmatmul.f32.gmra.mxu0 %v563
        %v1207 = vpop.f32.mrf.mxu0
        %v1208 = vadd.f32 %v1095, %v1207
        %1209 = vmatmul.f32.gmra.mxu0 %v564
        %v1210 = vpop.f32.mrf.mxu0
        %v1211 = vadd.f32 %v1098, %v1210
        %1212 = vmatmul.f32.gmra.mxu0 %v565
        %v1213 = vpop.f32.mrf.mxu0
        %v1214 = vadd.f32 %v1101, %v1213
        %1215 = vmatmul.f32.gmra.mxu0 %v566
        %v1216 = vpop.f32.mrf.mxu0
        %v1217 = vadd.f32 %v1104, %v1216
        %1218 = vmatmul.f32.gmra.mxu0 %v567
        %v1219 = vpop.f32.mrf.mxu0
        %v1220 = vadd.f32 %v1107, %v1219
        %1221 = vmatmul.f32.gmra.mxu0 %v568
        %v1222 = vpop.f32.mrf.mxu0
        %v1223 = vadd.f32 %v1110, %v1222
        %1224 = vmatmul.f32.gmra.mxu0 %v569
        %v1225 = vpop.f32.mrf.mxu0
        %v1226 = vadd.f32 %v1113, %v1225
        %1227 = vmatmul.f32.gmra.mxu0 %v570
        %v1228 = vpop.f32.mrf.mxu0
        %v1229 = vadd.f32 %v1116, %v1228
        %1230 = vmatmul.f32.gmra.mxu0 %v571
        %v1231 = vpop.f32.mrf.mxu0
        %v1232 = vadd.f32 %v1119, %v1231
        %1233 = vmatmul.f32.gmra.mxu0 %v572
        %v1234 = vpop.f32.mrf.mxu0
        %v1235 = vadd.f32 %v1122, %v1234
        %1236 = vmatmul.f32.gmra.mxu0 %v573
        %v1237 = vpop.f32.mrf.mxu0
        %v1238 = vadd.f32 %v1125, %v1237
        %1239 = vmatmul.f32.gmra.mxu0 %v574
        %v1240 = vpop.f32.mrf.mxu0
        %v1241 = vadd.f32 %v1128, %v1240
        %1242 = vmatmul.f32.gmra.mxu0 %v575
        %v1243 = vpop.f32.mrf.mxu0
        %v1244 = vadd.f32 %v1131, %v1243
        %1245 = vmatmul.f32.gmra.mxu0 %v576
        %v1246 = vpop.f32.mrf.mxu0
        %v1247 = vadd.f32 %v1134, %v1246
        %1248 = vmatmul.f32.gmra.mxu0 %v577
        %v1249 = vpop.f32.mrf.mxu0
        %v1250 = vadd.f32 %v1137, %v1249
        %1251 = vmatmul.f32.gmra.mxu0 %v578
        %v1252 = vpop.f32.mrf.mxu0
        %v1253 = vadd.f32 %v1140, %v1252
        %1254 = vmatmul.f32.gmra.mxu0 %v579
        %v1255 = vpop.f32.mrf.mxu0
        %v1256 = vadd.f32 %v1143, %v1255
        %1257 = vmatmul.f32.gmra.mxu0 %v580
        %v1258 = vpop.f32.mrf.mxu0
        %v1259 = vadd.f32 %v1146, %v1258
        %1260 = vdwg.mxu0
        %1261 = vmatpush.msra.mxu0 %v837
        %1262 = vmatpush.msra.mxu0 %v836
        %1263 = vmatpush.msra.mxu0 %v835
        %1264 = vmatpush.msra.mxu0 %v834
        %1265 = vmatpush.msra.mxu0 %v833
        %1266 = vmatpush.msra.mxu0 %v832
        %1267 = vmatpush.msra.mxu0 %v831
        %1268 = vmatpush.msra.mxu0 %v830
        %1269 = vmatpush.msra.mxu0 %v829
        %1270 = vmatpush.msra.mxu0 %v828
        %1271 = vmatpush.msra.mxu0 %v827
        %1272 = vmatpush.msra.mxu0 %v826
        %1273 = vmatpush.msra.mxu0 %v825
        %1274 = vmatpush.msra.mxu0 %v824
        %1275 = vmatpush.msra.mxu0 %v823
        %1276 = vmatpush.msra.mxu0 %v822
        %1277 = vmatmul.f32.gmra.mxu0 %v581
        %v1278 = vpop.f32.mrf.mxu0
        %v1279 = vadd.f32 %v1166, %v1278
        %1280 = vmatmul.f32.gmra.mxu0 %v582
        %v1281 = vpop.f32.mrf.mxu0
        %v1282 = vadd.f32 %v1169, %v1281
        %1283 = vmatmul.f32.gmra.mxu0 %v583
        %v1284 = vpop.f32.mrf.mxu0
        %v1285 = vadd.f32 %v1172, %v1284
        %1286 = vmatmul.f32.gmra.mxu0 %v584
        %v1287 = vpop.f32.mrf.mxu0
        %v1288 = vadd.f32 %v1175, %v1287
        %1289 = vmatmul.f32.gmra.mxu0 %v585
        %v1290 = vpop.f32.mrf.mxu0
        %v1291 = vadd.f32 %v1178, %v1290
        %1292 = vmatmul.f32.gmra.mxu0 %v586
        %v1293 = vpop.f32.mrf.mxu0
        %v1294 = vadd.f32 %v1181, %v1293
        %1295 = vmatmul.f32.gmra.mxu0 %v587
        %v1296 = vpop.f32.mrf.mxu0
        %v1297 = vadd.f32 %v1184, %v1296
        %1298 = vmatmul.f32.gmra.mxu0 %v588
        %v1299 = vpop.f32.mrf.mxu0
        %v1300 = vadd.f32 %v1187, %v1299
        %1301 = vmatmul.f32.gmra.mxu0 %v589
        %v1302 = vpop.f32.mrf.mxu0
        %v1303 = vadd.f32 %v1190, %v1302
        %1304 = vmatmul.f32.gmra.mxu0 %v590
        %v1305 = vpop.f32.mrf.mxu0
        %v1306 = vadd.f32 %v1193, %v1305
        %1307 = vmatmul.f32.gmra.mxu0 %v591
        %v1308 = vpop.f32.mrf.mxu0
        %v1309 = vadd.f32 %v1196, %v1308
        %1310 = vmatmul.f32.gmra.mxu0 %v592
        %v1311 = vpop.f32.mrf.mxu0
        %v1312 = vadd.f32 %v1199, %v1311
        %1313 = vmatmul.f32.gmra.mxu0 %v593
        %v1314 = vpop.f32.mrf.mxu0
        %v1315 = vadd.f32 %v1202, %v1314
        %1316 = vmatmul.f32.gmra.mxu0 %v594
        %v1317 = vpop.f32.mrf.mxu0
        %v1318 = vadd.f32 %v1205, %v1317
        %1319 = vmatmul.f32.gmra.mxu0 %v595
        %v1320 = vpop.f32.mrf.mxu0
        %v1321 = vadd.f32 %v1208, %v1320
        %1322 = vmatmul.f32.gmra.mxu0 %v596
        %v1323 = vpop.f32.mrf.mxu0
        %v1324 = vadd.f32 %v1211, %v1323
        %1325 = vmatmul.f32.gmra.mxu0 %v597
        %v1326 = vpop.f32.mrf.mxu0
        %v1327 = vadd.f32 %v1214, %v1326
        %1328 = vmatmul.f32.gmra.mxu0 %v598
        %v1329 = vpop.f32.mrf.mxu0
        %v1330 = vadd.f32 %v1217, %v1329
        %1331 = vmatmul.f32.gmra.mxu0 %v599
        %v1332 = vpop.f32.mrf.mxu0
        %v1333 = vadd.f32 %v1220, %v1332
        %1334 = vmatmul.f32.gmra.mxu0 %v600
        %v1335 = vpop.f32.mrf.mxu0
        %v1336 = vadd.f32 %v1223, %v1335
        %1337 = vmatmul.f32.gmra.mxu0 %v601
        %v1338 = vpop.f32.mrf.mxu0
        %v1339 = vadd.f32 %v1226, %v1338
        %1340 = vmatmul.f32.gmra.mxu0 %v602
        %v1341 = vpop.f32.mrf.mxu0
        %v1342 = vadd.f32 %v1229, %v1341
        %1343 = vmatmul.f32.gmra.mxu0 %v603
        %v1344 = vpop.f32.mrf.mxu0
        %v1345 = vadd.f32 %v1232, %v1344
        %1346 = vmatmul.f32.gmra.mxu0 %v604
        %v1347 = vpop.f32.mrf.mxu0
        %v1348 = vadd.f32 %v1235, %v1347
        %1349 = vmatmul.f32.gmra.mxu0 %v605
        %v1350 = vpop.f32.mrf.mxu0
        %v1351 = vadd.f32 %v1238, %v1350
        %1352 = vmatmul.f32.gmra.mxu0 %v606
        %v1353 = vpop.f32.mrf.mxu0
        %v1354 = vadd.f32 %v1241, %v1353
        %1355 = vmatmul.f32.gmra.mxu0 %v607
        %v1356 = vpop.f32.mrf.mxu0
        %v1357 = vadd.f32 %v1244, %v1356
        %1358 = vmatmul.f32.gmra.mxu0 %v608
        %v1359 = vpop.f32.mrf.mxu0
        %v1360 = vadd.f32 %v1247, %v1359
        %1361 = vmatmul.f32.gmra.mxu0 %v609
        %v1362 = vpop.f32.mrf.mxu0
        %v1363 = vadd.f32 %v1250, %v1362
        %1364 = vmatmul.f32.gmra.mxu0 %v610
        %v1365 = vpop.f32.mrf.mxu0
        %v1366 = vadd.f32 %v1253, %v1365
        %1367 = vmatmul.f32.gmra.mxu0 %v611
        %v1368 = vpop.f32.mrf.mxu0
        %v1369 = vadd.f32 %v1256, %v1368
        %1370 = vmatmul.f32.gmra.mxu0 %v612
        %v1371 = vpop.f32.mrf.mxu0
        %v1372 = vadd.f32 %v1259, %v1371
        %1373 = vdwg.mxu0
        %1374 = vmatpush.msra.mxu0 %v853
        %1375 = vmatpush.msra.mxu0 %v852
        %1376 = vmatpush.msra.mxu0 %v851
        %1377 = vmatpush.msra.mxu0 %v850
        %1378 = vmatpush.msra.mxu0 %v849
        %1379 = vmatpush.msra.mxu0 %v848
        %1380 = vmatpush.msra.mxu0 %v847
        %1381 = vmatpush.msra.mxu0 %v846
        %1382 = vmatpush.msra.mxu0 %v845
        %1383 = vmatpush.msra.mxu0 %v844
        %1384 = vmatpush.msra.mxu0 %v843
        %1385 = vmatpush.msra.mxu0 %v842
        %1386 = vmatpush.msra.mxu0 %v841
        %1387 = vmatpush.msra.mxu0 %v840
        %1388 = vmatpush.msra.mxu0 %v839
        %1389 = vmatpush.msra.mxu0 %v838
        %1390 = vmatmul.f32.gmra.mxu0 %v613
        %v1391 = vpop.f32.mrf.mxu0
        %v1392 = vadd.f32 %v1279, %v1391
        %1393 = vmatmul.f32.gmra.mxu0 %v614
        %v1394 = vpop.f32.mrf.mxu0
        %v1395 = vadd.f32 %v1282, %v1394
        %1396 = vmatmul.f32.gmra.mxu0 %v615
        %v1397 = vpop.f32.mrf.mxu0
        %v1398 = vadd.f32 %v1285, %v1397
        %1399 = vmatmul.f32.gmra.mxu0 %v616
        %v1400 = vpop.f32.mrf.mxu0
        %v1401 = vadd.f32 %v1288, %v1400
        %1402 = vmatmul.f32.gmra.mxu0 %v617
        %v1403 = vpop.f32.mrf.mxu0
        %v1404 = vadd.f32 %v1291, %v1403
        %1405 = vmatmul.f32.gmra.mxu0 %v618
        %v1406 = vpop.f32.mrf.mxu0
        %v1407 = vadd.f32 %v1294, %v1406
        %1408 = vmatmul.f32.gmra.mxu0 %v619
        %v1409 = vpop.f32.mrf.mxu0
        %v1410 = vadd.f32 %v1297, %v1409
        %1411 = vmatmul.f32.gmra.mxu0 %v620
        %v1412 = vpop.f32.mrf.mxu0
        %v1413 = vadd.f32 %v1300, %v1412
        %1414 = vmatmul.f32.gmra.mxu0 %v621
        %v1415 = vpop.f32.mrf.mxu0
        %v1416 = vadd.f32 %v1303, %v1415
        %1417 = vmatmul.f32.gmra.mxu0 %v622
        %v1418 = vpop.f32.mrf.mxu0
        %v1419 = vadd.f32 %v1306, %v1418
        %1420 = vmatmul.f32.gmra.mxu0 %v623
        %v1421 = vpop.f32.mrf.mxu0
        %v1422 = vadd.f32 %v1309, %v1421
        %1423 = vmatmul.f32.gmra.mxu0 %v624
        %v1424 = vpop.f32.mrf.mxu0
        %v1425 = vadd.f32 %v1312, %v1424
        %1426 = vmatmul.f32.gmra.mxu0 %v625
        %v1427 = vpop.f32.mrf.mxu0
        %v1428 = vadd.f32 %v1315, %v1427
        %1429 = vmatmul.f32.gmra.mxu0 %v626
        %v1430 = vpop.f32.mrf.mxu0
        %v1431 = vadd.f32 %v1318, %v1430
        %1432 = vmatmul.f32.gmra.mxu0 %v627
        %v1433 = vpop.f32.mrf.mxu0
        %v1434 = vadd.f32 %v1321, %v1433
        %1435 = vmatmul.f32.gmra.mxu0 %v628
        %v1436 = vpop.f32.mrf.mxu0
        %v1437 = vadd.f32 %v1324, %v1436
        %1438 = vmatmul.f32.gmra.mxu0 %v629
        %v1439 = vpop.f32.mrf.mxu0
        %v1440 = vadd.f32 %v1327, %v1439
        %1441 = vmatmul.f32.gmra.mxu0 %v630
        %v1442 = vpop.f32.mrf.mxu0
        %v1443 = vadd.f32 %v1330, %v1442
        %1444 = vmatmul.f32.gmra.mxu0 %v631
        %v1445 = vpop.f32.mrf.mxu0
        %v1446 = vadd.f32 %v1333, %v1445
        %1447 = vmatmul.f32.gmra.mxu0 %v632
        %v1448 = vpop.f32.mrf.mxu0
        %v1449 = vadd.f32 %v1336, %v1448
        %1450 = vmatmul.f32.gmra.mxu0 %v633
        %v1451 = vpop.f32.mrf.mxu0
        %v1452 = vadd.f32 %v1339, %v1451
        %1453 = vmatmul.f32.gmra.mxu0 %v634
        %v1454 = vpop.f32.mrf.mxu0
        %v1455 = vadd.f32 %v1342, %v1454
        %1456 = vmatmul.f32.gmra.mxu0 %v635
        %v1457 = vpop.f32.mrf.mxu0
        %v1458 = vadd.f32 %v1345, %v1457
        %1459 = vmatmul.f32.gmra.mxu0 %v636
        %v1460 = vpop.f32.mrf.mxu0
        %v1461 = vadd.f32 %v1348, %v1460
        %1462 = vmatmul.f32.gmra.mxu0 %v637
        %v1463 = vpop.f32.mrf.mxu0
        %v1464 = vadd.f32 %v1351, %v1463
        %1465 = vmatmul.f32.gmra.mxu0 %v638
        %v1466 = vpop.f32.mrf.mxu0
        %v1467 = vadd.f32 %v1354, %v1466
        %1468 = vmatmul.f32.gmra.mxu0 %v639
        %v1469 = vpop.f32.mrf.mxu0
        %v1470 = vadd.f32 %v1357, %v1469
        %1471 = vmatmul.f32.gmra.mxu0 %v640
        %v1472 = vpop.f32.mrf.mxu0
        %v1473 = vadd.f32 %v1360, %v1472
        %1474 = vmatmul.f32.gmra.mxu0 %v641
        %v1475 = vpop.f32.mrf.mxu0
        %v1476 = vadd.f32 %v1363, %v1475
        %1477 = vmatmul.f32.gmra.mxu0 %v642
        %v1478 = vpop.f32.mrf.mxu0
        %v1479 = vadd.f32 %v1366, %v1478
        %1480 = vmatmul.f32.gmra.mxu0 %v643
        %v1481 = vpop.f32.mrf.mxu0
        %v1482 = vadd.f32 %v1369, %v1481
        %1483 = vmatmul.f32.gmra.mxu0 %v644
        %v1484 = vpop.f32.mrf.mxu0
        %v1485 = vadd.f32 %v1372, %v1484
        %1486 = vdwg.mxu0
        %1487 = vmatpush.msra.mxu0 %v869
        %1488 = vmatpush.msra.mxu0 %v868
        %1489 = vmatpush.msra.mxu0 %v867
        %1490 = vmatpush.msra.mxu0 %v866
        %1491 = vmatpush.msra.mxu0 %v865
        %1492 = vmatpush.msra.mxu0 %v864
        %1493 = vmatpush.msra.mxu0 %v863
        %1494 = vmatpush.msra.mxu0 %v862
        %1495 = vmatpush.msra.mxu0 %v861
        %1496 = vmatpush.msra.mxu0 %v860
        %1497 = vmatpush.msra.mxu0 %v859
        %1498 = vmatpush.msra.mxu0 %v858
        %1499 = vmatpush.msra.mxu0 %v857
        %1500 = vmatpush.msra.mxu0 %v856
        %1501 = vmatpush.msra.mxu0 %v855
        %1502 = vmatpush.msra.mxu0 %v854
        %1503 = vmatmul.f32.gmra.mxu0 %v645
        %v1504 = vpop.f32.mrf.mxu0
        %v1505 = vadd.f32 %v1392, %v1504
        %1506 = vmatmul.f32.gmra.mxu0 %v646
        %v1507 = vpop.f32.mrf.mxu0
        %v1508 = vadd.f32 %v1395, %v1507
        %1509 = vmatmul.f32.gmra.mxu0 %v647
        %v1510 = vpop.f32.mrf.mxu0
        %v1511 = vadd.f32 %v1398, %v1510
        %1512 = vmatmul.f32.gmra.mxu0 %v648
        %v1513 = vpop.f32.mrf.mxu0
        %v1514 = vadd.f32 %v1401, %v1513
        %1515 = vmatmul.f32.gmra.mxu0 %v649
        %v1516 = vpop.f32.mrf.mxu0
        %v1517 = vadd.f32 %v1404, %v1516
        %1518 = vmatmul.f32.gmra.mxu0 %v650
        %v1519 = vpop.f32.mrf.mxu0
        %v1520 = vadd.f32 %v1407, %v1519
        %1521 = vmatmul.f32.gmra.mxu0 %v651
        %v1522 = vpop.f32.mrf.mxu0
        %v1523 = vadd.f32 %v1410, %v1522
        %1524 = vmatmul.f32.gmra.mxu0 %v652
        %v1525 = vpop.f32.mrf.mxu0
        %v1526 = vadd.f32 %v1413, %v1525
        %1527 = vmatmul.f32.gmra.mxu0 %v653
        %v1528 = vpop.f32.mrf.mxu0
        %v1529 = vadd.f32 %v1416, %v1528
        %1530 = vmatmul.f32.gmra.mxu0 %v654
        %v1531 = vpop.f32.mrf.mxu0
        %v1532 = vadd.f32 %v1419, %v1531
        %1533 = vmatmul.f32.gmra.mxu0 %v655
        %v1534 = vpop.f32.mrf.mxu0
        %v1535 = vadd.f32 %v1422, %v1534
        %1536 = vmatmul.f32.gmra.mxu0 %v656
        %v1537 = vpop.f32.mrf.mxu0
        %v1538 = vadd.f32 %v1425, %v1537
        %1539 = vmatmul.f32.gmra.mxu0 %v657
        %v1540 = vpop.f32.mrf.mxu0
        %v1541 = vadd.f32 %v1428, %v1540
        %1542 = vmatmul.f32.gmra.mxu0 %v658
        %v1543 = vpop.f32.mrf.mxu0
        %v1544 = vadd.f32 %v1431, %v1543
        %1545 = vmatmul.f32.gmra.mxu0 %v659
        %v1546 = vpop.f32.mrf.mxu0
        %v1547 = vadd.f32 %v1434, %v1546
        %1548 = vmatmul.f32.gmra.mxu0 %v660
        %v1549 = vpop.f32.mrf.mxu0
        %v1550 = vadd.f32 %v1437, %v1549
        %1551 = vmatmul.f32.gmra.mxu0 %v661
        %v1552 = vpop.f32.mrf.mxu0
        %v1553 = vadd.f32 %v1440, %v1552
        %1554 = vmatmul.f32.gmra.mxu0 %v662
        %v1555 = vpop.f32.mrf.mxu0
        %v1556 = vadd.f32 %v1443, %v1555
        %1557 = vmatmul.f32.gmra.mxu0 %v663
        %v1558 = vpop.f32.mrf.mxu0
        %v1559 = vadd.f32 %v1446, %v1558
        %1560 = vmatmul.f32.gmra.mxu0 %v664
        %v1561 = vpop.f32.mrf.mxu0
        %v1562 = vadd.f32 %v1449, %v1561
        %1563 = vmatmul.f32.gmra.mxu0 %v665
        %v1564 = vpop.f32.mrf.mxu0
        %v1565 = vadd.f32 %v1452, %v1564
        %1566 = vmatmul.f32.gmra.mxu0 %v666
        %v1567 = vpop.f32.mrf.mxu0
        %v1568 = vadd.f32 %v1455, %v1567
        %1569 = vmatmul.f32.gmra.mxu0 %v667
        %v1570 = vpop.f32.mrf.mxu0
        %v1571 = vadd.f32 %v1458, %v1570
        %1572 = vmatmul.f32.gmra.mxu0 %v668
        %v1573 = vpop.f32.mrf.mxu0
        %v1574 = vadd.f32 %v1461, %v1573
        %1575 = vmatmul.f32.gmra.mxu0 %v669
        %v1576 = vpop.f32.mrf.mxu0
        %v1577 = vadd.f32 %v1464, %v1576
        %1578 = vmatmul.f32.gmra.mxu0 %v670
        %v1579 = vpop.f32.mrf.mxu0
        %v1580 = vadd.f32 %v1467, %v1579
        %1581 = vmatmul.f32.gmra.mxu0 %v671
        %v1582 = vpop.f32.mrf.mxu0
        %v1583 = vadd.f32 %v1470, %v1582
        %1584 = vmatmul.f32.gmra.mxu0 %v672
        %v1585 = vpop.f32.mrf.mxu0
        %v1586 = vadd.f32 %v1473, %v1585
        %1587 = vmatmul.f32.gmra.mxu0 %v673
        %v1588 = vpop.f32.mrf.mxu0
        %v1589 = vadd.f32 %v1476, %v1588
        %1590 = vmatmul.f32.gmra.mxu0 %v674
        %v1591 = vpop.f32.mrf.mxu0
        %v1592 = vadd.f32 %v1479, %v1591
        %1593 = vmatmul.f32.gmra.mxu0 %v675
        %v1594 = vpop.f32.mrf.mxu0
        %v1595 = vadd.f32 %v1482, %v1594
        %1596 = vmatmul.f32.gmra.mxu0 %v676
        %v1597 = vpop.f32.mrf.mxu0
        %v1598 = vadd.f32 %v1485, %v1597
        %1599 = vdwg.mxu0
        %1600 = vmatpush.msra.mxu0 %v885
        %1601 = vmatpush.msra.mxu0 %v884
        %1602 = vmatpush.msra.mxu0 %v883
        %1603 = vmatpush.msra.mxu0 %v882
        %1604 = vmatpush.msra.mxu0 %v881
        %1605 = vmatpush.msra.mxu0 %v880
        %1606 = vmatpush.msra.mxu0 %v879
        %1607 = vmatpush.msra.mxu0 %v878
        %1608 = vmatpush.msra.mxu0 %v877
        %1609 = vmatpush.msra.mxu0 %v876
        %1610 = vmatpush.msra.mxu0 %v875
        %1611 = vmatpush.msra.mxu0 %v874
        %1612 = vmatpush.msra.mxu0 %v873
        %1613 = vmatpush.msra.mxu0 %v872
        %1614 = vmatpush.msra.mxu0 %v871
        %1615 = vmatpush.msra.mxu0 %v870
        %1616 = vmatmul.f32.gmra.mxu0 %v678
        %v1617 = vpop.f32.mrf.mxu0
        %v1618 = vadd.f32 %v1505, %v1617
        %1619 = vmatmul.f32.gmra.mxu0 %v679
        %v1620 = vpop.f32.mrf.mxu0
        %v1621 = vadd.f32 %v1508, %v1620
        %1622 = vmatmul.f32.gmra.mxu0 %v680
        %v1623 = vpop.f32.mrf.mxu0
        %v1624 = vadd.f32 %v1511, %v1623
        %1625 = vmatmul.f32.gmra.mxu0 %v681
        %v1626 = vpop.f32.mrf.mxu0
        %v1627 = vadd.f32 %v1514, %v1626
        %1628 = vmatmul.f32.gmra.mxu0 %v682
        %v1629 = vpop.f32.mrf.mxu0
        %v1630 = vadd.f32 %v1517, %v1629
        %1631 = vmatmul.f32.gmra.mxu0 %v683
        %v1632 = vpop.f32.mrf.mxu0
        %v1633 = vadd.f32 %v1520, %v1632
        %1634 = vmatmul.f32.gmra.mxu0 %v684
        %v1635 = vpop.f32.mrf.mxu0
        %v1636 = vadd.f32 %v1523, %v1635
        %1637 = vmatmul.f32.gmra.mxu0 %v685
        %v1638 = vpop.f32.mrf.mxu0
        %v1639 = vadd.f32 %v1526, %v1638
        %1640 = vmatmul.f32.gmra.mxu0 %v686
        %v1641 = vpop.f32.mrf.mxu0
        %v1642 = vadd.f32 %v1529, %v1641
        %1643 = vmatmul.f32.gmra.mxu0 %v687
        %v1644 = vpop.f32.mrf.mxu0
        %v1645 = vadd.f32 %v1532, %v1644
        %1646 = vmatmul.f32.gmra.mxu0 %v688
        %v1647 = vpop.f32.mrf.mxu0
        %v1648 = vadd.f32 %v1535, %v1647
        %1649 = vmatmul.f32.gmra.mxu0 %v689
        %v1650 = vpop.f32.mrf.mxu0
        %v1651 = vadd.f32 %v1538, %v1650
        %1652 = vmatmul.f32.gmra.mxu0 %v690
        %v1653 = vpop.f32.mrf.mxu0
        %v1654 = vadd.f32 %v1541, %v1653
        %1655 = vmatmul.f32.gmra.mxu0 %v691
        %v1656 = vpop.f32.mrf.mxu0
        %v1657 = vadd.f32 %v1544, %v1656
        %1658 = vmatmul.f32.gmra.mxu0 %v692
        %v1659 = vpop.f32.mrf.mxu0
        %v1660 = vadd.f32 %v1547, %v1659
        %1661 = vmatmul.f32.gmra.mxu0 %v693
        %v1662 = vpop.f32.mrf.mxu0
        %v1663 = vadd.f32 %v1550, %v1662
        %1664 = vmatmul.f32.gmra.mxu0 %v694
        %v1665 = vpop.f32.mrf.mxu0
        %v1666 = vadd.f32 %v1553, %v1665
        %1667 = vmatmul.f32.gmra.mxu0 %v695
        %v1668 = vpop.f32.mrf.mxu0
        %v1669 = vadd.f32 %v1556, %v1668
        %1670 = vmatmul.f32.gmra.mxu0 %v696
        %v1671 = vpop.f32.mrf.mxu0
        %v1672 = vadd.f32 %v1559, %v1671
        %1673 = vmatmul.f32.gmra.mxu0 %v697
        %v1674 = vpop.f32.mrf.mxu0
        %v1675 = vadd.f32 %v1562, %v1674
        %1676 = vmatmul.f32.gmra.mxu0 %v698
        %v1677 = vpop.f32.mrf.mxu0
        %v1678 = vadd.f32 %v1565, %v1677
        %1679 = vmatmul.f32.gmra.mxu0 %v699
        %v1680 = vpop.f32.mrf.mxu0
        %v1681 = vadd.f32 %v1568, %v1680
        %1682 = vmatmul.f32.gmra.mxu0 %v700
        %v1683 = vpop.f32.mrf.mxu0
        %v1684 = vadd.f32 %v1571, %v1683
        %1685 = vmatmul.f32.gmra.mxu0 %v701
        %v1686 = vpop.f32.mrf.mxu0
        %v1687 = vadd.f32 %v1574, %v1686
        %1688 = vmatmul.f32.gmra.mxu0 %v702
        %v1689 = vpop.f32.mrf.mxu0
        %v1690 = vadd.f32 %v1577, %v1689
        %1691 = vmatmul.f32.gmra.mxu0 %v703
        %v1692 = vpop.f32.mrf.mxu0
        %v1693 = vadd.f32 %v1580, %v1692
        %1694 = vmatmul.f32.gmra.mxu0 %v704
        %v1695 = vpop.f32.mrf.mxu0
        %v1696 = vadd.f32 %v1583, %v1695
        %1697 = vmatmul.f32.gmra.mxu0 %v705
        %v1698 = vpop.f32.mrf.mxu0
        %v1699 = vadd.f32 %v1586, %v1698
        %1700 = vmatmul.f32.gmra.mxu0 %v706
        %v1701 = vpop.f32.mrf.mxu0
        %v1702 = vadd.f32 %v1589, %v1701
        %1703 = vmatmul.f32.gmra.mxu0 %v707
        %v1704 = vpop.f32.mrf.mxu0
        %v1705 = vadd.f32 %v1592, %v1704
        %1706 = vmatmul.f32.gmra.mxu0 %v708
        %v1707 = vpop.f32.mrf.mxu0
        %v1708 = vadd.f32 %v1595, %v1707
        %1709 = vmatmul.f32.gmra.mxu0 %v709
        %v1710 = vpop.f32.mrf.mxu0
        %v1711 = vadd.f32 %v1598, %v1710
        %1712 = vdwg.mxu0
        %1713 = vmatpush.msra.mxu0 %v901
        %1714 = vmatpush.msra.mxu0 %v900
        %1715 = vmatpush.msra.mxu0 %v899
        %1716 = vmatpush.msra.mxu0 %v898
        %1717 = vmatpush.msra.mxu0 %v897
        %1718 = vmatpush.msra.mxu0 %v896
        %1719 = vmatpush.msra.mxu0 %v895
        %1720 = vmatpush.msra.mxu0 %v894
        %1721 = vmatpush.msra.mxu0 %v893
        %1722 = vmatpush.msra.mxu0 %v892
        %1723 = vmatpush.msra.mxu0 %v891
        %1724 = vmatpush.msra.mxu0 %v890
        %1725 = vmatpush.msra.mxu0 %v889
        %1726 = vmatpush.msra.mxu0 %v888
        %1727 = vmatpush.msra.mxu0 %v887
        %1728 = vmatpush.msra.mxu0 %v886
        %1729 = vmatmul.f32.gmra.mxu0 %v710
        %v1730 = vpop.f32.mrf.mxu0
        %v1731 = vadd.f32 %v1618, %v1730
        %1732 = vmatmul.f32.gmra.mxu0 %v711
        %v1733 = vpop.f32.mrf.mxu0
        %v1734 = vadd.f32 %v1621, %v1733
        %1735 = vmatmul.f32.gmra.mxu0 %v712
        %v1736 = vpop.f32.mrf.mxu0
        %v1737 = vadd.f32 %v1624, %v1736
        %1738 = vmatmul.f32.gmra.mxu0 %v713
        %v1739 = vpop.f32.mrf.mxu0
        %v1740 = vadd.f32 %v1627, %v1739
        %1741 = vmatmul.f32.gmra.mxu0 %v714
        %v1742 = vpop.f32.mrf.mxu0
        %v1743 = vadd.f32 %v1630, %v1742
        %1744 = vmatmul.f32.gmra.mxu0 %v715
        %v1745 = vpop.f32.mrf.mxu0
        %v1746 = vadd.f32 %v1633, %v1745
        %1747 = vmatmul.f32.gmra.mxu0 %v716
        %v1748 = vpop.f32.mrf.mxu0
        %v1749 = vadd.f32 %v1636, %v1748
        %1750 = vmatmul.f32.gmra.mxu0 %v717
        %v1751 = vpop.f32.mrf.mxu0
        %v1752 = vadd.f32 %v1639, %v1751
        %1753 = vmatmul.f32.gmra.mxu0 %v718
        %v1754 = vpop.f32.mrf.mxu0
        %v1755 = vadd.f32 %v1642, %v1754
        %1756 = vmatmul.f32.gmra.mxu0 %v719
        %v1757 = vpop.f32.mrf.mxu0
        %v1758 = vadd.f32 %v1645, %v1757
        %1759 = vmatmul.f32.gmra.mxu0 %v720
        %v1760 = vpop.f32.mrf.mxu0
        %v1761 = vadd.f32 %v1648, %v1760
        %1762 = vmatmul.f32.gmra.mxu0 %v721
        %v1763 = vpop.f32.mrf.mxu0
        %v1764 = vadd.f32 %v1651, %v1763
        %1765 = vmatmul.f32.gmra.mxu0 %v722
        %v1766 = vpop.f32.mrf.mxu0
        %v1767 = vadd.f32 %v1654, %v1766
        %1768 = vmatmul.f32.gmra.mxu0 %v723
        %v1769 = vpop.f32.mrf.mxu0
        %v1770 = vadd.f32 %v1657, %v1769
        %1771 = vmatmul.f32.gmra.mxu0 %v724
        %v1772 = vpop.f32.mrf.mxu0
        %v1773 = vadd.f32 %v1660, %v1772
        %1774 = vmatmul.f32.gmra.mxu0 %v725
        %v1775 = vpop.f32.mrf.mxu0
        %v1776 = vadd.f32 %v1663, %v1775
        %1777 = vmatmul.f32.gmra.mxu0 %v726
        %v1778 = vpop.f32.mrf.mxu0
        %v1779 = vadd.f32 %v1666, %v1778
        %1780 = vmatmul.f32.gmra.mxu0 %v727
        %v1781 = vpop.f32.mrf.mxu0
        %v1782 = vadd.f32 %v1669, %v1781
        %1783 = vmatmul.f32.gmra.mxu0 %v728
        %v1784 = vpop.f32.mrf.mxu0
        %v1785 = vadd.f32 %v1672, %v1784
        %1786 = vmatmul.f32.gmra.mxu0 %v729
        %v1787 = vpop.f32.mrf.mxu0
        %v1788 = vadd.f32 %v1675, %v1787
        %1789 = vmatmul.f32.gmra.mxu0 %v730
        %v1790 = vpop.f32.mrf.mxu0
        %v1791 = vadd.f32 %v1678, %v1790
        %1792 = vmatmul.f32.gmra.mxu0 %v731
        %v1793 = vpop.f32.mrf.mxu0
        %v1794 = vadd.f32 %v1681, %v1793
        %1795 = vmatmul.f32.gmra.mxu0 %v732
        %v1796 = vpop.f32.mrf.mxu0
        %v1797 = vadd.f32 %v1684, %v1796
        %1798 = vmatmul.f32.gmra.mxu0 %v733
        %v1799 = vpop.f32.mrf.mxu0
        %v1800 = vadd.f32 %v1687, %v1799
        %1801 = vmatmul.f32.gmra.mxu0 %v734
        %v1802 = vpop.f32.mrf.mxu0
        %v1803 = vadd.f32 %v1690, %v1802
        %1804 = vmatmul.f32.gmra.mxu0 %v735
        %v1805 = vpop.f32.mrf.mxu0
        %v1806 = vadd.f32 %v1693, %v1805
        %1807 = vmatmul.f32.gmra.mxu0 %v736
        %v1808 = vpop.f32.mrf.mxu0
        %v1809 = vadd.f32 %v1696, %v1808
        %1810 = vmatmul.f32.gmra.mxu0 %v737
        %v1811 = vpop.f32.mrf.mxu0
        %v1812 = vadd.f32 %v1699, %v1811
        %1813 = vmatmul.f32.gmra.mxu0 %v738
        %v1814 = vpop.f32.mrf.mxu0
        %v1815 = vadd.f32 %v1702, %v1814
        %1816 = vmatmul.f32.gmra.mxu0 %v739
        %v1817 = vpop.f32.mrf.mxu0
        %v1818 = vadd.f32 %v1705, %v1817
        %1819 = vmatmul.f32.gmra.mxu0 %v740
        %v1820 = vpop.f32.mrf.mxu0
        %v1821 = vadd.f32 %v1708, %v1820
        %1822 = vmatmul.f32.gmra.mxu0 %v741
        %v1823 = vpop.f32.mrf.mxu0
        %v1824 = vadd.f32 %v1711, %v1823
        %1825 = vdwg.mxu0
        %1826 = vmatpush.msra.mxu0 %v917
        %1827 = vmatpush.msra.mxu0 %v916
        %1828 = vmatpush.msra.mxu0 %v915
        %1829 = vmatpush.msra.mxu0 %v914
        %1830 = vmatpush.msra.mxu0 %v913
        %1831 = vmatpush.msra.mxu0 %v912
        %1832 = vmatpush.msra.mxu0 %v911
        %1833 = vmatpush.msra.mxu0 %v910
        %1834 = vmatpush.msra.mxu0 %v909
        %1835 = vmatpush.msra.mxu0 %v908
        %1836 = vmatpush.msra.mxu0 %v907
        %1837 = vmatpush.msra.mxu0 %v906
        %1838 = vmatpush.msra.mxu0 %v905
        %1839 = vmatpush.msra.mxu0 %v904
        %1840 = vmatpush.msra.mxu0 %v903
        %1841 = vmatpush.msra.mxu0 %v902
        %1842 = vmatmul.f32.gmra.mxu0 %v742
        %v1843 = vpop.f32.mrf.mxu0
        %v1844 = vadd.f32 %v1731, %v1843
        %1845 = vmatmul.f32.gmra.mxu0 %v743
        %v1846 = vpop.f32.mrf.mxu0
        %v1847 = vadd.f32 %v1734, %v1846
        %1848 = vmatmul.f32.gmra.mxu0 %v744
        %v1849 = vpop.f32.mrf.mxu0
        %v1850 = vadd.f32 %v1737, %v1849
        %1851 = vmatmul.f32.gmra.mxu0 %v745
        %v1852 = vpop.f32.mrf.mxu0
        %v1853 = vadd.f32 %v1740, %v1852
        %1854 = vmatmul.f32.gmra.mxu0 %v746
        %v1855 = vpop.f32.mrf.mxu0
        %v1856 = vadd.f32 %v1743, %v1855
        %1857 = vmatmul.f32.gmra.mxu0 %v747
        %v1858 = vpop.f32.mrf.mxu0
        %v1859 = vadd.f32 %v1746, %v1858
        %1860 = vmatmul.f32.gmra.mxu0 %v748
        %v1861 = vpop.f32.mrf.mxu0
        %v1862 = vadd.f32 %v1749, %v1861
        %1863 = vmatmul.f32.gmra.mxu0 %v749
        %v1864 = vpop.f32.mrf.mxu0
        %v1865 = vadd.f32 %v1752, %v1864
        %1866 = vmatmul.f32.gmra.mxu0 %v750
        %v1867 = vpop.f32.mrf.mxu0
        %v1868 = vadd.f32 %v1755, %v1867
        %1869 = vmatmul.f32.gmra.mxu0 %v751
        %v1870 = vpop.f32.mrf.mxu0
        %v1871 = vadd.f32 %v1758, %v1870
        %1872 = vmatmul.f32.gmra.mxu0 %v752
        %v1873 = vpop.f32.mrf.mxu0
        %v1874 = vadd.f32 %v1761, %v1873
        %1875 = vmatmul.f32.gmra.mxu0 %v753
        %v1876 = vpop.f32.mrf.mxu0
        %v1877 = vadd.f32 %v1764, %v1876
        %1878 = vmatmul.f32.gmra.mxu0 %v754
        %v1879 = vpop.f32.mrf.mxu0
        %v1880 = vadd.f32 %v1767, %v1879
        %1881 = vmatmul.f32.gmra.mxu0 %v755
        %v1882 = vpop.f32.mrf.mxu0
        %v1883 = vadd.f32 %v1770, %v1882
        %1884 = vmatmul.f32.gmra.mxu0 %v756
        %v1885 = vpop.f32.mrf.mxu0
        %v1886 = vadd.f32 %v1773, %v1885
        %1887 = vmatmul.f32.gmra.mxu0 %v757
        %v1888 = vpop.f32.mrf.mxu0
        %v1889 = vadd.f32 %v1776, %v1888
        %1890 = vmatmul.f32.gmra.mxu0 %v758
        %v1891 = vpop.f32.mrf.mxu0
        %v1892 = vadd.f32 %v1779, %v1891
        %1893 = vmatmul.f32.gmra.mxu0 %v759
        %v1894 = vpop.f32.mrf.mxu0
        %v1895 = vadd.f32 %v1782, %v1894
        %1896 = vmatmul.f32.gmra.mxu0 %v760
        %v1897 = vpop.f32.mrf.mxu0
        %v1898 = vadd.f32 %v1785, %v1897
        %1899 = vmatmul.f32.gmra.mxu0 %v761
        %v1900 = vpop.f32.mrf.mxu0
        %v1901 = vadd.f32 %v1788, %v1900
        %1902 = vmatmul.f32.gmra.mxu0 %v762
        %v1903 = vpop.f32.mrf.mxu0
        %v1904 = vadd.f32 %v1791, %v1903
        %1905 = vmatmul.f32.gmra.mxu0 %v763
        %v1906 = vpop.f32.mrf.mxu0
        %v1907 = vadd.f32 %v1794, %v1906
        %1908 = vmatmul.f32.gmra.mxu0 %v764
        %v1909 = vpop.f32.mrf.mxu0
        %v1910 = vadd.f32 %v1797, %v1909
        %1911 = vmatmul.f32.gmra.mxu0 %v765
        %v1912 = vpop.f32.mrf.mxu0
        %v1913 = vadd.f32 %v1800, %v1912
        %1914 = vmatmul.f32.gmra.mxu0 %v766
        %v1915 = vpop.f32.mrf.mxu0
        %v1916 = vadd.f32 %v1803, %v1915
        %1917 = vmatmul.f32.gmra.mxu0 %v767
        %v1918 = vpop.f32.mrf.mxu0
        %v1919 = vadd.f32 %v1806, %v1918
        %1920 = vmatmul.f32.gmra.mxu0 %v768
        %v1921 = vpop.f32.mrf.mxu0
        %v1922 = vadd.f32 %v1809, %v1921
        %1923 = vmatmul.f32.gmra.mxu0 %v769
        %v1924 = vpop.f32.mrf.mxu0
        %v1925 = vadd.f32 %v1812, %v1924
        %1926 = vmatmul.f32.gmra.mxu0 %v770
        %v1927 = vpop.f32.mrf.mxu0
        %v1928 = vadd.f32 %v1815, %v1927
        %1929 = vmatmul.f32.gmra.mxu0 %v771
        %v1930 = vpop.f32.mrf.mxu0
        %v1931 = vadd.f32 %v1818, %v1930
        %1932 = vmatmul.f32.gmra.mxu0 %v772
        %v1933 = vpop.f32.mrf.mxu0
        %v1934 = vadd.f32 %v1821, %v1933
        %1935 = vmatmul.f32.gmra.mxu0 %v773
        %v1936 = vpop.f32.mrf.mxu0
        %v1937 = vadd.f32 %v1824, %v1936
        %1938 = vdwg.mxu0
        %v1939 = vadd.f32 %v1844, %v1847
        %v1940 = vadd.f32 %v1939, %v1850
        %v1941 = vadd.f32 %v1940, %v1853
        %v1942 = vadd.f32 %v1941, %v1856
        %v1943 = vadd.f32 %v1942, %v1859
        %v1944 = vadd.f32 %v1943, %v1862
        %v1945 = vadd.f32 %v1944, %v1865
        %v1946 = vadd.f32 %v1945, %v1868
        %v1947 = vadd.f32 %v1946, %v1871
        %v1948 = vadd.f32 %v1947, %v1874
        %v1949 = vadd.f32 %v1948, %v1877
        %v1950 = vadd.f32 %v1949, %v1880
        %v1951 = vadd.f32 %v1950, %v1883
        %v1952 = vadd.f32 %v1951, %v1886
        %v1953 = vadd.f32 %v1952, %v1889
        %v1954 = vadd.f32 %v1953, %v1892
        %v1955 = vadd.f32 %v1954, %v1895
        %v1956 = vadd.f32 %v1955, %v1898
        %v1957 = vadd.f32 %v1956, %v1901
        %v1958 = vadd.f32 %v1957, %v1904
        %v1959 = vadd.f32 %v1958, %v1907
        %v1960 = vadd.f32 %v1959, %v1910
        %v1961 = vadd.f32 %v1960, %v1913
        %v1962 = vadd.f32 %v1961, %v1916
        %v1963 = vadd.f32 %v1962, %v1919
        %v1964 = vadd.f32 %v1963, %v1922
        %v1965 = vadd.f32 %v1964, %v1925
        %v1966 = vadd.f32 %v1965, %v1928
        %v1967 = vadd.f32 %v1966, %v1931
        %v1968 = vadd.f32 %v1967, %v1934
        %v1969 = vadd.f32 %v1968, %v1937
        %1970 = vadd.xlane.f32.xlu0 %v1969
        %v1971 = vpop.xlane.xlu0 %1970
        %v1972 = vrot.slane %v1971, 4
        %v1973 = vadd.f32 %v1971, %v1972
        %v1974 = vrot.slane %v1973, 2
        %v1975 = vadd.f32 %v1973, %v1974
        %v1976 = vrot.slane %v1975, 1
        %v1977 = vadd.f32 %v1975, %v1976
        %s1978 = vtos %v1977
        %s1979 = smul.f32 %s1978, 0.00048828125
        %v1980 = vmul.f32 %v1844, %v1844
        %v1981 = vmul.f32 %v1847, %v1847
        %v1982 = vmul.f32 %v1850, %v1850
        %v1983 = vmul.f32 %v1853, %v1853
        %v1984 = vmul.f32 %v1856, %v1856
        %v1985 = vmul.f32 %v1859, %v1859
        %v1986 = vmul.f32 %v1862, %v1862
        %v1987 = vmul.f32 %v1865, %v1865
        %v1988 = vmul.f32 %v1868, %v1868
        %v1989 = vmul.f32 %v1871, %v1871
        %v1990 = vmul.f32 %v1874, %v1874
        %v1991 = vmul.f32 %v1877, %v1877
        %v1992 = vmul.f32 %v1880, %v1880
        %v1993 = vmul.f32 %v1883, %v1883
        %v1994 = vmul.f32 %v1886, %v1886
        %v1995 = vmul.f32 %v1889, %v1889
        %v1996 = vmul.f32 %v1892, %v1892
        %v1997 = vmul.f32 %v1895, %v1895
        %v1998 = vmul.f32 %v1898, %v1898
        %v1999 = vmul.f32 %v1901, %v1901
        %v2000 = vmul.f32 %v1904, %v1904
        %v2001 = vmul.f32 %v1907, %v1907
        %v2002 = vmul.f32 %v1910, %v1910
        %v2003 = vmul.f32 %v1913, %v1913
        %v2004 = vmul.f32 %v1916, %v1916
        %v2005 = vmul.f32 %v1919, %v1919
        %v2006 = vmul.f32 %v1922, %v1922
        %v2007 = vmul.f32 %v1925, %v1925
        %v2008 = vmul.f32 %v1928, %v1928
        %v2009 = vmul.f32 %v1931, %v1931
        %v2010 = vmul.f32 %v1934, %v1934
        %v2011 = vmul.f32 %v1937, %v1937
        %v2012 = vadd.f32 %v1980, %v1981
        %v2013 = vadd.f32 %v2012, %v1982
        %v2014 = vadd.f32 %v2013, %v1983
        %v2015 = vadd.f32 %v2014, %v1984
        %v2016 = vadd.f32 %v2015, %v1985
        %v2017 = vadd.f32 %v2016, %v1986
        %v2018 = vadd.f32 %v2017, %v1987
        %v2019 = vadd.f32 %v2018, %v1988
        %v2020 = vadd.f32 %v2019, %v1989
        %v2021 = vadd.f32 %v2020, %v1990
        %v2022 = vadd.f32 %v2021, %v1991
        %v2023 = vadd.f32 %v2022, %v1992
        %v2024 = vadd.f32 %v2023, %v1993
        %v2025 = vadd.f32 %v2024, %v1994
        %v2026 = vadd.f32 %v2025, %v1995
        %v2027 = vadd.f32 %v2026, %v1996
        %v2028 = vadd.f32 %v2027, %v1997
        %v2029 = vadd.f32 %v2028, %v1998
        %v2030 = vadd.f32 %v2029, %v1999
        %v2031 = vadd.f32 %v2030, %v2000
        %v2032 = vadd.f32 %v2031, %v2001
        %v2033 = vadd.f32 %v2032, %v2002
        %v2034 = vadd.f32 %v2033, %v2003
        %v2035 = vadd.f32 %v2034, %v2004
        %v2036 = vadd.f32 %v2035, %v2005
        %v2037 = vadd.f32 %v2036, %v2006
        %v2038 = vadd.f32 %v2037, %v2007
        %v2039 = vadd.f32 %v2038, %v2008
        %v2040 = vadd.f32 %v2039, %v2009
        %v2041 = vadd.f32 %v2040, %v2010
        %v2042 = vadd.f32 %v2041, %v2011
        %2043 = vadd.xlane.f32.xlu0 %v2042
        %v2044 = vpop.xlane.xlu0 %2043
        %v2045 = vrot.slane %v2044, 4
        %v2046 = vadd.f32 %v2044, %v2045
        %v2047 = vrot.slane %v2046, 2
        %v2048 = vadd.f32 %v2046, %v2047
        %v2049 = vrot.slane %v2048, 1
        %v2050 = vadd.f32 %v2048, %v2049
        %s2051 = vtos %v2050
        %s2052 = smul.f32 %s2051, 0.00048828125
        %s2053 = smul.f32 %s1979, %s1979
        %s2054 = ssub.f32 %s2052, %s2053
        %s2055 = sadd.f32 %s2054, 1e-05
        %v2056 = vstv %s2055
        %v2057 = vrsqrt.pop %v2056
        %v2058 = vmul.f32 %v2057, %v2056
        %v2059 = vmul.f32 %v2058, %v2057
        %v2060 = vmul.f32 0.5, %v2059
        %v2061 = vsub.f32 1.5, %v2060
        %v2062 = vmul.f32 %v2057, %v2061
        %vm2063 = vweird.f32 %v2056
        %vm2064 = vweird.f32 %v2057
        %vm2065 = vmor %vm2063, %vm2064
        %v2066 = vsel %vm2065, %v2057, %v2062
        %s2067 = vtos %v2066
        %v2068 = vld [vmem:[%s3] sm:$0x1]
        %v2069 = vstv %s2067
        %v2070 = vmul.f32 %v2068, %v2069
        %v2071 = vld [vmem:[%s4] sm:$0x1]
        %v2072 = vstv %s1979
        %v2073 = vmul.f32 %v2072, %v2070
        %v2074 = vsub.f32 %v2071, %v2073
        %v2076 = vperm.slane %v2070, 0
        %v2078 = vmul.f32 %v1844, %v2076
        %v2079 = vmul.f32 %v1847, %v2076
        %v2080 = vmul.f32 %v1850, %v2076
        %v2081 = vmul.f32 %v1853, %v2076
        %v2082 = vmul.f32 %v1856, %v2076
        %v2083 = vmul.f32 %v1859, %v2076
        %v2084 = vmul.f32 %v1862, %v2076
        %v2085 = vmul.f32 %v1865, %v2076
        %v2086 = vmul.f32 %v1868, %v2076
        %v2087 = vmul.f32 %v1871, %v2076
        %v2088 = vmul.f32 %v1874, %v2076
        %v2089 = vmul.f32 %v1877, %v2076
        %v2090 = vmul.f32 %v1880, %v2076
        %v2091 = vmul.f32 %v1883, %v2076
        %v2092 = vmul.f32 %v1886, %v2076
        %v2093 = vmul.f32 %v1889, %v2076
        %v2094 = vmul.f32 %v1892, %v2076
        %v2095 = vmul.f32 %v1895, %v2076
        %v2096 = vmul.f32 %v1898, %v2076
        %v2097 = vmul.f32 %v1901, %v2076
        %v2098 = vmul.f32 %v1904, %v2076
        %v2099 = vmul.f32 %v1907, %v2076
        %v2100 = vmul.f32 %v1910, %v2076
        %v2101 = vmul.f32 %v1913, %v2076
        %v2102 = vmul.f32 %v1916, %v2076
        %v2103 = vmul.f32 %v1919, %v2076
        %v2104 = vmul.f32 %v1922, %v2076
        %v2105 = vmul.f32 %v1925, %v2076
        %v2106 = vmul.f32 %v1928, %v2076
        %v2107 = vmul.f32 %v1931, %v2076
        %v2108 = vmul.f32 %v1934, %v2076
        %v2109 = vmul.f32 %v1937, %v2076
        %v2111 = vperm.slane %v2074, 0
        %v2113 = vadd.f32 %v2078, %v2111
        %v2114 = vadd.f32 %v2079, %v2111
        %v2115 = vadd.f32 %v2080, %v2111
        %v2116 = vadd.f32 %v2081, %v2111
        %v2117 = vadd.f32 %v2082, %v2111
        %v2118 = vadd.f32 %v2083, %v2111
        %v2119 = vadd.f32 %v2084, %v2111
        %v2120 = vadd.f32 %v2085, %v2111
        %v2121 = vadd.f32 %v2086, %v2111
        %v2122 = vadd.f32 %v2087, %v2111
        %v2123 = vadd.f32 %v2088, %v2111
        %v2124 = vadd.f32 %v2089, %v2111
        %v2125 = vadd.f32 %v2090, %v2111
        %v2126 = vadd.f32 %v2091, %v2111
        %v2127 = vadd.f32 %v2092, %v2111
        %v2128 = vadd.f32 %v2093, %v2111
        %v2129 = vadd.f32 %v2094, %v2111
        %v2130 = vadd.f32 %v2095, %v2111
        %v2131 = vadd.f32 %v2096, %v2111
        %v2132 = vadd.f32 %v2097, %v2111
        %v2133 = vadd.f32 %v2098, %v2111
        %v2134 = vadd.f32 %v2099, %v2111
        %v2135 = vadd.f32 %v2100, %v2111
        %v2136 = vadd.f32 %v2101, %v2111
        %v2137 = vadd.f32 %v2102, %v2111
        %v2138 = vadd.f32 %v2103, %v2111
        %v2139 = vadd.f32 %v2104, %v2111
        %v2140 = vadd.f32 %v2105, %v2111
        %v2141 = vadd.f32 %v2106, %v2111
        %v2142 = vadd.f32 %v2107, %v2111
        %v2143 = vadd.f32 %v2108, %v2111
        %v2144 = vadd.f32 %v2109, %v2111
        %v2145 = vmul.f32 %v2113, 0.5
        %v2146 = vmul.f32 %v2114, 0.5
        %v2147 = vmul.f32 %v2115, 0.5
        %v2148 = vmul.f32 %v2116, 0.5
        %v2149 = vmul.f32 %v2117, 0.5
        %v2150 = vmul.f32 %v2118, 0.5
        %v2151 = vmul.f32 %v2119, 0.5
        %v2152 = vmul.f32 %v2120, 0.5
        %v2153 = vmul.f32 %v2121, 0.5
        %v2154 = vmul.f32 %v2122, 0.5
        %v2155 = vmul.f32 %v2123, 0.5
        %v2156 = vmul.f32 %v2124, 0.5
        %v2157 = vmul.f32 %v2125, 0.5
        %v2158 = vmul.f32 %v2126, 0.5
        %v2159 = vmul.f32 %v2127, 0.5
        %v2160 = vmul.f32 %v2128, 0.5
        %v2161 = vmul.f32 %v2129, 0.5
        %v2162 = vmul.f32 %v2130, 0.5
        %v2163 = vmul.f32 %v2131, 0.5
        %v2164 = vmul.f32 %v2132, 0.5
        %v2165 = vmul.f32 %v2133, 0.5
        %v2166 = vmul.f32 %v2134, 0.5
        %v2167 = vmul.f32 %v2135, 0.5
        %v2168 = vmul.f32 %v2136, 0.5
        %v2169 = vmul.f32 %v2137, 0.5
        %v2170 = vmul.f32 %v2138, 0.5
        %v2171 = vmul.f32 %v2139, 0.5
        %v2172 = vmul.f32 %v2140, 0.5
        %v2173 = vmul.f32 %v2141, 0.5
        %v2174 = vmul.f32 %v2142, 0.5
        %v2175 = vmul.f32 %v2143, 0.5
        %v2176 = vmul.f32 %v2144, 0.5
        %v2177 = vmul.f32 %v2113, 0.70710677
        %v2178 = vmul.f32 %v2114, 0.70710677
        %v2179 = vmul.f32 %v2115, 0.70710677
        %v2180 = vmul.f32 %v2116, 0.70710677
        %v2181 = vmul.f32 %v2117, 0.70710677
        %v2182 = vmul.f32 %v2118, 0.70710677
        %v2183 = vmul.f32 %v2119, 0.70710677
        %v2184 = vmul.f32 %v2120, 0.70710677
        %v2185 = vmul.f32 %v2121, 0.70710677
        %v2186 = vmul.f32 %v2122, 0.70710677
        %v2187 = vmul.f32 %v2123, 0.70710677
        %v2188 = vmul.f32 %v2124, 0.70710677
        %v2189 = vmul.f32 %v2125, 0.70710677
        %v2190 = vmul.f32 %v2126, 0.70710677
        %v2191 = vmul.f32 %v2127, 0.70710677
        %v2192 = vmul.f32 %v2128, 0.70710677
        %v2193 = vmul.f32 %v2129, 0.70710677
        %v2194 = vmul.f32 %v2130, 0.70710677
        %v2195 = vmul.f32 %v2131, 0.70710677
        %v2196 = vmul.f32 %v2132, 0.70710677
        %v2197 = vmul.f32 %v2133, 0.70710677
        %v2198 = vmul.f32 %v2134, 0.70710677
        %v2199 = vmul.f32 %v2135, 0.70710677
        %v2200 = vmul.f32 %v2136, 0.70710677
        %v2201 = vmul.f32 %v2137, 0.70710677
        %v2202 = vmul.f32 %v2138, 0.70710677
        %v2203 = vmul.f32 %v2139, 0.70710677
        %v2204 = vmul.f32 %v2140, 0.70710677
        %v2205 = vmul.f32 %v2141, 0.70710677
        %v2206 = vmul.f32 %v2142, 0.70710677
        %v2207 = vmul.f32 %v2143, 0.70710677
        %v2208 = vmul.f32 %v2144, 0.70710677
        %v2209 = vmul.f32 %v2177, %v2177
        %v2210 = vmin.f32 16.0, %v2209
        %v2211 = vmul.f32 %v2210, 2.1237322e-06
        %v2212 = vadd.f32 %v2211, 0.00028619796
        %v2213 = vmul.f32 %v2210, %v2212
        %v2214 = vadd.f32 %v2213, 0.0036580483
        %v2215 = vmul.f32 %v2210, %v2214
        %v2216 = vadd.f32 %v2215, 0.05243302
        %v2217 = vmul.f32 %v2210, %v2216
        %v2218 = vadd.f32 %v2217, 0.18741608
        %v2219 = vmul.f32 %v2210, %v2218
        %v2220 = vadd.f32 %v2219, 1.1283791
        %v2221 = vmul.f32 %v2177, %v2220
        %v2222 = vmul.f32 %v2210, 3.8918573e-05
        %v2223 = vadd.f32 %v2222, 0.001143296
        %v2224 = vmul.f32 %v2210, %v2223
        %v2225 = vadd.f32 %v2224, 0.014752088
        %v2226 = vmul.f32 %v2210, %v2225
        %v2227 = vadd.f32 %v2226, 0.112945676
        %v2228 = vmul.f32 %v2210, %v2227
        %v2229 = vadd.f32 %v2228, 0.4994258
        %v2230 = vmul.f32 %v2210, %v2229
        %v2231 = vadd.f32 %v2230, 1.0
        %v2232 = vrcp.pop %v2231
        %v2233 = vmul.f32 %v2231, %v2232
        %v2234 = vsub.f32 1.0, %v2233
        %v2235 = vmul.f32 %v2232, %v2234
        %v2236 = vadd.f32 %v2232, %v2235
        %vm2237 = vweird.f32 %v2231
        %vm2238 = vweird.f32 %v2232
        %vm2239 = vmor %vm2237, %vm2238
        %v2240 = vsel %vm2239, %v2232, %v2236
        %v2241 = vand.u32 2147483647, %v2231
        %vm2242 = vcmp.eq.f32.partialorder %v2241, 8.507059e+37
        %v2243 = vand.u32 %v2231, 2147483648
        %v2244 = vor.u32 1.1754944e-38, %v2243
        %v2245 = vsel %vm2242, %v2244, %v2240
        %v2246 = vmul.f32 %v2221, %v2245
        %v2247 = vmin.f32 %v2246, 1.0
        %v2248 = vmax.f32 %v2247, -1.0
        %v2249 = vmul.f32 %v2178, %v2178
        %v2250 = vmin.f32 16.0, %v2249
        %v2251 = vmul.f32 %v2250, 2.1237322e-06
        %v2252 = vadd.f32 %v2251, 0.00028619796
        %v2253 = vmul.f32 %v2250, %v2252
        %v2254 = vadd.f32 %v2253, 0.0036580483
        %v2255 = vmul.f32 %v2250, %v2254
        %v2256 = vadd.f32 %v2255, 0.05243302
        %v2257 = vmul.f32 %v2250, %v2256
        %v2258 = vadd.f32 %v2257, 0.18741608
        %v2259 = vmul.f32 %v2250, %v2258
        %v2260 = vadd.f32 %v2259, 1.1283791
        %v2261 = vmul.f32 %v2178, %v2260
        %v2262 = vmul.f32 %v2250, 3.8918573e-05
        %v2263 = vadd.f32 %v2262, 0.001143296
        %v2264 = vmul.f32 %v2250, %v2263
        %v2265 = vadd.f32 %v2264, 0.014752088
        %v2266 = vmul.f32 %v2250, %v2265
        %v2267 = vadd.f32 %v2266, 0.112945676
        %v2268 = vmul.f32 %v2250, %v2267
        %v2269 = vadd.f32 %v2268, 0.4994258
        %v2270 = vmul.f32 %v2250, %v2269
        %v2271 = vadd.f32 %v2270, 1.0
        %v2272 = vrcp.pop %v2271
        %v2273 = vmul.f32 %v2271, %v2272
        %v2274 = vsub.f32 1.0, %v2273
        %v2275 = vmul.f32 %v2272, %v2274
        %v2276 = vadd.f32 %v2272, %v2275
        %vm2277 = vweird.f32 %v2271
        %vm2278 = vweird.f32 %v2272
        %vm2279 = vmor %vm2277, %vm2278
        %v2280 = vsel %vm2279, %v2272, %v2276
        %v2281 = vand.u32 2147483647, %v2271
        %vm2282 = vcmp.eq.f32.partialorder %v2281, 8.507059e+37
        %v2283 = vand.u32 %v2271, 2147483648
        %v2284 = vor.u32 1.1754944e-38, %v2283
        %v2285 = vsel %vm2282, %v2284, %v2280
        %v2286 = vmul.f32 %v2261, %v2285
        %v2287 = vmin.f32 %v2286, 1.0
        %v2288 = vmax.f32 %v2287, -1.0
        %v2289 = vmul.f32 %v2179, %v2179
        %v2290 = vmin.f32 16.0, %v2289
        %v2291 = vmul.f32 %v2290, 2.1237322e-06
        %v2292 = vadd.f32 %v2291, 0.00028619796
        %v2293 = vmul.f32 %v2290, %v2292
        %v2294 = vadd.f32 %v2293, 0.0036580483
        %v2295 = vmul.f32 %v2290, %v2294
        %v2296 = vadd.f32 %v2295, 0.05243302
        %v2297 = vmul.f32 %v2290, %v2296
        %v2298 = vadd.f32 %v2297, 0.18741608
        %v2299 = vmul.f32 %v2290, %v2298
        %v2300 = vadd.f32 %v2299, 1.1283791
        %v2301 = vmul.f32 %v2179, %v2300
        %v2302 = vmul.f32 %v2290, 3.8918573e-05
        %v2303 = vadd.f32 %v2302, 0.001143296
        %v2304 = vmul.f32 %v2290, %v2303
        %v2305 = vadd.f32 %v2304, 0.014752088
        %v2306 = vmul.f32 %v2290, %v2305
        %v2307 = vadd.f32 %v2306, 0.112945676
        %v2308 = vmul.f32 %v2290, %v2307
        %v2309 = vadd.f32 %v2308, 0.4994258
        %v2310 = vmul.f32 %v2290, %v2309
        %v2311 = vadd.f32 %v2310, 1.0
        %v2312 = vrcp.pop %v2311
        %v2313 = vmul.f32 %v2311, %v2312
        %v2314 = vsub.f32 1.0, %v2313
        %v2315 = vmul.f32 %v2312, %v2314
        %v2316 = vadd.f32 %v2312, %v2315
        %vm2317 = vweird.f32 %v2311
        %vm2318 = vweird.f32 %v2312
        %vm2319 = vmor %vm2317, %vm2318
        %v2320 = vsel %vm2319, %v2312, %v2316
        %v2321 = vand.u32 2147483647, %v2311
        %vm2322 = vcmp.eq.f32.partialorder %v2321, 8.507059e+37
        %v2323 = vand.u32 %v2311, 2147483648
        %v2324 = vor.u32 1.1754944e-38, %v2323
        %v2325 = vsel %vm2322, %v2324, %v2320
        %v2326 = vmul.f32 %v2301, %v2325
        %v2327 = vmin.f32 %v2326, 1.0
        %v2328 = vmax.f32 %v2327, -1.0
        %v2329 = vmul.f32 %v2180, %v2180
        %v2330 = vmin.f32 16.0, %v2329
        %v2331 = vmul.f32 %v2330, 2.1237322e-06
        %v2332 = vadd.f32 %v2331, 0.00028619796
        %v2333 = vmul.f32 %v2330, %v2332
        %v2334 = vadd.f32 %v2333, 0.0036580483
        %v2335 = vmul.f32 %v2330, %v2334
        %v2336 = vadd.f32 %v2335, 0.05243302
        %v2337 = vmul.f32 %v2330, %v2336
        %v2338 = vadd.f32 %v2337, 0.18741608
        %v2339 = vmul.f32 %v2330, %v2338
        %v2340 = vadd.f32 %v2339, 1.1283791
        %v2341 = vmul.f32 %v2180, %v2340
        %v2342 = vmul.f32 %v2330, 3.8918573e-05
        %v2343 = vadd.f32 %v2342, 0.001143296
        %v2344 = vmul.f32 %v2330, %v2343
        %v2345 = vadd.f32 %v2344, 0.014752088
        %v2346 = vmul.f32 %v2330, %v2345
        %v2347 = vadd.f32 %v2346, 0.112945676
        %v2348 = vmul.f32 %v2330, %v2347
        %v2349 = vadd.f32 %v2348, 0.4994258
        %v2350 = vmul.f32 %v2330, %v2349
        %v2351 = vadd.f32 %v2350, 1.0
        %v2352 = vrcp.pop %v2351
        %v2353 = vmul.f32 %v2351, %v2352
        %v2354 = vsub.f32 1.0, %v2353
        %v2355 = vmul.f32 %v2352, %v2354
        %v2356 = vadd.f32 %v2352, %v2355
        %vm2357 = vweird.f32 %v2351
        %vm2358 = vweird.f32 %v2352
        %vm2359 = vmor %vm2357, %vm2358
        %v2360 = vsel %vm2359, %v2352, %v2356
        %v2361 = vand.u32 2147483647, %v2351
        %vm2362 = vcmp.eq.f32.partialorder %v2361, 8.507059e+37
        %v2363 = vand.u32 %v2351, 2147483648
        %v2364 = vor.u32 1.1754944e-38, %v2363
        %v2365 = vsel %vm2362, %v2364, %v2360
        %v2366 = vmul.f32 %v2341, %v2365
        %v2367 = vmin.f32 %v2366, 1.0
        %v2368 = vmax.f32 %v2367, -1.0
        %v2369 = vmul.f32 %v2181, %v2181
        %v2370 = vmin.f32 16.0, %v2369
        %v2371 = vmul.f32 %v2370, 2.1237322e-06
        %v2372 = vadd.f32 %v2371, 0.00028619796
        %v2373 = vmul.f32 %v2370, %v2372
        %v2374 = vadd.f32 %v2373, 0.0036580483
        %v2375 = vmul.f32 %v2370, %v2374
        %v2376 = vadd.f32 %v2375, 0.05243302
        %v2377 = vmul.f32 %v2370, %v2376
        %v2378 = vadd.f32 %v2377, 0.18741608
        %v2379 = vmul.f32 %v2370, %v2378
        %v2380 = vadd.f32 %v2379, 1.1283791
        %v2381 = vmul.f32 %v2181, %v2380
        %v2382 = vmul.f32 %v2370, 3.8918573e-05
        %v2383 = vadd.f32 %v2382, 0.001143296
        %v2384 = vmul.f32 %v2370, %v2383
        %v2385 = vadd.f32 %v2384, 0.014752088
        %v2386 = vmul.f32 %v2370, %v2385
        %v2387 = vadd.f32 %v2386, 0.112945676
        %v2388 = vmul.f32 %v2370, %v2387
        %v2389 = vadd.f32 %v2388, 0.4994258
        %v2390 = vmul.f32 %v2370, %v2389
        %v2391 = vadd.f32 %v2390, 1.0
        %v2392 = vrcp.pop %v2391
        %v2393 = vmul.f32 %v2391, %v2392
        %v2394 = vsub.f32 1.0, %v2393
        %v2395 = vmul.f32 %v2392, %v2394
        %v2396 = vadd.f32 %v2392, %v2395
        %vm2397 = vweird.f32 %v2391
        %vm2398 = vweird.f32 %v2392
        %vm2399 = vmor %vm2397, %vm2398
        %v2400 = vsel %vm2399, %v2392, %v2396
        %v2401 = vand.u32 2147483647, %v2391
        %vm2402 = vcmp.eq.f32.partialorder %v2401, 8.507059e+37
        %v2403 = vand.u32 %v2391, 2147483648
        %v2404 = vor.u32 1.1754944e-38, %v2403
        %v2405 = vsel %vm2402, %v2404, %v2400
        %v2406 = vmul.f32 %v2381, %v2405
        %v2407 = vmin.f32 %v2406, 1.0
        %v2408 = vmax.f32 %v2407, -1.0
        %v2409 = vmul.f32 %v2182, %v2182
        %v2410 = vmin.f32 16.0, %v2409
        %v2411 = vmul.f32 %v2410, 2.1237322e-06
        %v2412 = vadd.f32 %v2411, 0.00028619796
        %v2413 = vmul.f32 %v2410, %v2412
        %v2414 = vadd.f32 %v2413, 0.0036580483
        %v2415 = vmul.f32 %v2410, %v2414
        %v2416 = vadd.f32 %v2415, 0.05243302
        %v2417 = vmul.f32 %v2410, %v2416
        %v2418 = vadd.f32 %v2417, 0.18741608
        %v2419 = vmul.f32 %v2410, %v2418
        %v2420 = vadd.f32 %v2419, 1.1283791
        %v2421 = vmul.f32 %v2182, %v2420
        %v2422 = vmul.f32 %v2410, 3.8918573e-05
        %v2423 = vadd.f32 %v2422, 0.001143296
        %v2424 = vmul.f32 %v2410, %v2423
        %v2425 = vadd.f32 %v2424, 0.014752088
        %v2426 = vmul.f32 %v2410, %v2425
        %v2427 = vadd.f32 %v2426, 0.112945676
        %v2428 = vmul.f32 %v2410, %v2427
        %v2429 = vadd.f32 %v2428, 0.4994258
        %v2430 = vmul.f32 %v2410, %v2429
        %v2431 = vadd.f32 %v2430, 1.0
        %v2432 = vrcp.pop %v2431
        %v2433 = vmul.f32 %v2431, %v2432
        %v2434 = vsub.f32 1.0, %v2433
        %v2435 = vmul.f32 %v2432, %v2434
        %v2436 = vadd.f32 %v2432, %v2435
        %vm2437 = vweird.f32 %v2431
        %vm2438 = vweird.f32 %v2432
        %vm2439 = vmor %vm2437, %vm2438
        %v2440 = vsel %vm2439, %v2432, %v2436
        %v2441 = vand.u32 2147483647, %v2431
        %vm2442 = vcmp.eq.f32.partialorder %v2441, 8.507059e+37
        %v2443 = vand.u32 %v2431, 2147483648
        %v2444 = vor.u32 1.1754944e-38, %v2443
        %v2445 = vsel %vm2442, %v2444, %v2440
        %v2446 = vmul.f32 %v2421, %v2445
        %v2447 = vmin.f32 %v2446, 1.0
        %v2448 = vmax.f32 %v2447, -1.0
        %v2449 = vmul.f32 %v2183, %v2183
        %v2450 = vmin.f32 16.0, %v2449
        %v2451 = vmul.f32 %v2450, 2.1237322e-06
        %v2452 = vadd.f32 %v2451, 0.00028619796
        %v2453 = vmul.f32 %v2450, %v2452
        %v2454 = vadd.f32 %v2453, 0.0036580483
        %v2455 = vmul.f32 %v2450, %v2454
        %v2456 = vadd.f32 %v2455, 0.05243302
        %v2457 = vmul.f32 %v2450, %v2456
        %v2458 = vadd.f32 %v2457, 0.18741608
        %v2459 = vmul.f32 %v2450, %v2458
        %v2460 = vadd.f32 %v2459, 1.1283791
        %v2461 = vmul.f32 %v2183, %v2460
        %v2462 = vmul.f32 %v2450, 3.8918573e-05
        %v2463 = vadd.f32 %v2462, 0.001143296
        %v2464 = vmul.f32 %v2450, %v2463
        %v2465 = vadd.f32 %v2464, 0.014752088
        %v2466 = vmul.f32 %v2450, %v2465
        %v2467 = vadd.f32 %v2466, 0.112945676
        %v2468 = vmul.f32 %v2450, %v2467
        %v2469 = vadd.f32 %v2468, 0.4994258
        %v2470 = vmul.f32 %v2450, %v2469
        %v2471 = vadd.f32 %v2470, 1.0
        %v2472 = vrcp.pop %v2471
        %v2473 = vmul.f32 %v2471, %v2472
        %v2474 = vsub.f32 1.0, %v2473
        %v2475 = vmul.f32 %v2472, %v2474
        %v2476 = vadd.f32 %v2472, %v2475
        %vm2477 = vweird.f32 %v2471
        %vm2478 = vweird.f32 %v2472
        %vm2479 = vmor %vm2477, %vm2478
        %v2480 = vsel %vm2479, %v2472, %v2476
        %v2481 = vand.u32 2147483647, %v2471
        %vm2482 = vcmp.eq.f32.partialorder %v2481, 8.507059e+37
        %v2483 = vand.u32 %v2471, 2147483648
        %v2484 = vor.u32 1.1754944e-38, %v2483
        %v2485 = vsel %vm2482, %v2484, %v2480
        %v2486 = vmul.f32 %v2461, %v2485
        %v2487 = vmin.f32 %v2486, 1.0
        %v2488 = vmax.f32 %v2487, -1.0
        %v2489 = vmul.f32 %v2184, %v2184
        %v2490 = vmin.f32 16.0, %v2489
        %v2491 = vmul.f32 %v2490, 2.1237322e-06
        %v2492 = vadd.f32 %v2491, 0.00028619796
        %v2493 = vmul.f32 %v2490, %v2492
        %v2494 = vadd.f32 %v2493, 0.0036580483
        %v2495 = vmul.f32 %v2490, %v2494
        %v2496 = vadd.f32 %v2495, 0.05243302
        %v2497 = vmul.f32 %v2490, %v2496
        %v2498 = vadd.f32 %v2497, 0.18741608
        %v2499 = vmul.f32 %v2490, %v2498
        %v2500 = vadd.f32 %v2499, 1.1283791
        %v2501 = vmul.f32 %v2184, %v2500
        %v2502 = vmul.f32 %v2490, 3.8918573e-05
        %v2503 = vadd.f32 %v2502, 0.001143296
        %v2504 = vmul.f32 %v2490, %v2503
        %v2505 = vadd.f32 %v2504, 0.014752088
        %v2506 = vmul.f32 %v2490, %v2505
        %v2507 = vadd.f32 %v2506, 0.112945676
        %v2508 = vmul.f32 %v2490, %v2507
        %v2509 = vadd.f32 %v2508, 0.4994258
        %v2510 = vmul.f32 %v2490, %v2509
        %v2511 = vadd.f32 %v2510, 1.0
        %v2512 = vrcp.pop %v2511
        %v2513 = vmul.f32 %v2511, %v2512
        %v2514 = vsub.f32 1.0, %v2513
        %v2515 = vmul.f32 %v2512, %v2514
        %v2516 = vadd.f32 %v2512, %v2515
        %vm2517 = vweird.f32 %v2511
        %vm2518 = vweird.f32 %v2512
        %vm2519 = vmor %vm2517, %vm2518
        %v2520 = vsel %vm2519, %v2512, %v2516
        %v2521 = vand.u32 2147483647, %v2511
        %vm2522 = vcmp.eq.f32.partialorder %v2521, 8.507059e+37
        %v2523 = vand.u32 %v2511, 2147483648
        %v2524 = vor.u32 1.1754944e-38, %v2523
        %v2525 = vsel %vm2522, %v2524, %v2520
        %v2526 = vmul.f32 %v2501, %v2525
        %v2527 = vmin.f32 %v2526, 1.0
        %v2528 = vmax.f32 %v2527, -1.0
        %v2529 = vmul.f32 %v2185, %v2185
        %v2530 = vmin.f32 16.0, %v2529
        %v2531 = vmul.f32 %v2530, 2.1237322e-06
        %v2532 = vadd.f32 %v2531, 0.00028619796
        %v2533 = vmul.f32 %v2530, %v2532
        %v2534 = vadd.f32 %v2533, 0.0036580483
        %v2535 = vmul.f32 %v2530, %v2534
        %v2536 = vadd.f32 %v2535, 0.05243302
        %v2537 = vmul.f32 %v2530, %v2536
        %v2538 = vadd.f32 %v2537, 0.18741608
        %v2539 = vmul.f32 %v2530, %v2538
        %v2540 = vadd.f32 %v2539, 1.1283791
        %v2541 = vmul.f32 %v2185, %v2540
        %v2542 = vmul.f32 %v2530, 3.8918573e-05
        %v2543 = vadd.f32 %v2542, 0.001143296
        %v2544 = vmul.f32 %v2530, %v2543
        %v2545 = vadd.f32 %v2544, 0.014752088
        %v2546 = vmul.f32 %v2530, %v2545
        %v2547 = vadd.f32 %v2546, 0.112945676
        %v2548 = vmul.f32 %v2530, %v2547
        %v2549 = vadd.f32 %v2548, 0.4994258
        %v2550 = vmul.f32 %v2530, %v2549
        %v2551 = vadd.f32 %v2550, 1.0
        %v2552 = vrcp.pop %v2551
        %v2553 = vmul.f32 %v2551, %v2552
        %v2554 = vsub.f32 1.0, %v2553
        %v2555 = vmul.f32 %v2552, %v2554
        %v2556 = vadd.f32 %v2552, %v2555
        %vm2557 = vweird.f32 %v2551
        %vm2558 = vweird.f32 %v2552
        %vm2559 = vmor %vm2557, %vm2558
        %v2560 = vsel %vm2559, %v2552, %v2556
        %v2561 = vand.u32 2147483647, %v2551
        %vm2562 = vcmp.eq.f32.partialorder %v2561, 8.507059e+37
        %v2563 = vand.u32 %v2551, 2147483648
        %v2564 = vor.u32 1.1754944e-38, %v2563
        %v2565 = vsel %vm2562, %v2564, %v2560
        %v2566 = vmul.f32 %v2541, %v2565
        %v2567 = vmin.f32 %v2566, 1.0
        %v2568 = vmax.f32 %v2567, -1.0
        %v2569 = vmul.f32 %v2186, %v2186
        %v2570 = vmin.f32 16.0, %v2569
        %v2571 = vmul.f32 %v2570, 2.1237322e-06
        %v2572 = vadd.f32 %v2571, 0.00028619796
        %v2573 = vmul.f32 %v2570, %v2572
        %v2574 = vadd.f32 %v2573, 0.0036580483
        %v2575 = vmul.f32 %v2570, %v2574
        %v2576 = vadd.f32 %v2575, 0.05243302
        %v2577 = vmul.f32 %v2570, %v2576
        %v2578 = vadd.f32 %v2577, 0.18741608
        %v2579 = vmul.f32 %v2570, %v2578
        %v2580 = vadd.f32 %v2579, 1.1283791
        %v2581 = vmul.f32 %v2186, %v2580
        %v2582 = vmul.f32 %v2570, 3.8918573e-05
        %v2583 = vadd.f32 %v2582, 0.001143296
        %v2584 = vmul.f32 %v2570, %v2583
        %v2585 = vadd.f32 %v2584, 0.014752088
        %v2586 = vmul.f32 %v2570, %v2585
        %v2587 = vadd.f32 %v2586, 0.112945676
        %v2588 = vmul.f32 %v2570, %v2587
        %v2589 = vadd.f32 %v2588, 0.4994258
        %v2590 = vmul.f32 %v2570, %v2589
        %v2591 = vadd.f32 %v2590, 1.0
        %v2592 = vrcp.pop %v2591
        %v2593 = vmul.f32 %v2591, %v2592
        %v2594 = vsub.f32 1.0, %v2593
        %v2595 = vmul.f32 %v2592, %v2594
        %v2596 = vadd.f32 %v2592, %v2595
        %vm2597 = vweird.f32 %v2591
        %vm2598 = vweird.f32 %v2592
        %vm2599 = vmor %vm2597, %vm2598
        %v2600 = vsel %vm2599, %v2592, %v2596
        %v2601 = vand.u32 2147483647, %v2591
        %vm2602 = vcmp.eq.f32.partialorder %v2601, 8.507059e+37
        %v2603 = vand.u32 %v2591, 2147483648
        %v2604 = vor.u32 1.1754944e-38, %v2603
        %v2605 = vsel %vm2602, %v2604, %v2600
        %v2606 = vmul.f32 %v2581, %v2605
        %v2607 = vmin.f32 %v2606, 1.0
        %v2608 = vmax.f32 %v2607, -1.0
        %v2609 = vmul.f32 %v2187, %v2187
        %v2610 = vmin.f32 16.0, %v2609
        %v2611 = vmul.f32 %v2610, 2.1237322e-06
        %v2612 = vadd.f32 %v2611, 0.00028619796
        %v2613 = vmul.f32 %v2610, %v2612
        %v2614 = vadd.f32 %v2613, 0.0036580483
        %v2615 = vmul.f32 %v2610, %v2614
        %v2616 = vadd.f32 %v2615, 0.05243302
        %v2617 = vmul.f32 %v2610, %v2616
        %v2618 = vadd.f32 %v2617, 0.18741608
        %v2619 = vmul.f32 %v2610, %v2618
        %v2620 = vadd.f32 %v2619, 1.1283791
        %v2621 = vmul.f32 %v2187, %v2620
        %v2622 = vmul.f32 %v2610, 3.8918573e-05
        %v2623 = vadd.f32 %v2622, 0.001143296
        %v2624 = vmul.f32 %v2610, %v2623
        %v2625 = vadd.f32 %v2624, 0.014752088
        %v2626 = vmul.f32 %v2610, %v2625
        %v2627 = vadd.f32 %v2626, 0.112945676
        %v2628 = vmul.f32 %v2610, %v2627
        %v2629 = vadd.f32 %v2628, 0.4994258
        %v2630 = vmul.f32 %v2610, %v2629
        %v2631 = vadd.f32 %v2630, 1.0
        %v2632 = vrcp.pop %v2631
        %v2633 = vmul.f32 %v2631, %v2632
        %v2634 = vsub.f32 1.0, %v2633
        %v2635 = vmul.f32 %v2632, %v2634
        %v2636 = vadd.f32 %v2632, %v2635
        %vm2637 = vweird.f32 %v2631
        %vm2638 = vweird.f32 %v2632
        %vm2639 = vmor %vm2637, %vm2638
        %v2640 = vsel %vm2639, %v2632, %v2636
        %v2641 = vand.u32 2147483647, %v2631
        %vm2642 = vcmp.eq.f32.partialorder %v2641, 8.507059e+37
        %v2643 = vand.u32 %v2631, 2147483648
        %v2644 = vor.u32 1.1754944e-38, %v2643
        %v2645 = vsel %vm2642, %v2644, %v2640
        %v2646 = vmul.f32 %v2621, %v2645
        %v2647 = vmin.f32 %v2646, 1.0
        %v2648 = vmax.f32 %v2647, -1.0
        %v2649 = vmul.f32 %v2188, %v2188
        %v2650 = vmin.f32 16.0, %v2649
        %v2651 = vmul.f32 %v2650, 2.1237322e-06
        %v2652 = vadd.f32 %v2651, 0.00028619796
        %v2653 = vmul.f32 %v2650, %v2652
        %v2654 = vadd.f32 %v2653, 0.0036580483
        %v2655 = vmul.f32 %v2650, %v2654
        %v2656 = vadd.f32 %v2655, 0.05243302
        %v2657 = vmul.f32 %v2650, %v2656
        %v2658 = vadd.f32 %v2657, 0.18741608
        %v2659 = vmul.f32 %v2650, %v2658
        %v2660 = vadd.f32 %v2659, 1.1283791
        %v2661 = vmul.f32 %v2188, %v2660
        %v2662 = vmul.f32 %v2650, 3.8918573e-05
        %v2663 = vadd.f32 %v2662, 0.001143296
        %v2664 = vmul.f32 %v2650, %v2663
        %v2665 = vadd.f32 %v2664, 0.014752088
        %v2666 = vmul.f32 %v2650, %v2665
        %v2667 = vadd.f32 %v2666, 0.112945676
        %v2668 = vmul.f32 %v2650, %v2667
        %v2669 = vadd.f32 %v2668, 0.4994258
        %v2670 = vmul.f32 %v2650, %v2669
        %v2671 = vadd.f32 %v2670, 1.0
        %v2672 = vrcp.pop %v2671
        %v2673 = vmul.f32 %v2671, %v2672
        %v2674 = vsub.f32 1.0, %v2673
        %v2675 = vmul.f32 %v2672, %v2674
        %v2676 = vadd.f32 %v2672, %v2675
        %vm2677 = vweird.f32 %v2671
        %vm2678 = vweird.f32 %v2672
        %vm2679 = vmor %vm2677, %vm2678
        %v2680 = vsel %vm2679, %v2672, %v2676
        %v2681 = vand.u32 2147483647, %v2671
        %vm2682 = vcmp.eq.f32.partialorder %v2681, 8.507059e+37
        %v2683 = vand.u32 %v2671, 2147483648
        %v2684 = vor.u32 1.1754944e-38, %v2683
        %v2685 = vsel %vm2682, %v2684, %v2680
        %v2686 = vmul.f32 %v2661, %v2685
        %v2687 = vmin.f32 %v2686, 1.0
        %v2688 = vmax.f32 %v2687, -1.0
        %v2689 = vmul.f32 %v2189, %v2189
        %v2690 = vmin.f32 16.0, %v2689
        %v2691 = vmul.f32 %v2690, 2.1237322e-06
        %v2692 = vadd.f32 %v2691, 0.00028619796
        %v2693 = vmul.f32 %v2690, %v2692
        %v2694 = vadd.f32 %v2693, 0.0036580483
        %v2695 = vmul.f32 %v2690, %v2694
        %v2696 = vadd.f32 %v2695, 0.05243302
        %v2697 = vmul.f32 %v2690, %v2696
        %v2698 = vadd.f32 %v2697, 0.18741608
        %v2699 = vmul.f32 %v2690, %v2698
        %v2700 = vadd.f32 %v2699, 1.1283791
        %v2701 = vmul.f32 %v2189, %v2700
        %v2702 = vmul.f32 %v2690, 3.8918573e-05
        %v2703 = vadd.f32 %v2702, 0.001143296
        %v2704 = vmul.f32 %v2690, %v2703
        %v2705 = vadd.f32 %v2704, 0.014752088
        %v2706 = vmul.f32 %v2690, %v2705
        %v2707 = vadd.f32 %v2706, 0.112945676
        %v2708 = vmul.f32 %v2690, %v2707
        %v2709 = vadd.f32 %v2708, 0.4994258
        %v2710 = vmul.f32 %v2690, %v2709
        %v2711 = vadd.f32 %v2710, 1.0
        %v2712 = vrcp.pop %v2711
        %v2713 = vmul.f32 %v2711, %v2712
        %v2714 = vsub.f32 1.0, %v2713
        %v2715 = vmul.f32 %v2712, %v2714
        %v2716 = vadd.f32 %v2712, %v2715
        %vm2717 = vweird.f32 %v2711
        %vm2718 = vweird.f32 %v2712
        %vm2719 = vmor %vm2717, %vm2718
        %v2720 = vsel %vm2719, %v2712, %v2716
        %v2721 = vand.u32 2147483647, %v2711
        %vm2722 = vcmp.eq.f32.partialorder %v2721, 8.507059e+37
        %v2723 = vand.u32 %v2711, 2147483648
        %v2724 = vor.u32 1.1754944e-38, %v2723
        %v2725 = vsel %vm2722, %v2724, %v2720
        %v2726 = vmul.f32 %v2701, %v2725
        %v2727 = vmin.f32 %v2726, 1.0
        %v2728 = vmax.f32 %v2727, -1.0
        %v2729 = vmul.f32 %v2190, %v2190
        %v2730 = vmin.f32 16.0, %v2729
        %v2731 = vmul.f32 %v2730, 2.1237322e-06
        %v2732 = vadd.f32 %v2731, 0.00028619796
        %v2733 = vmul.f32 %v2730, %v2732
        %v2734 = vadd.f32 %v2733, 0.0036580483
        %v2735 = vmul.f32 %v2730, %v2734
        %v2736 = vadd.f32 %v2735, 0.05243302
        %v2737 = vmul.f32 %v2730, %v2736
        %v2738 = vadd.f32 %v2737, 0.18741608
        %v2739 = vmul.f32 %v2730, %v2738
        %v2740 = vadd.f32 %v2739, 1.1283791
        %v2741 = vmul.f32 %v2190, %v2740
        %v2742 = vmul.f32 %v2730, 3.8918573e-05
        %v2743 = vadd.f32 %v2742, 0.001143296
        %v2744 = vmul.f32 %v2730, %v2743
        %v2745 = vadd.f32 %v2744, 0.014752088
        %v2746 = vmul.f32 %v2730, %v2745
        %v2747 = vadd.f32 %v2746, 0.112945676
        %v2748 = vmul.f32 %v2730, %v2747
        %v2749 = vadd.f32 %v2748, 0.4994258
        %v2750 = vmul.f32 %v2730, %v2749
        %v2751 = vadd.f32 %v2750, 1.0
        %v2752 = vrcp.pop %v2751
        %v2753 = vmul.f32 %v2751, %v2752
        %v2754 = vsub.f32 1.0, %v2753
        %v2755 = vmul.f32 %v2752, %v2754
        %v2756 = vadd.f32 %v2752, %v2755
        %vm2757 = vweird.f32 %v2751
        %vm2758 = vweird.f32 %v2752
        %vm2759 = vmor %vm2757, %vm2758
        %v2760 = vsel %vm2759, %v2752, %v2756
        %v2761 = vand.u32 2147483647, %v2751
        %vm2762 = vcmp.eq.f32.partialorder %v2761, 8.507059e+37
        %v2763 = vand.u32 %v2751, 2147483648
        %v2764 = vor.u32 1.1754944e-38, %v2763
        %v2765 = vsel %vm2762, %v2764, %v2760
        %v2766 = vmul.f32 %v2741, %v2765
        %v2767 = vmin.f32 %v2766, 1.0
        %v2768 = vmax.f32 %v2767, -1.0
        %v2769 = vmul.f32 %v2191, %v2191
        %v2770 = vmin.f32 16.0, %v2769
        %v2771 = vmul.f32 %v2770, 2.1237322e-06
        %v2772 = vadd.f32 %v2771, 0.00028619796
        %v2773 = vmul.f32 %v2770, %v2772
        %v2774 = vadd.f32 %v2773, 0.0036580483
        %v2775 = vmul.f32 %v2770, %v2774
        %v2776 = vadd.f32 %v2775, 0.05243302
        %v2777 = vmul.f32 %v2770, %v2776
        %v2778 = vadd.f32 %v2777, 0.18741608
        %v2779 = vmul.f32 %v2770, %v2778
        %v2780 = vadd.f32 %v2779, 1.1283791
        %v2781 = vmul.f32 %v2191, %v2780
        %v2782 = vmul.f32 %v2770, 3.8918573e-05
        %v2783 = vadd.f32 %v2782, 0.001143296
        %v2784 = vmul.f32 %v2770, %v2783
        %v2785 = vadd.f32 %v2784, 0.014752088
        %v2786 = vmul.f32 %v2770, %v2785
        %v2787 = vadd.f32 %v2786, 0.112945676
        %v2788 = vmul.f32 %v2770, %v2787
        %v2789 = vadd.f32 %v2788, 0.4994258
        %v2790 = vmul.f32 %v2770, %v2789
        %v2791 = vadd.f32 %v2790, 1.0
        %v2792 = vrcp.pop %v2791
        %v2793 = vmul.f32 %v2791, %v2792
        %v2794 = vsub.f32 1.0, %v2793
        %v2795 = vmul.f32 %v2792, %v2794
        %v2796 = vadd.f32 %v2792, %v2795
        %vm2797 = vweird.f32 %v2791
        %vm2798 = vweird.f32 %v2792
        %vm2799 = vmor %vm2797, %vm2798
        %v2800 = vsel %vm2799, %v2792, %v2796
        %v2801 = vand.u32 2147483647, %v2791
        %vm2802 = vcmp.eq.f32.partialorder %v2801, 8.507059e+37
        %v2803 = vand.u32 %v2791, 2147483648
        %v2804 = vor.u32 1.1754944e-38, %v2803
        %v2805 = vsel %vm2802, %v2804, %v2800
        %v2806 = vmul.f32 %v2781, %v2805
        %v2807 = vmin.f32 %v2806, 1.0
        %v2808 = vmax.f32 %v2807, -1.0
        %v2809 = vmul.f32 %v2192, %v2192
        %v2810 = vmin.f32 16.0, %v2809
        %v2811 = vmul.f32 %v2810, 2.1237322e-06
        %v2812 = vadd.f32 %v2811, 0.00028619796
        %v2813 = vmul.f32 %v2810, %v2812
        %v2814 = vadd.f32 %v2813, 0.0036580483
        %v2815 = vmul.f32 %v2810, %v2814
        %v2816 = vadd.f32 %v2815, 0.05243302
        %v2817 = vmul.f32 %v2810, %v2816
        %v2818 = vadd.f32 %v2817, 0.18741608
        %v2819 = vmul.f32 %v2810, %v2818
        %v2820 = vadd.f32 %v2819, 1.1283791
        %v2821 = vmul.f32 %v2192, %v2820
        %v2822 = vmul.f32 %v2810, 3.8918573e-05
        %v2823 = vadd.f32 %v2822, 0.001143296
        %v2824 = vmul.f32 %v2810, %v2823
        %v2825 = vadd.f32 %v2824, 0.014752088
        %v2826 = vmul.f32 %v2810, %v2825
        %v2827 = vadd.f32 %v2826, 0.112945676
        %v2828 = vmul.f32 %v2810, %v2827
        %v2829 = vadd.f32 %v2828, 0.4994258
        %v2830 = vmul.f32 %v2810, %v2829
        %v2831 = vadd.f32 %v2830, 1.0
        %v2832 = vrcp.pop %v2831
        %v2833 = vmul.f32 %v2831, %v2832
        %v2834 = vsub.f32 1.0, %v2833
        %v2835 = vmul.f32 %v2832, %v2834
        %v2836 = vadd.f32 %v2832, %v2835
        %vm2837 = vweird.f32 %v2831
        %vm2838 = vweird.f32 %v2832
        %vm2839 = vmor %vm2837, %vm2838
        %v2840 = vsel %vm2839, %v2832, %v2836
        %v2841 = vand.u32 2147483647, %v2831
        %vm2842 = vcmp.eq.f32.partialorder %v2841, 8.507059e+37
        %v2843 = vand.u32 %v2831, 2147483648
        %v2844 = vor.u32 1.1754944e-38, %v2843
        %v2845 = vsel %vm2842, %v2844, %v2840
        %v2846 = vmul.f32 %v2821, %v2845
        %v2847 = vmin.f32 %v2846, 1.0
        %v2848 = vmax.f32 %v2847, -1.0
        %v2849 = vmul.f32 %v2193, %v2193
        %v2850 = vmin.f32 16.0, %v2849
        %v2851 = vmul.f32 %v2850, 2.1237322e-06
        %v2852 = vadd.f32 %v2851, 0.00028619796
        %v2853 = vmul.f32 %v2850, %v2852
        %v2854 = vadd.f32 %v2853, 0.0036580483
        %v2855 = vmul.f32 %v2850, %v2854
        %v2856 = vadd.f32 %v2855, 0.05243302
        %v2857 = vmul.f32 %v2850, %v2856
        %v2858 = vadd.f32 %v2857, 0.18741608
        %v2859 = vmul.f32 %v2850, %v2858
        %v2860 = vadd.f32 %v2859, 1.1283791
        %v2861 = vmul.f32 %v2193, %v2860
        %v2862 = vmul.f32 %v2850, 3.8918573e-05
        %v2863 = vadd.f32 %v2862, 0.001143296
        %v2864 = vmul.f32 %v2850, %v2863
        %v2865 = vadd.f32 %v2864, 0.014752088
        %v2866 = vmul.f32 %v2850, %v2865
        %v2867 = vadd.f32 %v2866, 0.112945676
        %v2868 = vmul.f32 %v2850, %v2867
        %v2869 = vadd.f32 %v2868, 0.4994258
        %v2870 = vmul.f32 %v2850, %v2869
        %v2871 = vadd.f32 %v2870, 1.0
        %v2872 = vrcp.pop %v2871
        %v2873 = vmul.f32 %v2871, %v2872
        %v2874 = vsub.f32 1.0, %v2873
        %v2875 = vmul.f32 %v2872, %v2874
        %v2876 = vadd.f32 %v2872, %v2875
        %vm2877 = vweird.f32 %v2871
        %vm2878 = vweird.f32 %v2872
        %vm2879 = vmor %vm2877, %vm2878
        %v2880 = vsel %vm2879, %v2872, %v2876
        %v2881 = vand.u32 2147483647, %v2871
        %vm2882 = vcmp.eq.f32.partialorder %v2881, 8.507059e+37
        %v2883 = vand.u32 %v2871, 2147483648
        %v2884 = vor.u32 1.1754944e-38, %v2883
        %v2885 = vsel %vm2882, %v2884, %v2880
        %v2886 = vmul.f32 %v2861, %v2885
        %v2887 = vmin.f32 %v2886, 1.0
        %v2888 = vmax.f32 %v2887, -1.0
        %v2889 = vmul.f32 %v2194, %v2194
        %v2890 = vmin.f32 16.0, %v2889
        %v2891 = vmul.f32 %v2890, 2.1237322e-06
        %v2892 = vadd.f32 %v2891, 0.00028619796
        %v2893 = vmul.f32 %v2890, %v2892
        %v2894 = vadd.f32 %v2893, 0.0036580483
        %v2895 = vmul.f32 %v2890, %v2894
        %v2896 = vadd.f32 %v2895, 0.05243302
        %v2897 = vmul.f32 %v2890, %v2896
        %v2898 = vadd.f32 %v2897, 0.18741608
        %v2899 = vmul.f32 %v2890, %v2898
        %v2900 = vadd.f32 %v2899, 1.1283791
        %v2901 = vmul.f32 %v2194, %v2900
        %v2902 = vmul.f32 %v2890, 3.8918573e-05
        %v2903 = vadd.f32 %v2902, 0.001143296
        %v2904 = vmul.f32 %v2890, %v2903
        %v2905 = vadd.f32 %v2904, 0.014752088
        %v2906 = vmul.f32 %v2890, %v2905
        %v2907 = vadd.f32 %v2906, 0.112945676
        %v2908 = vmul.f32 %v2890, %v2907
        %v2909 = vadd.f32 %v2908, 0.4994258
        %v2910 = vmul.f32 %v2890, %v2909
        %v2911 = vadd.f32 %v2910, 1.0
        %v2912 = vrcp.pop %v2911
        %v2913 = vmul.f32 %v2911, %v2912
        %v2914 = vsub.f32 1.0, %v2913
        %v2915 = vmul.f32 %v2912, %v2914
        %v2916 = vadd.f32 %v2912, %v2915
        %vm2917 = vweird.f32 %v2911
        %vm2918 = vweird.f32 %v2912
        %vm2919 = vmor %vm2917, %vm2918
        %v2920 = vsel %vm2919, %v2912, %v2916
        %v2921 = vand.u32 2147483647, %v2911
        %vm2922 = vcmp.eq.f32.partialorder %v2921, 8.507059e+37
        %v2923 = vand.u32 %v2911, 2147483648
        %v2924 = vor.u32 1.1754944e-38, %v2923
        %v2925 = vsel %vm2922, %v2924, %v2920
        %v2926 = vmul.f32 %v2901, %v2925
        %v2927 = vmin.f32 %v2926, 1.0
        %v2928 = vmax.f32 %v2927, -1.0
        %v2929 = vmul.f32 %v2195, %v2195
        %v2930 = vmin.f32 16.0, %v2929
        %v2931 = vmul.f32 %v2930, 2.1237322e-06
        %v2932 = vadd.f32 %v2931, 0.00028619796
        %v2933 = vmul.f32 %v2930, %v2932
        %v2934 = vadd.f32 %v2933, 0.0036580483
        %v2935 = vmul.f32 %v2930, %v2934
        %v2936 = vadd.f32 %v2935, 0.05243302
        %v2937 = vmul.f32 %v2930, %v2936
        %v2938 = vadd.f32 %v2937, 0.18741608
        %v2939 = vmul.f32 %v2930, %v2938
        %v2940 = vadd.f32 %v2939, 1.1283791
        %v2941 = vmul.f32 %v2195, %v2940
        %v2942 = vmul.f32 %v2930, 3.8918573e-05
        %v2943 = vadd.f32 %v2942, 0.001143296
        %v2944 = vmul.f32 %v2930, %v2943
        %v2945 = vadd.f32 %v2944, 0.014752088
        %v2946 = vmul.f32 %v2930, %v2945
        %v2947 = vadd.f32 %v2946, 0.112945676
        %v2948 = vmul.f32 %v2930, %v2947
        %v2949 = vadd.f32 %v2948, 0.4994258
        %v2950 = vmul.f32 %v2930, %v2949
        %v2951 = vadd.f32 %v2950, 1.0
        %v2952 = vrcp.pop %v2951
        %v2953 = vmul.f32 %v2951, %v2952
        %v2954 = vsub.f32 1.0, %v2953
        %v2955 = vmul.f32 %v2952, %v2954
        %v2956 = vadd.f32 %v2952, %v2955
        %vm2957 = vweird.f32 %v2951
        %vm2958 = vweird.f32 %v2952
        %vm2959 = vmor %vm2957, %vm2958
        %v2960 = vsel %vm2959, %v2952, %v2956
        %v2961 = vand.u32 2147483647, %v2951
        %vm2962 = vcmp.eq.f32.partialorder %v2961, 8.507059e+37
        %v2963 = vand.u32 %v2951, 2147483648
        %v2964 = vor.u32 1.1754944e-38, %v2963
        %v2965 = vsel %vm2962, %v2964, %v2960
        %v2966 = vmul.f32 %v2941, %v2965
        %v2967 = vmin.f32 %v2966, 1.0
        %v2968 = vmax.f32 %v2967, -1.0
        %v2969 = vmul.f32 %v2196, %v2196
        %v2970 = vmin.f32 16.0, %v2969
        %v2971 = vmul.f32 %v2970, 2.1237322e-06
        %v2972 = vadd.f32 %v2971, 0.00028619796
        %v2973 = vmul.f32 %v2970, %v2972
        %v2974 = vadd.f32 %v2973, 0.0036580483
        %v2975 = vmul.f32 %v2970, %v2974
        %v2976 = vadd.f32 %v2975, 0.05243302
        %v2977 = vmul.f32 %v2970, %v2976
        %v2978 = vadd.f32 %v2977, 0.18741608
        %v2979 = vmul.f32 %v2970, %v2978
        %v2980 = vadd.f32 %v2979, 1.1283791
        %v2981 = vmul.f32 %v2196, %v2980
        %v2982 = vmul.f32 %v2970, 3.8918573e-05
        %v2983 = vadd.f32 %v2982, 0.001143296
        %v2984 = vmul.f32 %v2970, %v2983
        %v2985 = vadd.f32 %v2984, 0.014752088
        %v2986 = vmul.f32 %v2970, %v2985
        %v2987 = vadd.f32 %v2986, 0.112945676
        %v2988 = vmul.f32 %v2970, %v2987
        %v2989 = vadd.f32 %v2988, 0.4994258
        %v2990 = vmul.f32 %v2970, %v2989
        %v2991 = vadd.f32 %v2990, 1.0
        %v2992 = vrcp.pop %v2991
        %v2993 = vmul.f32 %v2991, %v2992
        %v2994 = vsub.f32 1.0, %v2993
        %v2995 = vmul.f32 %v2992, %v2994
        %v2996 = vadd.f32 %v2992, %v2995
        %vm2997 = vweird.f32 %v2991
        %vm2998 = vweird.f32 %v2992
        %vm2999 = vmor %vm2997, %vm2998
        %v3000 = vsel %vm2999, %v2992, %v2996
        %v3001 = vand.u32 2147483647, %v2991
        %vm3002 = vcmp.eq.f32.partialorder %v3001, 8.507059e+37
        %v3003 = vand.u32 %v2991, 2147483648
        %v3004 = vor.u32 1.1754944e-38, %v3003
        %v3005 = vsel %vm3002, %v3004, %v3000
        %v3006 = vmul.f32 %v2981, %v3005
        %v3007 = vmin.f32 %v3006, 1.0
        %v3008 = vmax.f32 %v3007, -1.0
        %v3009 = vmul.f32 %v2197, %v2197
        %v3010 = vmin.f32 16.0, %v3009
        %v3011 = vmul.f32 %v3010, 2.1237322e-06
        %v3012 = vadd.f32 %v3011, 0.00028619796
        %v3013 = vmul.f32 %v3010, %v3012
        %v3014 = vadd.f32 %v3013, 0.0036580483
        %v3015 = vmul.f32 %v3010, %v3014
        %v3016 = vadd.f32 %v3015, 0.05243302
        %v3017 = vmul.f32 %v3010, %v3016
        %v3018 = vadd.f32 %v3017, 0.18741608
        %v3019 = vmul.f32 %v3010, %v3018
        %v3020 = vadd.f32 %v3019, 1.1283791
        %v3021 = vmul.f32 %v2197, %v3020
        %v3022 = vmul.f32 %v3010, 3.8918573e-05
        %v3023 = vadd.f32 %v3022, 0.001143296
        %v3024 = vmul.f32 %v3010, %v3023
        %v3025 = vadd.f32 %v3024, 0.014752088
        %v3026 = vmul.f32 %v3010, %v3025
        %v3027 = vadd.f32 %v3026, 0.112945676
        %v3028 = vmul.f32 %v3010, %v3027
        %v3029 = vadd.f32 %v3028, 0.4994258
        %v3030 = vmul.f32 %v3010, %v3029
        %v3031 = vadd.f32 %v3030, 1.0
        %v3032 = vrcp.pop %v3031
        %v3033 = vmul.f32 %v3031, %v3032
        %v3034 = vsub.f32 1.0, %v3033
        %v3035 = vmul.f32 %v3032, %v3034
        %v3036 = vadd.f32 %v3032, %v3035
        %vm3037 = vweird.f32 %v3031
        %vm3038 = vweird.f32 %v3032
        %vm3039 = vmor %vm3037, %vm3038
        %v3040 = vsel %vm3039, %v3032, %v3036
        %v3041 = vand.u32 2147483647, %v3031
        %vm3042 = vcmp.eq.f32.partialorder %v3041, 8.507059e+37
        %v3043 = vand.u32 %v3031, 2147483648
        %v3044 = vor.u32 1.1754944e-38, %v3043
        %v3045 = vsel %vm3042, %v3044, %v3040
        %v3046 = vmul.f32 %v3021, %v3045
        %v3047 = vmin.f32 %v3046, 1.0
        %v3048 = vmax.f32 %v3047, -1.0
        %v3049 = vmul.f32 %v2198, %v2198
        %v3050 = vmin.f32 16.0, %v3049
        %v3051 = vmul.f32 %v3050, 2.1237322e-06
        %v3052 = vadd.f32 %v3051, 0.00028619796
        %v3053 = vmul.f32 %v3050, %v3052
        %v3054 = vadd.f32 %v3053, 0.0036580483
        %v3055 = vmul.f32 %v3050, %v3054
        %v3056 = vadd.f32 %v3055, 0.05243302
        %v3057 = vmul.f32 %v3050, %v3056
        %v3058 = vadd.f32 %v3057, 0.18741608
        %v3059 = vmul.f32 %v3050, %v3058
        %v3060 = vadd.f32 %v3059, 1.1283791
        %v3061 = vmul.f32 %v2198, %v3060
        %v3062 = vmul.f32 %v3050, 3.8918573e-05
        %v3063 = vadd.f32 %v3062, 0.001143296
        %v3064 = vmul.f32 %v3050, %v3063
        %v3065 = vadd.f32 %v3064, 0.014752088
        %v3066 = vmul.f32 %v3050, %v3065
        %v3067 = vadd.f32 %v3066, 0.112945676
        %v3068 = vmul.f32 %v3050, %v3067
        %v3069 = vadd.f32 %v3068, 0.4994258
        %v3070 = vmul.f32 %v3050, %v3069
        %v3071 = vadd.f32 %v3070, 1.0
        %v3072 = vrcp.pop %v3071
        %v3073 = vmul.f32 %v3071, %v3072
        %v3074 = vsub.f32 1.0, %v3073
        %v3075 = vmul.f32 %v3072, %v3074
        %v3076 = vadd.f32 %v3072, %v3075
        %vm3077 = vweird.f32 %v3071
        %vm3078 = vweird.f32 %v3072
        %vm3079 = vmor %vm3077, %vm3078
        %v3080 = vsel %vm3079, %v3072, %v3076
        %v3081 = vand.u32 2147483647, %v3071
        %vm3082 = vcmp.eq.f32.partialorder %v3081, 8.507059e+37
        %v3083 = vand.u32 %v3071, 2147483648
        %v3084 = vor.u32 1.1754944e-38, %v3083
        %v3085 = vsel %vm3082, %v3084, %v3080
        %v3086 = vmul.f32 %v3061, %v3085
        %v3087 = vmin.f32 %v3086, 1.0
        %v3088 = vmax.f32 %v3087, -1.0
        %v3089 = vmul.f32 %v2199, %v2199
        %v3090 = vmin.f32 16.0, %v3089
        %v3091 = vmul.f32 %v3090, 2.1237322e-06
        %v3092 = vadd.f32 %v3091, 0.00028619796
        %v3093 = vmul.f32 %v3090, %v3092
        %v3094 = vadd.f32 %v3093, 0.0036580483
        %v3095 = vmul.f32 %v3090, %v3094
        %v3096 = vadd.f32 %v3095, 0.05243302
        %v3097 = vmul.f32 %v3090, %v3096
        %v3098 = vadd.f32 %v3097, 0.18741608
        %v3099 = vmul.f32 %v3090, %v3098
        %v3100 = vadd.f32 %v3099, 1.1283791
        %v3101 = vmul.f32 %v2199, %v3100
        %v3102 = vmul.f32 %v3090, 3.8918573e-05
        %v3103 = vadd.f32 %v3102, 0.001143296
        %v3104 = vmul.f32 %v3090, %v3103
        %v3105 = vadd.f32 %v3104, 0.014752088
        %v3106 = vmul.f32 %v3090, %v3105
        %v3107 = vadd.f32 %v3106, 0.112945676
        %v3108 = vmul.f32 %v3090, %v3107
        %v3109 = vadd.f32 %v3108, 0.4994258
        %v3110 = vmul.f32 %v3090, %v3109
        %v3111 = vadd.f32 %v3110, 1.0
        %v3112 = vrcp.pop %v3111
        %v3113 = vmul.f32 %v3111, %v3112
        %v3114 = vsub.f32 1.0, %v3113
        %v3115 = vmul.f32 %v3112, %v3114
        %v3116 = vadd.f32 %v3112, %v3115
        %vm3117 = vweird.f32 %v3111
        %vm3118 = vweird.f32 %v3112
        %vm3119 = vmor %vm3117, %vm3118
        %v3120 = vsel %vm3119, %v3112, %v3116
        %v3121 = vand.u32 2147483647, %v3111
        %vm3122 = vcmp.eq.f32.partialorder %v3121, 8.507059e+37
        %v3123 = vand.u32 %v3111, 2147483648
        %v3124 = vor.u32 1.1754944e-38, %v3123
        %v3125 = vsel %vm3122, %v3124, %v3120
        %v3126 = vmul.f32 %v3101, %v3125
        %v3127 = vmin.f32 %v3126, 1.0
        %v3128 = vmax.f32 %v3127, -1.0
        %v3129 = vmul.f32 %v2200, %v2200
        %v3130 = vmin.f32 16.0, %v3129
        %v3131 = vmul.f32 %v3130, 2.1237322e-06
        %v3132 = vadd.f32 %v3131, 0.00028619796
        %v3133 = vmul.f32 %v3130, %v3132
        %v3134 = vadd.f32 %v3133, 0.0036580483
        %v3135 = vmul.f32 %v3130, %v3134
        %v3136 = vadd.f32 %v3135, 0.05243302
        %v3137 = vmul.f32 %v3130, %v3136
        %v3138 = vadd.f32 %v3137, 0.18741608
        %v3139 = vmul.f32 %v3130, %v3138
        %v3140 = vadd.f32 %v3139, 1.1283791
        %v3141 = vmul.f32 %v2200, %v3140
        %v3142 = vmul.f32 %v3130, 3.8918573e-05
        %v3143 = vadd.f32 %v3142, 0.001143296
        %v3144 = vmul.f32 %v3130, %v3143
        %v3145 = vadd.f32 %v3144, 0.014752088
        %v3146 = vmul.f32 %v3130, %v3145
        %v3147 = vadd.f32 %v3146, 0.112945676
        %v3148 = vmul.f32 %v3130, %v3147
        %v3149 = vadd.f32 %v3148, 0.4994258
        %v3150 = vmul.f32 %v3130, %v3149
        %v3151 = vadd.f32 %v3150, 1.0
        %v3152 = vrcp.pop %v3151
        %v3153 = vmul.f32 %v3151, %v3152
        %v3154 = vsub.f32 1.0, %v3153
        %v3155 = vmul.f32 %v3152, %v3154
        %v3156 = vadd.f32 %v3152, %v3155
        %vm3157 = vweird.f32 %v3151
        %vm3158 = vweird.f32 %v3152
        %vm3159 = vmor %vm3157, %vm3158
        %v3160 = vsel %vm3159, %v3152, %v3156
        %v3161 = vand.u32 2147483647, %v3151
        %vm3162 = vcmp.eq.f32.partialorder %v3161, 8.507059e+37
        %v3163 = vand.u32 %v3151, 2147483648
        %v3164 = vor.u32 1.1754944e-38, %v3163
        %v3165 = vsel %vm3162, %v3164, %v3160
        %v3166 = vmul.f32 %v3141, %v3165
        %v3167 = vmin.f32 %v3166, 1.0
        %v3168 = vmax.f32 %v3167, -1.0
        %v3169 = vmul.f32 %v2201, %v2201
        %v3170 = vmin.f32 16.0, %v3169
        %v3171 = vmul.f32 %v3170, 2.1237322e-06
        %v3172 = vadd.f32 %v3171, 0.00028619796
        %v3173 = vmul.f32 %v3170, %v3172
        %v3174 = vadd.f32 %v3173, 0.0036580483
        %v3175 = vmul.f32 %v3170, %v3174
        %v3176 = vadd.f32 %v3175, 0.05243302
        %v3177 = vmul.f32 %v3170, %v3176
        %v3178 = vadd.f32 %v3177, 0.18741608
        %v3179 = vmul.f32 %v3170, %v3178
        %v3180 = vadd.f32 %v3179, 1.1283791
        %v3181 = vmul.f32 %v2201, %v3180
        %v3182 = vmul.f32 %v3170, 3.8918573e-05
        %v3183 = vadd.f32 %v3182, 0.001143296
        %v3184 = vmul.f32 %v3170, %v3183
        %v3185 = vadd.f32 %v3184, 0.014752088
        %v3186 = vmul.f32 %v3170, %v3185
        %v3187 = vadd.f32 %v3186, 0.112945676
        %v3188 = vmul.f32 %v3170, %v3187
        %v3189 = vadd.f32 %v3188, 0.4994258
        %v3190 = vmul.f32 %v3170, %v3189
        %v3191 = vadd.f32 %v3190, 1.0
        %v3192 = vrcp.pop %v3191
        %v3193 = vmul.f32 %v3191, %v3192
        %v3194 = vsub.f32 1.0, %v3193
        %v3195 = vmul.f32 %v3192, %v3194
        %v3196 = vadd.f32 %v3192, %v3195
        %vm3197 = vweird.f32 %v3191
        %vm3198 = vweird.f32 %v3192
        %vm3199 = vmor %vm3197, %vm3198
        %v3200 = vsel %vm3199, %v3192, %v3196
        %v3201 = vand.u32 2147483647, %v3191
        %vm3202 = vcmp.eq.f32.partialorder %v3201, 8.507059e+37
        %v3203 = vand.u32 %v3191, 2147483648
        %v3204 = vor.u32 1.1754944e-38, %v3203
        %v3205 = vsel %vm3202, %v3204, %v3200
        %v3206 = vmul.f32 %v3181, %v3205
        %v3207 = vmin.f32 %v3206, 1.0
        %v3208 = vmax.f32 %v3207, -1.0
        %v3209 = vmul.f32 %v2202, %v2202
        %v3210 = vmin.f32 16.0, %v3209
        %v3211 = vmul.f32 %v3210, 2.1237322e-06
        %v3212 = vadd.f32 %v3211, 0.00028619796
        %v3213 = vmul.f32 %v3210, %v3212
        %v3214 = vadd.f32 %v3213, 0.0036580483
        %v3215 = vmul.f32 %v3210, %v3214
        %v3216 = vadd.f32 %v3215, 0.05243302
        %v3217 = vmul.f32 %v3210, %v3216
        %v3218 = vadd.f32 %v3217, 0.18741608
        %v3219 = vmul.f32 %v3210, %v3218
        %v3220 = vadd.f32 %v3219, 1.1283791
        %v3221 = vmul.f32 %v2202, %v3220
        %v3222 = vmul.f32 %v3210, 3.8918573e-05
        %v3223 = vadd.f32 %v3222, 0.001143296
        %v3224 = vmul.f32 %v3210, %v3223
        %v3225 = vadd.f32 %v3224, 0.014752088
        %v3226 = vmul.f32 %v3210, %v3225
        %v3227 = vadd.f32 %v3226, 0.112945676
        %v3228 = vmul.f32 %v3210, %v3227
        %v3229 = vadd.f32 %v3228, 0.4994258
        %v3230 = vmul.f32 %v3210, %v3229
        %v3231 = vadd.f32 %v3230, 1.0
        %v3232 = vrcp.pop %v3231
        %v3233 = vmul.f32 %v3231, %v3232
        %v3234 = vsub.f32 1.0, %v3233
        %v3235 = vmul.f32 %v3232, %v3234
        %v3236 = vadd.f32 %v3232, %v3235
        %vm3237 = vweird.f32 %v3231
        %vm3238 = vweird.f32 %v3232
        %vm3239 = vmor %vm3237, %vm3238
        %v3240 = vsel %vm3239, %v3232, %v3236
        %v3241 = vand.u32 2147483647, %v3231
        %vm3242 = vcmp.eq.f32.partialorder %v3241, 8.507059e+37
        %v3243 = vand.u32 %v3231, 2147483648
        %v3244 = vor.u32 1.1754944e-38, %v3243
        %v3245 = vsel %vm3242, %v3244, %v3240
        %v3246 = vmul.f32 %v3221, %v3245
        %v3247 = vmin.f32 %v3246, 1.0
        %v3248 = vmax.f32 %v3247, -1.0
        %v3249 = vmul.f32 %v2203, %v2203
        %v3250 = vmin.f32 16.0, %v3249
        %v3251 = vmul.f32 %v3250, 2.1237322e-06
        %v3252 = vadd.f32 %v3251, 0.00028619796
        %v3253 = vmul.f32 %v3250, %v3252
        %v3254 = vadd.f32 %v3253, 0.0036580483
        %v3255 = vmul.f32 %v3250, %v3254
        %v3256 = vadd.f32 %v3255, 0.05243302
        %v3257 = vmul.f32 %v3250, %v3256
        %v3258 = vadd.f32 %v3257, 0.18741608
        %v3259 = vmul.f32 %v3250, %v3258
        %v3260 = vadd.f32 %v3259, 1.1283791
        %v3261 = vmul.f32 %v2203, %v3260
        %v3262 = vmul.f32 %v3250, 3.8918573e-05
        %v3263 = vadd.f32 %v3262, 0.001143296
        %v3264 = vmul.f32 %v3250, %v3263
        %v3265 = vadd.f32 %v3264, 0.014752088
        %v3266 = vmul.f32 %v3250, %v3265
        %v3267 = vadd.f32 %v3266, 0.112945676
        %v3268 = vmul.f32 %v3250, %v3267
        %v3269 = vadd.f32 %v3268, 0.4994258
        %v3270 = vmul.f32 %v3250, %v3269
        %v3271 = vadd.f32 %v3270, 1.0
        %v3272 = vrcp.pop %v3271
        %v3273 = vmul.f32 %v3271, %v3272
        %v3274 = vsub.f32 1.0, %v3273
        %v3275 = vmul.f32 %v3272, %v3274
        %v3276 = vadd.f32 %v3272, %v3275
        %vm3277 = vweird.f32 %v3271
        %vm3278 = vweird.f32 %v3272
        %vm3279 = vmor %vm3277, %vm3278
        %v3280 = vsel %vm3279, %v3272, %v3276
        %v3281 = vand.u32 2147483647, %v3271
        %vm3282 = vcmp.eq.f32.partialorder %v3281, 8.507059e+37
        %v3283 = vand.u32 %v3271, 2147483648
        %v3284 = vor.u32 1.1754944e-38, %v3283
        %v3285 = vsel %vm3282, %v3284, %v3280
        %v3286 = vmul.f32 %v3261, %v3285
        %v3287 = vmin.f32 %v3286, 1.0
        %v3288 = vmax.f32 %v3287, -1.0
        %v3289 = vmul.f32 %v2204, %v2204
        %v3290 = vmin.f32 16.0, %v3289
        %v3291 = vmul.f32 %v3290, 2.1237322e-06
        %v3292 = vadd.f32 %v3291, 0.00028619796
        %v3293 = vmul.f32 %v3290, %v3292
        %v3294 = vadd.f32 %v3293, 0.0036580483
        %v3295 = vmul.f32 %v3290, %v3294
        %v3296 = vadd.f32 %v3295, 0.05243302
        %v3297 = vmul.f32 %v3290, %v3296
        %v3298 = vadd.f32 %v3297, 0.18741608
        %v3299 = vmul.f32 %v3290, %v3298
        %v3300 = vadd.f32 %v3299, 1.1283791
        %v3301 = vmul.f32 %v2204, %v3300
        %v3302 = vmul.f32 %v3290, 3.8918573e-05
        %v3303 = vadd.f32 %v3302, 0.001143296
        %v3304 = vmul.f32 %v3290, %v3303
        %v3305 = vadd.f32 %v3304, 0.014752088
        %v3306 = vmul.f32 %v3290, %v3305
        %v3307 = vadd.f32 %v3306, 0.112945676
        %v3308 = vmul.f32 %v3290, %v3307
        %v3309 = vadd.f32 %v3308, 0.4994258
        %v3310 = vmul.f32 %v3290, %v3309
        %v3311 = vadd.f32 %v3310, 1.0
        %v3312 = vrcp.pop %v3311
        %v3313 = vmul.f32 %v3311, %v3312
        %v3314 = vsub.f32 1.0, %v3313
        %v3315 = vmul.f32 %v3312, %v3314
        %v3316 = vadd.f32 %v3312, %v3315
        %vm3317 = vweird.f32 %v3311
        %vm3318 = vweird.f32 %v3312
        %vm3319 = vmor %vm3317, %vm3318
        %v3320 = vsel %vm3319, %v3312, %v3316
        %v3321 = vand.u32 2147483647, %v3311
        %vm3322 = vcmp.eq.f32.partialorder %v3321, 8.507059e+37
        %v3323 = vand.u32 %v3311, 2147483648
        %v3324 = vor.u32 1.1754944e-38, %v3323
        %v3325 = vsel %vm3322, %v3324, %v3320
        %v3326 = vmul.f32 %v3301, %v3325
        %v3327 = vmin.f32 %v3326, 1.0
        %v3328 = vmax.f32 %v3327, -1.0
        %v3329 = vmul.f32 %v2205, %v2205
        %v3330 = vmin.f32 16.0, %v3329
        %v3331 = vmul.f32 %v3330, 2.1237322e-06
        %v3332 = vadd.f32 %v3331, 0.00028619796
        %v3333 = vmul.f32 %v3330, %v3332
        %v3334 = vadd.f32 %v3333, 0.0036580483
        %v3335 = vmul.f32 %v3330, %v3334
        %v3336 = vadd.f32 %v3335, 0.05243302
        %v3337 = vmul.f32 %v3330, %v3336
        %v3338 = vadd.f32 %v3337, 0.18741608
        %v3339 = vmul.f32 %v3330, %v3338
        %v3340 = vadd.f32 %v3339, 1.1283791
        %v3341 = vmul.f32 %v2205, %v3340
        %v3342 = vmul.f32 %v3330, 3.8918573e-05
        %v3343 = vadd.f32 %v3342, 0.001143296
        %v3344 = vmul.f32 %v3330, %v3343
        %v3345 = vadd.f32 %v3344, 0.014752088
        %v3346 = vmul.f32 %v3330, %v3345
        %v3347 = vadd.f32 %v3346, 0.112945676
        %v3348 = vmul.f32 %v3330, %v3347
        %v3349 = vadd.f32 %v3348, 0.4994258
        %v3350 = vmul.f32 %v3330, %v3349
        %v3351 = vadd.f32 %v3350, 1.0
        %v3352 = vrcp.pop %v3351
        %v3353 = vmul.f32 %v3351, %v3352
        %v3354 = vsub.f32 1.0, %v3353
        %v3355 = vmul.f32 %v3352, %v3354
        %v3356 = vadd.f32 %v3352, %v3355
        %vm3357 = vweird.f32 %v3351
        %vm3358 = vweird.f32 %v3352
        %vm3359 = vmor %vm3357, %vm3358
        %v3360 = vsel %vm3359, %v3352, %v3356
        %v3361 = vand.u32 2147483647, %v3351
        %vm3362 = vcmp.eq.f32.partialorder %v3361, 8.507059e+37
        %v3363 = vand.u32 %v3351, 2147483648
        %v3364 = vor.u32 1.1754944e-38, %v3363
        %v3365 = vsel %vm3362, %v3364, %v3360
        %v3366 = vmul.f32 %v3341, %v3365
        %v3367 = vmin.f32 %v3366, 1.0
        %v3368 = vmax.f32 %v3367, -1.0
        %v3369 = vmul.f32 %v2206, %v2206
        %v3370 = vmin.f32 16.0, %v3369
        %v3371 = vmul.f32 %v3370, 2.1237322e-06
        %v3372 = vadd.f32 %v3371, 0.00028619796
        %v3373 = vmul.f32 %v3370, %v3372
        %v3374 = vadd.f32 %v3373, 0.0036580483
        %v3375 = vmul.f32 %v3370, %v3374
        %v3376 = vadd.f32 %v3375, 0.05243302
        %v3377 = vmul.f32 %v3370, %v3376
        %v3378 = vadd.f32 %v3377, 0.18741608
        %v3379 = vmul.f32 %v3370, %v3378
        %v3380 = vadd.f32 %v3379, 1.1283791
        %v3381 = vmul.f32 %v2206, %v3380
        %v3382 = vmul.f32 %v3370, 3.8918573e-05
        %v3383 = vadd.f32 %v3382, 0.001143296
        %v3384 = vmul.f32 %v3370, %v3383
        %v3385 = vadd.f32 %v3384, 0.014752088
        %v3386 = vmul.f32 %v3370, %v3385
        %v3387 = vadd.f32 %v3386, 0.112945676
        %v3388 = vmul.f32 %v3370, %v3387
        %v3389 = vadd.f32 %v3388, 0.4994258
        %v3390 = vmul.f32 %v3370, %v3389
        %v3391 = vadd.f32 %v3390, 1.0
        %v3392 = vrcp.pop %v3391
        %v3393 = vmul.f32 %v3391, %v3392
        %v3394 = vsub.f32 1.0, %v3393
        %v3395 = vmul.f32 %v3392, %v3394
        %v3396 = vadd.f32 %v3392, %v3395
        %vm3397 = vweird.f32 %v3391
        %vm3398 = vweird.f32 %v3392
        %vm3399 = vmor %vm3397, %vm3398
        %v3400 = vsel %vm3399, %v3392, %v3396
        %v3401 = vand.u32 2147483647, %v3391
        %vm3402 = vcmp.eq.f32.partialorder %v3401, 8.507059e+37
        %v3403 = vand.u32 %v3391, 2147483648
        %v3404 = vor.u32 1.1754944e-38, %v3403
        %v3405 = vsel %vm3402, %v3404, %v3400
        %v3406 = vmul.f32 %v3381, %v3405
        %v3407 = vmin.f32 %v3406, 1.0
        %v3408 = vmax.f32 %v3407, -1.0
        %v3409 = vmul.f32 %v2207, %v2207
        %v3410 = vmin.f32 16.0, %v3409
        %v3411 = vmul.f32 %v3410, 2.1237322e-06
        %v3412 = vadd.f32 %v3411, 0.00028619796
        %v3413 = vmul.f32 %v3410, %v3412
        %v3414 = vadd.f32 %v3413, 0.0036580483
        %v3415 = vmul.f32 %v3410, %v3414
        %v3416 = vadd.f32 %v3415, 0.05243302
        %v3417 = vmul.f32 %v3410, %v3416
        %v3418 = vadd.f32 %v3417, 0.18741608
        %v3419 = vmul.f32 %v3410, %v3418
        %v3420 = vadd.f32 %v3419, 1.1283791
        %v3421 = vmul.f32 %v2207, %v3420
        %v3422 = vmul.f32 %v3410, 3.8918573e-05
        %v3423 = vadd.f32 %v3422, 0.001143296
        %v3424 = vmul.f32 %v3410, %v3423
        %v3425 = vadd.f32 %v3424, 0.014752088
        %v3426 = vmul.f32 %v3410, %v3425
        %v3427 = vadd.f32 %v3426, 0.112945676
        %v3428 = vmul.f32 %v3410, %v3427
        %v3429 = vadd.f32 %v3428, 0.4994258
        %v3430 = vmul.f32 %v3410, %v3429
        %v3431 = vadd.f32 %v3430, 1.0
        %v3432 = vrcp.pop %v3431
        %v3433 = vmul.f32 %v3431, %v3432
        %v3434 = vsub.f32 1.0, %v3433
        %v3435 = vmul.f32 %v3432, %v3434
        %v3436 = vadd.f32 %v3432, %v3435
        %vm3437 = vweird.f32 %v3431
        %vm3438 = vweird.f32 %v3432
        %vm3439 = vmor %vm3437, %vm3438
        %v3440 = vsel %vm3439, %v3432, %v3436
        %v3441 = vand.u32 2147483647, %v3431
        %vm3442 = vcmp.eq.f32.partialorder %v3441, 8.507059e+37
        %v3443 = vand.u32 %v3431, 2147483648
        %v3444 = vor.u32 1.1754944e-38, %v3443
        %v3445 = vsel %vm3442, %v3444, %v3440
        %v3446 = vmul.f32 %v3421, %v3445
        %v3447 = vmin.f32 %v3446, 1.0
        %v3448 = vmax.f32 %v3447, -1.0
        %v3449 = vmul.f32 %v2208, %v2208
        %v3450 = vmin.f32 16.0, %v3449
        %v3451 = vmul.f32 %v3450, 2.1237322e-06
        %v3452 = vadd.f32 %v3451, 0.00028619796
        %v3453 = vmul.f32 %v3450, %v3452
        %v3454 = vadd.f32 %v3453, 0.0036580483
        %v3455 = vmul.f32 %v3450, %v3454
        %v3456 = vadd.f32 %v3455, 0.05243302
        %v3457 = vmul.f32 %v3450, %v3456
        %v3458 = vadd.f32 %v3457, 0.18741608
        %v3459 = vmul.f32 %v3450, %v3458
        %v3460 = vadd.f32 %v3459, 1.1283791
        %v3461 = vmul.f32 %v2208, %v3460
        %v3462 = vmul.f32 %v3450, 3.8918573e-05
        %v3463 = vadd.f32 %v3462, 0.001143296
        %v3464 = vmul.f32 %v3450, %v3463
        %v3465 = vadd.f32 %v3464, 0.014752088
        %v3466 = vmul.f32 %v3450, %v3465
        %v3467 = vadd.f32 %v3466, 0.112945676
        %v3468 = vmul.f32 %v3450, %v3467
        %v3469 = vadd.f32 %v3468, 0.4994258
        %v3470 = vmul.f32 %v3450, %v3469
        %v3471 = vadd.f32 %v3470, 1.0
        %v3472 = vrcp.pop %v3471
        %v3473 = vmul.f32 %v3471, %v3472
        %v3474 = vsub.f32 1.0, %v3473
        %v3475 = vmul.f32 %v3472, %v3474
        %v3476 = vadd.f32 %v3472, %v3475
        %vm3477 = vweird.f32 %v3471
        %vm3478 = vweird.f32 %v3472
        %vm3479 = vmor %vm3477, %vm3478
        %v3480 = vsel %vm3479, %v3472, %v3476
        %v3481 = vand.u32 2147483647, %v3471
        %vm3482 = vcmp.eq.f32.partialorder %v3481, 8.507059e+37
        %v3483 = vand.u32 %v3471, 2147483648
        %v3484 = vor.u32 1.1754944e-38, %v3483
        %v3485 = vsel %vm3482, %v3484, %v3480
        %v3486 = vmul.f32 %v3461, %v3485
        %v3487 = vmin.f32 %v3486, 1.0
        %v3488 = vmax.f32 %v3487, -1.0
        %v3489 = vadd.f32 %v2248, 1.0
        %v3490 = vadd.f32 %v2288, 1.0
        %v3491 = vadd.f32 %v2328, 1.0
        %v3492 = vadd.f32 %v2368, 1.0
        %v3493 = vadd.f32 %v2408, 1.0
        %v3494 = vadd.f32 %v2448, 1.0
        %v3495 = vadd.f32 %v2488, 1.0
        %v3496 = vadd.f32 %v2528, 1.0
        %v3497 = vadd.f32 %v2568, 1.0
        %v3498 = vadd.f32 %v2608, 1.0
        %v3499 = vadd.f32 %v2648, 1.0
        %v3500 = vadd.f32 %v2688, 1.0
        %v3501 = vadd.f32 %v2728, 1.0
        %v3502 = vadd.f32 %v2768, 1.0
        %v3503 = vadd.f32 %v2808, 1.0
        %v3504 = vadd.f32 %v2848, 1.0
        %v3505 = vadd.f32 %v2888, 1.0
        %v3506 = vadd.f32 %v2928, 1.0
        %v3507 = vadd.f32 %v2968, 1.0
        %v3508 = vadd.f32 %v3008, 1.0
        %v3509 = vadd.f32 %v3048, 1.0
        %v3510 = vadd.f32 %v3088, 1.0
        %v3511 = vadd.f32 %v3128, 1.0
        %v3512 = vadd.f32 %v3168, 1.0
        %v3513 = vadd.f32 %v3208, 1.0
        %v3514 = vadd.f32 %v3248, 1.0
        %v3515 = vadd.f32 %v3288, 1.0
        %v3516 = vadd.f32 %v3328, 1.0
        %v3517 = vadd.f32 %v3368, 1.0
        %v3518 = vadd.f32 %v3408, 1.0
        %v3519 = vadd.f32 %v3448, 1.0
        %v3520 = vadd.f32 %v3488, 1.0
        %v3521 = vmul.f32 %v2145, %v3489
        %v3522 = vmul.f32 %v2146, %v3490
        %v3523 = vmul.f32 %v2147, %v3491
        %v3524 = vmul.f32 %v2148, %v3492
        %v3525 = vmul.f32 %v2149, %v3493
        %v3526 = vmul.f32 %v2150, %v3494
        %v3527 = vmul.f32 %v2151, %v3495
        %v3528 = vmul.f32 %v2152, %v3496
        %v3529 = vmul.f32 %v2153, %v3497
        %v3530 = vmul.f32 %v2154, %v3498
        %v3531 = vmul.f32 %v2155, %v3499
        %v3532 = vmul.f32 %v2156, %v3500
        %v3533 = vmul.f32 %v2157, %v3501
        %v3534 = vmul.f32 %v2158, %v3502
        %v3535 = vmul.f32 %v2159, %v3503
        %v3536 = vmul.f32 %v2160, %v3504
        %v3537 = vmul.f32 %v2161, %v3505
        %v3538 = vmul.f32 %v2162, %v3506
        %v3539 = vmul.f32 %v2163, %v3507
        %v3540 = vmul.f32 %v2164, %v3508
        %v3541 = vmul.f32 %v2165, %v3509
        %v3542 = vmul.f32 %v2166, %v3510
        %v3543 = vmul.f32 %v2167, %v3511
        %v3544 = vmul.f32 %v2168, %v3512
        %v3545 = vmul.f32 %v2169, %v3513
        %v3546 = vmul.f32 %v2170, %v3514
        %v3547 = vmul.f32 %v2171, %v3515
        %v3548 = vmul.f32 %v2172, %v3516
        %v3549 = vmul.f32 %v2173, %v3517
        %v3550 = vmul.f32 %v2174, %v3518
        %v3551 = vmul.f32 %v2175, %v3519
        %v3552 = vmul.f32 %v2176, %v3520
        %3553 = vst [vmem:[#allocation3] sm:$0xff] 0.0
        %3554 = vst [vmem:[#allocation3 + $0x8] sm:$0xff] 0.0
        %3555 = vst [vmem:[#allocation3 + $0x10] sm:$0x3] 0.0
        %3556 = vst [vmem:[#allocation3 + $0x18] sm:$0xff] 0.0
        %3557 = vst [vmem:[#allocation3 + $0x20] sm:$0xff] 0.0
        %3558 = vst [vmem:[#allocation3 + $0x28] sm:$0x3] 0.0
        %3559 = vst [vmem:[#allocation3 + $0x30] sm:$0xff] 0.0
        %3560 = vst [vmem:[#allocation3 + $0x38] sm:$0xff] 0.0
        %3561 = vst [vmem:[#allocation3 + $0x40] sm:$0x3] 0.0
        %3562 = vst [vmem:[#allocation3 + $0x48] sm:$0xff] 0.0
        %3563 = vst [vmem:[#allocation3 + $0x50] sm:$0xff] 0.0
        %3564 = vst [vmem:[#allocation3 + $0x58] sm:$0x3] 0.0
        %3565 = vst [vmem:[#allocation3 + $0x60] sm:$0xff] 0.0
        %3566 = vst [vmem:[#allocation3 + $0x68] sm:$0xff] 0.0
        %3567 = vst [vmem:[#allocation3 + $0x70] sm:$0x3] 0.0
        %3568 = vst [vmem:[#allocation3 + $0x78] sm:$0xff] 0.0
        %3569 = vst [vmem:[#allocation3 + $0x80] sm:$0xff] 0.0
        %3570 = vst [vmem:[#allocation3 + $0x88] sm:$0x3] 0.0
        %3571 = vst [vmem:[#allocation3 + $0x90] sm:$0xff] 0.0
        %3572 = vst [vmem:[#allocation3 + $0x98] sm:$0xff] 0.0
        %3573 = vst [vmem:[#allocation3 + $0xa0] sm:$0x3] 0.0
        %3574 = vst [vmem:[#allocation3 + $0xa8] sm:$0xff] 0.0
        %3575 = vst [vmem:[#allocation3 + $0xb0] sm:$0xff] 0.0
        %3576 = vst [vmem:[#allocation3 + $0xb8] sm:$0x3] 0.0
        %3577 = vst [vmem:[#allocation3 + $0xc0] sm:$0xff] 0.0
        %3578 = vst [vmem:[#allocation3 + $0xc8] sm:$0xff] 0.0
        %3579 = vst [vmem:[#allocation3 + $0xd0] sm:$0x3] 0.0
        %3580 = vst [vmem:[#allocation3 + $0xd8] sm:$0xff] 0.0
        %3581 = vst [vmem:[#allocation3 + $0xe0] sm:$0xff] 0.0
        %3582 = vst [vmem:[#allocation3 + $0xe8] sm:$0x3] 0.0
        %3583 = vst [vmem:[#allocation3 + $0xf0] sm:$0xff] 0.0
        %3584 = vst [vmem:[#allocation3 + $0xf8] sm:$0xff] 0.0
        %3585 = vst [vmem:[#allocation3 + $0x100] sm:$0x3] 0.0
        %3586 = vst [vmem:[#allocation3 + $0x108] sm:$0xff] 0.0
        %3587 = vst [vmem:[#allocation3 + $0x110] sm:$0xff] 0.0
        %3588 = vst [vmem:[#allocation3 + $0x118] sm:$0x3] 0.0
        %3589 = vst [vmem:[#allocation3 + $0x120] sm:$0xff] 0.0
        %3590 = vst [vmem:[#allocation3 + $0x128] sm:$0xff] 0.0
        %3591 = vst [vmem:[#allocation3 + $0x130] sm:$0x3] 0.0
        %3592 = vst [vmem:[#allocation3 + $0x138] sm:$0xff] 0.0
        %3593 = vst [vmem:[#allocation3 + $0x140] sm:$0xff] 0.0
        %3594 = vst [vmem:[#allocation3 + $0x148] sm:$0x3] 0.0
        %3595 = vst [vmem:[#allocation3 + $0x150] sm:$0xff] 0.0
        %3596 = vst [vmem:[#allocation3 + $0x158] sm:$0xff] 0.0
        %3597 = vst [vmem:[#allocation3 + $0x160] sm:$0x3] 0.0
        %3598 = vst [vmem:[#allocation3 + $0x168] sm:$0xff] 0.0
        %3599 = vst [vmem:[#allocation3 + $0x170] sm:$0xff] 0.0
        %3600 = vst [vmem:[#allocation3 + $0x178] sm:$0x3] 0.0
        %3601 = vst [vmem:[#allocation3 + $0x180] sm:$0xff] 0.0
        %3602 = vst [vmem:[#allocation3 + $0x188] sm:$0xff] 0.0
        %3603 = vst [vmem:[#allocation3 + $0x190] sm:$0x3] 0.0
        %3604 = vst [vmem:[#allocation3 + $0x198] sm:$0xff] 0.0
        %3605 = vst [vmem:[#allocation3 + $0x1a0] sm:$0xff] 0.0
        %3606 = vst [vmem:[#allocation3 + $0x1a8] sm:$0x3] 0.0
        %s3607 = scalar_lea.vmem [#allocation3], 24
        %3608 = vst [vmem:[%s3607 + $0x1] sm:$0xff] %v3521
        %3609 = vst [vmem:[%s3607 + $0x9] sm:$0xff] %v3522
        %3610 = vst [vmem:[%s3607 + $0x19] sm:$0xff] %v3523
        %3611 = vst [vmem:[%s3607 + $0x21] sm:$0xff] %v3524
        %3612 = vst [vmem:[%s3607 + $0x31] sm:$0xff] %v3525
        %3613 = vst [vmem:[%s3607 + $0x39] sm:$0xff] %v3526
        %3614 = vst [vmem:[%s3607 + $0x49] sm:$0xff] %v3527
        %3615 = vst [vmem:[%s3607 + $0x51] sm:$0xff] %v3528
        %3616 = vst [vmem:[%s3607 + $0x61] sm:$0xff] %v3529
        %3617 = vst [vmem:[%s3607 + $0x69] sm:$0xff] %v3530
        %3618 = vst [vmem:[%s3607 + $0x79] sm:$0xff] %v3531
        %3619 = vst [vmem:[%s3607 + $0x81] sm:$0xff] %v3532
        %3620 = vst [vmem:[%s3607 + $0x91] sm:$0xff] %v3533
        %3621 = vst [vmem:[%s3607 + $0x99] sm:$0xff] %v3534
        %3622 = vst [vmem:[%s3607 + $0xa9] sm:$0xff] %v3535
        %3623 = vst [vmem:[%s3607 + $0xb1] sm:$0xff] %v3536
        %3624 = vst [vmem:[%s3607 + $0xc1] sm:$0xff] %v3537
        %3625 = vst [vmem:[%s3607 + $0xc9] sm:$0xff] %v3538
        %3626 = vst [vmem:[%s3607 + $0xd9] sm:$0xff] %v3539
        %3627 = vst [vmem:[%s3607 + $0xe1] sm:$0xff] %v3540
        %3628 = vst [vmem:[%s3607 + $0xf1] sm:$0xff] %v3541
        %3629 = vst [vmem:[%s3607 + $0xf9] sm:$0xff] %v3542
        %3630 = vst [vmem:[%s3607 + $0x109] sm:$0xff] %v3543
        %3631 = vst [vmem:[%s3607 + $0x111] sm:$0xff] %v3544
        %3632 = vst [vmem:[%s3607 + $0x121] sm:$0xff] %v3545
        %3633 = vst [vmem:[%s3607 + $0x129] sm:$0xff] %v3546
        %3634 = vst [vmem:[%s3607 + $0x139] sm:$0xff] %v3547
        %3635 = vst [vmem:[%s3607 + $0x141] sm:$0xff] %v3548
        %3636 = vst [vmem:[%s3607 + $0x151] sm:$0xff] %v3549
        %3637 = vst [vmem:[%s3607 + $0x159] sm:$0xff] %v3550
        %3638 = vst [vmem:[%s3607 + $0x169] sm:$0xff] %v3551
        %3639 = vst [vmem:[%s3607 + $0x171] sm:$0xff] %v3552
        %v3640 = vld [vmem:[#allocation3] sm:$0xff]
        %v3641 = vld [vmem:[#allocation3 + $0x8] sm:$0xff]
        %v3642 = vld [vmem:[#allocation3 + $0x18] sm:$0xff]
        %v3643 = vld [vmem:[#allocation3 + $0x20] sm:$0xff]
        %v3644 = vld [vmem:[#allocation3 + $0x30] sm:$0xff]
        %v3645 = vld [vmem:[#allocation3 + $0x38] sm:$0xff]
        %v3646 = vld [vmem:[#allocation3 + $0x48] sm:$0xff]
        %v3647 = vld [vmem:[#allocation3 + $0x50] sm:$0xff]
        %v3648 = vld [vmem:[#allocation3 + $0x60] sm:$0xff]
        %v3649 = vld [vmem:[#allocation3 + $0x68] sm:$0xff]
        %v3650 = vld [vmem:[#allocation3 + $0x78] sm:$0xff]
        %v3651 = vld [vmem:[#allocation3 + $0x80] sm:$0xff]
        %v3652 = vld [vmem:[#allocation3 + $0x90] sm:$0xff]
        %v3653 = vld [vmem:[#allocation3 + $0x98] sm:$0xff]
        %v3654 = vld [vmem:[#allocation3 + $0xa8] sm:$0xff]
        %v3655 = vld [vmem:[#allocation3 + $0xb0] sm:$0xff]
        %v3656 = vld [vmem:[#allocation3 + $0xc0] sm:$0xff]
        %v3657 = vld [vmem:[#allocation3 + $0xc8] sm:$0xff]
        %v3658 = vld [vmem:[#allocation3 + $0xd8] sm:$0xff]
        %v3659 = vld [vmem:[#allocation3 + $0xe0] sm:$0xff]
        %v3660 = vld [vmem:[#allocation3 + $0xf0] sm:$0xff]
        %v3661 = vld [vmem:[#allocation3 + $0xf8] sm:$0xff]
        %v3662 = vld [vmem:[#allocation3 + $0x108] sm:$0xff]
        %v3663 = vld [vmem:[#allocation3 + $0x110] sm:$0xff]
        %v3664 = vld [vmem:[#allocation3 + $0x120] sm:$0xff]
        %v3665 = vld [vmem:[#allocation3 + $0x128] sm:$0xff]
        %v3666 = vld [vmem:[#allocation3 + $0x138] sm:$0xff]
        %v3667 = vld [vmem:[#allocation3 + $0x140] sm:$0xff]
        %v3668 = vld [vmem:[#allocation3 + $0x150] sm:$0xff]
        %v3669 = vld [vmem:[#allocation3 + $0x158] sm:$0xff]
        %v3670 = vld [vmem:[#allocation3 + $0x168] sm:$0xff]
        %v3671 = vld [vmem:[#allocation3 + $0x170] sm:$0xff]
        %v3672 = vld [vmem:[#allocation3 + $0x1] sm:$0xff]
        %v3673 = vld [vmem:[#allocation3 + $0x9] sm:$0xff]
        %v3674 = vld [vmem:[#allocation3 + $0x19] sm:$0xff]
        %v3675 = vld [vmem:[#allocation3 + $0x21] sm:$0xff]
        %v3676 = vld [vmem:[#allocation3 + $0x31] sm:$0xff]
        %v3677 = vld [vmem:[#allocation3 + $0x39] sm:$0xff]
        %v3678 = vld [vmem:[#allocation3 + $0x49] sm:$0xff]
        %v3679 = vld [vmem:[#allocation3 + $0x51] sm:$0xff]
        %v3680 = vld [vmem:[#allocation3 + $0x61] sm:$0xff]
        %v3681 = vld [vmem:[#allocation3 + $0x69] sm:$0xff]
        %v3682 = vld [vmem:[#allocation3 + $0x79] sm:$0xff]
        %v3683 = vld [vmem:[#allocation3 + $0x81] sm:$0xff]
        %v3684 = vld [vmem:[#allocation3 + $0x91] sm:$0xff]
        %v3685 = vld [vmem:[#allocation3 + $0x99] sm:$0xff]
        %v3686 = vld [vmem:[#allocation3 + $0xa9] sm:$0xff]
        %v3687 = vld [vmem:[#allocation3 + $0xb1] sm:$0xff]
        %v3688 = vld [vmem:[#allocation3 + $0xc1] sm:$0xff]
        %v3689 = vld [vmem:[#allocation3 + $0xc9] sm:$0xff]
        %v3690 = vld [vmem:[#allocation3 + $0xd9] sm:$0xff]
        %v3691 = vld [vmem:[#allocation3 + $0xe1] sm:$0xff]
        %v3692 = vld [vmem:[#allocation3 + $0xf1] sm:$0xff]
        %v3693 = vld [vmem:[#allocation3 + $0xf9] sm:$0xff]
        %v3694 = vld [vmem:[#allocation3 + $0x109] sm:$0xff]
        %v3695 = vld [vmem:[#allocation3 + $0x111] sm:$0xff]
        %v3696 = vld [vmem:[#allocation3 + $0x121] sm:$0xff]
        %v3697 = vld [vmem:[#allocation3 + $0x129] sm:$0xff]
        %v3698 = vld [vmem:[#allocation3 + $0x139] sm:$0xff]
        %v3699 = vld [vmem:[#allocation3 + $0x141] sm:$0xff]
        %v3700 = vld [vmem:[#allocation3 + $0x151] sm:$0xff]
        %v3701 = vld [vmem:[#allocation3 + $0x159] sm:$0xff]
        %v3702 = vld [vmem:[#allocation3 + $0x169] sm:$0xff]
        %v3703 = vld [vmem:[#allocation3 + $0x171] sm:$0xff]
        %v3704 = vld [vmem:[#allocation3 + $0x2] sm:$0xff]
        %v3705 = vld [vmem:[#allocation3 + $0xa] sm:$0xff]
        %v3706 = vld [vmem:[#allocation3 + $0x1a] sm:$0xff]
        %v3707 = vld [vmem:[#allocation3 + $0x22] sm:$0xff]
        %v3708 = vld [vmem:[#allocation3 + $0x32] sm:$0xff]
        %v3709 = vld [vmem:[#allocation3 + $0x3a] sm:$0xff]
        %v3710 = vld [vmem:[#allocation3 + $0x4a] sm:$0xff]
        %v3711 = vld [vmem:[#allocation3 + $0x52] sm:$0xff]
        %v3712 = vld [vmem:[#allocation3 + $0x62] sm:$0xff]
        %v3713 = vld [vmem:[#allocation3 + $0x6a] sm:$0xff]
        %v3714 = vld [vmem:[#allocation3 + $0x7a] sm:$0xff]
        %v3715 = vld [vmem:[#allocation3 + $0x82] sm:$0xff]
        %v3716 = vld [vmem:[#allocation3 + $0x92] sm:$0xff]
        %v3717 = vld [vmem:[#allocation3 + $0x9a] sm:$0xff]
        %v3718 = vld [vmem:[#allocation3 + $0xaa] sm:$0xff]
        %v3719 = vld [vmem:[#allocation3 + $0xb2] sm:$0xff]
        %v3720 = vld [vmem:[#allocation3 + $0xc2] sm:$0xff]
        %v3721 = vld [vmem:[#allocation3 + $0xca] sm:$0xff]
        %v3722 = vld [vmem:[#allocation3 + $0xda] sm:$0xff]
        %v3723 = vld [vmem:[#allocation3 + $0xe2] sm:$0xff]
        %v3724 = vld [vmem:[#allocation3 + $0xf2] sm:$0xff]
        %v3725 = vld [vmem:[#allocation3 + $0xfa] sm:$0xff]
        %v3726 = vld [vmem:[#allocation3 + $0x10a] sm:$0xff]
        %v3727 = vld [vmem:[#allocation3 + $0x112] sm:$0xff]
        %v3728 = vld [vmem:[#allocation3 + $0x122] sm:$0xff]
        %v3729 = vld [vmem:[#allocation3 + $0x12a] sm:$0xff]
        %v3730 = vld [vmem:[#allocation3 + $0x13a] sm:$0xff]
        %v3731 = vld [vmem:[#allocation3 + $0x142] sm:$0xff]
        %v3732 = vld [vmem:[#allocation3 + $0x152] sm:$0xff]
        %v3733 = vld [vmem:[#allocation3 + $0x15a] sm:$0xff]
        %v3734 = vld [vmem:[#allocation3 + $0x16a] sm:$0xff]
        %v3735 = vld [vmem:[#allocation3 + $0x172] sm:$0xff]
        %v3736 = vld [vmem:[%s3607] sm:$0xff]
        %v3737 = vld [vmem:[%s3607 + $0x8] sm:$0xff]
        %v3738 = vld [vmem:[%s3607 + $0x18] sm:$0xff]
        %v3739 = vld [vmem:[%s3607 + $0x20] sm:$0xff]
        %v3740 = vld [vmem:[%s3607 + $0x30] sm:$0xff]
        %v3741 = vld [vmem:[%s3607 + $0x38] sm:$0xff]
        %v3742 = vld [vmem:[%s3607 + $0x48] sm:$0xff]
        %v3743 = vld [vmem:[%s3607 + $0x50] sm:$0xff]
        %v3744 = vld [vmem:[%s3607 + $0x60] sm:$0xff]
        %v3745 = vld [vmem:[%s3607 + $0x68] sm:$0xff]
        %v3746 = vld [vmem:[%s3607 + $0x78] sm:$0xff]
        %v3747 = vld [vmem:[%s3607 + $0x80] sm:$0xff]
        %v3748 = vld [vmem:[%s3607 + $0x90] sm:$0xff]
        %v3749 = vld [vmem:[%s3607 + $0x98] sm:$0xff]
        %v3750 = vld [vmem:[%s3607 + $0xa8] sm:$0xff]
        %v3751 = vld [vmem:[%s3607 + $0xb0] sm:$0xff]
        %v3752 = vld [vmem:[%s3607 + $0xc0] sm:$0xff]
        %v3753 = vld [vmem:[%s3607 + $0xc8] sm:$0xff]
        %v3754 = vld [vmem:[%s3607 + $0xd8] sm:$0xff]
        %v3755 = vld [vmem:[%s3607 + $0xe0] sm:$0xff]
        %v3756 = vld [vmem:[%s3607 + $0xf0] sm:$0xff]
        %v3757 = vld [vmem:[%s3607 + $0xf8] sm:$0xff]
        %v3758 = vld [vmem:[%s3607 + $0x108] sm:$0xff]
        %v3759 = vld [vmem:[%s3607 + $0x110] sm:$0xff]
        %v3760 = vld [vmem:[%s3607 + $0x120] sm:$0xff]
        %v3761 = vld [vmem:[%s3607 + $0x128] sm:$0xff]
        %v3762 = vld [vmem:[%s3607 + $0x138] sm:$0xff]
        %v3763 = vld [vmem:[%s3607 + $0x140] sm:$0xff]
        %v3764 = vld [vmem:[%s3607 + $0x150] sm:$0xff]
        %v3765 = vld [vmem:[%s3607 + $0x158] sm:$0xff]
        %v3766 = vld [vmem:[%s3607 + $0x168] sm:$0xff]
        %v3767 = vld [vmem:[%s3607 + $0x170] sm:$0xff]
        %v3768 = vld [vmem:[%s3607 + $0x1] sm:$0xff]
        %v3769 = vld [vmem:[%s3607 + $0x9] sm:$0xff]
        %v3770 = vld [vmem:[%s3607 + $0x19] sm:$0xff]
        %v3771 = vld [vmem:[%s3607 + $0x21] sm:$0xff]
        %v3772 = vld [vmem:[%s3607 + $0x31] sm:$0xff]
        %v3773 = vld [vmem:[%s3607 + $0x39] sm:$0xff]
        %v3774 = vld [vmem:[%s3607 + $0x49] sm:$0xff]
        %v3775 = vld [vmem:[%s3607 + $0x51] sm:$0xff]
        %v3776 = vld [vmem:[%s3607 + $0x61] sm:$0xff]
        %v3777 = vld [vmem:[%s3607 + $0x69] sm:$0xff]
        %v3778 = vld [vmem:[%s3607 + $0x79] sm:$0xff]
        %v3779 = vld [vmem:[%s3607 + $0x81] sm:$0xff]
        %v3780 = vld [vmem:[%s3607 + $0x91] sm:$0xff]
        %v3781 = vld [vmem:[%s3607 + $0x99] sm:$0xff]
        %v3782 = vld [vmem:[%s3607 + $0xa9] sm:$0xff]
        %v3783 = vld [vmem:[%s3607 + $0xb1] sm:$0xff]
        %v3784 = vld [vmem:[%s3607 + $0xc1] sm:$0xff]
        %v3785 = vld [vmem:[%s3607 + $0xc9] sm:$0xff]
        %v3786 = vld [vmem:[%s3607 + $0xd9] sm:$0xff]
        %v3787 = vld [vmem:[%s3607 + $0xe1] sm:$0xff]
        %v3788 = vld [vmem:[%s3607 + $0xf1] sm:$0xff]
        %v3789 = vld [vmem:[%s3607 + $0xf9] sm:$0xff]
        %v3790 = vld [vmem:[%s3607 + $0x109] sm:$0xff]
        %v3791 = vld [vmem:[%s3607 + $0x111] sm:$0xff]
        %v3792 = vld [vmem:[%s3607 + $0x121] sm:$0xff]
        %v3793 = vld [vmem:[%s3607 + $0x129] sm:$0xff]
        %v3794 = vld [vmem:[%s3607 + $0x139] sm:$0xff]
        %v3795 = vld [vmem:[%s3607 + $0x141] sm:$0xff]
        %v3796 = vld [vmem:[%s3607 + $0x151] sm:$0xff]
        %v3797 = vld [vmem:[%s3607 + $0x159] sm:$0xff]
        %v3798 = vld [vmem:[%s3607 + $0x169] sm:$0xff]
        %v3799 = vld [vmem:[%s3607 + $0x171] sm:$0xff]
        %v3800 = vld [vmem:[%s3607 + $0x2] sm:$0xff]
        %v3801 = vld [vmem:[%s3607 + $0xa] sm:$0xff]
        %v3802 = vld [vmem:[%s3607 + $0x1a] sm:$0xff]
        %v3803 = vld [vmem:[%s3607 + $0x22] sm:$0xff]
        %v3804 = vld [vmem:[%s3607 + $0x32] sm:$0xff]
        %v3805 = vld [vmem:[%s3607 + $0x3a] sm:$0xff]
        %v3806 = vld [vmem:[%s3607 + $0x4a] sm:$0xff]
        %v3807 = vld [vmem:[%s3607 + $0x52] sm:$0xff]
        %v3808 = vld [vmem:[%s3607 + $0x62] sm:$0xff]
        %v3809 = vld [vmem:[%s3607 + $0x6a] sm:$0xff]
        %v3810 = vld [vmem:[%s3607 + $0x7a] sm:$0xff]
        %v3811 = vld [vmem:[%s3607 + $0x82] sm:$0xff]
        %v3812 = vld [vmem:[%s3607 + $0x92] sm:$0xff]
        %v3813 = vld [vmem:[%s3607 + $0x9a] sm:$0xff]
        %v3814 = vld [vmem:[%s3607 + $0xaa] sm:$0xff]
        %v3815 = vld [vmem:[%s3607 + $0xb2] sm:$0xff]
        %v3816 = vld [vmem:[%s3607 + $0xc2] sm:$0xff]
        %v3817 = vld [vmem:[%s3607 + $0xca] sm:$0xff]
        %v3818 = vld [vmem:[%s3607 + $0xda] sm:$0xff]
        %v3819 = vld [vmem:[%s3607 + $0xe2] sm:$0xff]
        %v3820 = vld [vmem:[%s3607 + $0xf2] sm:$0xff]
        %v3821 = vld [vmem:[%s3607 + $0xfa] sm:$0xff]
        %v3822 = vld [vmem:[%s3607 + $0x10a] sm:$0xff]
        %v3823 = vld [vmem:[%s3607 + $0x112] sm:$0xff]
        %v3824 = vld [vmem:[%s3607 + $0x122] sm:$0xff]
        %v3825 = vld [vmem:[%s3607 + $0x12a] sm:$0xff]
        %v3826 = vld [vmem:[%s3607 + $0x13a] sm:$0xff]
        %v3827 = vld [vmem:[%s3607 + $0x142] sm:$0xff]
        %v3828 = vld [vmem:[%s3607 + $0x152] sm:$0xff]
        %v3829 = vld [vmem:[%s3607 + $0x15a] sm:$0xff]
        %v3830 = vld [vmem:[%s3607 + $0x16a] sm:$0xff]
        %v3831 = vld [vmem:[%s3607 + $0x172] sm:$0xff]
        %s3832 = scalar_lea.vmem [#allocation3], 48
        %v3833 = vld [vmem:[%s3832] sm:$0xff]
        %v3834 = vld [vmem:[%s3832 + $0x8] sm:$0xff]
        %v3835 = vld [vmem:[%s3832 + $0x18] sm:$0xff]
        %v3836 = vld [vmem:[%s3832 + $0x20] sm:$0xff]
        %v3837 = vld [vmem:[%s3832 + $0x30] sm:$0xff]
        %v3838 = vld [vmem:[%s3832 + $0x38] sm:$0xff]
        %v3839 = vld [vmem:[%s3832 + $0x48] sm:$0xff]
        %v3840 = vld [vmem:[%s3832 + $0x50] sm:$0xff]
        %v3841 = vld [vmem:[%s3832 + $0x60] sm:$0xff]
        %v3842 = vld [vmem:[%s3832 + $0x68] sm:$0xff]
        %v3843 = vld [vmem:[%s3832 + $0x78] sm:$0xff]
        %v3844 = vld [vmem:[%s3832 + $0x80] sm:$0xff]
        %v3845 = vld [vmem:[%s3832 + $0x90] sm:$0xff]
        %v3846 = vld [vmem:[%s3832 + $0x98] sm:$0xff]
        %v3847 = vld [vmem:[%s3832 + $0xa8] sm:$0xff]
        %v3848 = vld [vmem:[%s3832 + $0xb0] sm:$0xff]
        %v3849 = vld [vmem:[%s3832 + $0xc0] sm:$0xff]
        %v3850 = vld [vmem:[%s3832 + $0xc8] sm:$0xff]
        %v3851 = vld [vmem:[%s3832 + $0xd8] sm:$0xff]
        %v3852 = vld [vmem:[%s3832 + $0xe0] sm:$0xff]
        %v3853 = vld [vmem:[%s3832 + $0xf0] sm:$0xff]
        %v3854 = vld [vmem:[%s3832 + $0xf8] sm:$0xff]
        %v3855 = vld [vmem:[%s3832 + $0x108] sm:$0xff]
        %v3856 = vld [vmem:[%s3832 + $0x110] sm:$0xff]
        %v3857 = vld [vmem:[%s3832 + $0x120] sm:$0xff]
        %v3858 = vld [vmem:[%s3832 + $0x128] sm:$0xff]
        %v3859 = vld [vmem:[%s3832 + $0x138] sm:$0xff]
        %v3860 = vld [vmem:[%s3832 + $0x140] sm:$0xff]
        %v3861 = vld [vmem:[%s3832 + $0x150] sm:$0xff]
        %v3862 = vld [vmem:[%s3832 + $0x158] sm:$0xff]
        %v3863 = vld [vmem:[%s3832 + $0x168] sm:$0xff]
        %v3864 = vld [vmem:[%s3832 + $0x170] sm:$0xff]
        %v3865 = vld [vmem:[%s3832 + $0x1] sm:$0xff]
        %v3866 = vld [vmem:[%s3832 + $0x9] sm:$0xff]
        %v3867 = vld [vmem:[%s3832 + $0x19] sm:$0xff]
        %v3868 = vld [vmem:[%s3832 + $0x21] sm:$0xff]
        %v3869 = vld [vmem:[%s3832 + $0x31] sm:$0xff]
        %v3870 = vld [vmem:[%s3832 + $0x39] sm:$0xff]
        %v3871 = vld [vmem:[%s3832 + $0x49] sm:$0xff]
        %v3872 = vld [vmem:[%s3832 + $0x51] sm:$0xff]
        %v3873 = vld [vmem:[%s3832 + $0x61] sm:$0xff]
        %v3874 = vld [vmem:[%s3832 + $0x69] sm:$0xff]
        %v3875 = vld [vmem:[%s3832 + $0x79] sm:$0xff]
        %v3876 = vld [vmem:[%s3832 + $0x81] sm:$0xff]
        %v3877 = vld [vmem:[%s3832 + $0x91] sm:$0xff]
        %v3878 = vld [vmem:[%s3832 + $0x99] sm:$0xff]
        %v3879 = vld [vmem:[%s3832 + $0xa9] sm:$0xff]
        %v3880 = vld [vmem:[%s3832 + $0xb1] sm:$0xff]
        %v3881 = vld [vmem:[%s3832 + $0xc1] sm:$0xff]
        %v3882 = vld [vmem:[%s3832 + $0xc9] sm:$0xff]
        %v3883 = vld [vmem:[%s3832 + $0xd9] sm:$0xff]
        %v3884 = vld [vmem:[%s3832 + $0xe1] sm:$0xff]
        %v3885 = vld [vmem:[%s3832 + $0xf1] sm:$0xff]
        %v3886 = vld [vmem:[%s3832 + $0xf9] sm:$0xff]
        %v3887 = vld [vmem:[%s3832 + $0x109] sm:$0xff]
        %v3888 = vld [vmem:[%s3832 + $0x111] sm:$0xff]
        %v3889 = vld [vmem:[%s3832 + $0x121] sm:$0xff]
        %v3890 = vld [vmem:[%s3832 + $0x129] sm:$0xff]
        %v3891 = vld [vmem:[%s3832 + $0x139] sm:$0xff]
        %v3892 = vld [vmem:[%s3832 + $0x141] sm:$0xff]
        %v3893 = vld [vmem:[%s3832 + $0x151] sm:$0xff]
        %v3894 = vld [vmem:[%s3832 + $0x159] sm:$0xff]
        %v3895 = vld [vmem:[%s3832 + $0x169] sm:$0xff]
        %v3896 = vld [vmem:[%s3832 + $0x171] sm:$0xff]
        %v3897 = vld [vmem:[%s3832 + $0x2] sm:$0xff]
        %v3898 = vld [vmem:[%s3832 + $0xa] sm:$0xff]
        %v3899 = vld [vmem:[%s3832 + $0x1a] sm:$0xff]
        %v3900 = vld [vmem:[%s3832 + $0x22] sm:$0xff]
        %v3901 = vld [vmem:[%s3832 + $0x32] sm:$0xff]
        %v3902 = vld [vmem:[%s3832 + $0x3a] sm:$0xff]
        %v3903 = vld [vmem:[%s3832 + $0x4a] sm:$0xff]
        %v3904 = vld [vmem:[%s3832 + $0x52] sm:$0xff]
        %v3905 = vld [vmem:[%s3832 + $0x62] sm:$0xff]
        %v3906 = vld [vmem:[%s3832 + $0x6a] sm:$0xff]
        %v3907 = vld [vmem:[%s3832 + $0x7a] sm:$0xff]
        %v3908 = vld [vmem:[%s3832 + $0x82] sm:$0xff]
        %v3909 = vld [vmem:[%s3832 + $0x92] sm:$0xff]
        %v3910 = vld [vmem:[%s3832 + $0x9a] sm:$0xff]
        %v3911 = vld [vmem:[%s3832 + $0xaa] sm:$0xff]
        %v3912 = vld [vmem:[%s3832 + $0xb2] sm:$0xff]
        %v3913 = vld [vmem:[%s3832 + $0xc2] sm:$0xff]
        %v3914 = vld [vmem:[%s3832 + $0xca] sm:$0xff]
        %v3915 = vld [vmem:[%s3832 + $0xda] sm:$0xff]
        %v3916 = vld [vmem:[%s3832 + $0xe2] sm:$0xff]
        %v3917 = vld [vmem:[%s3832 + $0xf2] sm:$0xff]
        %v3918 = vld [vmem:[%s3832 + $0xfa] sm:$0xff]
        %v3919 = vld [vmem:[%s3832 + $0x10a] sm:$0xff]
        %v3920 = vld [vmem:[%s3832 + $0x112] sm:$0xff]
        %v3921 = vld [vmem:[%s3832 + $0x122] sm:$0xff]
        %v3922 = vld [vmem:[%s3832 + $0x12a] sm:$0xff]
        %v3923 = vld [vmem:[%s3832 + $0x13a] sm:$0xff]
        %v3924 = vld [vmem:[%s3832 + $0x142] sm:$0xff]
        %v3925 = vld [vmem:[%s3832 + $0x152] sm:$0xff]
        %v3926 = vld [vmem:[%s3832 + $0x15a] sm:$0xff]
        %v3927 = vld [vmem:[%s3832 + $0x16a] sm:$0xff]
        %v3928 = vld [vmem:[%s3832 + $0x172] sm:$0xff]
        %v3929 = vld [vmem:[#allocation7] sm:$0xff]
        %v3930 = vld [vmem:[#allocation7 + $0x8] sm:$0xff]
        %v3931 = vld [vmem:[#allocation7 + $0x10] sm:$0xff]
        %v3932 = vld [vmem:[#allocation7 + $0x18] sm:$0xff]
        %v3933 = vld [vmem:[#allocation7 + $0x20] sm:$0xff]
        %v3934 = vld [vmem:[#allocation7 + $0x28] sm:$0xff]
        %v3935 = vld [vmem:[#allocation7 + $0x30] sm:$0xff]
        %v3936 = vld [vmem:[#allocation7 + $0x38] sm:$0xff]
        %v3937 = vld [vmem:[#allocation7 + $0x40] sm:$0xff]
        %v3938 = vld [vmem:[#allocation7 + $0x48] sm:$0xff]
        %v3939 = vld [vmem:[#allocation7 + $0x50] sm:$0xff]
        %v3940 = vld [vmem:[#allocation7 + $0x58] sm:$0xff]
        %v3941 = vld [vmem:[#allocation7 + $0x60] sm:$0xff]
        %v3942 = vld [vmem:[#allocation7 + $0x68] sm:$0xff]
        %v3943 = vld [vmem:[#allocation7 + $0x70] sm:$0xff]
        %v3944 = vld [vmem:[#allocation7 + $0x78] sm:$0xff]
        %v3945 = vld [vmem:[#allocation7 + $0x80] sm:$0xff]
        %v3946 = vld [vmem:[#allocation7 + $0x88] sm:$0xff]
        %v3947 = vld [vmem:[#allocation7 + $0x90] sm:$0xff]
        %v3948 = vld [vmem:[#allocation7 + $0x98] sm:$0xff]
        %v3949 = vld [vmem:[#allocation7 + $0xa0] sm:$0xff]
        %v3950 = vld [vmem:[#allocation7 + $0xa8] sm:$0xff]
        %v3951 = vld [vmem:[#allocation7 + $0xb0] sm:$0xff]
        %v3952 = vld [vmem:[#allocation7 + $0xb8] sm:$0xff]
        %v3953 = vld [vmem:[#allocation7 + $0xc0] sm:$0xff]
        %v3954 = vld [vmem:[#allocation7 + $0xc8] sm:$0xff]
        %v3955 = vld [vmem:[#allocation7 + $0xd0] sm:$0xff]
        %v3956 = vld [vmem:[#allocation7 + $0xd8] sm:$0xff]
        %v3957 = vld [vmem:[#allocation7 + $0xe0] sm:$0xff]
        %v3958 = vld [vmem:[#allocation7 + $0xe8] sm:$0xff]
        %v3959 = vld [vmem:[#allocation7 + $0xf0] sm:$0xff]
        %v3960 = vld [vmem:[#allocation7 + $0xf8] sm:$0xff]
        %v3961 = vld [vmem:[#allocation7 + $0x100] sm:$0xff]
        %v3962 = vld [vmem:[#allocation7 + $0x108] sm:$0xff]
        %v3963 = vld [vmem:[#allocation7 + $0x110] sm:$0xff]
        %v3964 = vld [vmem:[#allocation7 + $0x118] sm:$0xff]
        %v3965 = vld [vmem:[#allocation7 + $0x120] sm:$0xff]
        %v3966 = vld [vmem:[#allocation7 + $0x128] sm:$0xff]
        %v3967 = vld [vmem:[#allocation7 + $0x130] sm:$0xff]
        %v3968 = vld [vmem:[#allocation7 + $0x138] sm:$0xff]
        %v3969 = vld [vmem:[#allocation7 + $0x140] sm:$0xff]
        %v3970 = vld [vmem:[#allocation7 + $0x148] sm:$0xff]
        %v3971 = vld [vmem:[#allocation7 + $0x150] sm:$0xff]
        %v3972 = vld [vmem:[#allocation7 + $0x158] sm:$0xff]
        %v3973 = vld [vmem:[#allocation7 + $0x160] sm:$0xff]
        %v3974 = vld [vmem:[#allocation7 + $0x168] sm:$0xff]
        %v3975 = vld [vmem:[#allocation7 + $0x170] sm:$0xff]
        %v3976 = vld [vmem:[#allocation7 + $0x178] sm:$0xff]
        %v3977 = vld [vmem:[#allocation7 + $0x180] sm:$0xff]
        %v3978 = vld [vmem:[#allocation7 + $0x188] sm:$0xff]
        %v3979 = vld [vmem:[#allocation7 + $0x190] sm:$0xff]
        %v3980 = vld [vmem:[#allocation7 + $0x198] sm:$0xff]
        %v3981 = vld [vmem:[#allocation7 + $0x1a0] sm:$0xff]
        %v3982 = vld [vmem:[#allocation7 + $0x1a8] sm:$0xff]
        %v3983 = vld [vmem:[#allocation7 + $0x1b0] sm:$0xff]
        %v3984 = vld [vmem:[#allocation7 + $0x1b8] sm:$0xff]
        %v3985 = vld [vmem:[#allocation7 + $0x1c0] sm:$0xff]
        %v3986 = vld [vmem:[#allocation7 + $0x1c8] sm:$0xff]
        %v3987 = vld [vmem:[#allocation7 + $0x1d0] sm:$0xff]
        %v3988 = vld [vmem:[#allocation7 + $0x1d8] sm:$0xff]
        %v3989 = vld [vmem:[#allocation7 + $0x1e0] sm:$0xff]
        %v3990 = vld [vmem:[#allocation7 + $0x1e8] sm:$0xff]
        %v3991 = vld [vmem:[#allocation7 + $0x1f0] sm:$0xff]
        %v3992 = vld [vmem:[#allocation7 + $0x1f8] sm:$0xff]
        %v3993 = vld [vmem:[#allocation7 + $0x200] sm:$0xff]
        %v3994 = vld [vmem:[#allocation7 + $0x208] sm:$0xff]
        %v3995 = vld [vmem:[#allocation7 + $0x210] sm:$0xff]
        %v3996 = vld [vmem:[#allocation7 + $0x218] sm:$0xff]
        %v3997 = vld [vmem:[#allocation7 + $0x220] sm:$0xff]
        %v3998 = vld [vmem:[#allocation7 + $0x228] sm:$0xff]
        %v3999 = vld [vmem:[#allocation7 + $0x230] sm:$0xff]
        %v4000 = vld [vmem:[#allocation7 + $0x238] sm:$0xff]
        %v4001 = vld [vmem:[#allocation7 + $0x240] sm:$0xff]
        %v4002 = vld [vmem:[#allocation7 + $0x248] sm:$0xff]
        %v4003 = vld [vmem:[#allocation7 + $0x250] sm:$0xff]
        %v4004 = vld [vmem:[#allocation7 + $0x258] sm:$0xff]
        %v4005 = vld [vmem:[#allocation7 + $0x260] sm:$0xff]
        %v4006 = vld [vmem:[#allocation7 + $0x268] sm:$0xff]
        %v4007 = vld [vmem:[#allocation7 + $0x270] sm:$0xff]
        %v4008 = vld [vmem:[#allocation7 + $0x278] sm:$0xff]
        %v4009 = vld [vmem:[#allocation7 + $0x280] sm:$0xff]
        %v4010 = vld [vmem:[#allocation7 + $0x288] sm:$0xff]
        %v4011 = vld [vmem:[#allocation7 + $0x290] sm:$0xff]
        %v4012 = vld [vmem:[#allocation7 + $0x298] sm:$0xff]
        %v4013 = vld [vmem:[#allocation7 + $0x2a0] sm:$0xff]
        %v4014 = vld [vmem:[#allocation7 + $0x2a8] sm:$0xff]
        %v4015 = vld [vmem:[#allocation7 + $0x2b0] sm:$0xff]
        %v4016 = vld [vmem:[#allocation7 + $0x2b8] sm:$0xff]
        %v4017 = vld [vmem:[#allocation7 + $0x2c0] sm:$0xff]
        %v4018 = vld [vmem:[#allocation7 + $0x2c8] sm:$0xff]
        %v4019 = vld [vmem:[#allocation7 + $0x2d0] sm:$0xff]
        %v4020 = vld [vmem:[#allocation7 + $0x2d8] sm:$0xff]
        %v4021 = vld [vmem:[#allocation7 + $0x2e0] sm:$0xff]
        %v4022 = vld [vmem:[#allocation7 + $0x2e8] sm:$0xff]
        %v4023 = vld [vmem:[#allocation7 + $0x2f0] sm:$0xff]
        %v4024 = vld [vmem:[#allocation7 + $0x2f8] sm:$0xff]
        %v4025 = vld [vmem:[#allocation7 + $0x300] sm:$0xff]
        %v4026 = vld [vmem:[#allocation7 + $0x308] sm:$0xff]
        %v4027 = vld [vmem:[#allocation7 + $0x310] sm:$0xff]
        %v4028 = vld [vmem:[#allocation7 + $0x318] sm:$0xff]
        %v4029 = vld [vmem:[#allocation7 + $0x320] sm:$0xff]
        %v4030 = vld [vmem:[#allocation7 + $0x328] sm:$0xff]
        %v4031 = vld [vmem:[#allocation7 + $0x330] sm:$0xff]
        %v4032 = vld [vmem:[#allocation7 + $0x338] sm:$0xff]
        %v4033 = vld [vmem:[#allocation7 + $0x340] sm:$0xff]
        %v4034 = vld [vmem:[#allocation7 + $0x348] sm:$0xff]
        %v4035 = vld [vmem:[#allocation7 + $0x350] sm:$0xff]
        %v4036 = vld [vmem:[#allocation7 + $0x358] sm:$0xff]
        %v4037 = vld [vmem:[#allocation7 + $0x360] sm:$0xff]
        %v4038 = vld [vmem:[#allocation7 + $0x368] sm:$0xff]
        %v4039 = vld [vmem:[#allocation7 + $0x370] sm:$0xff]
        %v4040 = vld [vmem:[#allocation7 + $0x378] sm:$0xff]
        %v4041 = vld [vmem:[#allocation7 + $0x380] sm:$0xff]
        %v4042 = vld [vmem:[#allocation7 + $0x388] sm:$0xff]
        %v4043 = vld [vmem:[#allocation7 + $0x390] sm:$0xff]
        %v4044 = vld [vmem:[#allocation7 + $0x398] sm:$0xff]
        %v4045 = vld [vmem:[#allocation7 + $0x3a0] sm:$0xff]
        %v4046 = vld [vmem:[#allocation7 + $0x3a8] sm:$0xff]
        %v4047 = vld [vmem:[#allocation7 + $0x3b0] sm:$0xff]
        %v4048 = vld [vmem:[#allocation7 + $0x3b8] sm:$0xff]
        %v4049 = vld [vmem:[#allocation7 + $0x3c0] sm:$0xff]
        %v4050 = vld [vmem:[#allocation7 + $0x3c8] sm:$0xff]
        %v4051 = vld [vmem:[#allocation7 + $0x3d0] sm:$0xff]
        %v4052 = vld [vmem:[#allocation7 + $0x3d8] sm:$0xff]
        %v4053 = vld [vmem:[#allocation7 + $0x3e0] sm:$0xff]
        %v4054 = vld [vmem:[#allocation7 + $0x3e8] sm:$0xff]
        %v4055 = vld [vmem:[#allocation7 + $0x3f0] sm:$0xff]
        %v4056 = vld [vmem:[#allocation7 + $0x3f8] sm:$0xff]
        %v4057 = vld [vmem:[#allocation7 + $0x400] sm:$0xff]
        %v4058 = vld [vmem:[#allocation7 + $0x408] sm:$0xff]
        %v4059 = vld [vmem:[#allocation7 + $0x410] sm:$0xff]
        %v4060 = vld [vmem:[#allocation7 + $0x418] sm:$0xff]
        %v4061 = vld [vmem:[#allocation7 + $0x420] sm:$0xff]
        %v4062 = vld [vmem:[#allocation7 + $0x428] sm:$0xff]
        %v4063 = vld [vmem:[#allocation7 + $0x430] sm:$0xff]
        %v4064 = vld [vmem:[#allocation7 + $0x438] sm:$0xff]
        %v4065 = vld [vmem:[#allocation7 + $0x440] sm:$0xff]
        %v4066 = vld [vmem:[#allocation7 + $0x448] sm:$0xff]
        %v4067 = vld [vmem:[#allocation7 + $0x450] sm:$0xff]
        %v4068 = vld [vmem:[#allocation7 + $0x458] sm:$0xff]
        %v4069 = vld [vmem:[#allocation7 + $0x460] sm:$0xff]
        %v4070 = vld [vmem:[#allocation7 + $0x468] sm:$0xff]
        %v4071 = vld [vmem:[#allocation7 + $0x470] sm:$0xff]
        %v4072 = vld [vmem:[#allocation7 + $0x478] sm:$0xff]
        %v4073 = vld [vmem:[%s6] sm:$0x1]
        %v4075 = vperm.slane %v4073, 0
        %4077 = vmatpush.msra.mxu0 %v3944
        %4078 = vmatpush.msra.mxu0 %v3943
        %4079 = vmatpush.msra.mxu0 %v3942
        %4080 = vmatpush.msra.mxu0 %v3941
        %4081 = vmatpush.msra.mxu0 %v3940
        %4082 = vmatpush.msra.mxu0 %v3939
        %4083 = vmatpush.msra.mxu0 %v3938
        %4084 = vmatpush.msra.mxu0 %v3937
        %4085 = vmatpush.msra.mxu0 %v3936
        %4086 = vmatpush.msra.mxu0 %v3935
        %4087 = vmatpush.msra.mxu0 %v3934
        %4088 = vmatpush.msra.mxu0 %v3933
        %4089 = vmatpush.msra.mxu0 %v3932
        %4090 = vmatpush.msra.mxu0 %v3931
        %4091 = vmatpush.msra.mxu0 %v3930
        %4092 = vmatpush.msra.mxu0 %v3929
        %4093 = vmatmul.f32.gmra.mxu0 %v3640
        %v4094 = vpop.f32.mrf.mxu0
        %v4095 = vadd.f32 %v4075, %v4094
        %4096 = vmatmul.f32.gmra.mxu0 %v3641
        %v4097 = vpop.f32.mrf.mxu0
        %v4098 = vadd.f32 %v4075, %v4097
        %4099 = vmatmul.f32.gmra.mxu0 %v3642
        %v4100 = vpop.f32.mrf.mxu0
        %v4101 = vadd.f32 %v4075, %v4100
        %4102 = vmatmul.f32.gmra.mxu0 %v3643
        %v4103 = vpop.f32.mrf.mxu0
        %v4104 = vadd.f32 %v4075, %v4103
        %4105 = vmatmul.f32.gmra.mxu0 %v3644
        %v4106 = vpop.f32.mrf.mxu0
        %v4107 = vadd.f32 %v4075, %v4106
        %4108 = vmatmul.f32.gmra.mxu0 %v3645
        %v4109 = vpop.f32.mrf.mxu0
        %v4110 = vadd.f32 %v4075, %v4109
        %4111 = vmatmul.f32.gmra.mxu0 %v3646
        %v4112 = vpop.f32.mrf.mxu0
        %v4113 = vadd.f32 %v4075, %v4112
        %4114 = vmatmul.f32.gmra.mxu0 %v3647
        %v4115 = vpop.f32.mrf.mxu0
        %v4116 = vadd.f32 %v4075, %v4115
        %4117 = vmatmul.f32.gmra.mxu0 %v3648
        %v4118 = vpop.f32.mrf.mxu0
        %v4119 = vadd.f32 %v4075, %v4118
        %4120 = vmatmul.f32.gmra.mxu0 %v3649
        %v4121 = vpop.f32.mrf.mxu0
        %v4122 = vadd.f32 %v4075, %v4121
        %4123 = vmatmul.f32.gmra.mxu0 %v3650
        %v4124 = vpop.f32.mrf.mxu0
        %v4125 = vadd.f32 %v4075, %v4124
        %4126 = vmatmul.f32.gmra.mxu0 %v3651
        %v4127 = vpop.f32.mrf.mxu0
        %v4128 = vadd.f32 %v4075, %v4127
        %4129 = vmatmul.f32.gmra.mxu0 %v3652
        %v4130 = vpop.f32.mrf.mxu0
        %v4131 = vadd.f32 %v4075, %v4130
        %4132 = vmatmul.f32.gmra.mxu0 %v3653
        %v4133 = vpop.f32.mrf.mxu0
        %v4134 = vadd.f32 %v4075, %v4133
        %4135 = vmatmul.f32.gmra.mxu0 %v3654
        %v4136 = vpop.f32.mrf.mxu0
        %v4137 = vadd.f32 %v4075, %v4136
        %4138 = vmatmul.f32.gmra.mxu0 %v3655
        %v4139 = vpop.f32.mrf.mxu0
        %v4140 = vadd.f32 %v4075, %v4139
        %4141 = vmatmul.f32.gmra.mxu0 %v3656
        %v4142 = vpop.f32.mrf.mxu0
        %v4143 = vadd.f32 %v4075, %v4142
        %4144 = vmatmul.f32.gmra.mxu0 %v3657
        %v4145 = vpop.f32.mrf.mxu0
        %v4146 = vadd.f32 %v4075, %v4145
        %4147 = vmatmul.f32.gmra.mxu0 %v3658
        %v4148 = vpop.f32.mrf.mxu0
        %v4149 = vadd.f32 %v4075, %v4148
        %4150 = vmatmul.f32.gmra.mxu0 %v3659
        %v4151 = vpop.f32.mrf.mxu0
        %v4152 = vadd.f32 %v4075, %v4151
        %4153 = vmatmul.f32.gmra.mxu0 %v3660
        %v4154 = vpop.f32.mrf.mxu0
        %v4155 = vadd.f32 %v4075, %v4154
        %4156 = vmatmul.f32.gmra.mxu0 %v3661
        %v4157 = vpop.f32.mrf.mxu0
        %v4158 = vadd.f32 %v4075, %v4157
        %4159 = vmatmul.f32.gmra.mxu0 %v3662
        %v4160 = vpop.f32.mrf.mxu0
        %v4161 = vadd.f32 %v4075, %v4160
        %4162 = vmatmul.f32.gmra.mxu0 %v3663
        %v4163 = vpop.f32.mrf.mxu0
        %v4164 = vadd.f32 %v4075, %v4163
        %4165 = vmatmul.f32.gmra.mxu0 %v3664
        %v4166 = vpop.f32.mrf.mxu0
        %v4167 = vadd.f32 %v4075, %v4166
        %4168 = vmatmul.f32.gmra.mxu0 %v3665
        %v4169 = vpop.f32.mrf.mxu0
        %v4170 = vadd.f32 %v4075, %v4169
        %4171 = vmatmul.f32.gmra.mxu0 %v3666
        %v4172 = vpop.f32.mrf.mxu0
        %v4173 = vadd.f32 %v4075, %v4172
        %4174 = vmatmul.f32.gmra.mxu0 %v3667
        %v4175 = vpop.f32.mrf.mxu0
        %v4176 = vadd.f32 %v4075, %v4175
        %4177 = vmatmul.f32.gmra.mxu0 %v3668
        %v4178 = vpop.f32.mrf.mxu0
        %v4179 = vadd.f32 %v4075, %v4178
        %4180 = vmatmul.f32.gmra.mxu0 %v3669
        %v4181 = vpop.f32.mrf.mxu0
        %v4182 = vadd.f32 %v4075, %v4181
        %4183 = vmatmul.f32.gmra.mxu0 %v3670
        %v4184 = vpop.f32.mrf.mxu0
        %v4185 = vadd.f32 %v4075, %v4184
        %4186 = vmatmul.f32.gmra.mxu0 %v3671
        %v4187 = vpop.f32.mrf.mxu0
        %v4188 = vadd.f32 %v4075, %v4187
        %4189 = vdwg.mxu0
        %4190 = vmatpush.msra.mxu0 %v3960
        %4191 = vmatpush.msra.mxu0 %v3959
        %4192 = vmatpush.msra.mxu0 %v3958
        %4193 = vmatpush.msra.mxu0 %v3957
        %4194 = vmatpush.msra.mxu0 %v3956
        %4195 = vmatpush.msra.mxu0 %v3955
        %4196 = vmatpush.msra.mxu0 %v3954
        %4197 = vmatpush.msra.mxu0 %v3953
        %4198 = vmatpush.msra.mxu0 %v3952
        %4199 = vmatpush.msra.mxu0 %v3951
        %4200 = vmatpush.msra.mxu0 %v3950
        %4201 = vmatpush.msra.mxu0 %v3949
        %4202 = vmatpush.msra.mxu0 %v3948
        %4203 = vmatpush.msra.mxu0 %v3947
        %4204 = vmatpush.msra.mxu0 %v3946
        %4205 = vmatpush.msra.mxu0 %v3945
        %4206 = vmatmul.f32.gmra.mxu0 %v3672
        %v4207 = vpop.f32.mrf.mxu0
        %v4208 = vadd.f32 %v4095, %v4207
        %4209 = vmatmul.f32.gmra.mxu0 %v3673
        %v4210 = vpop.f32.mrf.mxu0
        %v4211 = vadd.f32 %v4098, %v4210
        %4212 = vmatmul.f32.gmra.mxu0 %v3674
        %v4213 = vpop.f32.mrf.mxu0
        %v4214 = vadd.f32 %v4101, %v4213
        %4215 = vmatmul.f32.gmra.mxu0 %v3675
        %v4216 = vpop.f32.mrf.mxu0
        %v4217 = vadd.f32 %v4104, %v4216
        %4218 = vmatmul.f32.gmra.mxu0 %v3676
        %v4219 = vpop.f32.mrf.mxu0
        %v4220 = vadd.f32 %v4107, %v4219
        %4221 = vmatmul.f32.gmra.mxu0 %v3677
        %v4222 = vpop.f32.mrf.mxu0
        %v4223 = vadd.f32 %v4110, %v4222
        %4224 = vmatmul.f32.gmra.mxu0 %v3678
        %v4225 = vpop.f32.mrf.mxu0
        %v4226 = vadd.f32 %v4113, %v4225
        %4227 = vmatmul.f32.gmra.mxu0 %v3679
        %v4228 = vpop.f32.mrf.mxu0
        %v4229 = vadd.f32 %v4116, %v4228
        %4230 = vmatmul.f32.gmra.mxu0 %v3680
        %v4231 = vpop.f32.mrf.mxu0
        %v4232 = vadd.f32 %v4119, %v4231
        %4233 = vmatmul.f32.gmra.mxu0 %v3681
        %v4234 = vpop.f32.mrf.mxu0
        %v4235 = vadd.f32 %v4122, %v4234
        %4236 = vmatmul.f32.gmra.mxu0 %v3682
        %v4237 = vpop.f32.mrf.mxu0
        %v4238 = vadd.f32 %v4125, %v4237
        %4239 = vmatmul.f32.gmra.mxu0 %v3683
        %v4240 = vpop.f32.mrf.mxu0
        %v4241 = vadd.f32 %v4128, %v4240
        %4242 = vmatmul.f32.gmra.mxu0 %v3684
        %v4243 = vpop.f32.mrf.mxu0
        %v4244 = vadd.f32 %v4131, %v4243
        %4245 = vmatmul.f32.gmra.mxu0 %v3685
        %v4246 = vpop.f32.mrf.mxu0
        %v4247 = vadd.f32 %v4134, %v4246
        %4248 = vmatmul.f32.gmra.mxu0 %v3686
        %v4249 = vpop.f32.mrf.mxu0
        %v4250 = vadd.f32 %v4137, %v4249
        %4251 = vmatmul.f32.gmra.mxu0 %v3687
        %v4252 = vpop.f32.mrf.mxu0
        %v4253 = vadd.f32 %v4140, %v4252
        %4254 = vmatmul.f32.gmra.mxu0 %v3688
        %v4255 = vpop.f32.mrf.mxu0
        %v4256 = vadd.f32 %v4143, %v4255
        %4257 = vmatmul.f32.gmra.mxu0 %v3689
        %v4258 = vpop.f32.mrf.mxu0
        %v4259 = vadd.f32 %v4146, %v4258
        %4260 = vmatmul.f32.gmra.mxu0 %v3690
        %v4261 = vpop.f32.mrf.mxu0
        %v4262 = vadd.f32 %v4149, %v4261
        %4263 = vmatmul.f32.gmra.mxu0 %v3691
        %v4264 = vpop.f32.mrf.mxu0
        %v4265 = vadd.f32 %v4152, %v4264
        %4266 = vmatmul.f32.gmra.mxu0 %v3692
        %v4267 = vpop.f32.mrf.mxu0
        %v4268 = vadd.f32 %v4155, %v4267
        %4269 = vmatmul.f32.gmra.mxu0 %v3693
        %v4270 = vpop.f32.mrf.mxu0
        %v4271 = vadd.f32 %v4158, %v4270
        %4272 = vmatmul.f32.gmra.mxu0 %v3694
        %v4273 = vpop.f32.mrf.mxu0
        %v4274 = vadd.f32 %v4161, %v4273
        %4275 = vmatmul.f32.gmra.mxu0 %v3695
        %v4276 = vpop.f32.mrf.mxu0
        %v4277 = vadd.f32 %v4164, %v4276
        %4278 = vmatmul.f32.gmra.mxu0 %v3696
        %v4279 = vpop.f32.mrf.mxu0
        %v4280 = vadd.f32 %v4167, %v4279
        %4281 = vmatmul.f32.gmra.mxu0 %v3697
        %v4282 = vpop.f32.mrf.mxu0
        %v4283 = vadd.f32 %v4170, %v4282
        %4284 = vmatmul.f32.gmra.mxu0 %v3698
        %v4285 = vpop.f32.mrf.mxu0
        %v4286 = vadd.f32 %v4173, %v4285
        %4287 = vmatmul.f32.gmra.mxu0 %v3699
        %v4288 = vpop.f32.mrf.mxu0
        %v4289 = vadd.f32 %v4176, %v4288
        %4290 = vmatmul.f32.gmra.mxu0 %v3700
        %v4291 = vpop.f32.mrf.mxu0
        %v4292 = vadd.f32 %v4179, %v4291
        %4293 = vmatmul.f32.gmra.mxu0 %v3701
        %v4294 = vpop.f32.mrf.mxu0
        %v4295 = vadd.f32 %v4182, %v4294
        %4296 = vmatmul.f32.gmra.mxu0 %v3702
        %v4297 = vpop.f32.mrf.mxu0
        %v4298 = vadd.f32 %v4185, %v4297
        %4299 = vmatmul.f32.gmra.mxu0 %v3703
        %v4300 = vpop.f32.mrf.mxu0
        %v4301 = vadd.f32 %v4188, %v4300
        %4302 = vdwg.mxu0
        %4303 = vmatpush.msra.mxu0 %v3976
        %4304 = vmatpush.msra.mxu0 %v3975
        %4305 = vmatpush.msra.mxu0 %v3974
        %4306 = vmatpush.msra.mxu0 %v3973
        %4307 = vmatpush.msra.mxu0 %v3972
        %4308 = vmatpush.msra.mxu0 %v3971
        %4309 = vmatpush.msra.mxu0 %v3970
        %4310 = vmatpush.msra.mxu0 %v3969
        %4311 = vmatpush.msra.mxu0 %v3968
        %4312 = vmatpush.msra.mxu0 %v3967
        %4313 = vmatpush.msra.mxu0 %v3966
        %4314 = vmatpush.msra.mxu0 %v3965
        %4315 = vmatpush.msra.mxu0 %v3964
        %4316 = vmatpush.msra.mxu0 %v3963
        %4317 = vmatpush.msra.mxu0 %v3962
        %4318 = vmatpush.msra.mxu0 %v3961
        %4319 = vmatmul.f32.gmra.mxu0 %v3704
        %v4320 = vpop.f32.mrf.mxu0
        %v4321 = vadd.f32 %v4208, %v4320
        %4322 = vmatmul.f32.gmra.mxu0 %v3705
        %v4323 = vpop.f32.mrf.mxu0
        %v4324 = vadd.f32 %v4211, %v4323
        %4325 = vmatmul.f32.gmra.mxu0 %v3706
        %v4326 = vpop.f32.mrf.mxu0
        %v4327 = vadd.f32 %v4214, %v4326
        %4328 = vmatmul.f32.gmra.mxu0 %v3707
        %v4329 = vpop.f32.mrf.mxu0
        %v4330 = vadd.f32 %v4217, %v4329
        %4331 = vmatmul.f32.gmra.mxu0 %v3708
        %v4332 = vpop.f32.mrf.mxu0
        %v4333 = vadd.f32 %v4220, %v4332
        %4334 = vmatmul.f32.gmra.mxu0 %v3709
        %v4335 = vpop.f32.mrf.mxu0
        %v4336 = vadd.f32 %v4223, %v4335
        %4337 = vmatmul.f32.gmra.mxu0 %v3710
        %v4338 = vpop.f32.mrf.mxu0
        %v4339 = vadd.f32 %v4226, %v4338
        %4340 = vmatmul.f32.gmra.mxu0 %v3711
        %v4341 = vpop.f32.mrf.mxu0
        %v4342 = vadd.f32 %v4229, %v4341
        %4343 = vmatmul.f32.gmra.mxu0 %v3712
        %v4344 = vpop.f32.mrf.mxu0
        %v4345 = vadd.f32 %v4232, %v4344
        %4346 = vmatmul.f32.gmra.mxu0 %v3713
        %v4347 = vpop.f32.mrf.mxu0
        %v4348 = vadd.f32 %v4235, %v4347
        %4349 = vmatmul.f32.gmra.mxu0 %v3714
        %v4350 = vpop.f32.mrf.mxu0
        %v4351 = vadd.f32 %v4238, %v4350
        %4352 = vmatmul.f32.gmra.mxu0 %v3715
        %v4353 = vpop.f32.mrf.mxu0
        %v4354 = vadd.f32 %v4241, %v4353
        %4355 = vmatmul.f32.gmra.mxu0 %v3716
        %v4356 = vpop.f32.mrf.mxu0
        %v4357 = vadd.f32 %v4244, %v4356
        %4358 = vmatmul.f32.gmra.mxu0 %v3717
        %v4359 = vpop.f32.mrf.mxu0
        %v4360 = vadd.f32 %v4247, %v4359
        %4361 = vmatmul.f32.gmra.mxu0 %v3718
        %v4362 = vpop.f32.mrf.mxu0
        %v4363 = vadd.f32 %v4250, %v4362
        %4364 = vmatmul.f32.gmra.mxu0 %v3719
        %v4365 = vpop.f32.mrf.mxu0
        %v4366 = vadd.f32 %v4253, %v4365
        %4367 = vmatmul.f32.gmra.mxu0 %v3720
        %v4368 = vpop.f32.mrf.mxu0
        %v4369 = vadd.f32 %v4256, %v4368
        %4370 = vmatmul.f32.gmra.mxu0 %v3721
        %v4371 = vpop.f32.mrf.mxu0
        %v4372 = vadd.f32 %v4259, %v4371
        %4373 = vmatmul.f32.gmra.mxu0 %v3722
        %v4374 = vpop.f32.mrf.mxu0
        %v4375 = vadd.f32 %v4262, %v4374
        %4376 = vmatmul.f32.gmra.mxu0 %v3723
        %v4377 = vpop.f32.mrf.mxu0
        %v4378 = vadd.f32 %v4265, %v4377
        %4379 = vmatmul.f32.gmra.mxu0 %v3724
        %v4380 = vpop.f32.mrf.mxu0
        %v4381 = vadd.f32 %v4268, %v4380
        %4382 = vmatmul.f32.gmra.mxu0 %v3725
        %v4383 = vpop.f32.mrf.mxu0
        %v4384 = vadd.f32 %v4271, %v4383
        %4385 = vmatmul.f32.gmra.mxu0 %v3726
        %v4386 = vpop.f32.mrf.mxu0
        %v4387 = vadd.f32 %v4274, %v4386
        %4388 = vmatmul.f32.gmra.mxu0 %v3727
        %v4389 = vpop.f32.mrf.mxu0
        %v4390 = vadd.f32 %v4277, %v4389
        %4391 = vmatmul.f32.gmra.mxu0 %v3728
        %v4392 = vpop.f32.mrf.mxu0
        %v4393 = vadd.f32 %v4280, %v4392
        %4394 = vmatmul.f32.gmra.mxu0 %v3729
        %v4395 = vpop.f32.mrf.mxu0
        %v4396 = vadd.f32 %v4283, %v4395
        %4397 = vmatmul.f32.gmra.mxu0 %v3730
        %v4398 = vpop.f32.mrf.mxu0
        %v4399 = vadd.f32 %v4286, %v4398
        %4400 = vmatmul.f32.gmra.mxu0 %v3731
        %v4401 = vpop.f32.mrf.mxu0
        %v4402 = vadd.f32 %v4289, %v4401
        %4403 = vmatmul.f32.gmra.mxu0 %v3732
        %v4404 = vpop.f32.mrf.mxu0
        %v4405 = vadd.f32 %v4292, %v4404
        %4406 = vmatmul.f32.gmra.mxu0 %v3733
        %v4407 = vpop.f32.mrf.mxu0
        %v4408 = vadd.f32 %v4295, %v4407
        %4409 = vmatmul.f32.gmra.mxu0 %v3734
        %v4410 = vpop.f32.mrf.mxu0
        %v4411 = vadd.f32 %v4298, %v4410
        %4412 = vmatmul.f32.gmra.mxu0 %v3735
        %v4413 = vpop.f32.mrf.mxu0
        %v4414 = vadd.f32 %v4301, %v4413
        %4415 = vdwg.mxu0
        %4416 = vmatpush.msra.mxu0 %v3992
        %4417 = vmatpush.msra.mxu0 %v3991
        %4418 = vmatpush.msra.mxu0 %v3990
        %4419 = vmatpush.msra.mxu0 %v3989
        %4420 = vmatpush.msra.mxu0 %v3988
        %4421 = vmatpush.msra.mxu0 %v3987
        %4422 = vmatpush.msra.mxu0 %v3986
        %4423 = vmatpush.msra.mxu0 %v3985
        %4424 = vmatpush.msra.mxu0 %v3984
        %4425 = vmatpush.msra.mxu0 %v3983
        %4426 = vmatpush.msra.mxu0 %v3982
        %4427 = vmatpush.msra.mxu0 %v3981
        %4428 = vmatpush.msra.mxu0 %v3980
        %4429 = vmatpush.msra.mxu0 %v3979
        %4430 = vmatpush.msra.mxu0 %v3978
        %4431 = vmatpush.msra.mxu0 %v3977
        %4432 = vmatmul.f32.gmra.mxu0 %v3736
        %v4433 = vpop.f32.mrf.mxu0
        %v4434 = vadd.f32 %v4321, %v4433
        %4435 = vmatmul.f32.gmra.mxu0 %v3737
        %v4436 = vpop.f32.mrf.mxu0
        %v4437 = vadd.f32 %v4324, %v4436
        %4438 = vmatmul.f32.gmra.mxu0 %v3738
        %v4439 = vpop.f32.mrf.mxu0
        %v4440 = vadd.f32 %v4327, %v4439
        %4441 = vmatmul.f32.gmra.mxu0 %v3739
        %v4442 = vpop.f32.mrf.mxu0
        %v4443 = vadd.f32 %v4330, %v4442
        %4444 = vmatmul.f32.gmra.mxu0 %v3740
        %v4445 = vpop.f32.mrf.mxu0
        %v4446 = vadd.f32 %v4333, %v4445
        %4447 = vmatmul.f32.gmra.mxu0 %v3741
        %v4448 = vpop.f32.mrf.mxu0
        %v4449 = vadd.f32 %v4336, %v4448
        %4450 = vmatmul.f32.gmra.mxu0 %v3742
        %v4451 = vpop.f32.mrf.mxu0
        %v4452 = vadd.f32 %v4339, %v4451
        %4453 = vmatmul.f32.gmra.mxu0 %v3743
        %v4454 = vpop.f32.mrf.mxu0
        %v4455 = vadd.f32 %v4342, %v4454
        %4456 = vmatmul.f32.gmra.mxu0 %v3744
        %v4457 = vpop.f32.mrf.mxu0
        %v4458 = vadd.f32 %v4345, %v4457
        %4459 = vmatmul.f32.gmra.mxu0 %v3745
        %v4460 = vpop.f32.mrf.mxu0
        %v4461 = vadd.f32 %v4348, %v4460
        %4462 = vmatmul.f32.gmra.mxu0 %v3746
        %v4463 = vpop.f32.mrf.mxu0
        %v4464 = vadd.f32 %v4351, %v4463
        %4465 = vmatmul.f32.gmra.mxu0 %v3747
        %v4466 = vpop.f32.mrf.mxu0
        %v4467 = vadd.f32 %v4354, %v4466
        %4468 = vmatmul.f32.gmra.mxu0 %v3748
        %v4469 = vpop.f32.mrf.mxu0
        %v4470 = vadd.f32 %v4357, %v4469
        %4471 = vmatmul.f32.gmra.mxu0 %v3749
        %v4472 = vpop.f32.mrf.mxu0
        %v4473 = vadd.f32 %v4360, %v4472
        %4474 = vmatmul.f32.gmra.mxu0 %v3750
        %v4475 = vpop.f32.mrf.mxu0
        %v4476 = vadd.f32 %v4363, %v4475
        %4477 = vmatmul.f32.gmra.mxu0 %v3751
        %v4478 = vpop.f32.mrf.mxu0
        %v4479 = vadd.f32 %v4366, %v4478
        %4480 = vmatmul.f32.gmra.mxu0 %v3752
        %v4481 = vpop.f32.mrf.mxu0
        %v4482 = vadd.f32 %v4369, %v4481
        %4483 = vmatmul.f32.gmra.mxu0 %v3753
        %v4484 = vpop.f32.mrf.mxu0
        %v4485 = vadd.f32 %v4372, %v4484
        %4486 = vmatmul.f32.gmra.mxu0 %v3754
        %v4487 = vpop.f32.mrf.mxu0
        %v4488 = vadd.f32 %v4375, %v4487
        %4489 = vmatmul.f32.gmra.mxu0 %v3755
        %v4490 = vpop.f32.mrf.mxu0
        %v4491 = vadd.f32 %v4378, %v4490
        %4492 = vmatmul.f32.gmra.mxu0 %v3756
        %v4493 = vpop.f32.mrf.mxu0
        %v4494 = vadd.f32 %v4381, %v4493
        %4495 = vmatmul.f32.gmra.mxu0 %v3757
        %v4496 = vpop.f32.mrf.mxu0
        %v4497 = vadd.f32 %v4384, %v4496
        %4498 = vmatmul.f32.gmra.mxu0 %v3758
        %v4499 = vpop.f32.mrf.mxu0
        %v4500 = vadd.f32 %v4387, %v4499
        %4501 = vmatmul.f32.gmra.mxu0 %v3759
        %v4502 = vpop.f32.mrf.mxu0
        %v4503 = vadd.f32 %v4390, %v4502
        %4504 = vmatmul.f32.gmra.mxu0 %v3760
        %v4505 = vpop.f32.mrf.mxu0
        %v4506 = vadd.f32 %v4393, %v4505
        %4507 = vmatmul.f32.gmra.mxu0 %v3761
        %v4508 = vpop.f32.mrf.mxu0
        %v4509 = vadd.f32 %v4396, %v4508
        %4510 = vmatmul.f32.gmra.mxu0 %v3762
        %v4511 = vpop.f32.mrf.mxu0
        %v4512 = vadd.f32 %v4399, %v4511
        %4513 = vmatmul.f32.gmra.mxu0 %v3763
        %v4514 = vpop.f32.mrf.mxu0
        %v4515 = vadd.f32 %v4402, %v4514
        %4516 = vmatmul.f32.gmra.mxu0 %v3764
        %v4517 = vpop.f32.mrf.mxu0
        %v4518 = vadd.f32 %v4405, %v4517
        %4519 = vmatmul.f32.gmra.mxu0 %v3765
        %v4520 = vpop.f32.mrf.mxu0
        %v4521 = vadd.f32 %v4408, %v4520
        %4522 = vmatmul.f32.gmra.mxu0 %v3766
        %v4523 = vpop.f32.mrf.mxu0
        %v4524 = vadd.f32 %v4411, %v4523
        %4525 = vmatmul.f32.gmra.mxu0 %v3767
        %v4526 = vpop.f32.mrf.mxu0
        %v4527 = vadd.f32 %v4414, %v4526
        %4528 = vdwg.mxu0
        %4529 = vmatpush.msra.mxu0 %v4008
        %4530 = vmatpush.msra.mxu0 %v4007
        %4531 = vmatpush.msra.mxu0 %v4006
        %4532 = vmatpush.msra.mxu0 %v4005
        %4533 = vmatpush.msra.mxu0 %v4004
        %4534 = vmatpush.msra.mxu0 %v4003
        %4535 = vmatpush.msra.mxu0 %v4002
        %4536 = vmatpush.msra.mxu0 %v4001
        %4537 = vmatpush.msra.mxu0 %v4000
        %4538 = vmatpush.msra.mxu0 %v3999
        %4539 = vmatpush.msra.mxu0 %v3998
        %4540 = vmatpush.msra.mxu0 %v3997
        %4541 = vmatpush.msra.mxu0 %v3996
        %4542 = vmatpush.msra.mxu0 %v3995
        %4543 = vmatpush.msra.mxu0 %v3994
        %4544 = vmatpush.msra.mxu0 %v3993
        %4545 = vmatmul.f32.gmra.mxu0 %v3768
        %v4546 = vpop.f32.mrf.mxu0
        %v4547 = vadd.f32 %v4434, %v4546
        %4548 = vmatmul.f32.gmra.mxu0 %v3769
        %v4549 = vpop.f32.mrf.mxu0
        %v4550 = vadd.f32 %v4437, %v4549
        %4551 = vmatmul.f32.gmra.mxu0 %v3770
        %v4552 = vpop.f32.mrf.mxu0
        %v4553 = vadd.f32 %v4440, %v4552
        %4554 = vmatmul.f32.gmra.mxu0 %v3771
        %v4555 = vpop.f32.mrf.mxu0
        %v4556 = vadd.f32 %v4443, %v4555
        %4557 = vmatmul.f32.gmra.mxu0 %v3772
        %v4558 = vpop.f32.mrf.mxu0
        %v4559 = vadd.f32 %v4446, %v4558
        %4560 = vmatmul.f32.gmra.mxu0 %v3773
        %v4561 = vpop.f32.mrf.mxu0
        %v4562 = vadd.f32 %v4449, %v4561
        %4563 = vmatmul.f32.gmra.mxu0 %v3774
        %v4564 = vpop.f32.mrf.mxu0
        %v4565 = vadd.f32 %v4452, %v4564
        %4566 = vmatmul.f32.gmra.mxu0 %v3775
        %v4567 = vpop.f32.mrf.mxu0
        %v4568 = vadd.f32 %v4455, %v4567
        %4569 = vmatmul.f32.gmra.mxu0 %v3776
        %v4570 = vpop.f32.mrf.mxu0
        %v4571 = vadd.f32 %v4458, %v4570
        %4572 = vmatmul.f32.gmra.mxu0 %v3777
        %v4573 = vpop.f32.mrf.mxu0
        %v4574 = vadd.f32 %v4461, %v4573
        %4575 = vmatmul.f32.gmra.mxu0 %v3778
        %v4576 = vpop.f32.mrf.mxu0
        %v4577 = vadd.f32 %v4464, %v4576
        %4578 = vmatmul.f32.gmra.mxu0 %v3779
        %v4579 = vpop.f32.mrf.mxu0
        %v4580 = vadd.f32 %v4467, %v4579
        %4581 = vmatmul.f32.gmra.mxu0 %v3780
        %v4582 = vpop.f32.mrf.mxu0
        %v4583 = vadd.f32 %v4470, %v4582
        %4584 = vmatmul.f32.gmra.mxu0 %v3781
        %v4585 = vpop.f32.mrf.mxu0
        %v4586 = vadd.f32 %v4473, %v4585
        %4587 = vmatmul.f32.gmra.mxu0 %v3782
        %v4588 = vpop.f32.mrf.mxu0
        %v4589 = vadd.f32 %v4476, %v4588
        %4590 = vmatmul.f32.gmra.mxu0 %v3783
        %v4591 = vpop.f32.mrf.mxu0
        %v4592 = vadd.f32 %v4479, %v4591
        %4593 = vmatmul.f32.gmra.mxu0 %v3784
        %v4594 = vpop.f32.mrf.mxu0
        %v4595 = vadd.f32 %v4482, %v4594
        %4596 = vmatmul.f32.gmra.mxu0 %v3785
        %v4597 = vpop.f32.mrf.mxu0
        %v4598 = vadd.f32 %v4485, %v4597
        %4599 = vmatmul.f32.gmra.mxu0 %v3786
        %v4600 = vpop.f32.mrf.mxu0
        %v4601 = vadd.f32 %v4488, %v4600
        %4602 = vmatmul.f32.gmra.mxu0 %v3787
        %v4603 = vpop.f32.mrf.mxu0
        %v4604 = vadd.f32 %v4491, %v4603
        %4605 = vmatmul.f32.gmra.mxu0 %v3788
        %v4606 = vpop.f32.mrf.mxu0
        %v4607 = vadd.f32 %v4494, %v4606
        %4608 = vmatmul.f32.gmra.mxu0 %v3789
        %v4609 = vpop.f32.mrf.mxu0
        %v4610 = vadd.f32 %v4497, %v4609
        %4611 = vmatmul.f32.gmra.mxu0 %v3790
        %v4612 = vpop.f32.mrf.mxu0
        %v4613 = vadd.f32 %v4500, %v4612
        %4614 = vmatmul.f32.gmra.mxu0 %v3791
        %v4615 = vpop.f32.mrf.mxu0
        %v4616 = vadd.f32 %v4503, %v4615
        %4617 = vmatmul.f32.gmra.mxu0 %v3792
        %v4618 = vpop.f32.mrf.mxu0
        %v4619 = vadd.f32 %v4506, %v4618
        %4620 = vmatmul.f32.gmra.mxu0 %v3793
        %v4621 = vpop.f32.mrf.mxu0
        %v4622 = vadd.f32 %v4509, %v4621
        %4623 = vmatmul.f32.gmra.mxu0 %v3794
        %v4624 = vpop.f32.mrf.mxu0
        %v4625 = vadd.f32 %v4512, %v4624
        %4626 = vmatmul.f32.gmra.mxu0 %v3795
        %v4627 = vpop.f32.mrf.mxu0
        %v4628 = vadd.f32 %v4515, %v4627
        %4629 = vmatmul.f32.gmra.mxu0 %v3796
        %v4630 = vpop.f32.mrf.mxu0
        %v4631 = vadd.f32 %v4518, %v4630
        %4632 = vmatmul.f32.gmra.mxu0 %v3797
        %v4633 = vpop.f32.mrf.mxu0
        %v4634 = vadd.f32 %v4521, %v4633
        %4635 = vmatmul.f32.gmra.mxu0 %v3798
        %v4636 = vpop.f32.mrf.mxu0
        %v4637 = vadd.f32 %v4524, %v4636
        %4638 = vmatmul.f32.gmra.mxu0 %v3799
        %v4639 = vpop.f32.mrf.mxu0
        %v4640 = vadd.f32 %v4527, %v4639
        %4641 = vdwg.mxu0
        %4642 = vmatpush.msra.mxu0 %v4024
        %4643 = vmatpush.msra.mxu0 %v4023
        %4644 = vmatpush.msra.mxu0 %v4022
        %4645 = vmatpush.msra.mxu0 %v4021
        %4646 = vmatpush.msra.mxu0 %v4020
        %4647 = vmatpush.msra.mxu0 %v4019
        %4648 = vmatpush.msra.mxu0 %v4018
        %4649 = vmatpush.msra.mxu0 %v4017
        %4650 = vmatpush.msra.mxu0 %v4016
        %4651 = vmatpush.msra.mxu0 %v4015
        %4652 = vmatpush.msra.mxu0 %v4014
        %4653 = vmatpush.msra.mxu0 %v4013
        %4654 = vmatpush.msra.mxu0 %v4012
        %4655 = vmatpush.msra.mxu0 %v4011
        %4656 = vmatpush.msra.mxu0 %v4010
        %4657 = vmatpush.msra.mxu0 %v4009
        %4658 = vmatmul.f32.gmra.mxu0 %v3800
        %v4659 = vpop.f32.mrf.mxu0
        %v4660 = vadd.f32 %v4547, %v4659
        %4661 = vmatmul.f32.gmra.mxu0 %v3801
        %v4662 = vpop.f32.mrf.mxu0
        %v4663 = vadd.f32 %v4550, %v4662
        %4664 = vmatmul.f32.gmra.mxu0 %v3802
        %v4665 = vpop.f32.mrf.mxu0
        %v4666 = vadd.f32 %v4553, %v4665
        %4667 = vmatmul.f32.gmra.mxu0 %v3803
        %v4668 = vpop.f32.mrf.mxu0
        %v4669 = vadd.f32 %v4556, %v4668
        %4670 = vmatmul.f32.gmra.mxu0 %v3804
        %v4671 = vpop.f32.mrf.mxu0
        %v4672 = vadd.f32 %v4559, %v4671
        %4673 = vmatmul.f32.gmra.mxu0 %v3805
        %v4674 = vpop.f32.mrf.mxu0
        %v4675 = vadd.f32 %v4562, %v4674
        %4676 = vmatmul.f32.gmra.mxu0 %v3806
        %v4677 = vpop.f32.mrf.mxu0
        %v4678 = vadd.f32 %v4565, %v4677
        %4679 = vmatmul.f32.gmra.mxu0 %v3807
        %v4680 = vpop.f32.mrf.mxu0
        %v4681 = vadd.f32 %v4568, %v4680
        %4682 = vmatmul.f32.gmra.mxu0 %v3808
        %v4683 = vpop.f32.mrf.mxu0
        %v4684 = vadd.f32 %v4571, %v4683
        %4685 = vmatmul.f32.gmra.mxu0 %v3809
        %v4686 = vpop.f32.mrf.mxu0
        %v4687 = vadd.f32 %v4574, %v4686
        %4688 = vmatmul.f32.gmra.mxu0 %v3810
        %v4689 = vpop.f32.mrf.mxu0
        %v4690 = vadd.f32 %v4577, %v4689
        %4691 = vmatmul.f32.gmra.mxu0 %v3811
        %v4692 = vpop.f32.mrf.mxu0
        %v4693 = vadd.f32 %v4580, %v4692
        %4694 = vmatmul.f32.gmra.mxu0 %v3812
        %v4695 = vpop.f32.mrf.mxu0
        %v4696 = vadd.f32 %v4583, %v4695
        %4697 = vmatmul.f32.gmra.mxu0 %v3813
        %v4698 = vpop.f32.mrf.mxu0
        %v4699 = vadd.f32 %v4586, %v4698
        %4700 = vmatmul.f32.gmra.mxu0 %v3814
        %v4701 = vpop.f32.mrf.mxu0
        %v4702 = vadd.f32 %v4589, %v4701
        %4703 = vmatmul.f32.gmra.mxu0 %v3815
        %v4704 = vpop.f32.mrf.mxu0
        %v4705 = vadd.f32 %v4592, %v4704
        %4706 = vmatmul.f32.gmra.mxu0 %v3816
        %v4707 = vpop.f32.mrf.mxu0
        %v4708 = vadd.f32 %v4595, %v4707
        %4709 = vmatmul.f32.gmra.mxu0 %v3817
        %v4710 = vpop.f32.mrf.mxu0
        %v4711 = vadd.f32 %v4598, %v4710
        %4712 = vmatmul.f32.gmra.mxu0 %v3818
        %v4713 = vpop.f32.mrf.mxu0
        %v4714 = vadd.f32 %v4601, %v4713
        %4715 = vmatmul.f32.gmra.mxu0 %v3819
        %v4716 = vpop.f32.mrf.mxu0
        %v4717 = vadd.f32 %v4604, %v4716
        %4718 = vmatmul.f32.gmra.mxu0 %v3820
        %v4719 = vpop.f32.mrf.mxu0
        %v4720 = vadd.f32 %v4607, %v4719
        %4721 = vmatmul.f32.gmra.mxu0 %v3821
        %v4722 = vpop.f32.mrf.mxu0
        %v4723 = vadd.f32 %v4610, %v4722
        %4724 = vmatmul.f32.gmra.mxu0 %v3822
        %v4725 = vpop.f32.mrf.mxu0
        %v4726 = vadd.f32 %v4613, %v4725
        %4727 = vmatmul.f32.gmra.mxu0 %v3823
        %v4728 = vpop.f32.mrf.mxu0
        %v4729 = vadd.f32 %v4616, %v4728
        %4730 = vmatmul.f32.gmra.mxu0 %v3824
        %v4731 = vpop.f32.mrf.mxu0
        %v4732 = vadd.f32 %v4619, %v4731
        %4733 = vmatmul.f32.gmra.mxu0 %v3825
        %v4734 = vpop.f32.mrf.mxu0
        %v4735 = vadd.f32 %v4622, %v4734
        %4736 = vmatmul.f32.gmra.mxu0 %v3826
        %v4737 = vpop.f32.mrf.mxu0
        %v4738 = vadd.f32 %v4625, %v4737
        %4739 = vmatmul.f32.gmra.mxu0 %v3827
        %v4740 = vpop.f32.mrf.mxu0
        %v4741 = vadd.f32 %v4628, %v4740
        %4742 = vmatmul.f32.gmra.mxu0 %v3828
        %v4743 = vpop.f32.mrf.mxu0
        %v4744 = vadd.f32 %v4631, %v4743
        %4745 = vmatmul.f32.gmra.mxu0 %v3829
        %v4746 = vpop.f32.mrf.mxu0
        %v4747 = vadd.f32 %v4634, %v4746
        %4748 = vmatmul.f32.gmra.mxu0 %v3830
        %v4749 = vpop.f32.mrf.mxu0
        %v4750 = vadd.f32 %v4637, %v4749
        %4751 = vmatmul.f32.gmra.mxu0 %v3831
        %v4752 = vpop.f32.mrf.mxu0
        %v4753 = vadd.f32 %v4640, %v4752
        %4754 = vdwg.mxu0
        %4755 = vmatpush.msra.mxu0 %v4040
        %4756 = vmatpush.msra.mxu0 %v4039
        %4757 = vmatpush.msra.mxu0 %v4038
        %4758 = vmatpush.msra.mxu0 %v4037
        %4759 = vmatpush.msra.mxu0 %v4036
        %4760 = vmatpush.msra.mxu0 %v4035
        %4761 = vmatpush.msra.mxu0 %v4034
        %4762 = vmatpush.msra.mxu0 %v4033
        %4763 = vmatpush.msra.mxu0 %v4032
        %4764 = vmatpush.msra.mxu0 %v4031
        %4765 = vmatpush.msra.mxu0 %v4030
        %4766 = vmatpush.msra.mxu0 %v4029
        %4767 = vmatpush.msra.mxu0 %v4028
        %4768 = vmatpush.msra.mxu0 %v4027
        %4769 = vmatpush.msra.mxu0 %v4026
        %4770 = vmatpush.msra.mxu0 %v4025
        %4771 = vmatmul.f32.gmra.mxu0 %v3833
        %v4772 = vpop.f32.mrf.mxu0
        %v4773 = vadd.f32 %v4660, %v4772
        %4774 = vmatmul.f32.gmra.mxu0 %v3834
        %v4775 = vpop.f32.mrf.mxu0
        %v4776 = vadd.f32 %v4663, %v4775
        %4777 = vmatmul.f32.gmra.mxu0 %v3835
        %v4778 = vpop.f32.mrf.mxu0
        %v4779 = vadd.f32 %v4666, %v4778
        %4780 = vmatmul.f32.gmra.mxu0 %v3836
        %v4781 = vpop.f32.mrf.mxu0
        %v4782 = vadd.f32 %v4669, %v4781
        %4783 = vmatmul.f32.gmra.mxu0 %v3837
        %v4784 = vpop.f32.mrf.mxu0
        %v4785 = vadd.f32 %v4672, %v4784
        %4786 = vmatmul.f32.gmra.mxu0 %v3838
        %v4787 = vpop.f32.mrf.mxu0
        %v4788 = vadd.f32 %v4675, %v4787
        %4789 = vmatmul.f32.gmra.mxu0 %v3839
        %v4790 = vpop.f32.mrf.mxu0
        %v4791 = vadd.f32 %v4678, %v4790
        %4792 = vmatmul.f32.gmra.mxu0 %v3840
        %v4793 = vpop.f32.mrf.mxu0
        %v4794 = vadd.f32 %v4681, %v4793
        %4795 = vmatmul.f32.gmra.mxu0 %v3841
        %v4796 = vpop.f32.mrf.mxu0
        %v4797 = vadd.f32 %v4684, %v4796
        %4798 = vmatmul.f32.gmra.mxu0 %v3842
        %v4799 = vpop.f32.mrf.mxu0
        %v4800 = vadd.f32 %v4687, %v4799
        %4801 = vmatmul.f32.gmra.mxu0 %v3843
        %v4802 = vpop.f32.mrf.mxu0
        %v4803 = vadd.f32 %v4690, %v4802
        %4804 = vmatmul.f32.gmra.mxu0 %v3844
        %v4805 = vpop.f32.mrf.mxu0
        %v4806 = vadd.f32 %v4693, %v4805
        %4807 = vmatmul.f32.gmra.mxu0 %v3845
        %v4808 = vpop.f32.mrf.mxu0
        %v4809 = vadd.f32 %v4696, %v4808
        %4810 = vmatmul.f32.gmra.mxu0 %v3846
        %v4811 = vpop.f32.mrf.mxu0
        %v4812 = vadd.f32 %v4699, %v4811
        %4813 = vmatmul.f32.gmra.mxu0 %v3847
        %v4814 = vpop.f32.mrf.mxu0
        %v4815 = vadd.f32 %v4702, %v4814
        %4816 = vmatmul.f32.gmra.mxu0 %v3848
        %v4817 = vpop.f32.mrf.mxu0
        %v4818 = vadd.f32 %v4705, %v4817
        %4819 = vmatmul.f32.gmra.mxu0 %v3849
        %v4820 = vpop.f32.mrf.mxu0
        %v4821 = vadd.f32 %v4708, %v4820
        %4822 = vmatmul.f32.gmra.mxu0 %v3850
        %v4823 = vpop.f32.mrf.mxu0
        %v4824 = vadd.f32 %v4711, %v4823
        %4825 = vmatmul.f32.gmra.mxu0 %v3851
        %v4826 = vpop.f32.mrf.mxu0
        %v4827 = vadd.f32 %v4714, %v4826
        %4828 = vmatmul.f32.gmra.mxu0 %v3852
        %v4829 = vpop.f32.mrf.mxu0
        %v4830 = vadd.f32 %v4717, %v4829
        %4831 = vmatmul.f32.gmra.mxu0 %v3853
        %v4832 = vpop.f32.mrf.mxu0
        %v4833 = vadd.f32 %v4720, %v4832
        %4834 = vmatmul.f32.gmra.mxu0 %v3854
        %v4835 = vpop.f32.mrf.mxu0
        %v4836 = vadd.f32 %v4723, %v4835
        %4837 = vmatmul.f32.gmra.mxu0 %v3855
        %v4838 = vpop.f32.mrf.mxu0
        %v4839 = vadd.f32 %v4726, %v4838
        %4840 = vmatmul.f32.gmra.mxu0 %v3856
        %v4841 = vpop.f32.mrf.mxu0
        %v4842 = vadd.f32 %v4729, %v4841
        %4843 = vmatmul.f32.gmra.mxu0 %v3857
        %v4844 = vpop.f32.mrf.mxu0
        %v4845 = vadd.f32 %v4732, %v4844
        %4846 = vmatmul.f32.gmra.mxu0 %v3858
        %v4847 = vpop.f32.mrf.mxu0
        %v4848 = vadd.f32 %v4735, %v4847
        %4849 = vmatmul.f32.gmra.mxu0 %v3859
        %v4850 = vpop.f32.mrf.mxu0
        %v4851 = vadd.f32 %v4738, %v4850
        %4852 = vmatmul.f32.gmra.mxu0 %v3860
        %v4853 = vpop.f32.mrf.mxu0
        %v4854 = vadd.f32 %v4741, %v4853
        %4855 = vmatmul.f32.gmra.mxu0 %v3861
        %v4856 = vpop.f32.mrf.mxu0
        %v4857 = vadd.f32 %v4744, %v4856
        %4858 = vmatmul.f32.gmra.mxu0 %v3862
        %v4859 = vpop.f32.mrf.mxu0
        %v4860 = vadd.f32 %v4747, %v4859
        %4861 = vmatmul.f32.gmra.mxu0 %v3863
        %v4862 = vpop.f32.mrf.mxu0
        %v4863 = vadd.f32 %v4750, %v4862
        %4864 = vmatmul.f32.gmra.mxu0 %v3864
        %v4865 = vpop.f32.mrf.mxu0
        %v4866 = vadd.f32 %v4753, %v4865
        %4867 = vdwg.mxu0
        %4868 = vmatpush.msra.mxu0 %v4056
        %4869 = vmatpush.msra.mxu0 %v4055
        %4870 = vmatpush.msra.mxu0 %v4054
        %4871 = vmatpush.msra.mxu0 %v4053
        %4872 = vmatpush.msra.mxu0 %v4052
        %4873 = vmatpush.msra.mxu0 %v4051
        %4874 = vmatpush.msra.mxu0 %v4050
        %4875 = vmatpush.msra.mxu0 %v4049
        %4876 = vmatpush.msra.mxu0 %v4048
        %4877 = vmatpush.msra.mxu0 %v4047
        %4878 = vmatpush.msra.mxu0 %v4046
        %4879 = vmatpush.msra.mxu0 %v4045
        %4880 = vmatpush.msra.mxu0 %v4044
        %4881 = vmatpush.msra.mxu0 %v4043
        %4882 = vmatpush.msra.mxu0 %v4042
        %4883 = vmatpush.msra.mxu0 %v4041
        %4884 = vmatmul.f32.gmra.mxu0 %v3865
        %v4885 = vpop.f32.mrf.mxu0
        %v4886 = vadd.f32 %v4773, %v4885
        %4887 = vmatmul.f32.gmra.mxu0 %v3866
        %v4888 = vpop.f32.mrf.mxu0
        %v4889 = vadd.f32 %v4776, %v4888
        %4890 = vmatmul.f32.gmra.mxu0 %v3867
        %v4891 = vpop.f32.mrf.mxu0
        %v4892 = vadd.f32 %v4779, %v4891
        %4893 = vmatmul.f32.gmra.mxu0 %v3868
        %v4894 = vpop.f32.mrf.mxu0
        %v4895 = vadd.f32 %v4782, %v4894
        %4896 = vmatmul.f32.gmra.mxu0 %v3869
        %v4897 = vpop.f32.mrf.mxu0
        %v4898 = vadd.f32 %v4785, %v4897
        %4899 = vmatmul.f32.gmra.mxu0 %v3870
        %v4900 = vpop.f32.mrf.mxu0
        %v4901 = vadd.f32 %v4788, %v4900
        %4902 = vmatmul.f32.gmra.mxu0 %v3871
        %v4903 = vpop.f32.mrf.mxu0
        %v4904 = vadd.f32 %v4791, %v4903
        %4905 = vmatmul.f32.gmra.mxu0 %v3872
        %v4906 = vpop.f32.mrf.mxu0
        %v4907 = vadd.f32 %v4794, %v4906
        %4908 = vmatmul.f32.gmra.mxu0 %v3873
        %v4909 = vpop.f32.mrf.mxu0
        %v4910 = vadd.f32 %v4797, %v4909
        %4911 = vmatmul.f32.gmra.mxu0 %v3874
        %v4912 = vpop.f32.mrf.mxu0
        %v4913 = vadd.f32 %v4800, %v4912
        %4914 = vmatmul.f32.gmra.mxu0 %v3875
        %v4915 = vpop.f32.mrf.mxu0
        %v4916 = vadd.f32 %v4803, %v4915
        %4917 = vmatmul.f32.gmra.mxu0 %v3876
        %v4918 = vpop.f32.mrf.mxu0
        %v4919 = vadd.f32 %v4806, %v4918
        %4920 = vmatmul.f32.gmra.mxu0 %v3877
        %v4921 = vpop.f32.mrf.mxu0
        %v4922 = vadd.f32 %v4809, %v4921
        %4923 = vmatmul.f32.gmra.mxu0 %v3878
        %v4924 = vpop.f32.mrf.mxu0
        %v4925 = vadd.f32 %v4812, %v4924
        %4926 = vmatmul.f32.gmra.mxu0 %v3879
        %v4927 = vpop.f32.mrf.mxu0
        %v4928 = vadd.f32 %v4815, %v4927
        %4929 = vmatmul.f32.gmra.mxu0 %v3880
        %v4930 = vpop.f32.mrf.mxu0
        %v4931 = vadd.f32 %v4818, %v4930
        %4932 = vmatmul.f32.gmra.mxu0 %v3881
        %v4933 = vpop.f32.mrf.mxu0
        %v4934 = vadd.f32 %v4821, %v4933
        %4935 = vmatmul.f32.gmra.mxu0 %v3882
        %v4936 = vpop.f32.mrf.mxu0
        %v4937 = vadd.f32 %v4824, %v4936
        %4938 = vmatmul.f32.gmra.mxu0 %v3883
        %v4939 = vpop.f32.mrf.mxu0
        %v4940 = vadd.f32 %v4827, %v4939
        %4941 = vmatmul.f32.gmra.mxu0 %v3884
        %v4942 = vpop.f32.mrf.mxu0
        %v4943 = vadd.f32 %v4830, %v4942
        %4944 = vmatmul.f32.gmra.mxu0 %v3885
        %v4945 = vpop.f32.mrf.mxu0
        %v4946 = vadd.f32 %v4833, %v4945
        %4947 = vmatmul.f32.gmra.mxu0 %v3886
        %v4948 = vpop.f32.mrf.mxu0
        %v4949 = vadd.f32 %v4836, %v4948
        %4950 = vmatmul.f32.gmra.mxu0 %v3887
        %v4951 = vpop.f32.mrf.mxu0
        %v4952 = vadd.f32 %v4839, %v4951
        %4953 = vmatmul.f32.gmra.mxu0 %v3888
        %v4954 = vpop.f32.mrf.mxu0
        %v4955 = vadd.f32 %v4842, %v4954
        %4956 = vmatmul.f32.gmra.mxu0 %v3889
        %v4957 = vpop.f32.mrf.mxu0
        %v4958 = vadd.f32 %v4845, %v4957
        %4959 = vmatmul.f32.gmra.mxu0 %v3890
        %v4960 = vpop.f32.mrf.mxu0
        %v4961 = vadd.f32 %v4848, %v4960
        %4962 = vmatmul.f32.gmra.mxu0 %v3891
        %v4963 = vpop.f32.mrf.mxu0
        %v4964 = vadd.f32 %v4851, %v4963
        %4965 = vmatmul.f32.gmra.mxu0 %v3892
        %v4966 = vpop.f32.mrf.mxu0
        %v4967 = vadd.f32 %v4854, %v4966
        %4968 = vmatmul.f32.gmra.mxu0 %v3893
        %v4969 = vpop.f32.mrf.mxu0
        %v4970 = vadd.f32 %v4857, %v4969
        %4971 = vmatmul.f32.gmra.mxu0 %v3894
        %v4972 = vpop.f32.mrf.mxu0
        %v4973 = vadd.f32 %v4860, %v4972
        %4974 = vmatmul.f32.gmra.mxu0 %v3895
        %v4975 = vpop.f32.mrf.mxu0
        %v4976 = vadd.f32 %v4863, %v4975
        %4977 = vmatmul.f32.gmra.mxu0 %v3896
        %v4978 = vpop.f32.mrf.mxu0
        %v4979 = vadd.f32 %v4866, %v4978
        %4980 = vdwg.mxu0
        %4981 = vmatpush.msra.mxu0 %v4072
        %4982 = vmatpush.msra.mxu0 %v4071
        %4983 = vmatpush.msra.mxu0 %v4070
        %4984 = vmatpush.msra.mxu0 %v4069
        %4985 = vmatpush.msra.mxu0 %v4068
        %4986 = vmatpush.msra.mxu0 %v4067
        %4987 = vmatpush.msra.mxu0 %v4066
        %4988 = vmatpush.msra.mxu0 %v4065
        %4989 = vmatpush.msra.mxu0 %v4064
        %4990 = vmatpush.msra.mxu0 %v4063
        %4991 = vmatpush.msra.mxu0 %v4062
        %4992 = vmatpush.msra.mxu0 %v4061
        %4993 = vmatpush.msra.mxu0 %v4060
        %4994 = vmatpush.msra.mxu0 %v4059
        %4995 = vmatpush.msra.mxu0 %v4058
        %4996 = vmatpush.msra.mxu0 %v4057
        %4997 = vmatmul.f32.gmra.mxu0 %v3897
        %v4998 = vpop.f32.mrf.mxu0
        %v4999 = vadd.f32 %v4886, %v4998
        %5000 = vmatmul.f32.gmra.mxu0 %v3898
        %v5001 = vpop.f32.mrf.mxu0
        %v5002 = vadd.f32 %v4889, %v5001
        %5003 = vmatmul.f32.gmra.mxu0 %v3899
        %v5004 = vpop.f32.mrf.mxu0
        %v5005 = vadd.f32 %v4892, %v5004
        %5006 = vmatmul.f32.gmra.mxu0 %v3900
        %v5007 = vpop.f32.mrf.mxu0
        %v5008 = vadd.f32 %v4895, %v5007
        %5009 = vmatmul.f32.gmra.mxu0 %v3901
        %v5010 = vpop.f32.mrf.mxu0
        %v5011 = vadd.f32 %v4898, %v5010
        %5012 = vmatmul.f32.gmra.mxu0 %v3902
        %v5013 = vpop.f32.mrf.mxu0
        %v5014 = vadd.f32 %v4901, %v5013
        %5015 = vmatmul.f32.gmra.mxu0 %v3903
        %v5016 = vpop.f32.mrf.mxu0
        %v5017 = vadd.f32 %v4904, %v5016
        %5018 = vmatmul.f32.gmra.mxu0 %v3904
        %v5019 = vpop.f32.mrf.mxu0
        %v5020 = vadd.f32 %v4907, %v5019
        %5021 = vmatmul.f32.gmra.mxu0 %v3905
        %v5022 = vpop.f32.mrf.mxu0
        %v5023 = vadd.f32 %v4910, %v5022
        %5024 = vmatmul.f32.gmra.mxu0 %v3906
        %v5025 = vpop.f32.mrf.mxu0
        %v5026 = vadd.f32 %v4913, %v5025
        %5027 = vmatmul.f32.gmra.mxu0 %v3907
        %v5028 = vpop.f32.mrf.mxu0
        %v5029 = vadd.f32 %v4916, %v5028
        %5030 = vmatmul.f32.gmra.mxu0 %v3908
        %v5031 = vpop.f32.mrf.mxu0
        %v5032 = vadd.f32 %v4919, %v5031
        %5033 = vmatmul.f32.gmra.mxu0 %v3909
        %v5034 = vpop.f32.mrf.mxu0
        %v5035 = vadd.f32 %v4922, %v5034
        %5036 = vmatmul.f32.gmra.mxu0 %v3910
        %v5037 = vpop.f32.mrf.mxu0
        %v5038 = vadd.f32 %v4925, %v5037
        %5039 = vmatmul.f32.gmra.mxu0 %v3911
        %v5040 = vpop.f32.mrf.mxu0
        %v5041 = vadd.f32 %v4928, %v5040
        %5042 = vmatmul.f32.gmra.mxu0 %v3912
        %v5043 = vpop.f32.mrf.mxu0
        %v5044 = vadd.f32 %v4931, %v5043
        %5045 = vmatmul.f32.gmra.mxu0 %v3913
        %v5046 = vpop.f32.mrf.mxu0
        %v5047 = vadd.f32 %v4934, %v5046
        %5048 = vmatmul.f32.gmra.mxu0 %v3914
        %v5049 = vpop.f32.mrf.mxu0
        %v5050 = vadd.f32 %v4937, %v5049
        %5051 = vmatmul.f32.gmra.mxu0 %v3915
        %v5052 = vpop.f32.mrf.mxu0
        %v5053 = vadd.f32 %v4940, %v5052
        %5054 = vmatmul.f32.gmra.mxu0 %v3916
        %v5055 = vpop.f32.mrf.mxu0
        %v5056 = vadd.f32 %v4943, %v5055
        %5057 = vmatmul.f32.gmra.mxu0 %v3917
        %v5058 = vpop.f32.mrf.mxu0
        %v5059 = vadd.f32 %v4946, %v5058
        %5060 = vmatmul.f32.gmra.mxu0 %v3918
        %v5061 = vpop.f32.mrf.mxu0
        %v5062 = vadd.f32 %v4949, %v5061
        %5063 = vmatmul.f32.gmra.mxu0 %v3919
        %v5064 = vpop.f32.mrf.mxu0
        %v5065 = vadd.f32 %v4952, %v5064
        %5066 = vmatmul.f32.gmra.mxu0 %v3920
        %v5067 = vpop.f32.mrf.mxu0
        %v5068 = vadd.f32 %v4955, %v5067
        %5069 = vmatmul.f32.gmra.mxu0 %v3921
        %v5070 = vpop.f32.mrf.mxu0
        %v5071 = vadd.f32 %v4958, %v5070
        %5072 = vmatmul.f32.gmra.mxu0 %v3922
        %v5073 = vpop.f32.mrf.mxu0
        %v5074 = vadd.f32 %v4961, %v5073
        %5075 = vmatmul.f32.gmra.mxu0 %v3923
        %v5076 = vpop.f32.mrf.mxu0
        %v5077 = vadd.f32 %v4964, %v5076
        %5078 = vmatmul.f32.gmra.mxu0 %v3924
        %v5079 = vpop.f32.mrf.mxu0
        %v5080 = vadd.f32 %v4967, %v5079
        %5081 = vmatmul.f32.gmra.mxu0 %v3925
        %v5082 = vpop.f32.mrf.mxu0
        %v5083 = vadd.f32 %v4970, %v5082
        %5084 = vmatmul.f32.gmra.mxu0 %v3926
        %v5085 = vpop.f32.mrf.mxu0
        %v5086 = vadd.f32 %v4973, %v5085
        %5087 = vmatmul.f32.gmra.mxu0 %v3927
        %v5088 = vpop.f32.mrf.mxu0
        %v5089 = vadd.f32 %v4976, %v5088
        %5090 = vmatmul.f32.gmra.mxu0 %v3928
        %v5091 = vpop.f32.mrf.mxu0
        %v5092 = vadd.f32 %v4979, %v5091
        %5093 = vdwg.mxu0
        %v5094 = vadd.f32 %v4999, %v5002
        %v5095 = vadd.f32 %v5094, %v5005
        %v5096 = vadd.f32 %v5095, %v5008
        %v5097 = vadd.f32 %v5096, %v5011
        %v5098 = vadd.f32 %v5097, %v5014
        %v5099 = vadd.f32 %v5098, %v5017
        %v5100 = vadd.f32 %v5099, %v5020
        %v5101 = vadd.f32 %v5100, %v5023
        %v5102 = vadd.f32 %v5101, %v5026
        %v5103 = vadd.f32 %v5102, %v5029
        %v5104 = vadd.f32 %v5103, %v5032
        %v5105 = vadd.f32 %v5104, %v5035
        %v5106 = vadd.f32 %v5105, %v5038
        %v5107 = vadd.f32 %v5106, %v5041
        %v5108 = vadd.f32 %v5107, %v5044
        %v5109 = vadd.f32 %v5108, %v5047
        %v5110 = vadd.f32 %v5109, %v5050
        %v5111 = vadd.f32 %v5110, %v5053
        %v5112 = vadd.f32 %v5111, %v5056
        %v5113 = vadd.f32 %v5112, %v5059
        %v5114 = vadd.f32 %v5113, %v5062
        %v5115 = vadd.f32 %v5114, %v5065
        %v5116 = vadd.f32 %v5115, %v5068
        %v5117 = vadd.f32 %v5116, %v5071
        %v5118 = vadd.f32 %v5117, %v5074
        %v5119 = vadd.f32 %v5118, %v5077
        %v5120 = vadd.f32 %v5119, %v5080
        %v5121 = vadd.f32 %v5120, %v5083
        %v5122 = vadd.f32 %v5121, %v5086
        %v5123 = vadd.f32 %v5122, %v5089
        %v5124 = vadd.f32 %v5123, %v5092
        %5125 = vadd.xlane.f32.xlu0 %v5124
        %v5126 = vpop.xlane.xlu0 %5125
        %v5127 = vrot.slane %v5126, 4
        %v5128 = vadd.f32 %v5126, %v5127
        %v5129 = vrot.slane %v5128, 2
        %v5130 = vadd.f32 %v5128, %v5129
        %v5131 = vrot.slane %v5130, 1
        %v5132 = vadd.f32 %v5130, %v5131
        %s5133 = vtos %v5132
        %s5134 = smul.f32 %s5133, 0.00048828125
        %v5135 = vmul.f32 %v4999, %v4999
        %v5136 = vmul.f32 %v5002, %v5002
        %v5137 = vmul.f32 %v5005, %v5005
        %v5138 = vmul.f32 %v5008, %v5008
        %v5139 = vmul.f32 %v5011, %v5011
        %v5140 = vmul.f32 %v5014, %v5014
        %v5141 = vmul.f32 %v5017, %v5017
        %v5142 = vmul.f32 %v5020, %v5020
        %v5143 = vmul.f32 %v5023, %v5023
        %v5144 = vmul.f32 %v5026, %v5026
        %v5145 = vmul.f32 %v5029, %v5029
        %v5146 = vmul.f32 %v5032, %v5032
        %v5147 = vmul.f32 %v5035, %v5035
        %v5148 = vmul.f32 %v5038, %v5038
        %v5149 = vmul.f32 %v5041, %v5041
        %v5150 = vmul.f32 %v5044, %v5044
        %v5151 = vmul.f32 %v5047, %v5047
        %v5152 = vmul.f32 %v5050, %v5050
        %v5153 = vmul.f32 %v5053, %v5053
        %v5154 = vmul.f32 %v5056, %v5056
        %v5155 = vmul.f32 %v5059, %v5059
        %v5156 = vmul.f32 %v5062, %v5062
        %v5157 = vmul.f32 %v5065, %v5065
        %v5158 = vmul.f32 %v5068, %v5068
        %v5159 = vmul.f32 %v5071, %v5071
        %v5160 = vmul.f32 %v5074, %v5074
        %v5161 = vmul.f32 %v5077, %v5077
        %v5162 = vmul.f32 %v5080, %v5080
        %v5163 = vmul.f32 %v5083, %v5083
        %v5164 = vmul.f32 %v5086, %v5086
        %v5165 = vmul.f32 %v5089, %v5089
        %v5166 = vmul.f32 %v5092, %v5092
        %v5167 = vadd.f32 %v5135, %v5136
        %v5168 = vadd.f32 %v5167, %v5137
        %v5169 = vadd.f32 %v5168, %v5138
        %v5170 = vadd.f32 %v5169, %v5139
        %v5171 = vadd.f32 %v5170, %v5140
        %v5172 = vadd.f32 %v5171, %v5141
        %v5173 = vadd.f32 %v5172, %v5142
        %v5174 = vadd.f32 %v5173, %v5143
        %v5175 = vadd.f32 %v5174, %v5144
        %v5176 = vadd.f32 %v5175, %v5145
        %v5177 = vadd.f32 %v5176, %v5146
        %v5178 = vadd.f32 %v5177, %v5147
        %v5179 = vadd.f32 %v5178, %v5148
        %v5180 = vadd.f32 %v5179, %v5149
        %v5181 = vadd.f32 %v5180, %v5150
        %v5182 = vadd.f32 %v5181, %v5151
        %v5183 = vadd.f32 %v5182, %v5152
        %v5184 = vadd.f32 %v5183, %v5153
        %v5185 = vadd.f32 %v5184, %v5154
        %v5186 = vadd.f32 %v5185, %v5155
        %v5187 = vadd.f32 %v5186, %v5156
        %v5188 = vadd.f32 %v5187, %v5157
        %v5189 = vadd.f32 %v5188, %v5158
        %v5190 = vadd.f32 %v5189, %v5159
        %v5191 = vadd.f32 %v5190, %v5160
        %v5192 = vadd.f32 %v5191, %v5161
        %v5193 = vadd.f32 %v5192, %v5162
        %v5194 = vadd.f32 %v5193, %v5163
        %v5195 = vadd.f32 %v5194, %v5164
        %v5196 = vadd.f32 %v5195, %v5165
        %v5197 = vadd.f32 %v5196, %v5166
        %5198 = vadd.xlane.f32.xlu0 %v5197
        %v5199 = vpop.xlane.xlu0 %5198
        %v5200 = vrot.slane %v5199, 4
        %v5201 = vadd.f32 %v5199, %v5200
        %v5202 = vrot.slane %v5201, 2
        %v5203 = vadd.f32 %v5201, %v5202
        %v5204 = vrot.slane %v5203, 1
        %v5205 = vadd.f32 %v5203, %v5204
        %s5206 = vtos %v5205
        %s5207 = smul.f32 %s5206, 0.00048828125
        %s5208 = smul.f32 %s5134, %s5134
        %s5209 = ssub.f32 %s5207, %s5208
        %s5210 = sadd.f32 %s5209, 1e-05
        %v5211 = vstv %s5210
        %v5212 = vrsqrt.pop %v5211
        %v5213 = vmul.f32 %v5212, %v5211
        %v5214 = vmul.f32 %v5213, %v5212
        %v5215 = vmul.f32 0.5, %v5214
        %v5216 = vsub.f32 1.5, %v5215
        %v5217 = vmul.f32 %v5212, %v5216
        %vm5218 = vweird.f32 %v5211
        %vm5219 = vweird.f32 %v5212
        %vm5220 = vmor %vm5218, %vm5219
        %v5221 = vsel %vm5220, %v5212, %v5217
        %s5222 = vtos %v5221
        %v5223 = vld [vmem:[%s7] sm:$0x1]
        %v5224 = vstv %s5222
        %v5225 = vmul.f32 %v5223, %v5224
        %v5226 = vld [vmem:[%s8] sm:$0x1]
        %v5227 = vstv %s5134
        %v5228 = vmul.f32 %v5227, %v5225
        %v5229 = vsub.f32 %v5226, %v5228
        %v5231 = vperm.slane %v5225, 0
        %v5233 = vmul.f32 %v4999, %v5231
        %v5234 = vmul.f32 %v5002, %v5231
        %v5235 = vmul.f32 %v5005, %v5231
        %v5236 = vmul.f32 %v5008, %v5231
        %v5237 = vmul.f32 %v5011, %v5231
        %v5238 = vmul.f32 %v5014, %v5231
        %v5239 = vmul.f32 %v5017, %v5231
        %v5240 = vmul.f32 %v5020, %v5231
        %v5241 = vmul.f32 %v5023, %v5231
        %v5242 = vmul.f32 %v5026, %v5231
        %v5243 = vmul.f32 %v5029, %v5231
        %v5244 = vmul.f32 %v5032, %v5231
        %v5245 = vmul.f32 %v5035, %v5231
        %v5246 = vmul.f32 %v5038, %v5231
        %v5247 = vmul.f32 %v5041, %v5231
        %v5248 = vmul.f32 %v5044, %v5231
        %v5249 = vmul.f32 %v5047, %v5231
        %v5250 = vmul.f32 %v5050, %v5231
        %v5251 = vmul.f32 %v5053, %v5231
        %v5252 = vmul.f32 %v5056, %v5231
        %v5253 = vmul.f32 %v5059, %v5231
        %v5254 = vmul.f32 %v5062, %v5231
        %v5255 = vmul.f32 %v5065, %v5231
        %v5256 = vmul.f32 %v5068, %v5231
        %v5257 = vmul.f32 %v5071, %v5231
        %v5258 = vmul.f32 %v5074, %v5231
        %v5259 = vmul.f32 %v5077, %v5231
        %v5260 = vmul.f32 %v5080, %v5231
        %v5261 = vmul.f32 %v5083, %v5231
        %v5262 = vmul.f32 %v5086, %v5231
        %v5263 = vmul.f32 %v5089, %v5231
        %v5264 = vmul.f32 %v5092, %v5231
        %v5266 = vperm.slane %v5229, 0
        %v5268 = vadd.f32 %v5233, %v5266
        %v5269 = vadd.f32 %v5234, %v5266
        %v5270 = vadd.f32 %v5235, %v5266
        %v5271 = vadd.f32 %v5236, %v5266
        %v5272 = vadd.f32 %v5237, %v5266
        %v5273 = vadd.f32 %v5238, %v5266
        %v5274 = vadd.f32 %v5239, %v5266
        %v5275 = vadd.f32 %v5240, %v5266
        %v5276 = vadd.f32 %v5241, %v5266
        %v5277 = vadd.f32 %v5242, %v5266
        %v5278 = vadd.f32 %v5243, %v5266
        %v5279 = vadd.f32 %v5244, %v5266
        %v5280 = vadd.f32 %v5245, %v5266
        %v5281 = vadd.f32 %v5246, %v5266
        %v5282 = vadd.f32 %v5247, %v5266
        %v5283 = vadd.f32 %v5248, %v5266
        %v5284 = vadd.f32 %v5249, %v5266
        %v5285 = vadd.f32 %v5250, %v5266
        %v5286 = vadd.f32 %v5251, %v5266
        %v5287 = vadd.f32 %v5252, %v5266
        %v5288 = vadd.f32 %v5253, %v5266
        %v5289 = vadd.f32 %v5254, %v5266
        %v5290 = vadd.f32 %v5255, %v5266
        %v5291 = vadd.f32 %v5256, %v5266
        %v5292 = vadd.f32 %v5257, %v5266
        %v5293 = vadd.f32 %v5258, %v5266
        %v5294 = vadd.f32 %v5259, %v5266
        %v5295 = vadd.f32 %v5260, %v5266
        %v5296 = vadd.f32 %v5261, %v5266
        %v5297 = vadd.f32 %v5262, %v5266
        %v5298 = vadd.f32 %v5263, %v5266
        %v5299 = vadd.f32 %v5264, %v5266
        %v5300 = vmul.f32 %v5268, 0.5
        %v5301 = vmul.f32 %v5269, 0.5
        %v5302 = vmul.f32 %v5270, 0.5
        %v5303 = vmul.f32 %v5271, 0.5
        %v5304 = vmul.f32 %v5272, 0.5
        %v5305 = vmul.f32 %v5273, 0.5
        %v5306 = vmul.f32 %v5274, 0.5
        %v5307 = vmul.f32 %v5275, 0.5
        %v5308 = vmul.f32 %v5276, 0.5
        %v5309 = vmul.f32 %v5277, 0.5
        %v5310 = vmul.f32 %v5278, 0.5
        %v5311 = vmul.f32 %v5279, 0.5
        %v5312 = vmul.f32 %v5280, 0.5
        %v5313 = vmul.f32 %v5281, 0.5
        %v5314 = vmul.f32 %v5282, 0.5
        %v5315 = vmul.f32 %v5283, 0.5
        %v5316 = vmul.f32 %v5284, 0.5
        %v5317 = vmul.f32 %v5285, 0.5
        %v5318 = vmul.f32 %v5286, 0.5
        %v5319 = vmul.f32 %v5287, 0.5
        %v5320 = vmul.f32 %v5288, 0.5
        %v5321 = vmul.f32 %v5289, 0.5
        %v5322 = vmul.f32 %v5290, 0.5
        %v5323 = vmul.f32 %v5291, 0.5
        %v5324 = vmul.f32 %v5292, 0.5
        %v5325 = vmul.f32 %v5293, 0.5
        %v5326 = vmul.f32 %v5294, 0.5
        %v5327 = vmul.f32 %v5295, 0.5
        %v5328 = vmul.f32 %v5296, 0.5
        %v5329 = vmul.f32 %v5297, 0.5
        %v5330 = vmul.f32 %v5298, 0.5
        %v5331 = vmul.f32 %v5299, 0.5
        %v5332 = vmul.f32 %v5268, 0.70710677
        %v5333 = vmul.f32 %v5269, 0.70710677
        %v5334 = vmul.f32 %v5270, 0.70710677
        %v5335 = vmul.f32 %v5271, 0.70710677
        %v5336 = vmul.f32 %v5272, 0.70710677
        %v5337 = vmul.f32 %v5273, 0.70710677
        %v5338 = vmul.f32 %v5274, 0.70710677
        %v5339 = vmul.f32 %v5275, 0.70710677
        %v5340 = vmul.f32 %v5276, 0.70710677
        %v5341 = vmul.f32 %v5277, 0.70710677
        %v5342 = vmul.f32 %v5278, 0.70710677
        %v5343 = vmul.f32 %v5279, 0.70710677
        %v5344 = vmul.f32 %v5280, 0.70710677
        %v5345 = vmul.f32 %v5281, 0.70710677
        %v5346 = vmul.f32 %v5282, 0.70710677
        %v5347 = vmul.f32 %v5283, 0.70710677
        %v5348 = vmul.f32 %v5284, 0.70710677
        %v5349 = vmul.f32 %v5285, 0.70710677
        %v5350 = vmul.f32 %v5286, 0.70710677
        %v5351 = vmul.f32 %v5287, 0.70710677
        %v5352 = vmul.f32 %v5288, 0.70710677
        %v5353 = vmul.f32 %v5289, 0.70710677
        %v5354 = vmul.f32 %v5290, 0.70710677
        %v5355 = vmul.f32 %v5291, 0.70710677
        %v5356 = vmul.f32 %v5292, 0.70710677
        %v5357 = vmul.f32 %v5293, 0.70710677
        %v5358 = vmul.f32 %v5294, 0.70710677
        %v5359 = vmul.f32 %v5295, 0.70710677
        %v5360 = vmul.f32 %v5296, 0.70710677
        %v5361 = vmul.f32 %v5297, 0.70710677
        %v5362 = vmul.f32 %v5298, 0.70710677
        %v5363 = vmul.f32 %v5299, 0.70710677
        %v5364 = vmul.f32 %v5332, %v5332
        %v5365 = vmin.f32 16.0, %v5364
        %v5366 = vmul.f32 %v5365, 2.1237322e-06
        %v5367 = vadd.f32 %v5366, 0.00028619796
        %v5368 = vmul.f32 %v5365, %v5367
        %v5369 = vadd.f32 %v5368, 0.0036580483
        %v5370 = vmul.f32 %v5365, %v5369
        %v5371 = vadd.f32 %v5370, 0.05243302
        %v5372 = vmul.f32 %v5365, %v5371
        %v5373 = vadd.f32 %v5372, 0.18741608
        %v5374 = vmul.f32 %v5365, %v5373
        %v5375 = vadd.f32 %v5374, 1.1283791
        %v5376 = vmul.f32 %v5332, %v5375
        %v5377 = vmul.f32 %v5365, 3.8918573e-05
        %v5378 = vadd.f32 %v5377, 0.001143296
        %v5379 = vmul.f32 %v5365, %v5378
        %v5380 = vadd.f32 %v5379, 0.014752088
        %v5381 = vmul.f32 %v5365, %v5380
        %v5382 = vadd.f32 %v5381, 0.112945676
        %v5383 = vmul.f32 %v5365, %v5382
        %v5384 = vadd.f32 %v5383, 0.4994258
        %v5385 = vmul.f32 %v5365, %v5384
        %v5386 = vadd.f32 %v5385, 1.0
        %v5387 = vrcp.pop %v5386
        %v5388 = vmul.f32 %v5386, %v5387
        %v5389 = vsub.f32 1.0, %v5388
        %v5390 = vmul.f32 %v5387, %v5389
        %v5391 = vadd.f32 %v5387, %v5390
        %vm5392 = vweird.f32 %v5386
        %vm5393 = vweird.f32 %v5387
        %vm5394 = vmor %vm5392, %vm5393
        %v5395 = vsel %vm5394, %v5387, %v5391
        %v5396 = vand.u32 2147483647, %v5386
        %vm5397 = vcmp.eq.f32.partialorder %v5396, 8.507059e+37
        %v5398 = vand.u32 %v5386, 2147483648
        %v5399 = vor.u32 1.1754944e-38, %v5398
        %v5400 = vsel %vm5397, %v5399, %v5395
        %v5401 = vmul.f32 %v5376, %v5400
        %v5402 = vmin.f32 %v5401, 1.0
        %v5403 = vmax.f32 %v5402, -1.0
        %v5404 = vmul.f32 %v5333, %v5333
        %v5405 = vmin.f32 16.0, %v5404
        %v5406 = vmul.f32 %v5405, 2.1237322e-06
        %v5407 = vadd.f32 %v5406, 0.00028619796
        %v5408 = vmul.f32 %v5405, %v5407
        %v5409 = vadd.f32 %v5408, 0.0036580483
        %v5410 = vmul.f32 %v5405, %v5409
        %v5411 = vadd.f32 %v5410, 0.05243302
        %v5412 = vmul.f32 %v5405, %v5411
        %v5413 = vadd.f32 %v5412, 0.18741608
        %v5414 = vmul.f32 %v5405, %v5413
        %v5415 = vadd.f32 %v5414, 1.1283791
        %v5416 = vmul.f32 %v5333, %v5415
        %v5417 = vmul.f32 %v5405, 3.8918573e-05
        %v5418 = vadd.f32 %v5417, 0.001143296
        %v5419 = vmul.f32 %v5405, %v5418
        %v5420 = vadd.f32 %v5419, 0.014752088
        %v5421 = vmul.f32 %v5405, %v5420
        %v5422 = vadd.f32 %v5421, 0.112945676
        %v5423 = vmul.f32 %v5405, %v5422
        %v5424 = vadd.f32 %v5423, 0.4994258
        %v5425 = vmul.f32 %v5405, %v5424
        %v5426 = vadd.f32 %v5425, 1.0
        %v5427 = vrcp.pop %v5426
        %v5428 = vmul.f32 %v5426, %v5427
        %v5429 = vsub.f32 1.0, %v5428
        %v5430 = vmul.f32 %v5427, %v5429
        %v5431 = vadd.f32 %v5427, %v5430
        %vm5432 = vweird.f32 %v5426
        %vm5433 = vweird.f32 %v5427
        %vm5434 = vmor %vm5432, %vm5433
        %v5435 = vsel %vm5434, %v5427, %v5431
        %v5436 = vand.u32 2147483647, %v5426
        %vm5437 = vcmp.eq.f32.partialorder %v5436, 8.507059e+37
        %v5438 = vand.u32 %v5426, 2147483648
        %v5439 = vor.u32 1.1754944e-38, %v5438
        %v5440 = vsel %vm5437, %v5439, %v5435
        %v5441 = vmul.f32 %v5416, %v5440
        %v5442 = vmin.f32 %v5441, 1.0
        %v5443 = vmax.f32 %v5442, -1.0
        %v5444 = vmul.f32 %v5334, %v5334
        %v5445 = vmin.f32 16.0, %v5444
        %v5446 = vmul.f32 %v5445, 2.1237322e-06
        %v5447 = vadd.f32 %v5446, 0.00028619796
        %v5448 = vmul.f32 %v5445, %v5447
        %v5449 = vadd.f32 %v5448, 0.0036580483
        %v5450 = vmul.f32 %v5445, %v5449
        %v5451 = vadd.f32 %v5450, 0.05243302
        %v5452 = vmul.f32 %v5445, %v5451
        %v5453 = vadd.f32 %v5452, 0.18741608
        %v5454 = vmul.f32 %v5445, %v5453
        %v5455 = vadd.f32 %v5454, 1.1283791
        %v5456 = vmul.f32 %v5334, %v5455
        %v5457 = vmul.f32 %v5445, 3.8918573e-05
        %v5458 = vadd.f32 %v5457, 0.001143296
        %v5459 = vmul.f32 %v5445, %v5458
        %v5460 = vadd.f32 %v5459, 0.014752088
        %v5461 = vmul.f32 %v5445, %v5460
        %v5462 = vadd.f32 %v5461, 0.112945676
        %v5463 = vmul.f32 %v5445, %v5462
        %v5464 = vadd.f32 %v5463, 0.4994258
        %v5465 = vmul.f32 %v5445, %v5464
        %v5466 = vadd.f32 %v5465, 1.0
        %v5467 = vrcp.pop %v5466
        %v5468 = vmul.f32 %v5466, %v5467
        %v5469 = vsub.f32 1.0, %v5468
        %v5470 = vmul.f32 %v5467, %v5469
        %v5471 = vadd.f32 %v5467, %v5470
        %vm5472 = vweird.f32 %v5466
        %vm5473 = vweird.f32 %v5467
        %vm5474 = vmor %vm5472, %vm5473
        %v5475 = vsel %vm5474, %v5467, %v5471
        %v5476 = vand.u32 2147483647, %v5466
        %vm5477 = vcmp.eq.f32.partialorder %v5476, 8.507059e+37
        %v5478 = vand.u32 %v5466, 2147483648
        %v5479 = vor.u32 1.1754944e-38, %v5478
        %v5480 = vsel %vm5477, %v5479, %v5475
        %v5481 = vmul.f32 %v5456, %v5480
        %v5482 = vmin.f32 %v5481, 1.0
        %v5483 = vmax.f32 %v5482, -1.0
        %v5484 = vmul.f32 %v5335, %v5335
        %v5485 = vmin.f32 16.0, %v5484
        %v5486 = vmul.f32 %v5485, 2.1237322e-06
        %v5487 = vadd.f32 %v5486, 0.00028619796
        %v5488 = vmul.f32 %v5485, %v5487
        %v5489 = vadd.f32 %v5488, 0.0036580483
        %v5490 = vmul.f32 %v5485, %v5489
        %v5491 = vadd.f32 %v5490, 0.05243302
        %v5492 = vmul.f32 %v5485, %v5491
        %v5493 = vadd.f32 %v5492, 0.18741608
        %v5494 = vmul.f32 %v5485, %v5493
        %v5495 = vadd.f32 %v5494, 1.1283791
        %v5496 = vmul.f32 %v5335, %v5495
        %v5497 = vmul.f32 %v5485, 3.8918573e-05
        %v5498 = vadd.f32 %v5497, 0.001143296
        %v5499 = vmul.f32 %v5485, %v5498
        %v5500 = vadd.f32 %v5499, 0.014752088
        %v5501 = vmul.f32 %v5485, %v5500
        %v5502 = vadd.f32 %v5501, 0.112945676
        %v5503 = vmul.f32 %v5485, %v5502
        %v5504 = vadd.f32 %v5503, 0.4994258
        %v5505 = vmul.f32 %v5485, %v5504
        %v5506 = vadd.f32 %v5505, 1.0
        %v5507 = vrcp.pop %v5506
        %v5508 = vmul.f32 %v5506, %v5507
        %v5509 = vsub.f32 1.0, %v5508
        %v5510 = vmul.f32 %v5507, %v5509
        %v5511 = vadd.f32 %v5507, %v5510
        %vm5512 = vweird.f32 %v5506
        %vm5513 = vweird.f32 %v5507
        %vm5514 = vmor %vm5512, %vm5513
        %v5515 = vsel %vm5514, %v5507, %v5511
        %v5516 = vand.u32 2147483647, %v5506
        %vm5517 = vcmp.eq.f32.partialorder %v5516, 8.507059e+37
        %v5518 = vand.u32 %v5506, 2147483648
        %v5519 = vor.u32 1.1754944e-38, %v5518
        %v5520 = vsel %vm5517, %v5519, %v5515
        %v5521 = vmul.f32 %v5496, %v5520
        %v5522 = vmin.f32 %v5521, 1.0
        %v5523 = vmax.f32 %v5522, -1.0
        %v5524 = vmul.f32 %v5336, %v5336
        %v5525 = vmin.f32 16.0, %v5524
        %v5526 = vmul.f32 %v5525, 2.1237322e-06
        %v5527 = vadd.f32 %v5526, 0.00028619796
        %v5528 = vmul.f32 %v5525, %v5527
        %v5529 = vadd.f32 %v5528, 0.0036580483
        %v5530 = vmul.f32 %v5525, %v5529
        %v5531 = vadd.f32 %v5530, 0.05243302
        %v5532 = vmul.f32 %v5525, %v5531
        %v5533 = vadd.f32 %v5532, 0.18741608
        %v5534 = vmul.f32 %v5525, %v5533
        %v5535 = vadd.f32 %v5534, 1.1283791
        %v5536 = vmul.f32 %v5336, %v5535
        %v5537 = vmul.f32 %v5525, 3.8918573e-05
        %v5538 = vadd.f32 %v5537, 0.001143296
        %v5539 = vmul.f32 %v5525, %v5538
        %v5540 = vadd.f32 %v5539, 0.014752088
        %v5541 = vmul.f32 %v5525, %v5540
        %v5542 = vadd.f32 %v5541, 0.112945676
        %v5543 = vmul.f32 %v5525, %v5542
        %v5544 = vadd.f32 %v5543, 0.4994258
        %v5545 = vmul.f32 %v5525, %v5544
        %v5546 = vadd.f32 %v5545, 1.0
        %v5547 = vrcp.pop %v5546
        %v5548 = vmul.f32 %v5546, %v5547
        %v5549 = vsub.f32 1.0, %v5548
        %v5550 = vmul.f32 %v5547, %v5549
        %v5551 = vadd.f32 %v5547, %v5550
        %vm5552 = vweird.f32 %v5546
        %vm5553 = vweird.f32 %v5547
        %vm5554 = vmor %vm5552, %vm5553
        %v5555 = vsel %vm5554, %v5547, %v5551
        %v5556 = vand.u32 2147483647, %v5546
        %vm5557 = vcmp.eq.f32.partialorder %v5556, 8.507059e+37
        %v5558 = vand.u32 %v5546, 2147483648
        %v5559 = vor.u32 1.1754944e-38, %v5558
        %v5560 = vsel %vm5557, %v5559, %v5555
        %v5561 = vmul.f32 %v5536, %v5560
        %v5562 = vmin.f32 %v5561, 1.0
        %v5563 = vmax.f32 %v5562, -1.0
        %v5564 = vmul.f32 %v5337, %v5337
        %v5565 = vmin.f32 16.0, %v5564
        %v5566 = vmul.f32 %v5565, 2.1237322e-06
        %v5567 = vadd.f32 %v5566, 0.00028619796
        %v5568 = vmul.f32 %v5565, %v5567
        %v5569 = vadd.f32 %v5568, 0.0036580483
        %v5570 = vmul.f32 %v5565, %v5569
        %v5571 = vadd.f32 %v5570, 0.05243302
        %v5572 = vmul.f32 %v5565, %v5571
        %v5573 = vadd.f32 %v5572, 0.18741608
        %v5574 = vmul.f32 %v5565, %v5573
        %v5575 = vadd.f32 %v5574, 1.1283791
        %v5576 = vmul.f32 %v5337, %v5575
        %v5577 = vmul.f32 %v5565, 3.8918573e-05
        %v5578 = vadd.f32 %v5577, 0.001143296
        %v5579 = vmul.f32 %v5565, %v5578
        %v5580 = vadd.f32 %v5579, 0.014752088
        %v5581 = vmul.f32 %v5565, %v5580
        %v5582 = vadd.f32 %v5581, 0.112945676
        %v5583 = vmul.f32 %v5565, %v5582
        %v5584 = vadd.f32 %v5583, 0.4994258
        %v5585 = vmul.f32 %v5565, %v5584
        %v5586 = vadd.f32 %v5585, 1.0
        %v5587 = vrcp.pop %v5586
        %v5588 = vmul.f32 %v5586, %v5587
        %v5589 = vsub.f32 1.0, %v5588
        %v5590 = vmul.f32 %v5587, %v5589
        %v5591 = vadd.f32 %v5587, %v5590
        %vm5592 = vweird.f32 %v5586
        %vm5593 = vweird.f32 %v5587
        %vm5594 = vmor %vm5592, %vm5593
        %v5595 = vsel %vm5594, %v5587, %v5591
        %v5596 = vand.u32 2147483647, %v5586
        %vm5597 = vcmp.eq.f32.partialorder %v5596, 8.507059e+37
        %v5598 = vand.u32 %v5586, 2147483648
        %v5599 = vor.u32 1.1754944e-38, %v5598
        %v5600 = vsel %vm5597, %v5599, %v5595
        %v5601 = vmul.f32 %v5576, %v5600
        %v5602 = vmin.f32 %v5601, 1.0
        %v5603 = vmax.f32 %v5602, -1.0
        %v5604 = vmul.f32 %v5338, %v5338
        %v5605 = vmin.f32 16.0, %v5604
        %v5606 = vmul.f32 %v5605, 2.1237322e-06
        %v5607 = vadd.f32 %v5606, 0.00028619796
        %v5608 = vmul.f32 %v5605, %v5607
        %v5609 = vadd.f32 %v5608, 0.0036580483
        %v5610 = vmul.f32 %v5605, %v5609
        %v5611 = vadd.f32 %v5610, 0.05243302
        %v5612 = vmul.f32 %v5605, %v5611
        %v5613 = vadd.f32 %v5612, 0.18741608
        %v5614 = vmul.f32 %v5605, %v5613
        %v5615 = vadd.f32 %v5614, 1.1283791
        %v5616 = vmul.f32 %v5338, %v5615
        %v5617 = vmul.f32 %v5605, 3.8918573e-05
        %v5618 = vadd.f32 %v5617, 0.001143296
        %v5619 = vmul.f32 %v5605, %v5618
        %v5620 = vadd.f32 %v5619, 0.014752088
        %v5621 = vmul.f32 %v5605, %v5620
        %v5622 = vadd.f32 %v5621, 0.112945676
        %v5623 = vmul.f32 %v5605, %v5622
        %v5624 = vadd.f32 %v5623, 0.4994258
        %v5625 = vmul.f32 %v5605, %v5624
        %v5626 = vadd.f32 %v5625, 1.0
        %v5627 = vrcp.pop %v5626
        %v5628 = vmul.f32 %v5626, %v5627
        %v5629 = vsub.f32 1.0, %v5628
        %v5630 = vmul.f32 %v5627, %v5629
        %v5631 = vadd.f32 %v5627, %v5630
        %vm5632 = vweird.f32 %v5626
        %vm5633 = vweird.f32 %v5627
        %vm5634 = vmor %vm5632, %vm5633
        %v5635 = vsel %vm5634, %v5627, %v5631
        %v5636 = vand.u32 2147483647, %v5626
        %vm5637 = vcmp.eq.f32.partialorder %v5636, 8.507059e+37
        %v5638 = vand.u32 %v5626, 2147483648
        %v5639 = vor.u32 1.1754944e-38, %v5638
        %v5640 = vsel %vm5637, %v5639, %v5635
        %v5641 = vmul.f32 %v5616, %v5640
        %v5642 = vmin.f32 %v5641, 1.0
        %v5643 = vmax.f32 %v5642, -1.0
        %v5644 = vmul.f32 %v5339, %v5339
        %v5645 = vmin.f32 16.0, %v5644
        %v5646 = vmul.f32 %v5645, 2.1237322e-06
        %v5647 = vadd.f32 %v5646, 0.00028619796
        %v5648 = vmul.f32 %v5645, %v5647
        %v5649 = vadd.f32 %v5648, 0.0036580483
        %v5650 = vmul.f32 %v5645, %v5649
        %v5651 = vadd.f32 %v5650, 0.05243302
        %v5652 = vmul.f32 %v5645, %v5651
        %v5653 = vadd.f32 %v5652, 0.18741608
        %v5654 = vmul.f32 %v5645, %v5653
        %v5655 = vadd.f32 %v5654, 1.1283791
        %v5656 = vmul.f32 %v5339, %v5655
        %v5657 = vmul.f32 %v5645, 3.8918573e-05
        %v5658 = vadd.f32 %v5657, 0.001143296
        %v5659 = vmul.f32 %v5645, %v5658
        %v5660 = vadd.f32 %v5659, 0.014752088
        %v5661 = vmul.f32 %v5645, %v5660
        %v5662 = vadd.f32 %v5661, 0.112945676
        %v5663 = vmul.f32 %v5645, %v5662
        %v5664 = vadd.f32 %v5663, 0.4994258
        %v5665 = vmul.f32 %v5645, %v5664
        %v5666 = vadd.f32 %v5665, 1.0
        %v5667 = vrcp.pop %v5666
        %v5668 = vmul.f32 %v5666, %v5667
        %v5669 = vsub.f32 1.0, %v5668
        %v5670 = vmul.f32 %v5667, %v5669
        %v5671 = vadd.f32 %v5667, %v5670
        %vm5672 = vweird.f32 %v5666
        %vm5673 = vweird.f32 %v5667
        %vm5674 = vmor %vm5672, %vm5673
        %v5675 = vsel %vm5674, %v5667, %v5671
        %v5676 = vand.u32 2147483647, %v5666
        %vm5677 = vcmp.eq.f32.partialorder %v5676, 8.507059e+37
        %v5678 = vand.u32 %v5666, 2147483648
        %v5679 = vor.u32 1.1754944e-38, %v5678
        %v5680 = vsel %vm5677, %v5679, %v5675
        %v5681 = vmul.f32 %v5656, %v5680
        %v5682 = vmin.f32 %v5681, 1.0
        %v5683 = vmax.f32 %v5682, -1.0
        %v5684 = vmul.f32 %v5340, %v5340
        %v5685 = vmin.f32 16.0, %v5684
        %v5686 = vmul.f32 %v5685, 2.1237322e-06
        %v5687 = vadd.f32 %v5686, 0.00028619796
        %v5688 = vmul.f32 %v5685, %v5687
        %v5689 = vadd.f32 %v5688, 0.0036580483
        %v5690 = vmul.f32 %v5685, %v5689
        %v5691 = vadd.f32 %v5690, 0.05243302
        %v5692 = vmul.f32 %v5685, %v5691
        %v5693 = vadd.f32 %v5692, 0.18741608
        %v5694 = vmul.f32 %v5685, %v5693
        %v5695 = vadd.f32 %v5694, 1.1283791
        %v5696 = vmul.f32 %v5340, %v5695
        %v5697 = vmul.f32 %v5685, 3.8918573e-05
        %v5698 = vadd.f32 %v5697, 0.001143296
        %v5699 = vmul.f32 %v5685, %v5698
        %v5700 = vadd.f32 %v5699, 0.014752088
        %v5701 = vmul.f32 %v5685, %v5700
        %v5702 = vadd.f32 %v5701, 0.112945676
        %v5703 = vmul.f32 %v5685, %v5702
        %v5704 = vadd.f32 %v5703, 0.4994258
        %v5705 = vmul.f32 %v5685, %v5704
        %v5706 = vadd.f32 %v5705, 1.0
        %v5707 = vrcp.pop %v5706
        %v5708 = vmul.f32 %v5706, %v5707
        %v5709 = vsub.f32 1.0, %v5708
        %v5710 = vmul.f32 %v5707, %v5709
        %v5711 = vadd.f32 %v5707, %v5710
        %vm5712 = vweird.f32 %v5706
        %vm5713 = vweird.f32 %v5707
        %vm5714 = vmor %vm5712, %vm5713
        %v5715 = vsel %vm5714, %v5707, %v5711
        %v5716 = vand.u32 2147483647, %v5706
        %vm5717 = vcmp.eq.f32.partialorder %v5716, 8.507059e+37
        %v5718 = vand.u32 %v5706, 2147483648
        %v5719 = vor.u32 1.1754944e-38, %v5718
        %v5720 = vsel %vm5717, %v5719, %v5715
        %v5721 = vmul.f32 %v5696, %v5720
        %v5722 = vmin.f32 %v5721, 1.0
        %v5723 = vmax.f32 %v5722, -1.0
        %v5724 = vmul.f32 %v5341, %v5341
        %v5725 = vmin.f32 16.0, %v5724
        %v5726 = vmul.f32 %v5725, 2.1237322e-06
        %v5727 = vadd.f32 %v5726, 0.00028619796
        %v5728 = vmul.f32 %v5725, %v5727
        %v5729 = vadd.f32 %v5728, 0.0036580483
        %v5730 = vmul.f32 %v5725, %v5729
        %v5731 = vadd.f32 %v5730, 0.05243302
        %v5732 = vmul.f32 %v5725, %v5731
        %v5733 = vadd.f32 %v5732, 0.18741608
        %v5734 = vmul.f32 %v5725, %v5733
        %v5735 = vadd.f32 %v5734, 1.1283791
        %v5736 = vmul.f32 %v5341, %v5735
        %v5737 = vmul.f32 %v5725, 3.8918573e-05
        %v5738 = vadd.f32 %v5737, 0.001143296
        %v5739 = vmul.f32 %v5725, %v5738
        %v5740 = vadd.f32 %v5739, 0.014752088
        %v5741 = vmul.f32 %v5725, %v5740
        %v5742 = vadd.f32 %v5741, 0.112945676
        %v5743 = vmul.f32 %v5725, %v5742
        %v5744 = vadd.f32 %v5743, 0.4994258
        %v5745 = vmul.f32 %v5725, %v5744
        %v5746 = vadd.f32 %v5745, 1.0
        %v5747 = vrcp.pop %v5746
        %v5748 = vmul.f32 %v5746, %v5747
        %v5749 = vsub.f32 1.0, %v5748
        %v5750 = vmul.f32 %v5747, %v5749
        %v5751 = vadd.f32 %v5747, %v5750
        %vm5752 = vweird.f32 %v5746
        %vm5753 = vweird.f32 %v5747
        %vm5754 = vmor %vm5752, %vm5753
        %v5755 = vsel %vm5754, %v5747, %v5751
        %v5756 = vand.u32 2147483647, %v5746
        %vm5757 = vcmp.eq.f32.partialorder %v5756, 8.507059e+37
        %v5758 = vand.u32 %v5746, 2147483648
        %v5759 = vor.u32 1.1754944e-38, %v5758
        %v5760 = vsel %vm5757, %v5759, %v5755
        %v5761 = vmul.f32 %v5736, %v5760
        %v5762 = vmin.f32 %v5761, 1.0
        %v5763 = vmax.f32 %v5762, -1.0
        %v5764 = vmul.f32 %v5342, %v5342
        %v5765 = vmin.f32 16.0, %v5764
        %v5766 = vmul.f32 %v5765, 2.1237322e-06
        %v5767 = vadd.f32 %v5766, 0.00028619796
        %v5768 = vmul.f32 %v5765, %v5767
        %v5769 = vadd.f32 %v5768, 0.0036580483
        %v5770 = vmul.f32 %v5765, %v5769
        %v5771 = vadd.f32 %v5770, 0.05243302
        %v5772 = vmul.f32 %v5765, %v5771
        %v5773 = vadd.f32 %v5772, 0.18741608
        %v5774 = vmul.f32 %v5765, %v5773
        %v5775 = vadd.f32 %v5774, 1.1283791
        %v5776 = vmul.f32 %v5342, %v5775
        %v5777 = vmul.f32 %v5765, 3.8918573e-05
        %v5778 = vadd.f32 %v5777, 0.001143296
        %v5779 = vmul.f32 %v5765, %v5778
        %v5780 = vadd.f32 %v5779, 0.014752088
        %v5781 = vmul.f32 %v5765, %v5780
        %v5782 = vadd.f32 %v5781, 0.112945676
        %v5783 = vmul.f32 %v5765, %v5782
        %v5784 = vadd.f32 %v5783, 0.4994258
        %v5785 = vmul.f32 %v5765, %v5784
        %v5786 = vadd.f32 %v5785, 1.0
        %v5787 = vrcp.pop %v5786
        %v5788 = vmul.f32 %v5786, %v5787
        %v5789 = vsub.f32 1.0, %v5788
        %v5790 = vmul.f32 %v5787, %v5789
        %v5791 = vadd.f32 %v5787, %v5790
        %vm5792 = vweird.f32 %v5786
        %vm5793 = vweird.f32 %v5787
        %vm5794 = vmor %vm5792, %vm5793
        %v5795 = vsel %vm5794, %v5787, %v5791
        %v5796 = vand.u32 2147483647, %v5786
        %vm5797 = vcmp.eq.f32.partialorder %v5796, 8.507059e+37
        %v5798 = vand.u32 %v5786, 2147483648
        %v5799 = vor.u32 1.1754944e-38, %v5798
        %v5800 = vsel %vm5797, %v5799, %v5795
        %v5801 = vmul.f32 %v5776, %v5800
        %v5802 = vmin.f32 %v5801, 1.0
        %v5803 = vmax.f32 %v5802, -1.0
        %v5804 = vmul.f32 %v5343, %v5343
        %v5805 = vmin.f32 16.0, %v5804
        %v5806 = vmul.f32 %v5805, 2.1237322e-06
        %v5807 = vadd.f32 %v5806, 0.00028619796
        %v5808 = vmul.f32 %v5805, %v5807
        %v5809 = vadd.f32 %v5808, 0.0036580483
        %v5810 = vmul.f32 %v5805, %v5809
        %v5811 = vadd.f32 %v5810, 0.05243302
        %v5812 = vmul.f32 %v5805, %v5811
        %v5813 = vadd.f32 %v5812, 0.18741608
        %v5814 = vmul.f32 %v5805, %v5813
        %v5815 = vadd.f32 %v5814, 1.1283791
        %v5816 = vmul.f32 %v5343, %v5815
        %v5817 = vmul.f32 %v5805, 3.8918573e-05
        %v5818 = vadd.f32 %v5817, 0.001143296
        %v5819 = vmul.f32 %v5805, %v5818
        %v5820 = vadd.f32 %v5819, 0.014752088
        %v5821 = vmul.f32 %v5805, %v5820
        %v5822 = vadd.f32 %v5821, 0.112945676
        %v5823 = vmul.f32 %v5805, %v5822
        %v5824 = vadd.f32 %v5823, 0.4994258
        %v5825 = vmul.f32 %v5805, %v5824
        %v5826 = vadd.f32 %v5825, 1.0
        %v5827 = vrcp.pop %v5826
        %v5828 = vmul.f32 %v5826, %v5827
        %v5829 = vsub.f32 1.0, %v5828
        %v5830 = vmul.f32 %v5827, %v5829
        %v5831 = vadd.f32 %v5827, %v5830
        %vm5832 = vweird.f32 %v5826
        %vm5833 = vweird.f32 %v5827
        %vm5834 = vmor %vm5832, %vm5833
        %v5835 = vsel %vm5834, %v5827, %v5831
        %v5836 = vand.u32 2147483647, %v5826
        %vm5837 = vcmp.eq.f32.partialorder %v5836, 8.507059e+37
        %v5838 = vand.u32 %v5826, 2147483648
        %v5839 = vor.u32 1.1754944e-38, %v5838
        %v5840 = vsel %vm5837, %v5839, %v5835
        %v5841 = vmul.f32 %v5816, %v5840
        %v5842 = vmin.f32 %v5841, 1.0
        %v5843 = vmax.f32 %v5842, -1.0
        %v5844 = vmul.f32 %v5344, %v5344
        %v5845 = vmin.f32 16.0, %v5844
        %v5846 = vmul.f32 %v5845, 2.1237322e-06
        %v5847 = vadd.f32 %v5846, 0.00028619796
        %v5848 = vmul.f32 %v5845, %v5847
        %v5849 = vadd.f32 %v5848, 0.0036580483
        %v5850 = vmul.f32 %v5845, %v5849
        %v5851 = vadd.f32 %v5850, 0.05243302
        %v5852 = vmul.f32 %v5845, %v5851
        %v5853 = vadd.f32 %v5852, 0.18741608
        %v5854 = vmul.f32 %v5845, %v5853
        %v5855 = vadd.f32 %v5854, 1.1283791
        %v5856 = vmul.f32 %v5344, %v5855
        %v5857 = vmul.f32 %v5845, 3.8918573e-05
        %v5858 = vadd.f32 %v5857, 0.001143296
        %v5859 = vmul.f32 %v5845, %v5858
        %v5860 = vadd.f32 %v5859, 0.014752088
        %v5861 = vmul.f32 %v5845, %v5860
        %v5862 = vadd.f32 %v5861, 0.112945676
        %v5863 = vmul.f32 %v5845, %v5862
        %v5864 = vadd.f32 %v5863, 0.4994258
        %v5865 = vmul.f32 %v5845, %v5864
        %v5866 = vadd.f32 %v5865, 1.0
        %v5867 = vrcp.pop %v5866
        %v5868 = vmul.f32 %v5866, %v5867
        %v5869 = vsub.f32 1.0, %v5868
        %v5870 = vmul.f32 %v5867, %v5869
        %v5871 = vadd.f32 %v5867, %v5870
        %vm5872 = vweird.f32 %v5866
        %vm5873 = vweird.f32 %v5867
        %vm5874 = vmor %vm5872, %vm5873
        %v5875 = vsel %vm5874, %v5867, %v5871
        %v5876 = vand.u32 2147483647, %v5866
        %vm5877 = vcmp.eq.f32.partialorder %v5876, 8.507059e+37
        %v5878 = vand.u32 %v5866, 2147483648
        %v5879 = vor.u32 1.1754944e-38, %v5878
        %v5880 = vsel %vm5877, %v5879, %v5875
        %v5881 = vmul.f32 %v5856, %v5880
        %v5882 = vmin.f32 %v5881, 1.0
        %v5883 = vmax.f32 %v5882, -1.0
        %v5884 = vmul.f32 %v5345, %v5345
        %v5885 = vmin.f32 16.0, %v5884
        %v5886 = vmul.f32 %v5885, 2.1237322e-06
        %v5887 = vadd.f32 %v5886, 0.00028619796
        %v5888 = vmul.f32 %v5885, %v5887
        %v5889 = vadd.f32 %v5888, 0.0036580483
        %v5890 = vmul.f32 %v5885, %v5889
        %v5891 = vadd.f32 %v5890, 0.05243302
        %v5892 = vmul.f32 %v5885, %v5891
        %v5893 = vadd.f32 %v5892, 0.18741608
        %v5894 = vmul.f32 %v5885, %v5893
        %v5895 = vadd.f32 %v5894, 1.1283791
        %v5896 = vmul.f32 %v5345, %v5895
        %v5897 = vmul.f32 %v5885, 3.8918573e-05
        %v5898 = vadd.f32 %v5897, 0.001143296
        %v5899 = vmul.f32 %v5885, %v5898
        %v5900 = vadd.f32 %v5899, 0.014752088
        %v5901 = vmul.f32 %v5885, %v5900
        %v5902 = vadd.f32 %v5901, 0.112945676
        %v5903 = vmul.f32 %v5885, %v5902
        %v5904 = vadd.f32 %v5903, 0.4994258
        %v5905 = vmul.f32 %v5885, %v5904
        %v5906 = vadd.f32 %v5905, 1.0
        %v5907 = vrcp.pop %v5906
        %v5908 = vmul.f32 %v5906, %v5907
        %v5909 = vsub.f32 1.0, %v5908
        %v5910 = vmul.f32 %v5907, %v5909
        %v5911 = vadd.f32 %v5907, %v5910
        %vm5912 = vweird.f32 %v5906
        %vm5913 = vweird.f32 %v5907
        %vm5914 = vmor %vm5912, %vm5913
        %v5915 = vsel %vm5914, %v5907, %v5911
        %v5916 = vand.u32 2147483647, %v5906
        %vm5917 = vcmp.eq.f32.partialorder %v5916, 8.507059e+37
        %v5918 = vand.u32 %v5906, 2147483648
        %v5919 = vor.u32 1.1754944e-38, %v5918
        %v5920 = vsel %vm5917, %v5919, %v5915
        %v5921 = vmul.f32 %v5896, %v5920
        %v5922 = vmin.f32 %v5921, 1.0
        %v5923 = vmax.f32 %v5922, -1.0
        %v5924 = vmul.f32 %v5346, %v5346
        %v5925 = vmin.f32 16.0, %v5924
        %v5926 = vmul.f32 %v5925, 2.1237322e-06
        %v5927 = vadd.f32 %v5926, 0.00028619796
        %v5928 = vmul.f32 %v5925, %v5927
        %v5929 = vadd.f32 %v5928, 0.0036580483
        %v5930 = vmul.f32 %v5925, %v5929
        %v5931 = vadd.f32 %v5930, 0.05243302
        %v5932 = vmul.f32 %v5925, %v5931
        %v5933 = vadd.f32 %v5932, 0.18741608
        %v5934 = vmul.f32 %v5925, %v5933
        %v5935 = vadd.f32 %v5934, 1.1283791
        %v5936 = vmul.f32 %v5346, %v5935
        %v5937 = vmul.f32 %v5925, 3.8918573e-05
        %v5938 = vadd.f32 %v5937, 0.001143296
        %v5939 = vmul.f32 %v5925, %v5938
        %v5940 = vadd.f32 %v5939, 0.014752088
        %v5941 = vmul.f32 %v5925, %v5940
        %v5942 = vadd.f32 %v5941, 0.112945676
        %v5943 = vmul.f32 %v5925, %v5942
        %v5944 = vadd.f32 %v5943, 0.4994258
        %v5945 = vmul.f32 %v5925, %v5944
        %v5946 = vadd.f32 %v5945, 1.0
        %v5947 = vrcp.pop %v5946
        %v5948 = vmul.f32 %v5946, %v5947
        %v5949 = vsub.f32 1.0, %v5948
        %v5950 = vmul.f32 %v5947, %v5949
        %v5951 = vadd.f32 %v5947, %v5950
        %vm5952 = vweird.f32 %v5946
        %vm5953 = vweird.f32 %v5947
        %vm5954 = vmor %vm5952, %vm5953
        %v5955 = vsel %vm5954, %v5947, %v5951
        %v5956 = vand.u32 2147483647, %v5946
        %vm5957 = vcmp.eq.f32.partialorder %v5956, 8.507059e+37
        %v5958 = vand.u32 %v5946, 2147483648
        %v5959 = vor.u32 1.1754944e-38, %v5958
        %v5960 = vsel %vm5957, %v5959, %v5955
        %v5961 = vmul.f32 %v5936, %v5960
        %v5962 = vmin.f32 %v5961, 1.0
        %v5963 = vmax.f32 %v5962, -1.0
        %v5964 = vmul.f32 %v5347, %v5347
        %v5965 = vmin.f32 16.0, %v5964
        %v5966 = vmul.f32 %v5965, 2.1237322e-06
        %v5967 = vadd.f32 %v5966, 0.00028619796
        %v5968 = vmul.f32 %v5965, %v5967
        %v5969 = vadd.f32 %v5968, 0.0036580483
        %v5970 = vmul.f32 %v5965, %v5969
        %v5971 = vadd.f32 %v5970, 0.05243302
        %v5972 = vmul.f32 %v5965, %v5971
        %v5973 = vadd.f32 %v5972, 0.18741608
        %v5974 = vmul.f32 %v5965, %v5973
        %v5975 = vadd.f32 %v5974, 1.1283791
        %v5976 = vmul.f32 %v5347, %v5975
        %v5977 = vmul.f32 %v5965, 3.8918573e-05
        %v5978 = vadd.f32 %v5977, 0.001143296
        %v5979 = vmul.f32 %v5965, %v5978
        %v5980 = vadd.f32 %v5979, 0.014752088
        %v5981 = vmul.f32 %v5965, %v5980
        %v5982 = vadd.f32 %v5981, 0.112945676
        %v5983 = vmul.f32 %v5965, %v5982
        %v5984 = vadd.f32 %v5983, 0.4994258
        %v5985 = vmul.f32 %v5965, %v5984
        %v5986 = vadd.f32 %v5985, 1.0
        %v5987 = vrcp.pop %v5986
        %v5988 = vmul.f32 %v5986, %v5987
        %v5989 = vsub.f32 1.0, %v5988
        %v5990 = vmul.f32 %v5987, %v5989
        %v5991 = vadd.f32 %v5987, %v5990
        %vm5992 = vweird.f32 %v5986
        %vm5993 = vweird.f32 %v5987
        %vm5994 = vmor %vm5992, %vm5993
        %v5995 = vsel %vm5994, %v5987, %v5991
        %v5996 = vand.u32 2147483647, %v5986
        %vm5997 = vcmp.eq.f32.partialorder %v5996, 8.507059e+37
        %v5998 = vand.u32 %v5986, 2147483648
        %v5999 = vor.u32 1.1754944e-38, %v5998
        %v6000 = vsel %vm5997, %v5999, %v5995
        %v6001 = vmul.f32 %v5976, %v6000
        %v6002 = vmin.f32 %v6001, 1.0
        %v6003 = vmax.f32 %v6002, -1.0
        %v6004 = vmul.f32 %v5348, %v5348
        %v6005 = vmin.f32 16.0, %v6004
        %v6006 = vmul.f32 %v6005, 2.1237322e-06
        %v6007 = vadd.f32 %v6006, 0.00028619796
        %v6008 = vmul.f32 %v6005, %v6007
        %v6009 = vadd.f32 %v6008, 0.0036580483
        %v6010 = vmul.f32 %v6005, %v6009
        %v6011 = vadd.f32 %v6010, 0.05243302
        %v6012 = vmul.f32 %v6005, %v6011
        %v6013 = vadd.f32 %v6012, 0.18741608
        %v6014 = vmul.f32 %v6005, %v6013
        %v6015 = vadd.f32 %v6014, 1.1283791
        %v6016 = vmul.f32 %v5348, %v6015
        %v6017 = vmul.f32 %v6005, 3.8918573e-05
        %v6018 = vadd.f32 %v6017, 0.001143296
        %v6019 = vmul.f32 %v6005, %v6018
        %v6020 = vadd.f32 %v6019, 0.014752088
        %v6021 = vmul.f32 %v6005, %v6020
        %v6022 = vadd.f32 %v6021, 0.112945676
        %v6023 = vmul.f32 %v6005, %v6022
        %v6024 = vadd.f32 %v6023, 0.4994258
        %v6025 = vmul.f32 %v6005, %v6024
        %v6026 = vadd.f32 %v6025, 1.0
        %v6027 = vrcp.pop %v6026
        %v6028 = vmul.f32 %v6026, %v6027
        %v6029 = vsub.f32 1.0, %v6028
        %v6030 = vmul.f32 %v6027, %v6029
        %v6031 = vadd.f32 %v6027, %v6030
        %vm6032 = vweird.f32 %v6026
        %vm6033 = vweird.f32 %v6027
        %vm6034 = vmor %vm6032, %vm6033
        %v6035 = vsel %vm6034, %v6027, %v6031
        %v6036 = vand.u32 2147483647, %v6026
        %vm6037 = vcmp.eq.f32.partialorder %v6036, 8.507059e+37
        %v6038 = vand.u32 %v6026, 2147483648
        %v6039 = vor.u32 1.1754944e-38, %v6038
        %v6040 = vsel %vm6037, %v6039, %v6035
        %v6041 = vmul.f32 %v6016, %v6040
        %v6042 = vmin.f32 %v6041, 1.0
        %v6043 = vmax.f32 %v6042, -1.0
        %v6044 = vmul.f32 %v5349, %v5349
        %v6045 = vmin.f32 16.0, %v6044
        %v6046 = vmul.f32 %v6045, 2.1237322e-06
        %v6047 = vadd.f32 %v6046, 0.00028619796
        %v6048 = vmul.f32 %v6045, %v6047
        %v6049 = vadd.f32 %v6048, 0.0036580483
        %v6050 = vmul.f32 %v6045, %v6049
        %v6051 = vadd.f32 %v6050, 0.05243302
        %v6052 = vmul.f32 %v6045, %v6051
        %v6053 = vadd.f32 %v6052, 0.18741608
        %v6054 = vmul.f32 %v6045, %v6053
        %v6055 = vadd.f32 %v6054, 1.1283791
        %v6056 = vmul.f32 %v5349, %v6055
        %v6057 = vmul.f32 %v6045, 3.8918573e-05
        %v6058 = vadd.f32 %v6057, 0.001143296
        %v6059 = vmul.f32 %v6045, %v6058
        %v6060 = vadd.f32 %v6059, 0.014752088
        %v6061 = vmul.f32 %v6045, %v6060
        %v6062 = vadd.f32 %v6061, 0.112945676
        %v6063 = vmul.f32 %v6045, %v6062
        %v6064 = vadd.f32 %v6063, 0.4994258
        %v6065 = vmul.f32 %v6045, %v6064
        %v6066 = vadd.f32 %v6065, 1.0
        %v6067 = vrcp.pop %v6066
        %v6068 = vmul.f32 %v6066, %v6067
        %v6069 = vsub.f32 1.0, %v6068
        %v6070 = vmul.f32 %v6067, %v6069
        %v6071 = vadd.f32 %v6067, %v6070
        %vm6072 = vweird.f32 %v6066
        %vm6073 = vweird.f32 %v6067
        %vm6074 = vmor %vm6072, %vm6073
        %v6075 = vsel %vm6074, %v6067, %v6071
        %v6076 = vand.u32 2147483647, %v6066
        %vm6077 = vcmp.eq.f32.partialorder %v6076, 8.507059e+37
        %v6078 = vand.u32 %v6066, 2147483648
        %v6079 = vor.u32 1.1754944e-38, %v6078
        %v6080 = vsel %vm6077, %v6079, %v6075
        %v6081 = vmul.f32 %v6056, %v6080
        %v6082 = vmin.f32 %v6081, 1.0
        %v6083 = vmax.f32 %v6082, -1.0
        %v6084 = vmul.f32 %v5350, %v5350
        %v6085 = vmin.f32 16.0, %v6084
        %v6086 = vmul.f32 %v6085, 2.1237322e-06
        %v6087 = vadd.f32 %v6086, 0.00028619796
        %v6088 = vmul.f32 %v6085, %v6087
        %v6089 = vadd.f32 %v6088, 0.0036580483
        %v6090 = vmul.f32 %v6085, %v6089
        %v6091 = vadd.f32 %v6090, 0.05243302
        %v6092 = vmul.f32 %v6085, %v6091
        %v6093 = vadd.f32 %v6092, 0.18741608
        %v6094 = vmul.f32 %v6085, %v6093
        %v6095 = vadd.f32 %v6094, 1.1283791
        %v6096 = vmul.f32 %v5350, %v6095
        %v6097 = vmul.f32 %v6085, 3.8918573e-05
        %v6098 = vadd.f32 %v6097, 0.001143296
        %v6099 = vmul.f32 %v6085, %v6098
        %v6100 = vadd.f32 %v6099, 0.014752088
        %v6101 = vmul.f32 %v6085, %v6100
        %v6102 = vadd.f32 %v6101, 0.112945676
        %v6103 = vmul.f32 %v6085, %v6102
        %v6104 = vadd.f32 %v6103, 0.4994258
        %v6105 = vmul.f32 %v6085, %v6104
        %v6106 = vadd.f32 %v6105, 1.0
        %v6107 = vrcp.pop %v6106
        %v6108 = vmul.f32 %v6106, %v6107
        %v6109 = vsub.f32 1.0, %v6108
        %v6110 = vmul.f32 %v6107, %v6109
        %v6111 = vadd.f32 %v6107, %v6110
        %vm6112 = vweird.f32 %v6106
        %vm6113 = vweird.f32 %v6107
        %vm6114 = vmor %vm6112, %vm6113
        %v6115 = vsel %vm6114, %v6107, %v6111
        %v6116 = vand.u32 2147483647, %v6106
        %vm6117 = vcmp.eq.f32.partialorder %v6116, 8.507059e+37
        %v6118 = vand.u32 %v6106, 2147483648
        %v6119 = vor.u32 1.1754944e-38, %v6118
        %v6120 = vsel %vm6117, %v6119, %v6115
        %v6121 = vmul.f32 %v6096, %v6120
        %v6122 = vmin.f32 %v6121, 1.0
        %v6123 = vmax.f32 %v6122, -1.0
        %v6124 = vmul.f32 %v5351, %v5351
        %v6125 = vmin.f32 16.0, %v6124
        %v6126 = vmul.f32 %v6125, 2.1237322e-06
        %v6127 = vadd.f32 %v6126, 0.00028619796
        %v6128 = vmul.f32 %v6125, %v6127
        %v6129 = vadd.f32 %v6128, 0.0036580483
        %v6130 = vmul.f32 %v6125, %v6129
        %v6131 = vadd.f32 %v6130, 0.05243302
        %v6132 = vmul.f32 %v6125, %v6131
        %v6133 = vadd.f32 %v6132, 0.18741608
        %v6134 = vmul.f32 %v6125, %v6133
        %v6135 = vadd.f32 %v6134, 1.1283791
        %v6136 = vmul.f32 %v5351, %v6135
        %v6137 = vmul.f32 %v6125, 3.8918573e-05
        %v6138 = vadd.f32 %v6137, 0.001143296
        %v6139 = vmul.f32 %v6125, %v6138
        %v6140 = vadd.f32 %v6139, 0.014752088
        %v6141 = vmul.f32 %v6125, %v6140
        %v6142 = vadd.f32 %v6141, 0.112945676
        %v6143 = vmul.f32 %v6125, %v6142
        %v6144 = vadd.f32 %v6143, 0.4994258
        %v6145 = vmul.f32 %v6125, %v6144
        %v6146 = vadd.f32 %v6145, 1.0
        %v6147 = vrcp.pop %v6146
        %v6148 = vmul.f32 %v6146, %v6147
        %v6149 = vsub.f32 1.0, %v6148
        %v6150 = vmul.f32 %v6147, %v6149
        %v6151 = vadd.f32 %v6147, %v6150
        %vm6152 = vweird.f32 %v6146
        %vm6153 = vweird.f32 %v6147
        %vm6154 = vmor %vm6152, %vm6153
        %v6155 = vsel %vm6154, %v6147, %v6151
        %v6156 = vand.u32 2147483647, %v6146
        %vm6157 = vcmp.eq.f32.partialorder %v6156, 8.507059e+37
        %v6158 = vand.u32 %v6146, 2147483648
        %v6159 = vor.u32 1.1754944e-38, %v6158
        %v6160 = vsel %vm6157, %v6159, %v6155
        %v6161 = vmul.f32 %v6136, %v6160
        %v6162 = vmin.f32 %v6161, 1.0
        %v6163 = vmax.f32 %v6162, -1.0
        %v6164 = vmul.f32 %v5352, %v5352
        %v6165 = vmin.f32 16.0, %v6164
        %v6166 = vmul.f32 %v6165, 2.1237322e-06
        %v6167 = vadd.f32 %v6166, 0.00028619796
        %v6168 = vmul.f32 %v6165, %v6167
        %v6169 = vadd.f32 %v6168, 0.0036580483
        %v6170 = vmul.f32 %v6165, %v6169
        %v6171 = vadd.f32 %v6170, 0.05243302
        %v6172 = vmul.f32 %v6165, %v6171
        %v6173 = vadd.f32 %v6172, 0.18741608
        %v6174 = vmul.f32 %v6165, %v6173
        %v6175 = vadd.f32 %v6174, 1.1283791
        %v6176 = vmul.f32 %v5352, %v6175
        %v6177 = vmul.f32 %v6165, 3.8918573e-05
        %v6178 = vadd.f32 %v6177, 0.001143296
        %v6179 = vmul.f32 %v6165, %v6178
        %v6180 = vadd.f32 %v6179, 0.014752088
        %v6181 = vmul.f32 %v6165, %v6180
        %v6182 = vadd.f32 %v6181, 0.112945676
        %v6183 = vmul.f32 %v6165, %v6182
        %v6184 = vadd.f32 %v6183, 0.4994258
        %v6185 = vmul.f32 %v6165, %v6184
        %v6186 = vadd.f32 %v6185, 1.0
        %v6187 = vrcp.pop %v6186
        %v6188 = vmul.f32 %v6186, %v6187
        %v6189 = vsub.f32 1.0, %v6188
        %v6190 = vmul.f32 %v6187, %v6189
        %v6191 = vadd.f32 %v6187, %v6190
        %vm6192 = vweird.f32 %v6186
        %vm6193 = vweird.f32 %v6187
        %vm6194 = vmor %vm6192, %vm6193
        %v6195 = vsel %vm6194, %v6187, %v6191
        %v6196 = vand.u32 2147483647, %v6186
        %vm6197 = vcmp.eq.f32.partialorder %v6196, 8.507059e+37
        %v6198 = vand.u32 %v6186, 2147483648
        %v6199 = vor.u32 1.1754944e-38, %v6198
        %v6200 = vsel %vm6197, %v6199, %v6195
        %v6201 = vmul.f32 %v6176, %v6200
        %v6202 = vmin.f32 %v6201, 1.0
        %v6203 = vmax.f32 %v6202, -1.0
        %v6204 = vmul.f32 %v5353, %v5353
        %v6205 = vmin.f32 16.0, %v6204
        %v6206 = vmul.f32 %v6205, 2.1237322e-06
        %v6207 = vadd.f32 %v6206, 0.00028619796
        %v6208 = vmul.f32 %v6205, %v6207
        %v6209 = vadd.f32 %v6208, 0.0036580483
        %v6210 = vmul.f32 %v6205, %v6209
        %v6211 = vadd.f32 %v6210, 0.05243302
        %v6212 = vmul.f32 %v6205, %v6211
        %v6213 = vadd.f32 %v6212, 0.18741608
        %v6214 = vmul.f32 %v6205, %v6213
        %v6215 = vadd.f32 %v6214, 1.1283791
        %v6216 = vmul.f32 %v5353, %v6215
        %v6217 = vmul.f32 %v6205, 3.8918573e-05
        %v6218 = vadd.f32 %v6217, 0.001143296
        %v6219 = vmul.f32 %v6205, %v6218
        %v6220 = vadd.f32 %v6219, 0.014752088
        %v6221 = vmul.f32 %v6205, %v6220
        %v6222 = vadd.f32 %v6221, 0.112945676
        %v6223 = vmul.f32 %v6205, %v6222
        %v6224 = vadd.f32 %v6223, 0.4994258
        %v6225 = vmul.f32 %v6205, %v6224
        %v6226 = vadd.f32 %v6225, 1.0
        %v6227 = vrcp.pop %v6226
        %v6228 = vmul.f32 %v6226, %v6227
        %v6229 = vsub.f32 1.0, %v6228
        %v6230 = vmul.f32 %v6227, %v6229
        %v6231 = vadd.f32 %v6227, %v6230
        %vm6232 = vweird.f32 %v6226
        %vm6233 = vweird.f32 %v6227
        %vm6234 = vmor %vm6232, %vm6233
        %v6235 = vsel %vm6234, %v6227, %v6231
        %v6236 = vand.u32 2147483647, %v6226
        %vm6237 = vcmp.eq.f32.partialorder %v6236, 8.507059e+37
        %v6238 = vand.u32 %v6226, 2147483648
        %v6239 = vor.u32 1.1754944e-38, %v6238
        %v6240 = vsel %vm6237, %v6239, %v6235
        %v6241 = vmul.f32 %v6216, %v6240
        %v6242 = vmin.f32 %v6241, 1.0
        %v6243 = vmax.f32 %v6242, -1.0
        %v6244 = vmul.f32 %v5354, %v5354
        %v6245 = vmin.f32 16.0, %v6244
        %v6246 = vmul.f32 %v6245, 2.1237322e-06
        %v6247 = vadd.f32 %v6246, 0.00028619796
        %v6248 = vmul.f32 %v6245, %v6247
        %v6249 = vadd.f32 %v6248, 0.0036580483
        %v6250 = vmul.f32 %v6245, %v6249
        %v6251 = vadd.f32 %v6250, 0.05243302
        %v6252 = vmul.f32 %v6245, %v6251
        %v6253 = vadd.f32 %v6252, 0.18741608
        %v6254 = vmul.f32 %v6245, %v6253
        %v6255 = vadd.f32 %v6254, 1.1283791
        %v6256 = vmul.f32 %v5354, %v6255
        %v6257 = vmul.f32 %v6245, 3.8918573e-05
        %v6258 = vadd.f32 %v6257, 0.001143296
        %v6259 = vmul.f32 %v6245, %v6258
        %v6260 = vadd.f32 %v6259, 0.014752088
        %v6261 = vmul.f32 %v6245, %v6260
        %v6262 = vadd.f32 %v6261, 0.112945676
        %v6263 = vmul.f32 %v6245, %v6262
        %v6264 = vadd.f32 %v6263, 0.4994258
        %v6265 = vmul.f32 %v6245, %v6264
        %v6266 = vadd.f32 %v6265, 1.0
        %v6267 = vrcp.pop %v6266
        %v6268 = vmul.f32 %v6266, %v6267
        %v6269 = vsub.f32 1.0, %v6268
        %v6270 = vmul.f32 %v6267, %v6269
        %v6271 = vadd.f32 %v6267, %v6270
        %vm6272 = vweird.f32 %v6266
        %vm6273 = vweird.f32 %v6267
        %vm6274 = vmor %vm6272, %vm6273
        %v6275 = vsel %vm6274, %v6267, %v6271
        %v6276 = vand.u32 2147483647, %v6266
        %vm6277 = vcmp.eq.f32.partialorder %v6276, 8.507059e+37
        %v6278 = vand.u32 %v6266, 2147483648
        %v6279 = vor.u32 1.1754944e-38, %v6278
        %v6280 = vsel %vm6277, %v6279, %v6275
        %v6281 = vmul.f32 %v6256, %v6280
        %v6282 = vmin.f32 %v6281, 1.0
        %v6283 = vmax.f32 %v6282, -1.0
        %v6284 = vmul.f32 %v5355, %v5355
        %v6285 = vmin.f32 16.0, %v6284
        %v6286 = vmul.f32 %v6285, 2.1237322e-06
        %v6287 = vadd.f32 %v6286, 0.00028619796
        %v6288 = vmul.f32 %v6285, %v6287
        %v6289 = vadd.f32 %v6288, 0.0036580483
        %v6290 = vmul.f32 %v6285, %v6289
        %v6291 = vadd.f32 %v6290, 0.05243302
        %v6292 = vmul.f32 %v6285, %v6291
        %v6293 = vadd.f32 %v6292, 0.18741608
        %v6294 = vmul.f32 %v6285, %v6293
        %v6295 = vadd.f32 %v6294, 1.1283791
        %v6296 = vmul.f32 %v5355, %v6295
        %v6297 = vmul.f32 %v6285, 3.8918573e-05
        %v6298 = vadd.f32 %v6297, 0.001143296
        %v6299 = vmul.f32 %v6285, %v6298
        %v6300 = vadd.f32 %v6299, 0.014752088
        %v6301 = vmul.f32 %v6285, %v6300
        %v6302 = vadd.f32 %v6301, 0.112945676
        %v6303 = vmul.f32 %v6285, %v6302
        %v6304 = vadd.f32 %v6303, 0.4994258
        %v6305 = vmul.f32 %v6285, %v6304
        %v6306 = vadd.f32 %v6305, 1.0
        %v6307 = vrcp.pop %v6306
        %v6308 = vmul.f32 %v6306, %v6307
        %v6309 = vsub.f32 1.0, %v6308
        %v6310 = vmul.f32 %v6307, %v6309
        %v6311 = vadd.f32 %v6307, %v6310
        %vm6312 = vweird.f32 %v6306
        %vm6313 = vweird.f32 %v6307
        %vm6314 = vmor %vm6312, %vm6313
        %v6315 = vsel %vm6314, %v6307, %v6311
        %v6316 = vand.u32 2147483647, %v6306
        %vm6317 = vcmp.eq.f32.partialorder %v6316, 8.507059e+37
        %v6318 = vand.u32 %v6306, 2147483648
        %v6319 = vor.u32 1.1754944e-38, %v6318
        %v6320 = vsel %vm6317, %v6319, %v6315
        %v6321 = vmul.f32 %v6296, %v6320
        %v6322 = vmin.f32 %v6321, 1.0
        %v6323 = vmax.f32 %v6322, -1.0
        %v6324 = vmul.f32 %v5356, %v5356
        %v6325 = vmin.f32 16.0, %v6324
        %v6326 = vmul.f32 %v6325, 2.1237322e-06
        %v6327 = vadd.f32 %v6326, 0.00028619796
        %v6328 = vmul.f32 %v6325, %v6327
        %v6329 = vadd.f32 %v6328, 0.0036580483
        %v6330 = vmul.f32 %v6325, %v6329
        %v6331 = vadd.f32 %v6330, 0.05243302
        %v6332 = vmul.f32 %v6325, %v6331
        %v6333 = vadd.f32 %v6332, 0.18741608
        %v6334 = vmul.f32 %v6325, %v6333
        %v6335 = vadd.f32 %v6334, 1.1283791
        %v6336 = vmul.f32 %v5356, %v6335
        %v6337 = vmul.f32 %v6325, 3.8918573e-05
        %v6338 = vadd.f32 %v6337, 0.001143296
        %v6339 = vmul.f32 %v6325, %v6338
        %v6340 = vadd.f32 %v6339, 0.014752088
        %v6341 = vmul.f32 %v6325, %v6340
        %v6342 = vadd.f32 %v6341, 0.112945676
        %v6343 = vmul.f32 %v6325, %v6342
        %v6344 = vadd.f32 %v6343, 0.4994258
        %v6345 = vmul.f32 %v6325, %v6344
        %v6346 = vadd.f32 %v6345, 1.0
        %v6347 = vrcp.pop %v6346
        %v6348 = vmul.f32 %v6346, %v6347
        %v6349 = vsub.f32 1.0, %v6348
        %v6350 = vmul.f32 %v6347, %v6349
        %v6351 = vadd.f32 %v6347, %v6350
        %vm6352 = vweird.f32 %v6346
        %vm6353 = vweird.f32 %v6347
        %vm6354 = vmor %vm6352, %vm6353
        %v6355 = vsel %vm6354, %v6347, %v6351
        %v6356 = vand.u32 2147483647, %v6346
        %vm6357 = vcmp.eq.f32.partialorder %v6356, 8.507059e+37
        %v6358 = vand.u32 %v6346, 2147483648
        %v6359 = vor.u32 1.1754944e-38, %v6358
        %v6360 = vsel %vm6357, %v6359, %v6355
        %v6361 = vmul.f32 %v6336, %v6360
        %v6362 = vmin.f32 %v6361, 1.0
        %v6363 = vmax.f32 %v6362, -1.0
        %v6364 = vmul.f32 %v5357, %v5357
        %v6365 = vmin.f32 16.0, %v6364
        %v6366 = vmul.f32 %v6365, 2.1237322e-06
        %v6367 = vadd.f32 %v6366, 0.00028619796
        %v6368 = vmul.f32 %v6365, %v6367
        %v6369 = vadd.f32 %v6368, 0.0036580483
        %v6370 = vmul.f32 %v6365, %v6369
        %v6371 = vadd.f32 %v6370, 0.05243302
        %v6372 = vmul.f32 %v6365, %v6371
        %v6373 = vadd.f32 %v6372, 0.18741608
        %v6374 = vmul.f32 %v6365, %v6373
        %v6375 = vadd.f32 %v6374, 1.1283791
        %v6376 = vmul.f32 %v5357, %v6375
        %v6377 = vmul.f32 %v6365, 3.8918573e-05
        %v6378 = vadd.f32 %v6377, 0.001143296
        %v6379 = vmul.f32 %v6365, %v6378
        %v6380 = vadd.f32 %v6379, 0.014752088
        %v6381 = vmul.f32 %v6365, %v6380
        %v6382 = vadd.f32 %v6381, 0.112945676
        %v6383 = vmul.f32 %v6365, %v6382
        %v6384 = vadd.f32 %v6383, 0.4994258
        %v6385 = vmul.f32 %v6365, %v6384
        %v6386 = vadd.f32 %v6385, 1.0
        %v6387 = vrcp.pop %v6386
        %v6388 = vmul.f32 %v6386, %v6387
        %v6389 = vsub.f32 1.0, %v6388
        %v6390 = vmul.f32 %v6387, %v6389
        %v6391 = vadd.f32 %v6387, %v6390
        %vm6392 = vweird.f32 %v6386
        %vm6393 = vweird.f32 %v6387
        %vm6394 = vmor %vm6392, %vm6393
        %v6395 = vsel %vm6394, %v6387, %v6391
        %v6396 = vand.u32 2147483647, %v6386
        %vm6397 = vcmp.eq.f32.partialorder %v6396, 8.507059e+37
        %v6398 = vand.u32 %v6386, 2147483648
        %v6399 = vor.u32 1.1754944e-38, %v6398
        %v6400 = vsel %vm6397, %v6399, %v6395
        %v6401 = vmul.f32 %v6376, %v6400
        %v6402 = vmin.f32 %v6401, 1.0
        %v6403 = vmax.f32 %v6402, -1.0
        %v6404 = vmul.f32 %v5358, %v5358
        %v6405 = vmin.f32 16.0, %v6404
        %v6406 = vmul.f32 %v6405, 2.1237322e-06
        %v6407 = vadd.f32 %v6406, 0.00028619796
        %v6408 = vmul.f32 %v6405, %v6407
        %v6409 = vadd.f32 %v6408, 0.0036580483
        %v6410 = vmul.f32 %v6405, %v6409
        %v6411 = vadd.f32 %v6410, 0.05243302
        %v6412 = vmul.f32 %v6405, %v6411
        %v6413 = vadd.f32 %v6412, 0.18741608
        %v6414 = vmul.f32 %v6405, %v6413
        %v6415 = vadd.f32 %v6414, 1.1283791
        %v6416 = vmul.f32 %v5358, %v6415
        %v6417 = vmul.f32 %v6405, 3.8918573e-05
        %v6418 = vadd.f32 %v6417, 0.001143296
        %v6419 = vmul.f32 %v6405, %v6418
        %v6420 = vadd.f32 %v6419, 0.014752088
        %v6421 = vmul.f32 %v6405, %v6420
        %v6422 = vadd.f32 %v6421, 0.112945676
        %v6423 = vmul.f32 %v6405, %v6422
        %v6424 = vadd.f32 %v6423, 0.4994258
        %v6425 = vmul.f32 %v6405, %v6424
        %v6426 = vadd.f32 %v6425, 1.0
        %v6427 = vrcp.pop %v6426
        %v6428 = vmul.f32 %v6426, %v6427
        %v6429 = vsub.f32 1.0, %v6428
        %v6430 = vmul.f32 %v6427, %v6429
        %v6431 = vadd.f32 %v6427, %v6430
        %vm6432 = vweird.f32 %v6426
        %vm6433 = vweird.f32 %v6427
        %vm6434 = vmor %vm6432, %vm6433
        %v6435 = vsel %vm6434, %v6427, %v6431
        %v6436 = vand.u32 2147483647, %v6426
        %vm6437 = vcmp.eq.f32.partialorder %v6436, 8.507059e+37
        %v6438 = vand.u32 %v6426, 2147483648
        %v6439 = vor.u32 1.1754944e-38, %v6438
        %v6440 = vsel %vm6437, %v6439, %v6435
        %v6441 = vmul.f32 %v6416, %v6440
        %v6442 = vmin.f32 %v6441, 1.0
        %v6443 = vmax.f32 %v6442, -1.0
        %v6444 = vmul.f32 %v5359, %v5359
        %v6445 = vmin.f32 16.0, %v6444
        %v6446 = vmul.f32 %v6445, 2.1237322e-06
        %v6447 = vadd.f32 %v6446, 0.00028619796
        %v6448 = vmul.f32 %v6445, %v6447
        %v6449 = vadd.f32 %v6448, 0.0036580483
        %v6450 = vmul.f32 %v6445, %v6449
        %v6451 = vadd.f32 %v6450, 0.05243302
        %v6452 = vmul.f32 %v6445, %v6451
        %v6453 = vadd.f32 %v6452, 0.18741608
        %v6454 = vmul.f32 %v6445, %v6453
        %v6455 = vadd.f32 %v6454, 1.1283791
        %v6456 = vmul.f32 %v5359, %v6455
        %v6457 = vmul.f32 %v6445, 3.8918573e-05
        %v6458 = vadd.f32 %v6457, 0.001143296
        %v6459 = vmul.f32 %v6445, %v6458
        %v6460 = vadd.f32 %v6459, 0.014752088
        %v6461 = vmul.f32 %v6445, %v6460
        %v6462 = vadd.f32 %v6461, 0.112945676
        %v6463 = vmul.f32 %v6445, %v6462
        %v6464 = vadd.f32 %v6463, 0.4994258
        %v6465 = vmul.f32 %v6445, %v6464
        %v6466 = vadd.f32 %v6465, 1.0
        %v6467 = vrcp.pop %v6466
        %v6468 = vmul.f32 %v6466, %v6467
        %v6469 = vsub.f32 1.0, %v6468
        %v6470 = vmul.f32 %v6467, %v6469
        %v6471 = vadd.f32 %v6467, %v6470
        %vm6472 = vweird.f32 %v6466
        %vm6473 = vweird.f32 %v6467
        %vm6474 = vmor %vm6472, %vm6473
        %v6475 = vsel %vm6474, %v6467, %v6471
        %v6476 = vand.u32 2147483647, %v6466
        %vm6477 = vcmp.eq.f32.partialorder %v6476, 8.507059e+37
        %v6478 = vand.u32 %v6466, 2147483648
        %v6479 = vor.u32 1.1754944e-38, %v6478
        %v6480 = vsel %vm6477, %v6479, %v6475
        %v6481 = vmul.f32 %v6456, %v6480
        %v6482 = vmin.f32 %v6481, 1.0
        %v6483 = vmax.f32 %v6482, -1.0
        %v6484 = vmul.f32 %v5360, %v5360
        %v6485 = vmin.f32 16.0, %v6484
        %v6486 = vmul.f32 %v6485, 2.1237322e-06
        %v6487 = vadd.f32 %v6486, 0.00028619796
        %v6488 = vmul.f32 %v6485, %v6487
        %v6489 = vadd.f32 %v6488, 0.0036580483
        %v6490 = vmul.f32 %v6485, %v6489
        %v6491 = vadd.f32 %v6490, 0.05243302
        %v6492 = vmul.f32 %v6485, %v6491
        %v6493 = vadd.f32 %v6492, 0.18741608
        %v6494 = vmul.f32 %v6485, %v6493
        %v6495 = vadd.f32 %v6494, 1.1283791
        %v6496 = vmul.f32 %v5360, %v6495
        %v6497 = vmul.f32 %v6485, 3.8918573e-05
        %v6498 = vadd.f32 %v6497, 0.001143296
        %v6499 = vmul.f32 %v6485, %v6498
        %v6500 = vadd.f32 %v6499, 0.014752088
        %v6501 = vmul.f32 %v6485, %v6500
        %v6502 = vadd.f32 %v6501, 0.112945676
        %v6503 = vmul.f32 %v6485, %v6502
        %v6504 = vadd.f32 %v6503, 0.4994258
        %v6505 = vmul.f32 %v6485, %v6504
        %v6506 = vadd.f32 %v6505, 1.0
        %v6507 = vrcp.pop %v6506
        %v6508 = vmul.f32 %v6506, %v6507
        %v6509 = vsub.f32 1.0, %v6508
        %v6510 = vmul.f32 %v6507, %v6509
        %v6511 = vadd.f32 %v6507, %v6510
        %vm6512 = vweird.f32 %v6506
        %vm6513 = vweird.f32 %v6507
        %vm6514 = vmor %vm6512, %vm6513
        %v6515 = vsel %vm6514, %v6507, %v6511
        %v6516 = vand.u32 2147483647, %v6506
        %vm6517 = vcmp.eq.f32.partialorder %v6516, 8.507059e+37
        %v6518 = vand.u32 %v6506, 2147483648
        %v6519 = vor.u32 1.1754944e-38, %v6518
        %v6520 = vsel %vm6517, %v6519, %v6515
        %v6521 = vmul.f32 %v6496, %v6520
        %v6522 = vmin.f32 %v6521, 1.0
        %v6523 = vmax.f32 %v6522, -1.0
        %v6524 = vmul.f32 %v5361, %v5361
        %v6525 = vmin.f32 16.0, %v6524
        %v6526 = vmul.f32 %v6525, 2.1237322e-06
        %v6527 = vadd.f32 %v6526, 0.00028619796
        %v6528 = vmul.f32 %v6525, %v6527
        %v6529 = vadd.f32 %v6528, 0.0036580483
        %v6530 = vmul.f32 %v6525, %v6529
        %v6531 = vadd.f32 %v6530, 0.05243302
        %v6532 = vmul.f32 %v6525, %v6531
        %v6533 = vadd.f32 %v6532, 0.18741608
        %v6534 = vmul.f32 %v6525, %v6533
        %v6535 = vadd.f32 %v6534, 1.1283791
        %v6536 = vmul.f32 %v5361, %v6535
        %v6537 = vmul.f32 %v6525, 3.8918573e-05
        %v6538 = vadd.f32 %v6537, 0.001143296
        %v6539 = vmul.f32 %v6525, %v6538
        %v6540 = vadd.f32 %v6539, 0.014752088
        %v6541 = vmul.f32 %v6525, %v6540
        %v6542 = vadd.f32 %v6541, 0.112945676
        %v6543 = vmul.f32 %v6525, %v6542
        %v6544 = vadd.f32 %v6543, 0.4994258
        %v6545 = vmul.f32 %v6525, %v6544
        %v6546 = vadd.f32 %v6545, 1.0
        %v6547 = vrcp.pop %v6546
        %v6548 = vmul.f32 %v6546, %v6547
        %v6549 = vsub.f32 1.0, %v6548
        %v6550 = vmul.f32 %v6547, %v6549
        %v6551 = vadd.f32 %v6547, %v6550
        %vm6552 = vweird.f32 %v6546
        %vm6553 = vweird.f32 %v6547
        %vm6554 = vmor %vm6552, %vm6553
        %v6555 = vsel %vm6554, %v6547, %v6551
        %v6556 = vand.u32 2147483647, %v6546
        %vm6557 = vcmp.eq.f32.partialorder %v6556, 8.507059e+37
        %v6558 = vand.u32 %v6546, 2147483648
        %v6559 = vor.u32 1.1754944e-38, %v6558
        %v6560 = vsel %vm6557, %v6559, %v6555
        %v6561 = vmul.f32 %v6536, %v6560
        %v6562 = vmin.f32 %v6561, 1.0
        %v6563 = vmax.f32 %v6562, -1.0
        %v6564 = vmul.f32 %v5362, %v5362
        %v6565 = vmin.f32 16.0, %v6564
        %v6566 = vmul.f32 %v6565, 2.1237322e-06
        %v6567 = vadd.f32 %v6566, 0.00028619796
        %v6568 = vmul.f32 %v6565, %v6567
        %v6569 = vadd.f32 %v6568, 0.0036580483
        %v6570 = vmul.f32 %v6565, %v6569
        %v6571 = vadd.f32 %v6570, 0.05243302
        %v6572 = vmul.f32 %v6565, %v6571
        %v6573 = vadd.f32 %v6572, 0.18741608
        %v6574 = vmul.f32 %v6565, %v6573
        %v6575 = vadd.f32 %v6574, 1.1283791
        %v6576 = vmul.f32 %v5362, %v6575
        %v6577 = vmul.f32 %v6565, 3.8918573e-05
        %v6578 = vadd.f32 %v6577, 0.001143296
        %v6579 = vmul.f32 %v6565, %v6578
        %v6580 = vadd.f32 %v6579, 0.014752088
        %v6581 = vmul.f32 %v6565, %v6580
        %v6582 = vadd.f32 %v6581, 0.112945676
        %v6583 = vmul.f32 %v6565, %v6582
        %v6584 = vadd.f32 %v6583, 0.4994258
        %v6585 = vmul.f32 %v6565, %v6584
        %v6586 = vadd.f32 %v6585, 1.0
        %v6587 = vrcp.pop %v6586
        %v6588 = vmul.f32 %v6586, %v6587
        %v6589 = vsub.f32 1.0, %v6588
        %v6590 = vmul.f32 %v6587, %v6589
        %v6591 = vadd.f32 %v6587, %v6590
        %vm6592 = vweird.f32 %v6586
        %vm6593 = vweird.f32 %v6587
        %vm6594 = vmor %vm6592, %vm6593
        %v6595 = vsel %vm6594, %v6587, %v6591
        %v6596 = vand.u32 2147483647, %v6586
        %vm6597 = vcmp.eq.f32.partialorder %v6596, 8.507059e+37
        %v6598 = vand.u32 %v6586, 2147483648
        %v6599 = vor.u32 1.1754944e-38, %v6598
        %v6600 = vsel %vm6597, %v6599, %v6595
        %v6601 = vmul.f32 %v6576, %v6600
        %v6602 = vmin.f32 %v6601, 1.0
        %v6603 = vmax.f32 %v6602, -1.0
        %v6604 = vmul.f32 %v5363, %v5363
        %v6605 = vmin.f32 16.0, %v6604
        %v6606 = vmul.f32 %v6605, 2.1237322e-06
        %v6607 = vadd.f32 %v6606, 0.00028619796
        %v6608 = vmul.f32 %v6605, %v6607
        %v6609 = vadd.f32 %v6608, 0.0036580483
        %v6610 = vmul.f32 %v6605, %v6609
        %v6611 = vadd.f32 %v6610, 0.05243302
        %v6612 = vmul.f32 %v6605, %v6611
        %v6613 = vadd.f32 %v6612, 0.18741608
        %v6614 = vmul.f32 %v6605, %v6613
        %v6615 = vadd.f32 %v6614, 1.1283791
        %v6616 = vmul.f32 %v5363, %v6615
        %v6617 = vmul.f32 %v6605, 3.8918573e-05
        %v6618 = vadd.f32 %v6617, 0.001143296
        %v6619 = vmul.f32 %v6605, %v6618
        %v6620 = vadd.f32 %v6619, 0.014752088
        %v6621 = vmul.f32 %v6605, %v6620
        %v6622 = vadd.f32 %v6621, 0.112945676
        %v6623 = vmul.f32 %v6605, %v6622
        %v6624 = vadd.f32 %v6623, 0.4994258
        %v6625 = vmul.f32 %v6605, %v6624
        %v6626 = vadd.f32 %v6625, 1.0
        %v6627 = vrcp.pop %v6626
        %v6628 = vmul.f32 %v6626, %v6627
        %v6629 = vsub.f32 1.0, %v6628
        %v6630 = vmul.f32 %v6627, %v6629
        %v6631 = vadd.f32 %v6627, %v6630
        %vm6632 = vweird.f32 %v6626
        %vm6633 = vweird.f32 %v6627
        %vm6634 = vmor %vm6632, %vm6633
        %v6635 = vsel %vm6634, %v6627, %v6631
        %v6636 = vand.u32 2147483647, %v6626
        %vm6637 = vcmp.eq.f32.partialorder %v6636, 8.507059e+37
        %v6638 = vand.u32 %v6626, 2147483648
        %v6639 = vor.u32 1.1754944e-38, %v6638
        %v6640 = vsel %vm6637, %v6639, %v6635
        %v6641 = vmul.f32 %v6616, %v6640
        %v6642 = vmin.f32 %v6641, 1.0
        %v6643 = vmax.f32 %v6642, -1.0
        %v6644 = vadd.f32 %v5403, 1.0
        %v6645 = vadd.f32 %v5443, 1.0
        %v6646 = vadd.f32 %v5483, 1.0
        %v6647 = vadd.f32 %v5523, 1.0
        %v6648 = vadd.f32 %v5563, 1.0
        %v6649 = vadd.f32 %v5603, 1.0
        %v6650 = vadd.f32 %v5643, 1.0
        %v6651 = vadd.f32 %v5683, 1.0
        %v6652 = vadd.f32 %v5723, 1.0
        %v6653 = vadd.f32 %v5763, 1.0
        %v6654 = vadd.f32 %v5803, 1.0
        %v6655 = vadd.f32 %v5843, 1.0
        %v6656 = vadd.f32 %v5883, 1.0
        %v6657 = vadd.f32 %v5923, 1.0
        %v6658 = vadd.f32 %v5963, 1.0
        %v6659 = vadd.f32 %v6003, 1.0
        %v6660 = vadd.f32 %v6043, 1.0
        %v6661 = vadd.f32 %v6083, 1.0
        %v6662 = vadd.f32 %v6123, 1.0
        %v6663 = vadd.f32 %v6163, 1.0
        %v6664 = vadd.f32 %v6203, 1.0
        %v6665 = vadd.f32 %v6243, 1.0
        %v6666 = vadd.f32 %v6283, 1.0
        %v6667 = vadd.f32 %v6323, 1.0
        %v6668 = vadd.f32 %v6363, 1.0
        %v6669 = vadd.f32 %v6403, 1.0
        %v6670 = vadd.f32 %v6443, 1.0
        %v6671 = vadd.f32 %v6483, 1.0
        %v6672 = vadd.f32 %v6523, 1.0
        %v6673 = vadd.f32 %v6563, 1.0
        %v6674 = vadd.f32 %v6603, 1.0
        %v6675 = vadd.f32 %v6643, 1.0
        %v6676 = vmul.f32 %v5300, %v6644
        %v6677 = vmul.f32 %v5301, %v6645
        %v6678 = vmul.f32 %v5302, %v6646
        %v6679 = vmul.f32 %v5303, %v6647
        %v6680 = vmul.f32 %v5304, %v6648
        %v6681 = vmul.f32 %v5305, %v6649
        %v6682 = vmul.f32 %v5306, %v6650
        %v6683 = vmul.f32 %v5307, %v6651
        %v6684 = vmul.f32 %v5308, %v6652
        %v6685 = vmul.f32 %v5309, %v6653
        %v6686 = vmul.f32 %v5310, %v6654
        %v6687 = vmul.f32 %v5311, %v6655
        %v6688 = vmul.f32 %v5312, %v6656
        %v6689 = vmul.f32 %v5313, %v6657
        %v6690 = vmul.f32 %v5314, %v6658
        %v6691 = vmul.f32 %v5315, %v6659
        %v6692 = vmul.f32 %v5316, %v6660
        %v6693 = vmul.f32 %v5317, %v6661
        %v6694 = vmul.f32 %v5318, %v6662
        %v6695 = vmul.f32 %v5319, %v6663
        %v6696 = vmul.f32 %v5320, %v6664
        %v6697 = vmul.f32 %v5321, %v6665
        %v6698 = vmul.f32 %v5322, %v6666
        %v6699 = vmul.f32 %v5323, %v6667
        %v6700 = vmul.f32 %v5324, %v6668
        %v6701 = vmul.f32 %v5325, %v6669
        %v6702 = vmul.f32 %v5326, %v6670
        %v6703 = vmul.f32 %v5327, %v6671
        %v6704 = vmul.f32 %v5328, %v6672
        %v6705 = vmul.f32 %v5329, %v6673
        %v6706 = vmul.f32 %v5330, %v6674
        %v6707 = vmul.f32 %v5331, %v6675
        %6708 = vst [vmem:[%s359] sm:$0xff] %v6676
        %6709 = vst [vmem:[%s359 + $0x8] sm:$0xff] %v6677
        %6710 = vst [vmem:[%s359 + $0x10] sm:$0xff] %v6678
        %6711 = vst [vmem:[%s359 + $0x18] sm:$0xff] %v6679
        %6712 = vst [vmem:[%s359 + $0x20] sm:$0xff] %v6680
        %6713 = vst [vmem:[%s359 + $0x28] sm:$0xff] %v6681
        %6714 = vst [vmem:[%s359 + $0x30] sm:$0xff] %v6682
        %6715 = vst [vmem:[%s359 + $0x38] sm:$0xff] %v6683
        %6716 = vst [vmem:[%s359 + $0x40] sm:$0xff] %v6684
        %6717 = vst [vmem:[%s359 + $0x48] sm:$0xff] %v6685
        %6718 = vst [vmem:[%s359 + $0x50] sm:$0xff] %v6686
        %6719 = vst [vmem:[%s359 + $0x58] sm:$0xff] %v6687
        %6720 = vst [vmem:[%s359 + $0x60] sm:$0xff] %v6688
        %6721 = vst [vmem:[%s359 + $0x68] sm:$0xff] %v6689
        %6722 = vst [vmem:[%s359 + $0x70] sm:$0xff] %v6690
        %6723 = vst [vmem:[%s359 + $0x78] sm:$0xff] %v6691
        %6724 = vst [vmem:[%s359 + $0x80] sm:$0xff] %v6692
        %6725 = vst [vmem:[%s359 + $0x88] sm:$0xff] %v6693
        %6726 = vst [vmem:[%s359 + $0x90] sm:$0xff] %v6694
        %6727 = vst [vmem:[%s359 + $0x98] sm:$0xff] %v6695
        %6728 = vst [vmem:[%s359 + $0xa0] sm:$0xff] %v6696
        %6729 = vst [vmem:[%s359 + $0xa8] sm:$0xff] %v6697
        %6730 = vst [vmem:[%s359 + $0xb0] sm:$0xff] %v6698
        %6731 = vst [vmem:[%s359 + $0xb8] sm:$0xff] %v6699
        %6732 = vst [vmem:[%s359 + $0xc0] sm:$0xff] %v6700
        %6733 = vst [vmem:[%s359 + $0xc8] sm:$0xff] %v6701
        %6734 = vst [vmem:[%s359 + $0xd0] sm:$0xff] %v6702
        %6735 = vst [vmem:[%s359 + $0xd8] sm:$0xff] %v6703
        %6736 = vst [vmem:[%s359 + $0xe0] sm:$0xff] %v6704
        %6737 = vst [vmem:[%s359 + $0xe8] sm:$0xff] %v6705
        %6738 = vst [vmem:[%s359 + $0xf0] sm:$0xff] %v6706
        %6739 = vst [vmem:[%s359 + $0xf8] sm:$0xff] %v6707
        %s6740 = sand.u32 %s227, 1
        %s6741 = scalar_lea.sflag [#allocation6], %s6740
        %s6742 = sand.u32 %s227, 1
        %s6743 = smul.addr %s6742, 256
        %s6744 = scalar_lea.vmem [#allocation9], %s6743
        // Predicated region
        $region65: #{tpu_custom_call.1} parent=55 // pred_check
          %p6745 = pneg %p237
        $region66: #{tpu_custom_call.1} parent=55 // pred_check_branch
          %6747 = sbr.rel (%p6745) target = $region68
        $region67: #{tpu_custom_call.1} parent=55 // pred_region
          %6749 = vsyncadd %s6741, 0
          %s6750 = smul.addr %s25, 32
          %s6751 = smul.addr %s6750, 8
          %s6752 = scalar_lea.hbm %s9, %s6751
          %s6753 = sshll.u32 %s6744, 4
          %s6754 = int_to_ptr.vmem [resolvable:$true] %s6753
          %s6755 = sshll.u32 %s6752, 4
          %s6756 = int_to_ptr.hbm [resolvable:$true] %s6755
          %6761 = dma.vmem_to_hbm [thread:$0]  %s6754, 4096, %s6756, %s6741, 128, 128, 8
        $region68: #{tpu_custom_call.1} parent=55 // pred_fallthru
          _
      $region56: #{tpu_custom_call.1} parent=5 // pred_fallthru
        _
      %p6762 = scmp.le.s32.totalorder 2, %s20
      // Predicated region
      $region69: #{tpu_custom_call.1} parent=5 // pred_check
        %p6763 = pneg %p6762
      $region70: #{tpu_custom_call.1} parent=5 // pred_check_branch
        %6765 = sbr.rel (%p6763) target = $region72
      $region71: #{tpu_custom_call.1} parent=5 // pred_region
        %s6766 = ssub.s32 %s20, 2
        // Predicated region
        $region73: #{tpu_custom_call.1} parent=71 // pred_check
          %p6767 = pneg %p243
        $region74: #{tpu_custom_call.1} parent=71 // pred_check_branch
          %6769 = sbr.rel (%p6767) target = $region76
        $region75: #{tpu_custom_call.1} parent=71 // pred_region
          %s6770 = sand.u32 %s228, 1
          %s6771 = scalar_lea.sflag [#allocation6], %s6770
          %s6772 = sand.u32 %s228, 1
          %s6773 = smul.addr %s6772, 256
          %s6774 = scalar_lea.vmem [#allocation9], %s6773
          %6776 = dma.done %s6771, 4096
        $region76: #{tpu_custom_call.1} parent=71 // pred_fallthru
          _
      $region72: #{tpu_custom_call.1} parent=5 // pred_fallthru
        _
    $region6: #{tpu_custom_call.1} parent=1 // loop_footer
      %s24 = sadd.s32 1, %s20
    $region7: #{tpu_custom_call.1} parent=1 // loop_footer_branch
      %19 = sbr.rel target = $region3
    $region8: #{tpu_custom_call.1} parent=1 // loop_exit
      _
    %6777 = vsyncpa [#allocation5], 1
    %s6778 = scalar_lea.sflag [#allocation5], 1
    %6779 = vsyncpa %s6778, 1
    %6780 = vsyncpa [#allocation8], 1
    %6781 = vsyncpa [#allocation6], 1
    %s6782 = scalar_lea.sflag [#allocation6], 1
    %6783 = vsyncpa %s6782, 1

</llo_original>
